<compile_context>
chip_gen: v6e
topology: v6e:2x2x1
jax: 0.10.0
libtpu: 0.0.40
codegen_flags: <defaults>
</compile_context>

<pallas_src>
import functools

import jax
import jax.numpy as jnp
from jax import lax
from jax.experimental import pallas as pl

D_MODEL = 32
HEADS = 4
D_FF = 2048          # FeedForward default d_ff
EPS = 1e-6           # Norm default eps

# Row layout of the packed "vecs" slab (each row is a length-D vector):
#   0..7   : (alpha, bias) for norm_1 .. norm_4
#   8..11  : (bq, bk, bv, bo) for attn_1
#   12..15 : (bq, bk, bv, bo) for attn_2
#   16..19 : (bq, bk, bv, bo) for attn_3
#   20     : ff b2
_ROW_B2 = 20


# --------------------------------------------------------------------------
# Fused decoder-layer kernel (single grid step; whole batch in VMEM)
# --------------------------------------------------------------------------
def _decoder_layer_kernel(x_ref, e_ref, e2_ref, mask_ref, vecs_ref, attnw_ref,
                          ff1_ref, w2t_ref, o_ref, *, heads):
    B, S, D = x_ref.shape
    Se = e_ref.shape[1]
    Se2 = e2_ref.shape[1]
    H = heads
    dk = D // H
    scale = 1.0 / float(dk) ** 0.5
    f32 = jnp.float32

    vecs = vecs_ref[...].astype(f32)                      # (21, D) packed slab

    def vrow(i):                                          # (1, D) row of the slab
        return vecs[i:i + 1, :]

    def norm(xf, row):
        # alpha * (x - mean) / (std + eps) + bias, std unbiased (n-1) like torch.std
        alpha, bias = vrow(row), vrow(row + 1)
        mean = jnp.mean(xf, axis=-1, keepdims=True)
        xc = xf - mean
        var = jnp.sum(xc * xc, axis=-1, keepdims=True) * (1.0 / (D - 1))
        return alpha * (xc / (jnp.sqrt(var) + EPS)) + bias    # exact divide

    def softmax(s):
        m = jnp.max(s, axis=-1, keepdims=True)
        e = jnp.exp(s - m)
        return e * pl.reciprocal(jnp.sum(e, axis=-1, keepdims=True), approx=True)

    def heads_of(t, n):
        # (B*n, D) -> (B*H, n, dk); head h = feature cols [h*dk:(h+1)*dk]
        # (same split as torch .view(bs,-1,h,dk).transpose(1,2))
        return jnp.stack([t[b * n:(b + 1) * n, h * dk:(h + 1) * dk]
                          for b in range(B) for h in range(H)], axis=0)

    def mha(xq2d, xkv2d, nk, widx, brow, mask_add, *, self_attn):
        W = attnw_ref[widx].astype(f32)                   # (D, 4D) = [Wq|Wk|Wv|Wo]
        bq, bk, bv, bo = (vrow(brow + i) for i in range(4))

        if self_attn:
            # one lane-dense (B*S, D) @ (D, 3D) matmul for q,k,v
            qkv = jnp.dot(xq2d, W[:, :3 * D], preferred_element_type=f32)
            q = qkv[:, 0 * D:1 * D] + bq
            k = qkv[:, 1 * D:2 * D] + bk
            v = qkv[:, 2 * D:3 * D] + bv
        else:
            q = jnp.dot(xq2d, W[:, :D], preferred_element_type=f32) + bq
            kv = jnp.dot(xkv2d, W[:, D:3 * D], preferred_element_type=f32)
            k = kv[:, :D] + bk
            v = kv[:, D:] + bv

        qh = heads_of(q, S)                               # (B*H, S,  dk)
        kh = heads_of(k, nk)                              # (B*H, nk, dk)
        vh = heads_of(v, nk)

        s = jnp.einsum("nqd,nkd->nqk", qh, kh, preferred_element_type=f32) * scale
        if mask_add is not None:                          # additive 0 / -1e9 mask
            s = s + mask_add
        p = softmax(s)
        ctx = jnp.einsum("nqk,nkd->nqd", p, vh, preferred_element_type=f32)

        # reassemble heads -> (B*S, D): lane-concat heads, sublane-concat batches
        ctx2d = jnp.concatenate(
            [jnp.concatenate([ctx[b * H + h] for h in range(H)], axis=1)
             for b in range(B)], axis=0)
        # single full-width output projection
        return jnp.dot(ctx2d, W[:, 3 * D:], preferred_element_type=f32) + bo

    # Fold batch into sublanes for all dense ops.
    x = x_ref[...].astype(f32).reshape(B * S, D)
    e = e_ref[...].astype(f32).reshape(B * Se, D)
    e2 = e2_ref[...].astype(f32).reshape(B * Se2, D)
    mask_add = mask_ref[...]                              # (B*H, S, S)

    # 1) masked self-attention (dropout = identity in eval)
    x2 = norm(x, 0)
    x = x + mha(x2, x2, S, 0, 8, mask_add, self_attn=True)
    # 2) cross-attention over e_outputs (no mask in the PyTorch module)
    x2 = norm(x, 2)
    x = x + mha(x2, e, Se, 1, 12, None, self_attn=False)
    # 3) cross-attention over e2_outputs (no mask)
    x2 = norm(x, 4)
    x = x + mha(x2, e2, Se2, 2, 16, None, self_attn=False)
    # 4) feed-forward: relu(x @ W1 + b1) @ W2 + b2   (bf16 weights, f32 accumulate)
    x2 = norm(x, 6)
    h = jnp.dot(x2.astype(jnp.bfloat16), ff1_ref[0:D, :],
                preferred_element_type=f32) + ff1_ref[D:D + 1, :].astype(f32)
    h = jnp.maximum(h, 0.0)
    # W2 stored transposed (D, d_ff): contract over d_ff (lane-dense VMEM tile)
    y = lax.dot_general(h.astype(jnp.bfloat16), w2t_ref[...],
                        dimension_numbers=(((1,), (1,)), ((), ())),
                        preferred_element_type=f32)
    x = x + y + vrow(_ROW_B2)

    # TODO(synk): output stays (B,S,D) (32-lane store); a lane-dense (B,S*D) slab
    # would need an in-kernel relayout not worth it at this size.
    o_ref[...] = x.reshape(B, S, D).astype(o_ref.dtype)


def decoder_layer_forward(params, x, e_outputs, e2_outputs, trg_mask, heads=HEADS):
    B, S, D = x.shape
    assert D % heads == 0

    # ---- pack the tiny parameters into a few lane-dense slabs (wrapper-side) ----
    rows = []
    for k in ("norm_1", "norm_2", "norm_3", "norm_4"):
        a, b = params[k]
        rows += [a.reshape(D), b.reshape(D)]
    for k in ("attn_1", "attn_2", "attn_3"):
        _, bq, _, bk, _, bv, _, bo = params[k]
        rows += [bq.reshape(D), bk.reshape(D), bv.reshape(D), bo.reshape(D)]
    w1, b1, w2, b2 = params["ff"]
    rows.append(b2.reshape(D))
    vecs = jnp.stack(rows, axis=0).astype(jnp.float32)                    # (21, D)

    # fused attention weights: [Wq | Wk | Wv | Wo] -> (3, D, 4D) = (3, 32, 128)
    attnw = jnp.stack(
        [jnp.concatenate([params[k][0], params[k][2], params[k][4], params[k][6]],
                         axis=1)
         for k in ("attn_1", "attn_2", "attn_3")], axis=0).astype(jnp.float32)

    # FF weights: bf16 (dominant HBM bytes), W2 stored transposed (lane-dense)
    ff1 = jnp.concatenate([w1, b1.reshape(1, -1)], axis=0).astype(jnp.bfloat16)  # (D+1, d_ff)
    w2t = jnp.transpose(w2).astype(jnp.bfloat16)                                  # (D, d_ff)

    # additive mask, pre-expanded over heads: 0 where attend, -1e9 where masked
    mask_add = jnp.where(trg_mask == 0, jnp.float32(-1e9), jnp.float32(0.0))
    mask_add = jnp.repeat(mask_add, heads, axis=0)                                # (B*H, S, S)

    kern = functools.partial(_decoder_layer_kernel, heads=heads)
    # grid=() : single kernel invocation; all operands (~0.4 MiB) live in VMEM
    # for the whole layer, batch folded into sublanes / the head batch axis.
    return pl.pallas_call(
        kern,
        out_shape=jax.ShapeDtypeStruct((B, S, D), x.dtype),
    )(x, e_outputs, e2_outputs, mask_add, vecs, attnw, ff1, w2t)


# --------------------------------------------------------------------------
# Plain-JAX reference (same math, full f32) for a correctness check.
# --------------------------------------------------------------------------
def _norm_ref(x, alpha, bias):
    mean = x.mean(-1, keepdims=True)
    xc = x - mean
    var = (xc * xc).sum(-1, keepdims=True) / (x.shape[-1] - 1)
    return alpha[0] * xc / (jnp.sqrt(var) + EPS) + bias[0]


def _mha_ref(xq, xkv, mask, p, heads):
    wq, bq, wk, bk, wv, bv, wo, bo = p
    B, Sq, D = xq.shape
    Sk = xkv.shape[1]
    dk = D // heads
    q = xq @ wq + bq[0]
    k = xkv @ wk + bk[0]
    v = xkv @ wv + bv[0]
    qh = q.reshape(B, Sq, heads, dk).transpose(0, 2, 1, 3)
    kh = k.reshape(B, Sk, heads, dk).transpose(0, 2, 1, 3)
    vh = v.reshape(B, Sk, heads, dk).transpose(0, 2, 1, 3)
    s = jnp.einsum("bhqd,bhkd->bhqk", qh, kh) / jnp.sqrt(jnp.float32(dk))
    if mask is not None:
        s = jnp.where(mask[:, None, :, :] == 0, -1e9, s)
    a = jax.nn.softmax(s, axis=-1)
    ctx = jnp.einsum("bhqk,bhkd->bhqd", a, vh)
    concat = ctx.transpose(0, 2, 1, 3).reshape(B, Sq, D)
    return concat @ wo + bo[0]


def _ff_ref(x, p):
    w1, b1, w2, b2 = p
    return jnp.maximum(x @ w1 + b1[0], 0.0) @ w2 + b2[0]


def decoder_layer_ref(params, x, e_outputs, e2_outputs, trg_mask, heads=HEADS):
    x2 = _norm_ref(x, *params["norm_1"])
    x = x + _mha_ref(x2, x2, trg_mask, params["attn_1"], heads)
    x2 = _norm_ref(x, *params["norm_2"])
    x = x + _mha_ref(x2, e_outputs, None, params["attn_2"], heads)
    x2 = _norm_ref(x, *params["norm_3"])
    x = x + _mha_ref(x2, e2_outputs, None, params["attn_3"], heads)
    x2 = _norm_ref(x, *params["norm_4"])
    x = x + _ff_ref(x2, params["ff"])
    return x


# --------------------------------------------------------------------------
# Deterministic parameter init (synthetic; shapes follow nn.Linear / Norm).
# --------------------------------------------------------------------------
def init_params(key, d_model=D_MODEL, d_ff=D_FF):
    keys = jax.random.split(key, 9)

    def norm_p(k):
        ka, kb = jax.random.split(k)
        return (1.0 + 0.1 * jax.random.normal(ka, (1, d_model), jnp.float32),
                0.1 * jax.random.normal(kb, (1, d_model), jnp.float32))

    def linear(k, d_in, d_out, scale=0.1):
        kw, kb = jax.random.split(k)
        return (scale * jax.random.normal(kw, (d_in, d_out), jnp.float32),
                scale * jax.random.normal(kb, (1, d_out), jnp.float32))

    def attn_p(k):
        kq, kk, kv, ko = jax.random.split(k, 4)
        wq, bq = linear(kq, d_model, d_model)
        wk, bk = linear(kk, d_model, d_model)
        wv, bv = linear(kv, d_model, d_model)
        wo, bo = linear(ko, d_model, d_model)
        return (wq, bq, wk, bk, wv, bv, wo, bo)

    return {
        "norm_1": norm_p(keys[0]), "norm_2": norm_p(keys[1]),
        "norm_3": norm_p(keys[2]), "norm_4": norm_p(keys[3]),
        "attn_1": attn_p(keys[4]), "attn_2": attn_p(keys[5]), "attn_3": attn_p(keys[6]),
        "ff": linear(keys[7], d_model, d_ff, scale=0.05)
              + linear(keys[8], d_ff, d_model, scale=0.05),
    }


if __name__ == "__main__":
    B, S, S_ENC = 2, 8, 8
    key = jax.random.PRNGKey(0)
    kp, kx, ke, ke2 = jax.random.split(key, 4)

    params = init_params(kp)
    x = jax.random.normal(kx, (B, S, D_MODEL), jnp.float32)
    e_outputs = jax.random.normal(ke, (B, S_ENC, D_MODEL), jnp.float32)
    e2_outputs = jax.random.normal(ke2, (B, S_ENC, D_MODEL), jnp.float32)
    # causal target mask (B, S, S), 1 = attend, 0 = masked
    trg_mask = jnp.tile(jnp.tril(jnp.ones((S, S), jnp.float32))[None], (B, 1, 1))

    out = jax.block_until_ready(
        decoder_layer_forward(params, x, e_outputs, e2_outputs, trg_mask))
    ref = jax.block_until_ready(
        decoder_layer_ref(params, x, e_outputs, e2_outputs, trg_mask))

    assert out.shape == (B, S, D_MODEL)
    assert jnp.allclose(out, ref, atol=2e-2, rtol=2e-2), "mismatch vs reference"
    print("KERNEL_OK")
</pallas_src>

<mosaic_0001>
module attributes {stable_mosaic.version = 11 : i64} {
  func.func @_decoder_layer_kernel(%arg0: memref<2x8x32xf32, #tpu.memory_space<vmem>>, %arg1: memref<2x8x32xf32, #tpu.memory_space<vmem>>, %arg2: memref<2x8x32xf32, #tpu.memory_space<vmem>>, %arg3: memref<8x8x8xf32, #tpu.memory_space<vmem>>, %arg4: memref<21x32xf32, #tpu.memory_space<vmem>>, %arg5: memref<3x32x128xf32, #tpu.memory_space<vmem>>, %arg6: memref<33x2048xbf16, #tpu.memory_space<vmem>>, %arg7: memref<32x2048xbf16, #tpu.memory_space<vmem>>, %arg8: memref<2x8x32xf32, #tpu.memory_space<vmem>>) attributes {dimension_semantics = [], scalar_prefetch = 0 : i64, scratch_operands = 0 : i64, tpu.core_type = #tpu.core_type<tc>} {
    %c0 = arith.constant 0 : index
    %c0_0 = arith.constant 0 : index
    %0 = vector.load %arg4[%c0, %c0_0] : memref<21x32xf32, #tpu.memory_space<vmem>>, vector<21x32xf32>
    %c0_1 = arith.constant 0 : index
    %c0_2 = arith.constant 0 : index
    %c0_3 = arith.constant 0 : index
    %1 = vector.load %arg0[%c0_1, %c0_2, %c0_3] : memref<2x8x32xf32, #tpu.memory_space<vmem>>, vector<2x8x32xf32>
    %2 = vector.shape_cast %1 : vector<2x8x32xf32> to vector<16x32xf32>
    %c0_4 = arith.constant 0 : index
    %c0_5 = arith.constant 0 : index
    %c0_6 = arith.constant 0 : index
    %3 = vector.load %arg1[%c0_4, %c0_5, %c0_6] : memref<2x8x32xf32, #tpu.memory_space<vmem>>, vector<2x8x32xf32>
    %4 = vector.shape_cast %3 : vector<2x8x32xf32> to vector<16x32xf32>
    %c0_7 = arith.constant 0 : index
    %c0_8 = arith.constant 0 : index
    %c0_9 = arith.constant 0 : index
    %5 = vector.load %arg2[%c0_7, %c0_8, %c0_9] : memref<2x8x32xf32, #tpu.memory_space<vmem>>, vector<2x8x32xf32>
    %6 = vector.shape_cast %5 : vector<2x8x32xf32> to vector<16x32xf32>
    %c0_10 = arith.constant 0 : index
    %c0_11 = arith.constant 0 : index
    %c0_12 = arith.constant 0 : index
    %7 = vector.load %arg3[%c0_10, %c0_11, %c0_12] : memref<8x8x8xf32, #tpu.memory_space<vmem>>, vector<8x8x8xf32>
    %8 = vector.extract_strided_slice %0 {offsets = [0, 0], sizes = [1, 32], strides = [1, 1]} : vector<21x32xf32> to vector<1x32xf32>
    %9 = vector.extract_strided_slice %0 {offsets = [1, 0], sizes = [1, 32], strides = [1, 1]} : vector<21x32xf32> to vector<1x32xf32>
    %cst = arith.constant dense<0.000000e+00> : vector<16xf32>
    %10 = vector.multi_reduction <add>, %2, %cst [1] : vector<16x32xf32> to vector<16xf32>
    %11 = vector.shape_cast %10 : vector<16xf32> to vector<16x1xf32>
    %cst_13 = arith.constant 3.200000e+01 : f32
    %12 = vector.broadcast %cst_13 : f32 to vector<16x1xf32>
    %13 = arith.divf %11, %12 : vector<16x1xf32>
    %14 = vector.broadcast %13 : vector<16x1xf32> to vector<16x32xf32>
    %15 = arith.subf %2, %14 : vector<16x32xf32>
    %16 = arith.mulf %15, %15 : vector<16x32xf32>
    %cst_14 = arith.constant dense<0.000000e+00> : vector<16xf32>
    %17 = vector.multi_reduction <add>, %16, %cst_14 [1] : vector<16x32xf32> to vector<16xf32>
    %18 = vector.shape_cast %17 : vector<16xf32> to vector<16x1xf32>
    %cst_15 = arith.constant 0.0322580636 : f32
    %19 = vector.broadcast %cst_15 : f32 to vector<16x1xf32>
    %20 = arith.mulf %18, %19 : vector<16x1xf32>
    %21 = math.sqrt %20 : vector<16x1xf32>
    %cst_16 = arith.constant 9.99999997E-7 : f32
    %22 = vector.broadcast %cst_16 : f32 to vector<16x1xf32>
    %23 = arith.addf %21, %22 : vector<16x1xf32>
    %24 = vector.broadcast %23 : vector<16x1xf32> to vector<16x32xf32>
    %25 = arith.divf %15, %24 : vector<16x32xf32>
    %26 = vector.broadcast %8 : vector<1x32xf32> to vector<16x32xf32>
    %27 = arith.mulf %26, %25 : vector<16x32xf32>
    %28 = vector.broadcast %9 : vector<1x32xf32> to vector<16x32xf32>
    %29 = arith.addf %27, %28 : vector<16x32xf32>
    %c0_17 = arith.constant 0 : index
    %c0_18 = arith.constant 0 : index
    %c0_19 = arith.constant 0 : index
    %30 = vector.load %arg5[%c0_17, %c0_18, %c0_19] : memref<3x32x128xf32, #tpu.memory_space<vmem>>, vector<1x32x128xf32>
    %31 = vector.shape_cast %30 : vector<1x32x128xf32> to vector<32x128xf32>
    %32 = vector.extract_strided_slice %0 {offsets = [8, 0], sizes = [1, 32], strides = [1, 1]} : vector<21x32xf32> to vector<1x32xf32>
    %33 = vector.extract_strided_slice %0 {offsets = [9, 0], sizes = [1, 32], strides = [1, 1]} : vector<21x32xf32> to vector<1x32xf32>
    %34 = vector.extract_strided_slice %0 {offsets = [10, 0], sizes = [1, 32], strides = [1, 1]} : vector<21x32xf32> to vector<1x32xf32>
    %35 = vector.extract_strided_slice %0 {offsets = [11, 0], sizes = [1, 32], strides = [1, 1]} : vector<21x32xf32> to vector<1x32xf32>
    %36 = vector.extract_strided_slice %31 {offsets = [0, 0], sizes = [32, 96], strides = [1, 1]} : vector<32x128xf32> to vector<32x96xf32>
    %cst_20 = arith.constant dense<0.000000e+00> : vector<16x96xf32>
    %37 = tpu.matmul %29, %36, %cst_20 {dimension_numbers = #tpu.dot_dimension_numbers<[1], [0], [0], [1], [0, 0, 1, 1], [], []>} : vector<16x32xf32>, vector<32x96xf32>, vector<16x96xf32> -> vector<16x96xf32>
    %38 = vector.extract_strided_slice %37 {offsets = [0, 0], sizes = [16, 32], strides = [1, 1]} : vector<16x96xf32> to vector<16x32xf32>
    %39 = vector.broadcast %32 : vector<1x32xf32> to vector<16x32xf32>
    %40 = arith.addf %38, %39 : vector<16x32xf32>
    %41 = vector.extract_strided_slice %37 {offsets = [0, 32], sizes = [16, 32], strides = [1, 1]} : vector<16x96xf32> to vector<16x32xf32>
    %42 = vector.broadcast %33 : vector<1x32xf32> to vector<16x32xf32>
    %43 = arith.addf %41, %42 : vector<16x32xf32>
    %44 = vector.extract_strided_slice %37 {offsets = [0, 64], sizes = [16, 32], strides = [1, 1]} : vector<16x96xf32> to vector<16x32xf32>
    %45 = vector.broadcast %34 : vector<1x32xf32> to vector<16x32xf32>
    %46 = arith.addf %44, %45 : vector<16x32xf32>
    %47 = vector.extract_strided_slice %40 {offsets = [0, 0], sizes = [8, 8], strides = [1, 1]} : vector<16x32xf32> to vector<8x8xf32>
    %48 = vector.extract_strided_slice %40 {offsets = [0, 8], sizes = [8, 8], strides = [1, 1]} : vector<16x32xf32> to vector<8x8xf32>
    %49 = vector.extract_strided_slice %40 {offsets = [0, 16], sizes = [8, 8], strides = [1, 1]} : vector<16x32xf32> to vector<8x8xf32>
    %50 = vector.extract_strided_slice %40 {offsets = [0, 24], sizes = [8, 8], strides = [1, 1]} : vector<16x32xf32> to vector<8x8xf32>
    %51 = vector.extract_strided_slice %40 {offsets = [8, 0], sizes = [8, 8], strides = [1, 1]} : vector<16x32xf32> to vector<8x8xf32>
    %52 = vector.extract_strided_slice %40 {offsets = [8, 8], sizes = [8, 8], strides = [1, 1]} : vector<16x32xf32> to vector<8x8xf32>
    %53 = vector.extract_strided_slice %40 {offsets = [8, 16], sizes = [8, 8], strides = [1, 1]} : vector<16x32xf32> to vector<8x8xf32>
    %54 = vector.extract_strided_slice %40 {offsets = [8, 24], sizes = [8, 8], strides = [1, 1]} : vector<16x32xf32> to vector<8x8xf32>
    %55 = vector.shape_cast %47 : vector<8x8xf32> to vector<1x8x8xf32>
    %56 = vector.shape_cast %48 : vector<8x8xf32> to vector<1x8x8xf32>
    %57 = vector.shape_cast %49 : vector<8x8xf32> to vector<1x8x8xf32>
    %58 = vector.shape_cast %50 : vector<8x8xf32> to vector<1x8x8xf32>
    %59 = vector.shape_cast %51 : vector<8x8xf32> to vector<1x8x8xf32>
    %60 = vector.shape_cast %52 : vector<8x8xf32> to vector<1x8x8xf32>
    %61 = vector.shape_cast %53 : vector<8x8xf32> to vector<1x8x8xf32>
    %62 = vector.shape_cast %54 : vector<8x8xf32> to vector<1x8x8xf32>
    %63 = tpu.concatenate %55, %56, %57, %58, %59, %60, %61, %62 in 0 : vector<1x8x8xf32>, vector<1x8x8xf32>, vector<1x8x8xf32>, vector<1x8x8xf32>, vector<1x8x8xf32>, vector<1x8x8xf32>, vector<1x8x8xf32>, vector<1x8x8xf32> -> vector<8x8x8xf32>
    %64 = vector.extract_strided_slice %43 {offsets = [0, 0], sizes = [8, 8], strides = [1, 1]} : vector<16x32xf32> to vector<8x8xf32>
    %65 = vector.extract_strided_slice %43 {offsets = [0, 8], sizes = [8, 8], strides = [1, 1]} : vector<16x32xf32> to vector<8x8xf32>
    %66 = vector.extract_strided_slice %43 {offsets = [0, 16], sizes = [8, 8], strides = [1, 1]} : vector<16x32xf32> to vector<8x8xf32>
    %67 = vector.extract_strided_slice %43 {offsets = [0, 24], sizes = [8, 8], strides = [1, 1]} : vector<16x32xf32> to vector<8x8xf32>
    %68 = vector.extract_strided_slice %43 {offsets = [8, 0], sizes = [8, 8], strides = [1, 1]} : vector<16x32xf32> to vector<8x8xf32>
    %69 = vector.extract_strided_slice %43 {offsets = [8, 8], sizes = [8, 8], strides = [1, 1]} : vector<16x32xf32> to vector<8x8xf32>
    %70 = vector.extract_strided_slice %43 {offsets = [8, 16], sizes = [8, 8], strides = [1, 1]} : vector<16x32xf32> to vector<8x8xf32>
    %71 = vector.extract_strided_slice %43 {offsets = [8, 24], sizes = [8, 8], strides = [1, 1]} : vector<16x32xf32> to vector<8x8xf32>
    %72 = vector.shape_cast %64 : vector<8x8xf32> to vector<1x8x8xf32>
    %73 = vector.shape_cast %65 : vector<8x8xf32> to vector<1x8x8xf32>
    %74 = vector.shape_cast %66 : vector<8x8xf32> to vector<1x8x8xf32>
    %75 = vector.shape_cast %67 : vector<8x8xf32> to vector<1x8x8xf32>
    %76 = vector.shape_cast %68 : vector<8x8xf32> to vector<1x8x8xf32>
    %77 = vector.shape_cast %69 : vector<8x8xf32> to vector<1x8x8xf32>
    %78 = vector.shape_cast %70 : vector<8x8xf32> to vector<1x8x8xf32>
    %79 = vector.shape_cast %71 : vector<8x8xf32> to vector<1x8x8xf32>
    %80 = tpu.concatenate %72, %73, %74, %75, %76, %77, %78, %79 in 0 : vector<1x8x8xf32>, vector<1x8x8xf32>, vector<1x8x8xf32>, vector<1x8x8xf32>, vector<1x8x8xf32>, vector<1x8x8xf32>, vector<1x8x8xf32>, vector<1x8x8xf32> -> vector<8x8x8xf32>
    %81 = vector.extract_strided_slice %46 {offsets = [0, 0], sizes = [8, 8], strides = [1, 1]} : vector<16x32xf32> to vector<8x8xf32>
    %82 = vector.extract_strided_slice %46 {offsets = [0, 8], sizes = [8, 8], strides = [1, 1]} : vector<16x32xf32> to vector<8x8xf32>
    %83 = vector.extract_strided_slice %46 {offsets = [0, 16], sizes = [8, 8], strides = [1, 1]} : vector<16x32xf32> to vector<8x8xf32>
    %84 = vector.extract_strided_slice %46 {offsets = [0, 24], sizes = [8, 8], strides = [1, 1]} : vector<16x32xf32> to vector<8x8xf32>
    %85 = vector.extract_strided_slice %46 {offsets = [8, 0], sizes = [8, 8], strides = [1, 1]} : vector<16x32xf32> to vector<8x8xf32>
    %86 = vector.extract_strided_slice %46 {offsets = [8, 8], sizes = [8, 8], strides = [1, 1]} : vector<16x32xf32> to vector<8x8xf32>
    %87 = vector.extract_strided_slice %46 {offsets = [8, 16], sizes = [8, 8], strides = [1, 1]} : vector<16x32xf32> to vector<8x8xf32>
    %88 = vector.extract_strided_slice %46 {offsets = [8, 24], sizes = [8, 8], strides = [1, 1]} : vector<16x32xf32> to vector<8x8xf32>
    %89 = vector.shape_cast %81 : vector<8x8xf32> to vector<1x8x8xf32>
    %90 = vector.shape_cast %82 : vector<8x8xf32> to vector<1x8x8xf32>
    %91 = vector.shape_cast %83 : vector<8x8xf32> to vector<1x8x8xf32>
    %92 = vector.shape_cast %84 : vector<8x8xf32> to vector<1x8x8xf32>
    %93 = vector.shape_cast %85 : vector<8x8xf32> to vector<1x8x8xf32>
    %94 = vector.shape_cast %86 : vector<8x8xf32> to vector<1x8x8xf32>
    %95 = vector.shape_cast %87 : vector<8x8xf32> to vector<1x8x8xf32>
    %96 = vector.shape_cast %88 : vector<8x8xf32> to vector<1x8x8xf32>
    %97 = tpu.concatenate %89, %90, %91, %92, %93, %94, %95, %96 in 0 : vector<1x8x8xf32>, vector<1x8x8xf32>, vector<1x8x8xf32>, vector<1x8x8xf32>, vector<1x8x8xf32>, vector<1x8x8xf32>, vector<1x8x8xf32>, vector<1x8x8xf32> -> vector<8x8x8xf32>
    "tpu.trace_start"() <{level = 10 : i32, message = "nqd,nkd->nqk"}> : () -> ()
    %cst_21 = arith.constant dense<0.000000e+00> : vector<8x8x8xf32>
    %98 = tpu.matmul %63, %80, %cst_21 {dimension_numbers = #tpu.dot_dimension_numbers<[2], [2], [1], [1], [0, 0, 0, 1, 1, 1], [0], [0]>} : vector<8x8x8xf32>, vector<8x8x8xf32>, vector<8x8x8xf32> -> vector<8x8x8xf32>
    "tpu.trace_stop"() : () -> ()
    %cst_22 = arith.constant 0.353553385 : f32
    %99 = vector.broadcast %cst_22 : f32 to vector<8x8x8xf32>
    %100 = arith.mulf %98, %99 : vector<8x8x8xf32>
    %101 = arith.addf %100, %7 : vector<8x8x8xf32>
    %cst_23 = arith.constant dense<0xFF800000> : vector<8x8xf32>
    %102 = vector.multi_reduction <maximumf>, %101, %cst_23 [2] : vector<8x8x8xf32> to vector<8x8xf32>
    %103 = vector.shape_cast %102 : vector<8x8xf32> to vector<8x8x1xf32>
    %104 = vector.broadcast %103 : vector<8x8x1xf32> to vector<8x8x8xf32>
    %105 = arith.subf %101, %104 : vector<8x8x8xf32>
    %106 = math.exp %105 : vector<8x8x8xf32>
    %cst_24 = arith.constant dense<0.000000e+00> : vector<8x8xf32>
    %107 = vector.multi_reduction <add>, %106, %cst_24 [2] : vector<8x8x8xf32> to vector<8x8xf32>
    %108 = vector.shape_cast %107 : vector<8x8xf32> to vector<8x8x1xf32>
    %109 = tpu.reciprocal %108 {approx = true} : vector<8x8x1xf32> -> vector<8x8x1xf32>
    %110 = vector.broadcast %109 : vector<8x8x1xf32> to vector<8x8x8xf32>
    %111 = arith.mulf %106, %110 : vector<8x8x8xf32>
    "tpu.trace_start"() <{level = 10 : i32, message = "nqk,nkd->nqd"}> : () -> ()
    %cst_25 = arith.constant dense<0.000000e+00> : vector<8x8x8xf32>
    %112 = tpu.matmul %111, %97, %cst_25 {dimension_numbers = #tpu.dot_dimension_numbers<[2], [1], [1], [2], [0, 0, 0, 1, 1, 2], [0], [0]>} : vector<8x8x8xf32>, vector<8x8x8xf32>, vector<8x8x8xf32> -> vector<8x8x8xf32>
    "tpu.trace_stop"() : () -> ()
    %113 = vector.extract_strided_slice %112 {offsets = [0, 0, 0], sizes = [1, 8, 8], strides = [1, 1, 1]} : vector<8x8x8xf32> to vector<1x8x8xf32>
    %114 = vector.shape_cast %113 : vector<1x8x8xf32> to vector<8x8xf32>
    %115 = vector.extract_strided_slice %112 {offsets = [1, 0, 0], sizes = [1, 8, 8], strides = [1, 1, 1]} : vector<8x8x8xf32> to vector<1x8x8xf32>
    %116 = vector.shape_cast %115 : vector<1x8x8xf32> to vector<8x8xf32>
    %117 = vector.extract_strided_slice %112 {offsets = [2, 0, 0], sizes = [1, 8, 8], strides = [1, 1, 1]} : vector<8x8x8xf32> to vector<1x8x8xf32>
    %118 = vector.shape_cast %117 : vector<1x8x8xf32> to vector<8x8xf32>
    %119 = vector.extract_strided_slice %112 {offsets = [3, 0, 0], sizes = [1, 8, 8], strides = [1, 1, 1]} : vector<8x8x8xf32> to vector<1x8x8xf32>
    %120 = vector.shape_cast %119 : vector<1x8x8xf32> to vector<8x8xf32>
    %121 = tpu.concatenate %114, %116, %118, %120 in 1 : vector<8x8xf32>, vector<8x8xf32>, vector<8x8xf32>, vector<8x8xf32> -> vector<8x32xf32>
    %122 = vector.extract_strided_slice %112 {offsets = [4, 0, 0], sizes = [1, 8, 8], strides = [1, 1, 1]} : vector<8x8x8xf32> to vector<1x8x8xf32>
    %123 = vector.shape_cast %122 : vector<1x8x8xf32> to vector<8x8xf32>
    %124 = vector.extract_strided_slice %112 {offsets = [5, 0, 0], sizes = [1, 8, 8], strides = [1, 1, 1]} : vector<8x8x8xf32> to vector<1x8x8xf32>
    %125 = vector.shape_cast %124 : vector<1x8x8xf32> to vector<8x8xf32>
    %126 = vector.extract_strided_slice %112 {offsets = [6, 0, 0], sizes = [1, 8, 8], strides = [1, 1, 1]} : vector<8x8x8xf32> to vector<1x8x8xf32>
    %127 = vector.shape_cast %126 : vector<1x8x8xf32> to vector<8x8xf32>
    %128 = vector.extract_strided_slice %112 {offsets = [7, 0, 0], sizes = [1, 8, 8], strides = [1, 1, 1]} : vector<8x8x8xf32> to vector<1x8x8xf32>
    %129 = vector.shape_cast %128 : vector<1x8x8xf32> to vector<8x8xf32>
    %130 = tpu.concatenate %123, %125, %127, %129 in 1 : vector<8x8xf32>, vector<8x8xf32>, vector<8x8xf32>, vector<8x8xf32> -> vector<8x32xf32>
    %131 = tpu.concatenate %121, %130 in 0 : vector<8x32xf32>, vector<8x32xf32> -> vector<16x32xf32>
    %132 = vector.extract_strided_slice %31 {offsets = [0, 96], sizes = [32, 32], strides = [1, 1]} : vector<32x128xf32> to vector<32x32xf32>
    %cst_26 = arith.constant dense<0.000000e+00> : vector<16x32xf32>
    %133 = tpu.matmul %131, %132, %cst_26 {dimension_numbers = #tpu.dot_dimension_numbers<[1], [0], [0], [1], [0, 0, 1, 1], [], []>} : vector<16x32xf32>, vector<32x32xf32>, vector<16x32xf32> -> vector<16x32xf32>
    %134 = vector.broadcast %35 : vector<1x32xf32> to vector<16x32xf32>
    %135 = arith.addf %133, %134 : vector<16x32xf32>
    %136 = arith.addf %2, %135 : vector<16x32xf32>
    %137 = vector.extract_strided_slice %0 {offsets = [2, 0], sizes = [1, 32], strides = [1, 1]} : vector<21x32xf32> to vector<1x32xf32>
    %138 = vector.extract_strided_slice %0 {offsets = [3, 0], sizes = [1, 32], strides = [1, 1]} : vector<21x32xf32> to vector<1x32xf32>
    %cst_27 = arith.constant dense<0.000000e+00> : vector<16xf32>
    %139 = vector.multi_reduction <add>, %136, %cst_27 [1] : vector<16x32xf32> to vector<16xf32>
    %140 = vector.shape_cast %139 : vector<16xf32> to vector<16x1xf32>
    %cst_28 = arith.constant 3.200000e+01 : f32
    %141 = vector.broadcast %cst_28 : f32 to vector<16x1xf32>
    %142 = arith.divf %140, %141 : vector<16x1xf32>
    %143 = vector.broadcast %142 : vector<16x1xf32> to vector<16x32xf32>
    %144 = arith.subf %136, %143 : vector<16x32xf32>
    %145 = arith.mulf %144, %144 : vector<16x32xf32>
    %cst_29 = arith.constant dense<0.000000e+00> : vector<16xf32>
    %146 = vector.multi_reduction <add>, %145, %cst_29 [1] : vector<16x32xf32> to vector<16xf32>
    %147 = vector.shape_cast %146 : vector<16xf32> to vector<16x1xf32>
    %cst_30 = arith.constant 0.0322580636 : f32
    %148 = vector.broadcast %cst_30 : f32 to vector<16x1xf32>
    %149 = arith.mulf %147, %148 : vector<16x1xf32>
    %150 = math.sqrt %149 : vector<16x1xf32>
    %cst_31 = arith.constant 9.99999997E-7 : f32
    %151 = vector.broadcast %cst_31 : f32 to vector<16x1xf32>
    %152 = arith.addf %150, %151 : vector<16x1xf32>
    %153 = vector.broadcast %152 : vector<16x1xf32> to vector<16x32xf32>
    %154 = arith.divf %144, %153 : vector<16x32xf32>
    %155 = vector.broadcast %137 : vector<1x32xf32> to vector<16x32xf32>
    %156 = arith.mulf %155, %154 : vector<16x32xf32>
    %157 = vector.broadcast %138 : vector<1x32xf32> to vector<16x32xf32>
    %158 = arith.addf %156, %157 : vector<16x32xf32>
    %c1 = arith.constant 1 : index
    %c0_32 = arith.constant 0 : index
    %c0_33 = arith.constant 0 : index
    %159 = vector.load %arg5[%c1, %c0_32, %c0_33] : memref<3x32x128xf32, #tpu.memory_space<vmem>>, vector<1x32x128xf32>
    %160 = vector.shape_cast %159 : vector<1x32x128xf32> to vector<32x128xf32>
    %161 = vector.extract_strided_slice %0 {offsets = [12, 0], sizes = [1, 32], strides = [1, 1]} : vector<21x32xf32> to vector<1x32xf32>
    %162 = vector.extract_strided_slice %0 {offsets = [13, 0], sizes = [1, 32], strides = [1, 1]} : vector<21x32xf32> to vector<1x32xf32>
    %163 = vector.extract_strided_slice %0 {offsets = [14, 0], sizes = [1, 32], strides = [1, 1]} : vector<21x32xf32> to vector<1x32xf32>
    %164 = vector.extract_strided_slice %0 {offsets = [15, 0], sizes = [1, 32], strides = [1, 1]} : vector<21x32xf32> to vector<1x32xf32>
    %165 = vector.extract_strided_slice %160 {offsets = [0, 0], sizes = [32, 32], strides = [1, 1]} : vector<32x128xf32> to vector<32x32xf32>
    %cst_34 = arith.constant dense<0.000000e+00> : vector<16x32xf32>
    %166 = tpu.matmul %158, %165, %cst_34 {dimension_numbers = #tpu.dot_dimension_numbers<[1], [0], [0], [1], [0, 0, 1, 1], [], []>} : vector<16x32xf32>, vector<32x32xf32>, vector<16x32xf32> -> vector<16x32xf32>
    %167 = vector.broadcast %161 : vector<1x32xf32> to vector<16x32xf32>
    %168 = arith.addf %166, %167 : vector<16x32xf32>
    %169 = vector.extract_strided_slice %160 {offsets = [0, 32], sizes = [32, 64], strides = [1, 1]} : vector<32x128xf32> to vector<32x64xf32>
    %cst_35 = arith.constant dense<0.000000e+00> : vector<16x64xf32>
    %170 = tpu.matmul %4, %169, %cst_35 {dimension_numbers = #tpu.dot_dimension_numbers<[1], [0], [0], [1], [0, 0, 1, 1], [], []>} : vector<16x32xf32>, vector<32x64xf32>, vector<16x64xf32> -> vector<16x64xf32>
    %171 = vector.extract_strided_slice %170 {offsets = [0, 0], sizes = [16, 32], strides = [1, 1]} : vector<16x64xf32> to vector<16x32xf32>
    %172 = vector.broadcast %162 : vector<1x32xf32> to vector<16x32xf32>
    %173 = arith.addf %171, %172 : vector<16x32xf32>
    %174 = vector.extract_strided_slice %170 {offsets = [0, 32], sizes = [16, 32], strides = [1, 1]} : vector<16x64xf32> to vector<16x32xf32>
    %175 = vector.broadcast %163 : vector<1x32xf32> to vector<16x32xf32>
    %176 = arith.addf %174, %175 : vector<16x32xf32>
    %177 = vector.extract_strided_slice %168 {offsets = [0, 0], sizes = [8, 8], strides = [1, 1]} : vector<16x32xf32> to vector<8x8xf32>
    %178 = vector.extract_strided_slice %168 {offsets = [0, 8], sizes = [8, 8], strides = [1, 1]} : vector<16x32xf32> to vector<8x8xf32>
    %179 = vector.extract_strided_slice %168 {offsets = [0, 16], sizes = [8, 8], strides = [1, 1]} : vector<16x32xf32> to vector<8x8xf32>
    %180 = vector.extract_strided_slice %168 {offsets = [0, 24], sizes = [8, 8], strides = [1, 1]} : vector<16x32xf32> to vector<8x8xf32>
    %181 = vector.extract_strided_slice %168 {offsets = [8, 0], sizes = [8, 8], strides = [1, 1]} : vector<16x32xf32> to vector<8x8xf32>
    %182 = vector.extract_strided_slice %168 {offsets = [8, 8], sizes = [8, 8], strides = [1, 1]} : vector<16x32xf32> to vector<8x8xf32>
    %183 = vector.extract_strided_slice %168 {offsets = [8, 16], sizes = [8, 8], strides = [1, 1]} : vector<16x32xf32> to vector<8x8xf32>
    %184 = vector.extract_strided_slice %168 {offsets = [8, 24], sizes = [8, 8], strides = [1, 1]} : vector<16x32xf32> to vector<8x8xf32>
    %185 = vector.shape_cast %177 : vector<8x8xf32> to vector<1x8x8xf32>
    %186 = vector.shape_cast %178 : vector<8x8xf32> to vector<1x8x8xf32>
    %187 = vector.shape_cast %179 : vector<8x8xf32> to vector<1x8x8xf32>
    %188 = vector.shape_cast %180 : vector<8x8xf32> to vector<1x8x8xf32>
    %189 = vector.shape_cast %181 : vector<8x8xf32> to vector<1x8x8xf32>
    %190 = vector.shape_cast %182 : vector<8x8xf32> to vector<1x8x8xf32>
    %191 = vector.shape_cast %183 : vector<8x8xf32> to vector<1x8x8xf32>
    %192 = vector.shape_cast %184 : vector<8x8xf32> to vector<1x8x8xf32>
    %193 = tpu.concatenate %185, %186, %187, %188, %189, %190, %191, %192 in 0 : vector<1x8x8xf32>, vector<1x8x8xf32>, vector<1x8x8xf32>, vector<1x8x8xf32>, vector<1x8x8xf32>, vector<1x8x8xf32>, vector<1x8x8xf32>, vector<1x8x8xf32> -> vector<8x8x8xf32>
    %194 = vector.extract_strided_slice %173 {offsets = [0, 0], sizes = [8, 8], strides = [1, 1]} : vector<16x32xf32> to vector<8x8xf32>
    %195 = vector.extract_strided_slice %173 {offsets = [0, 8], sizes = [8, 8], strides = [1, 1]} : vector<16x32xf32> to vector<8x8xf32>
    %196 = vector.extract_strided_slice %173 {offsets = [0, 16], sizes = [8, 8], strides = [1, 1]} : vector<16x32xf32> to vector<8x8xf32>
    %197 = vector.extract_strided_slice %173 {offsets = [0, 24], sizes = [8, 8], strides = [1, 1]} : vector<16x32xf32> to vector<8x8xf32>
    %198 = vector.extract_strided_slice %173 {offsets = [8, 0], sizes = [8, 8], strides = [1, 1]} : vector<16x32xf32> to vector<8x8xf32>
    %199 = vector.extract_strided_slice %173 {offsets = [8, 8], sizes = [8, 8], strides = [1, 1]} : vector<16x32xf32> to vector<8x8xf32>
    %200 = vector.extract_strided_slice %173 {offsets = [8, 16], sizes = [8, 8], strides = [1, 1]} : vector<16x32xf32> to vector<8x8xf32>
    %201 = vector.extract_strided_slice %173 {offsets = [8, 24], sizes = [8, 8], strides = [1, 1]} : vector<16x32xf32> to vector<8x8xf32>
    %202 = vector.shape_cast %194 : vector<8x8xf32> to vector<1x8x8xf32>
    %203 = vector.shape_cast %195 : vector<8x8xf32> to vector<1x8x8xf32>
    %204 = vector.shape_cast %196 : vector<8x8xf32> to vector<1x8x8xf32>
    %205 = vector.shape_cast %197 : vector<8x8xf32> to vector<1x8x8xf32>
    %206 = vector.shape_cast %198 : vector<8x8xf32> to vector<1x8x8xf32>
    %207 = vector.shape_cast %199 : vector<8x8xf32> to vector<1x8x8xf32>
    %208 = vector.shape_cast %200 : vector<8x8xf32> to vector<1x8x8xf32>
    %209 = vector.shape_cast %201 : vector<8x8xf32> to vector<1x8x8xf32>
    %210 = tpu.concatenate %202, %203, %204, %205, %206, %207, %208, %209 in 0 : vector<1x8x8xf32>, vector<1x8x8xf32>, vector<1x8x8xf32>, vector<1x8x8xf32>, vector<1x8x8xf32>, vector<1x8x8xf32>, vector<1x8x8xf32>, vector<1x8x8xf32> -> vector<8x8x8xf32>
    %211 = vector.extract_strided_slice %176 {offsets = [0, 0], sizes = [8, 8], strides = [1, 1]} : vector<16x32xf32> to vector<8x8xf32>
    %212 = vector.extract_strided_slice %176 {offsets = [0, 8], sizes = [8, 8], strides = [1, 1]} : vector<16x32xf32> to vector<8x8xf32>
    %213 = vector.extract_strided_slice %176 {offsets = [0, 16], sizes = [8, 8], strides = [1, 1]} : vector<16x32xf32> to vector<8x8xf32>
    %214 = vector.extract_strided_slice %176 {offsets = [0, 24], sizes = [8, 8], strides = [1, 1]} : vector<16x32xf32> to vector<8x8xf32>
    %215 = vector.extract_strided_slice %176 {offsets = [8, 0], sizes = [8, 8], strides = [1, 1]} : vector<16x32xf32> to vector<8x8xf32>
    %216 = vector.extract_strided_slice %176 {offsets = [8, 8], sizes = [8, 8], strides = [1, 1]} : vector<16x32xf32> to vector<8x8xf32>
    %217 = vector.extract_strided_slice %176 {offsets = [8, 16], sizes = [8, 8], strides = [1, 1]} : vector<16x32xf32> to vector<8x8xf32>
    %218 = vector.extract_strided_slice %176 {offsets = [8, 24], sizes = [8, 8], strides = [1, 1]} : vector<16x32xf32> to vector<8x8xf32>
    %219 = vector.shape_cast %211 : vector<8x8xf32> to vector<1x8x8xf32>
    %220 = vector.shape_cast %212 : vector<8x8xf32> to vector<1x8x8xf32>
    %221 = vector.shape_cast %213 : vector<8x8xf32> to vector<1x8x8xf32>
    %222 = vector.shape_cast %214 : vector<8x8xf32> to vector<1x8x8xf32>
    %223 = vector.shape_cast %215 : vector<8x8xf32> to vector<1x8x8xf32>
    %224 = vector.shape_cast %216 : vector<8x8xf32> to vector<1x8x8xf32>
    %225 = vector.shape_cast %217 : vector<8x8xf32> to vector<1x8x8xf32>
    %226 = vector.shape_cast %218 : vector<8x8xf32> to vector<1x8x8xf32>
    %227 = tpu.concatenate %219, %220, %221, %222, %223, %224, %225, %226 in 0 : vector<1x8x8xf32>, vector<1x8x8xf32>, vector<1x8x8xf32>, vector<1x8x8xf32>, vector<1x8x8xf32>, vector<1x8x8xf32>, vector<1x8x8xf32>, vector<1x8x8xf32> -> vector<8x8x8xf32>
    "tpu.trace_start"() <{level = 10 : i32, message = "nqd,nkd->nqk"}> : () -> ()
    %cst_36 = arith.constant dense<0.000000e+00> : vector<8x8x8xf32>
    %228 = tpu.matmul %193, %210, %cst_36 {dimension_numbers = #tpu.dot_dimension_numbers<[2], [2], [1], [1], [0, 0, 0, 1, 1, 1], [0], [0]>} : vector<8x8x8xf32>, vector<8x8x8xf32>, vector<8x8x8xf32> -> vector<8x8x8xf32>
    "tpu.trace_stop"() : () -> ()
    %cst_37 = arith.constant 0.353553385 : f32
    %229 = vector.broadcast %cst_37 : f32 to vector<8x8x8xf32>
    %230 = arith.mulf %228, %229 : vector<8x8x8xf32>
    %cst_38 = arith.constant dense<0xFF800000> : vector<8x8xf32>
    %231 = vector.multi_reduction <maximumf>, %230, %cst_38 [2] : vector<8x8x8xf32> to vector<8x8xf32>
    %232 = vector.shape_cast %231 : vector<8x8xf32> to vector<8x8x1xf32>
    %233 = vector.broadcast %232 : vector<8x8x1xf32> to vector<8x8x8xf32>
    %234 = arith.subf %230, %233 : vector<8x8x8xf32>
    %235 = math.exp %234 : vector<8x8x8xf32>
    %cst_39 = arith.constant dense<0.000000e+00> : vector<8x8xf32>
    %236 = vector.multi_reduction <add>, %235, %cst_39 [2] : vector<8x8x8xf32> to vector<8x8xf32>
    %237 = vector.shape_cast %236 : vector<8x8xf32> to vector<8x8x1xf32>
    %238 = tpu.reciprocal %237 {approx = true} : vector<8x8x1xf32> -> vector<8x8x1xf32>
    %239 = vector.broadcast %238 : vector<8x8x1xf32> to vector<8x8x8xf32>
    %240 = arith.mulf %235, %239 : vector<8x8x8xf32>
    "tpu.trace_start"() <{level = 10 : i32, message = "nqk,nkd->nqd"}> : () -> ()
    %cst_40 = arith.constant dense<0.000000e+00> : vector<8x8x8xf32>
    %241 = tpu.matmul %240, %227, %cst_40 {dimension_numbers = #tpu.dot_dimension_numbers<[2], [1], [1], [2], [0, 0, 0, 1, 1, 2], [0], [0]>} : vector<8x8x8xf32>, vector<8x8x8xf32>, vector<8x8x8xf32> -> vector<8x8x8xf32>
    "tpu.trace_stop"() : () -> ()
    %242 = vector.extract_strided_slice %241 {offsets = [0, 0, 0], sizes = [1, 8, 8], strides = [1, 1, 1]} : vector<8x8x8xf32> to vector<1x8x8xf32>
    %243 = vector.shape_cast %242 : vector<1x8x8xf32> to vector<8x8xf32>
    %244 = vector.extract_strided_slice %241 {offsets = [1, 0, 0], sizes = [1, 8, 8], strides = [1, 1, 1]} : vector<8x8x8xf32> to vector<1x8x8xf32>
    %245 = vector.shape_cast %244 : vector<1x8x8xf32> to vector<8x8xf32>
    %246 = vector.extract_strided_slice %241 {offsets = [2, 0, 0], sizes = [1, 8, 8], strides = [1, 1, 1]} : vector<8x8x8xf32> to vector<1x8x8xf32>
    %247 = vector.shape_cast %246 : vector<1x8x8xf32> to vector<8x8xf32>
    %248 = vector.extract_strided_slice %241 {offsets = [3, 0, 0], sizes = [1, 8, 8], strides = [1, 1, 1]} : vector<8x8x8xf32> to vector<1x8x8xf32>
    %249 = vector.shape_cast %248 : vector<1x8x8xf32> to vector<8x8xf32>
    %250 = tpu.concatenate %243, %245, %247, %249 in 1 : vector<8x8xf32>, vector<8x8xf32>, vector<8x8xf32>, vector<8x8xf32> -> vector<8x32xf32>
    %251 = vector.extract_strided_slice %241 {offsets = [4, 0, 0], sizes = [1, 8, 8], strides = [1, 1, 1]} : vector<8x8x8xf32> to vector<1x8x8xf32>
    %252 = vector.shape_cast %251 : vector<1x8x8xf32> to vector<8x8xf32>
    %253 = vector.extract_strided_slice %241 {offsets = [5, 0, 0], sizes = [1, 8, 8], strides = [1, 1, 1]} : vector<8x8x8xf32> to vector<1x8x8xf32>
    %254 = vector.shape_cast %253 : vector<1x8x8xf32> to vector<8x8xf32>
    %255 = vector.extract_strided_slice %241 {offsets = [6, 0, 0], sizes = [1, 8, 8], strides = [1, 1, 1]} : vector<8x8x8xf32> to vector<1x8x8xf32>
    %256 = vector.shape_cast %255 : vector<1x8x8xf32> to vector<8x8xf32>
    %257 = vector.extract_strided_slice %241 {offsets = [7, 0, 0], sizes = [1, 8, 8], strides = [1, 1, 1]} : vector<8x8x8xf32> to vector<1x8x8xf32>
    %258 = vector.shape_cast %257 : vector<1x8x8xf32> to vector<8x8xf32>
    %259 = tpu.concatenate %252, %254, %256, %258 in 1 : vector<8x8xf32>, vector<8x8xf32>, vector<8x8xf32>, vector<8x8xf32> -> vector<8x32xf32>
    %260 = tpu.concatenate %250, %259 in 0 : vector<8x32xf32>, vector<8x32xf32> -> vector<16x32xf32>
    %261 = vector.extract_strided_slice %160 {offsets = [0, 96], sizes = [32, 32], strides = [1, 1]} : vector<32x128xf32> to vector<32x32xf32>
    %cst_41 = arith.constant dense<0.000000e+00> : vector<16x32xf32>
    %262 = tpu.matmul %260, %261, %cst_41 {dimension_numbers = #tpu.dot_dimension_numbers<[1], [0], [0], [1], [0, 0, 1, 1], [], []>} : vector<16x32xf32>, vector<32x32xf32>, vector<16x32xf32> -> vector<16x32xf32>
    %263 = vector.broadcast %164 : vector<1x32xf32> to vector<16x32xf32>
    %264 = arith.addf %262, %263 : vector<16x32xf32>
    %265 = arith.addf %136, %264 : vector<16x32xf32>
    %266 = vector.extract_strided_slice %0 {offsets = [4, 0], sizes = [1, 32], strides = [1, 1]} : vector<21x32xf32> to vector<1x32xf32>
    %267 = vector.extract_strided_slice %0 {offsets = [5, 0], sizes = [1, 32], strides = [1, 1]} : vector<21x32xf32> to vector<1x32xf32>
    %cst_42 = arith.constant dense<0.000000e+00> : vector<16xf32>
    %268 = vector.multi_reduction <add>, %265, %cst_42 [1] : vector<16x32xf32> to vector<16xf32>
    %269 = vector.shape_cast %268 : vector<16xf32> to vector<16x1xf32>
    %cst_43 = arith.constant 3.200000e+01 : f32
    %270 = vector.broadcast %cst_43 : f32 to vector<16x1xf32>
    %271 = arith.divf %269, %270 : vector<16x1xf32>
    %272 = vector.broadcast %271 : vector<16x1xf32> to vector<16x32xf32>
    %273 = arith.subf %265, %272 : vector<16x32xf32>
    %274 = arith.mulf %273, %273 : vector<16x32xf32>
    %cst_44 = arith.constant dense<0.000000e+00> : vector<16xf32>
    %275 = vector.multi_reduction <add>, %274, %cst_44 [1] : vector<16x32xf32> to vector<16xf32>
    %276 = vector.shape_cast %275 : vector<16xf32> to vector<16x1xf32>
    %cst_45 = arith.constant 0.0322580636 : f32
    %277 = vector.broadcast %cst_45 : f32 to vector<16x1xf32>
    %278 = arith.mulf %276, %277 : vector<16x1xf32>
    %279 = math.sqrt %278 : vector<16x1xf32>
    %cst_46 = arith.constant 9.99999997E-7 : f32
    %280 = vector.broadcast %cst_46 : f32 to vector<16x1xf32>
    %281 = arith.addf %279, %280 : vector<16x1xf32>
    %282 = vector.broadcast %281 : vector<16x1xf32> to vector<16x32xf32>
    %283 = arith.divf %273, %282 : vector<16x32xf32>
    %284 = vector.broadcast %266 : vector<1x32xf32> to vector<16x32xf32>
    %285 = arith.mulf %284, %283 : vector<16x32xf32>
    %286 = vector.broadcast %267 : vector<1x32xf32> to vector<16x32xf32>
    %287 = arith.addf %285, %286 : vector<16x32xf32>
    %c2 = arith.constant 2 : index
    %c0_47 = arith.constant 0 : index
    %c0_48 = arith.constant 0 : index
    %288 = vector.load %arg5[%c2, %c0_47, %c0_48] : memref<3x32x128xf32, #tpu.memory_space<vmem>>, vector<1x32x128xf32>
    %289 = vector.shape_cast %288 : vector<1x32x128xf32> to vector<32x128xf32>
    %290 = vector.extract_strided_slice %0 {offsets = [16, 0], sizes = [1, 32], strides = [1, 1]} : vector<21x32xf32> to vector<1x32xf32>
    %291 = vector.extract_strided_slice %0 {offsets = [17, 0], sizes = [1, 32], strides = [1, 1]} : vector<21x32xf32> to vector<1x32xf32>
    %292 = vector.extract_strided_slice %0 {offsets = [18, 0], sizes = [1, 32], strides = [1, 1]} : vector<21x32xf32> to vector<1x32xf32>
    %293 = vector.extract_strided_slice %0 {offsets = [19, 0], sizes = [1, 32], strides = [1, 1]} : vector<21x32xf32> to vector<1x32xf32>
    %294 = vector.extract_strided_slice %289 {offsets = [0, 0], sizes = [32, 32], strides = [1, 1]} : vector<32x128xf32> to vector<32x32xf32>
    %cst_49 = arith.constant dense<0.000000e+00> : vector<16x32xf32>
    %295 = tpu.matmul %287, %294, %cst_49 {dimension_numbers = #tpu.dot_dimension_numbers<[1], [0], [0], [1], [0, 0, 1, 1], [], []>} : vector<16x32xf32>, vector<32x32xf32>, vector<16x32xf32> -> vector<16x32xf32>
    %296 = vector.broadcast %290 : vector<1x32xf32> to vector<16x32xf32>
    %297 = arith.addf %295, %296 : vector<16x32xf32>
    %298 = vector.extract_strided_slice %289 {offsets = [0, 32], sizes = [32, 64], strides = [1, 1]} : vector<32x128xf32> to vector<32x64xf32>
    %cst_50 = arith.constant dense<0.000000e+00> : vector<16x64xf32>
    %299 = tpu.matmul %6, %298, %cst_50 {dimension_numbers = #tpu.dot_dimension_numbers<[1], [0], [0], [1], [0, 0, 1, 1], [], []>} : vector<16x32xf32>, vector<32x64xf32>, vector<16x64xf32> -> vector<16x64xf32>
    %300 = vector.extract_strided_slice %299 {offsets = [0, 0], sizes = [16, 32], strides = [1, 1]} : vector<16x64xf32> to vector<16x32xf32>
    %301 = vector.broadcast %291 : vector<1x32xf32> to vector<16x32xf32>
    %302 = arith.addf %300, %301 : vector<16x32xf32>
    %303 = vector.extract_strided_slice %299 {offsets = [0, 32], sizes = [16, 32], strides = [1, 1]} : vector<16x64xf32> to vector<16x32xf32>
    %304 = vector.broadcast %292 : vector<1x32xf32> to vector<16x32xf32>
    %305 = arith.addf %303, %304 : vector<16x32xf32>
    %306 = vector.extract_strided_slice %297 {offsets = [0, 0], sizes = [8, 8], strides = [1, 1]} : vector<16x32xf32> to vector<8x8xf32>
    %307 = vector.extract_strided_slice %297 {offsets = [0, 8], sizes = [8, 8], strides = [1, 1]} : vector<16x32xf32> to vector<8x8xf32>
    %308 = vector.extract_strided_slice %297 {offsets = [0, 16], sizes = [8, 8], strides = [1, 1]} : vector<16x32xf32> to vector<8x8xf32>
    %309 = vector.extract_strided_slice %297 {offsets = [0, 24], sizes = [8, 8], strides = [1, 1]} : vector<16x32xf32> to vector<8x8xf32>
    %310 = vector.extract_strided_slice %297 {offsets = [8, 0], sizes = [8, 8], strides = [1, 1]} : vector<16x32xf32> to vector<8x8xf32>
    %311 = vector.extract_strided_slice %297 {offsets = [8, 8], sizes = [8, 8], strides = [1, 1]} : vector<16x32xf32> to vector<8x8xf32>
    %312 = vector.extract_strided_slice %297 {offsets = [8, 16], sizes = [8, 8], strides = [1, 1]} : vector<16x32xf32> to vector<8x8xf32>
    %313 = vector.extract_strided_slice %297 {offsets = [8, 24], sizes = [8, 8], strides = [1, 1]} : vector<16x32xf32> to vector<8x8xf32>
    %314 = vector.shape_cast %306 : vector<8x8xf32> to vector<1x8x8xf32>
    %315 = vector.shape_cast %307 : vector<8x8xf32> to vector<1x8x8xf32>
    %316 = vector.shape_cast %308 : vector<8x8xf32> to vector<1x8x8xf32>
    %317 = vector.shape_cast %309 : vector<8x8xf32> to vector<1x8x8xf32>
    %318 = vector.shape_cast %310 : vector<8x8xf32> to vector<1x8x8xf32>
    %319 = vector.shape_cast %311 : vector<8x8xf32> to vector<1x8x8xf32>
    %320 = vector.shape_cast %312 : vector<8x8xf32> to vector<1x8x8xf32>
    %321 = vector.shape_cast %313 : vector<8x8xf32> to vector<1x8x8xf32>
    %322 = tpu.concatenate %314, %315, %316, %317, %318, %319, %320, %321 in 0 : vector<1x8x8xf32>, vector<1x8x8xf32>, vector<1x8x8xf32>, vector<1x8x8xf32>, vector<1x8x8xf32>, vector<1x8x8xf32>, vector<1x8x8xf32>, vector<1x8x8xf32> -> vector<8x8x8xf32>
    %323 = vector.extract_strided_slice %302 {offsets = [0, 0], sizes = [8, 8], strides = [1, 1]} : vector<16x32xf32> to vector<8x8xf32>
    %324 = vector.extract_strided_slice %302 {offsets = [0, 8], sizes = [8, 8], strides = [1, 1]} : vector<16x32xf32> to vector<8x8xf32>
    %325 = vector.extract_strided_slice %302 {offsets = [0, 16], sizes = [8, 8], strides = [1, 1]} : vector<16x32xf32> to vector<8x8xf32>
    %326 = vector.extract_strided_slice %302 {offsets = [0, 24], sizes = [8, 8], strides = [1, 1]} : vector<16x32xf32> to vector<8x8xf32>
    %327 = vector.extract_strided_slice %302 {offsets = [8, 0], sizes = [8, 8], strides = [1, 1]} : vector<16x32xf32> to vector<8x8xf32>
    %328 = vector.extract_strided_slice %302 {offsets = [8, 8], sizes = [8, 8], strides = [1, 1]} : vector<16x32xf32> to vector<8x8xf32>
    %329 = vector.extract_strided_slice %302 {offsets = [8, 16], sizes = [8, 8], strides = [1, 1]} : vector<16x32xf32> to vector<8x8xf32>
    %330 = vector.extract_strided_slice %302 {offsets = [8, 24], sizes = [8, 8], strides = [1, 1]} : vector<16x32xf32> to vector<8x8xf32>
    %331 = vector.shape_cast %323 : vector<8x8xf32> to vector<1x8x8xf32>
    %332 = vector.shape_cast %324 : vector<8x8xf32> to vector<1x8x8xf32>
    %333 = vector.shape_cast %325 : vector<8x8xf32> to vector<1x8x8xf32>
    %334 = vector.shape_cast %326 : vector<8x8xf32> to vector<1x8x8xf32>
    %335 = vector.shape_cast %327 : vector<8x8xf32> to vector<1x8x8xf32>
    %336 = vector.shape_cast %328 : vector<8x8xf32> to vector<1x8x8xf32>
    %337 = vector.shape_cast %329 : vector<8x8xf32> to vector<1x8x8xf32>
    %338 = vector.shape_cast %330 : vector<8x8xf32> to vector<1x8x8xf32>
    %339 = tpu.concatenate %331, %332, %333, %334, %335, %336, %337, %338 in 0 : vector<1x8x8xf32>, vector<1x8x8xf32>, vector<1x8x8xf32>, vector<1x8x8xf32>, vector<1x8x8xf32>, vector<1x8x8xf32>, vector<1x8x8xf32>, vector<1x8x8xf32> -> vector<8x8x8xf32>
    %340 = vector.extract_strided_slice %305 {offsets = [0, 0], sizes = [8, 8], strides = [1, 1]} : vector<16x32xf32> to vector<8x8xf32>
    %341 = vector.extract_strided_slice %305 {offsets = [0, 8], sizes = [8, 8], strides = [1, 1]} : vector<16x32xf32> to vector<8x8xf32>
    %342 = vector.extract_strided_slice %305 {offsets = [0, 16], sizes = [8, 8], strides = [1, 1]} : vector<16x32xf32> to vector<8x8xf32>
    %343 = vector.extract_strided_slice %305 {offsets = [0, 24], sizes = [8, 8], strides = [1, 1]} : vector<16x32xf32> to vector<8x8xf32>
    %344 = vector.extract_strided_slice %305 {offsets = [8, 0], sizes = [8, 8], strides = [1, 1]} : vector<16x32xf32> to vector<8x8xf32>
    %345 = vector.extract_strided_slice %305 {offsets = [8, 8], sizes = [8, 8], strides = [1, 1]} : vector<16x32xf32> to vector<8x8xf32>
    %346 = vector.extract_strided_slice %305 {offsets = [8, 16], sizes = [8, 8], strides = [1, 1]} : vector<16x32xf32> to vector<8x8xf32>
    %347 = vector.extract_strided_slice %305 {offsets = [8, 24], sizes = [8, 8], strides = [1, 1]} : vector<16x32xf32> to vector<8x8xf32>
    %348 = vector.shape_cast %340 : vector<8x8xf32> to vector<1x8x8xf32>
    %349 = vector.shape_cast %341 : vector<8x8xf32> to vector<1x8x8xf32>
    %350 = vector.shape_cast %342 : vector<8x8xf32> to vector<1x8x8xf32>
    %351 = vector.shape_cast %343 : vector<8x8xf32> to vector<1x8x8xf32>
    %352 = vector.shape_cast %344 : vector<8x8xf32> to vector<1x8x8xf32>
    %353 = vector.shape_cast %345 : vector<8x8xf32> to vector<1x8x8xf32>
    %354 = vector.shape_cast %346 : vector<8x8xf32> to vector<1x8x8xf32>
    %355 = vector.shape_cast %347 : vector<8x8xf32> to vector<1x8x8xf32>
    %356 = tpu.concatenate %348, %349, %350, %351, %352, %353, %354, %355 in 0 : vector<1x8x8xf32>, vector<1x8x8xf32>, vector<1x8x8xf32>, vector<1x8x8xf32>, vector<1x8x8xf32>, vector<1x8x8xf32>, vector<1x8x8xf32>, vector<1x8x8xf32> -> vector<8x8x8xf32>
    "tpu.trace_start"() <{level = 10 : i32, message = "nqd,nkd->nqk"}> : () -> ()
    %cst_51 = arith.constant dense<0.000000e+00> : vector<8x8x8xf32>
    %357 = tpu.matmul %322, %339, %cst_51 {dimension_numbers = #tpu.dot_dimension_numbers<[2], [2], [1], [1], [0, 0, 0, 1, 1, 1], [0], [0]>} : vector<8x8x8xf32>, vector<8x8x8xf32>, vector<8x8x8xf32> -> vector<8x8x8xf32>
    "tpu.trace_stop"() : () -> ()
    %cst_52 = arith.constant 0.353553385 : f32
    %358 = vector.broadcast %cst_52 : f32 to vector<8x8x8xf32>
    %359 = arith.mulf %357, %358 : vector<8x8x8xf32>
    %cst_53 = arith.constant dense<0xFF800000> : vector<8x8xf32>
    %360 = vector.multi_reduction <maximumf>, %359, %cst_53 [2] : vector<8x8x8xf32> to vector<8x8xf32>
    %361 = vector.shape_cast %360 : vector<8x8xf32> to vector<8x8x1xf32>
    %362 = vector.broadcast %361 : vector<8x8x1xf32> to vector<8x8x8xf32>
    %363 = arith.subf %359, %362 : vector<8x8x8xf32>
    %364 = math.exp %363 : vector<8x8x8xf32>
    %cst_54 = arith.constant dense<0.000000e+00> : vector<8x8xf32>
    %365 = vector.multi_reduction <add>, %364, %cst_54 [2] : vector<8x8x8xf32> to vector<8x8xf32>
    %366 = vector.shape_cast %365 : vector<8x8xf32> to vector<8x8x1xf32>
    %367 = tpu.reciprocal %366 {approx = true} : vector<8x8x1xf32> -> vector<8x8x1xf32>
    %368 = vector.broadcast %367 : vector<8x8x1xf32> to vector<8x8x8xf32>
    %369 = arith.mulf %364, %368 : vector<8x8x8xf32>
    "tpu.trace_start"() <{level = 10 : i32, message = "nqk,nkd->nqd"}> : () -> ()
    %cst_55 = arith.constant dense<0.000000e+00> : vector<8x8x8xf32>
    %370 = tpu.matmul %369, %356, %cst_55 {dimension_numbers = #tpu.dot_dimension_numbers<[2], [1], [1], [2], [0, 0, 0, 1, 1, 2], [0], [0]>} : vector<8x8x8xf32>, vector<8x8x8xf32>, vector<8x8x8xf32> -> vector<8x8x8xf32>
    "tpu.trace_stop"() : () -> ()
    %371 = vector.extract_strided_slice %370 {offsets = [0, 0, 0], sizes = [1, 8, 8], strides = [1, 1, 1]} : vector<8x8x8xf32> to vector<1x8x8xf32>
    %372 = vector.shape_cast %371 : vector<1x8x8xf32> to vector<8x8xf32>
    %373 = vector.extract_strided_slice %370 {offsets = [1, 0, 0], sizes = [1, 8, 8], strides = [1, 1, 1]} : vector<8x8x8xf32> to vector<1x8x8xf32>
    %374 = vector.shape_cast %373 : vector<1x8x8xf32> to vector<8x8xf32>
    %375 = vector.extract_strided_slice %370 {offsets = [2, 0, 0], sizes = [1, 8, 8], strides = [1, 1, 1]} : vector<8x8x8xf32> to vector<1x8x8xf32>
    %376 = vector.shape_cast %375 : vector<1x8x8xf32> to vector<8x8xf32>
    %377 = vector.extract_strided_slice %370 {offsets = [3, 0, 0], sizes = [1, 8, 8], strides = [1, 1, 1]} : vector<8x8x8xf32> to vector<1x8x8xf32>
    %378 = vector.shape_cast %377 : vector<1x8x8xf32> to vector<8x8xf32>
    %379 = tpu.concatenate %372, %374, %376, %378 in 1 : vector<8x8xf32>, vector<8x8xf32>, vector<8x8xf32>, vector<8x8xf32> -> vector<8x32xf32>
    %380 = vector.extract_strided_slice %370 {offsets = [4, 0, 0], sizes = [1, 8, 8], strides = [1, 1, 1]} : vector<8x8x8xf32> to vector<1x8x8xf32>
    %381 = vector.shape_cast %380 : vector<1x8x8xf32> to vector<8x8xf32>
    %382 = vector.extract_strided_slice %370 {offsets = [5, 0, 0], sizes = [1, 8, 8], strides = [1, 1, 1]} : vector<8x8x8xf32> to vector<1x8x8xf32>
    %383 = vector.shape_cast %382 : vector<1x8x8xf32> to vector<8x8xf32>
    %384 = vector.extract_strided_slice %370 {offsets = [6, 0, 0], sizes = [1, 8, 8], strides = [1, 1, 1]} : vector<8x8x8xf32> to vector<1x8x8xf32>
    %385 = vector.shape_cast %384 : vector<1x8x8xf32> to vector<8x8xf32>
    %386 = vector.extract_strided_slice %370 {offsets = [7, 0, 0], sizes = [1, 8, 8], strides = [1, 1, 1]} : vector<8x8x8xf32> to vector<1x8x8xf32>
    %387 = vector.shape_cast %386 : vector<1x8x8xf32> to vector<8x8xf32>
    %388 = tpu.concatenate %381, %383, %385, %387 in 1 : vector<8x8xf32>, vector<8x8xf32>, vector<8x8xf32>, vector<8x8xf32> -> vector<8x32xf32>
    %389 = tpu.concatenate %379, %388 in 0 : vector<8x32xf32>, vector<8x32xf32> -> vector<16x32xf32>
    %390 = vector.extract_strided_slice %289 {offsets = [0, 96], sizes = [32, 32], strides = [1, 1]} : vector<32x128xf32> to vector<32x32xf32>
    %cst_56 = arith.constant dense<0.000000e+00> : vector<16x32xf32>
    %391 = tpu.matmul %389, %390, %cst_56 {dimension_numbers = #tpu.dot_dimension_numbers<[1], [0], [0], [1], [0, 0, 1, 1], [], []>} : vector<16x32xf32>, vector<32x32xf32>, vector<16x32xf32> -> vector<16x32xf32>
    %392 = vector.broadcast %293 : vector<1x32xf32> to vector<16x32xf32>
    %393 = arith.addf %391, %392 : vector<16x32xf32>
    %394 = arith.addf %265, %393 : vector<16x32xf32>
    %395 = vector.extract_strided_slice %0 {offsets = [6, 0], sizes = [1, 32], strides = [1, 1]} : vector<21x32xf32> to vector<1x32xf32>
    %396 = vector.extract_strided_slice %0 {offsets = [7, 0], sizes = [1, 32], strides = [1, 1]} : vector<21x32xf32> to vector<1x32xf32>
    %cst_57 = arith.constant dense<0.000000e+00> : vector<16xf32>
    %397 = vector.multi_reduction <add>, %394, %cst_57 [1] : vector<16x32xf32> to vector<16xf32>
    %398 = vector.shape_cast %397 : vector<16xf32> to vector<16x1xf32>
    %cst_58 = arith.constant 3.200000e+01 : f32
    %399 = vector.broadcast %cst_58 : f32 to vector<16x1xf32>
    %400 = arith.divf %398, %399 : vector<16x1xf32>
    %401 = vector.broadcast %400 : vector<16x1xf32> to vector<16x32xf32>
    %402 = arith.subf %394, %401 : vector<16x32xf32>
    %403 = arith.mulf %402, %402 : vector<16x32xf32>
    %cst_59 = arith.constant dense<0.000000e+00> : vector<16xf32>
    %404 = vector.multi_reduction <add>, %403, %cst_59 [1] : vector<16x32xf32> to vector<16xf32>
    %405 = vector.shape_cast %404 : vector<16xf32> to vector<16x1xf32>
    %cst_60 = arith.constant 0.0322580636 : f32
    %406 = vector.broadcast %cst_60 : f32 to vector<16x1xf32>
    %407 = arith.mulf %405, %406 : vector<16x1xf32>
    %408 = math.sqrt %407 : vector<16x1xf32>
    %cst_61 = arith.constant 9.99999997E-7 : f32
    %409 = vector.broadcast %cst_61 : f32 to vector<16x1xf32>
    %410 = arith.addf %408, %409 : vector<16x1xf32>
    %411 = vector.broadcast %410 : vector<16x1xf32> to vector<16x32xf32>
    %412 = arith.divf %402, %411 : vector<16x32xf32>
    %413 = vector.broadcast %395 : vector<1x32xf32> to vector<16x32xf32>
    %414 = arith.mulf %413, %412 : vector<16x32xf32>
    %415 = vector.broadcast %396 : vector<1x32xf32> to vector<16x32xf32>
    %416 = arith.addf %414, %415 : vector<16x32xf32>
    %417 = arith.truncf %416 : vector<16x32xf32> to vector<16x32xbf16>
    %c0_62 = arith.constant 0 : index
    %c0_63 = arith.constant 0 : index
    %418 = vector.load %arg6[%c0_62, %c0_63] : memref<33x2048xbf16, #tpu.memory_space<vmem>>, vector<32x2048xbf16>
    %cst_64 = arith.constant dense<0.000000e+00> : vector<16x2048xf32>
    %419 = tpu.matmul %417, %418, %cst_64 {dimension_numbers = #tpu.dot_dimension_numbers<[1], [0], [0], [1], [0, 0, 1, 1], [], []>} : vector<16x32xbf16>, vector<32x2048xbf16>, vector<16x2048xf32> -> vector<16x2048xf32>
    %c32 = arith.constant 32 : index
    %c0_65 = arith.constant 0 : index
    %420 = vector.load %arg6[%c32, %c0_65] : memref<33x2048xbf16, #tpu.memory_space<vmem>>, vector<1x2048xbf16>
    %421 = arith.extf %420 : vector<1x2048xbf16> to vector<1x2048xf32>
    %422 = vector.broadcast %421 : vector<1x2048xf32> to vector<16x2048xf32>
    %423 = arith.addf %419, %422 : vector<16x2048xf32>
    %cst_66 = arith.constant 0.000000e+00 : f32
    %424 = vector.broadcast %cst_66 : f32 to vector<16x2048xf32>
    %425 = arith.maximumf %423, %424 : vector<16x2048xf32>
    %426 = arith.truncf %425 : vector<16x2048xf32> to vector<16x2048xbf16>
    %c0_67 = arith.constant 0 : index
    %c0_68 = arith.constant 0 : index
    %427 = vector.load %arg7[%c0_67, %c0_68] : memref<32x2048xbf16, #tpu.memory_space<vmem>>, vector<32x2048xbf16>
    %cst_69 = arith.constant dense<0.000000e+00> : vector<16x32xf32>
    %428 = tpu.matmul %426, %427, %cst_69 {dimension_numbers = #tpu.dot_dimension_numbers<[1], [1], [0], [0], [0, 0, 1, 0], [], []>} : vector<16x2048xbf16>, vector<32x2048xbf16>, vector<16x32xf32> -> vector<16x32xf32>
    %429 = arith.addf %394, %428 : vector<16x32xf32>
    %430 = vector.extract_strided_slice %0 {offsets = [20, 0], sizes = [1, 32], strides = [1, 1]} : vector<21x32xf32> to vector<1x32xf32>
    %431 = vector.broadcast %430 : vector<1x32xf32> to vector<16x32xf32>
    %432 = arith.addf %429, %431 : vector<16x32xf32>
    %433 = vector.shape_cast %432 : vector<16x32xf32> to vector<2x8x32xf32>
    %c0_70 = arith.constant 0 : index
    %c0_71 = arith.constant 0 : index
    %c0_72 = arith.constant 0 : index
    %434 = vector.load %arg8[%c0_70, %c0_71, %c0_72] : memref<2x8x32xf32, #tpu.memory_space<vmem>>, vector<2x8x32xf32>
    tpu.vector_store %arg8[%c0_70, %c0_71, %c0_72], %433 {strides = array<i32>} : memref<2x8x32xf32, #tpu.memory_space<vmem>>, vector<2x8x32xf32>,
    return
  }
}

</mosaic_0001>

<llo_original>
// kernel: tpu_custom_call.1
$region0: #{tpu_custom_call.1}
  #allocation0 [shape = 'u32[]', space=smem, size = 0x4, offset = 0x4, fixed_abs, tag = 'smem constant byte address 0x4 - core index']
  #allocation1 [shape = 'u32[144,128]{1,0:T(1,128)}', space=vmem, size = 0x12000, scoped, tag = 'internal scratch']
  %s0 = inlined_call_operand.hbm [shape: f32[2,8,32], index: 0, kind: input, shape index: {}]
  %s1 = inlined_call_operand.hbm [shape: f32[2,8,32], index: 1, kind: input, shape index: {}]
  %s2 = inlined_call_operand.hbm [shape: f32[2,8,32], index: 2, kind: input, shape index: {}]
  %s3 = inlined_call_operand.hbm [shape: f32[8,8,8], index: 3, kind: input, shape index: {}]
  %s4 = inlined_call_operand.hbm [shape: f32[21,32], index: 4, kind: input, shape index: {}]
  %s5 = inlined_call_operand.hbm [shape: f32[3,32,128], index: 5, kind: input, shape index: {}]
  %s6 = inlined_call_operand.hbm [shape: bf16[33,2048], index: 6, kind: input, shape index: {}]
  %s7 = inlined_call_operand.hbm [shape: bf16[32,2048], index: 7, kind: input, shape index: {}]
  %s8 = inlined_call_operand.hbm [shape: f32[2,8,32], index: 8, kind: output, shape index: {}]
  %s9 = sld [smem:[#allocation0]]
  $region74: #{tpu_custom_call.1} parent=0
    _
  %s11 = ssub.s32 1, %s9
  %s12 = scalar_select 0, %s11, %s9
  $region1: #{tpu_custom_call.1} parent=0
    #allocation2 [shape = 'u8[8192]{0}', space=vmem, size = 0x2000, scoped, tag = 'input window, operand 0, single buffered']
    #allocation3 [shape = 's32[1]{0}', space=sflag, size = 0x4, scoped, tag = 'scoped memory for tpu_custom_call.1']
    #allocation4 [shape = 's32[1]{0}', space=sflag, size = 0x4, scoped, tag = 'scoped memory for tpu_custom_call.1']
    #allocation5 [shape = 'u8[8192]{0}', space=vmem, size = 0x2000, scoped, tag = 'input window, operand 1, single buffered']
    #allocation6 [shape = 's32[1]{0}', space=sflag, size = 0x4, scoped, tag = 'scoped memory for tpu_custom_call.1']
    #allocation7 [shape = 'u8[8192]{0}', space=vmem, size = 0x2000, scoped, tag = 'input window, operand 2, single buffered']
    #allocation8 [shape = 'u8[32768]{0}', space=vmem, size = 0x8000, scoped, tag = 'input window, operand 3, single buffered']
    #allocation9 [shape = 's32[1]{0}', space=sflag, size = 0x4, scoped, tag = 'scoped memory for tpu_custom_call.1']
    #allocation10 [shape = 'u8[12288]{0}', space=vmem, size = 0x3000, scoped, tag = 'input window, operand 4, single buffered']
    #allocation11 [shape = 'u8[49152]{0}', space=vmem, size = 0xc000, scoped, tag = 'input window, operand 5, single buffered']
    #allocation12 [shape = 's32[1]{0}', space=sflag, size = 0x4, scoped, tag = 'scoped memory for tpu_custom_call.1']
    #allocation13 [shape = 'u8[163840]{0}', space=vmem, size = 0x28000, scoped, tag = 'input window, operand 6, single buffered']
    #allocation14 [shape = 'u8[131072]{0}', space=vmem, size = 0x20000, scoped, tag = 'input window, operand 7, single buffered']
    #allocation15 [shape = 's32[1]{0}', space=sflag, size = 0x4, scoped, tag = 'scoped memory for tpu_custom_call.1']
    #allocation16 [shape = 'u8[8192]{0}', space=vmem, size = 0x2000, scoped, tag = 'output window, operand 0, single buffered']
    %13 = vsyncpa [#allocation3], 0
    %14 = vsyncpa [#allocation6], 0
    %15 = vsyncpa [#allocation9], 0
    %16 = vsyncpa [#allocation12], 0
    %17 = vsyncpa [#allocation15], 0
    %18 = vsyncpa [#allocation4], 0
    // Predicated region
    $region2: #{tpu_custom_call.1} parent=1 // pred_check
      _
    $region3: #{tpu_custom_call.1} parent=1 // pred_check_branch
      %20 = sbr.rel (0) target = $region5
    $region4: #{tpu_custom_call.1} parent=1 // pred_region
      %s22 = ssub.s32 256, 256
      %23 = vsyncadd [#allocation3], %s22
      %s24 = sshll.u32 [#allocation2], 4
      %s25 = int_to_ptr.vmem [resolvable:$true] %s24
      %30 = dma.hbm_to_vmem [thread:$0]  %s0, 256, %s25, [#allocation3], 128, 128, 8
    $region5: #{tpu_custom_call.1} parent=1 // pred_fallthru
      _
    // Predicated region
    $region6: #{tpu_custom_call.1} parent=1 // pred_check
      _
    $region7: #{tpu_custom_call.1} parent=1 // pred_check_branch
      %32 = sbr.rel (0) target = $region9
    $region8: #{tpu_custom_call.1} parent=1 // pred_region
      %s34 = ssub.s32 256, 256
      %35 = vsyncadd [#allocation6], %s34
      %s36 = sshll.u32 [#allocation5], 4
      %s37 = int_to_ptr.vmem [resolvable:$true] %s36
      %42 = dma.hbm_to_vmem [thread:$0]  %s1, 256, %s37, [#allocation6], 128, 128, 8
    $region9: #{tpu_custom_call.1} parent=1 // pred_fallthru
      _
    // Predicated region
    $region10: #{tpu_custom_call.1} parent=1 // pred_check
      _
    $region11: #{tpu_custom_call.1} parent=1 // pred_check_branch
      %44 = sbr.rel (0) target = $region13
    $region12: #{tpu_custom_call.1} parent=1 // pred_region
      %s46 = ssub.s32 256, 256
      %47 = vsyncadd [#allocation6], %s46
      %s48 = sshll.u32 [#allocation7], 4
      %s49 = int_to_ptr.vmem [resolvable:$true] %s48
      %54 = dma.hbm_to_vmem [thread:$0]  %s2, 256, %s49, [#allocation6], 128, 128, 8
    $region13: #{tpu_custom_call.1} parent=1 // pred_fallthru
      _
    // Predicated region
    $region14: #{tpu_custom_call.1} parent=1 // pred_check
      _
    $region15: #{tpu_custom_call.1} parent=1 // pred_check_branch
      %56 = sbr.rel (0) target = $region17
    $region16: #{tpu_custom_call.1} parent=1 // pred_region
      %s58 = ssub.s32 1024, 1024
      %59 = vsyncadd [#allocation9], %s58
      %s60 = sshll.u32 [#allocation8], 4
      %s61 = int_to_ptr.vmem [resolvable:$true] %s60
      %66 = dma.hbm_to_vmem [thread:$0]  %s3, 1024, %s61, [#allocation9], 128, 128, 8
    $region17: #{tpu_custom_call.1} parent=1 // pred_fallthru
      _
    // Predicated region
    $region18: #{tpu_custom_call.1} parent=1 // pred_check
      _
    $region19: #{tpu_custom_call.1} parent=1 // pred_check_branch
      %68 = sbr.rel (0) target = $region21
    $region20: #{tpu_custom_call.1} parent=1 // pred_region
      %s70 = ssub.s32 384, 384
      %71 = vsyncadd [#allocation9], %s70
      %s72 = sshll.u32 [#allocation10], 4
      %s73 = int_to_ptr.vmem [resolvable:$true] %s72
      %78 = dma.hbm_to_vmem [thread:$0]  %s4, 384, %s73, [#allocation9], 128, 128, 8
    $region21: #{tpu_custom_call.1} parent=1 // pred_fallthru
      _
    // Predicated region
    $region22: #{tpu_custom_call.1} parent=1 // pred_check
      _
    $region23: #{tpu_custom_call.1} parent=1 // pred_check_branch
      %80 = sbr.rel (0) target = $region25
    $region24: #{tpu_custom_call.1} parent=1 // pred_region
      %s82 = ssub.s32 1536, 1536
      %83 = vsyncadd [#allocation12], %s82
      %s84 = sshll.u32 [#allocation11], 4
      %s85 = int_to_ptr.vmem [resolvable:$true] %s84
      %90 = dma.hbm_to_vmem [thread:$0]  %s5, 1536, %s85, [#allocation12], 128, 128, 8
    $region25: #{tpu_custom_call.1} parent=1 // pred_fallthru
      _
    // Predicated region
    $region26: #{tpu_custom_call.1} parent=1 // pred_check
      _
    $region27: #{tpu_custom_call.1} parent=1 // pred_check_branch
      %92 = sbr.rel (0) target = $region29
    $region28: #{tpu_custom_call.1} parent=1 // pred_region
      %s94 = ssub.s32 5120, 5120
      %95 = vsyncadd [#allocation12], %s94
      %s96 = sshll.u32 [#allocation13], 4
      %s97 = int_to_ptr.vmem [resolvable:$true] %s96
      %102 = dma.hbm_to_vmem [thread:$0]  %s6, 5120, %s97, [#allocation12], 1024, 1024, 64
    $region29: #{tpu_custom_call.1} parent=1 // pred_fallthru
      _
    // Predicated region
    $region30: #{tpu_custom_call.1} parent=1 // pred_check
      _
    $region31: #{tpu_custom_call.1} parent=1 // pred_check_branch
      %104 = sbr.rel (0) target = $region33
    $region32: #{tpu_custom_call.1} parent=1 // pred_region
      %s106 = ssub.s32 4096, 4096
      %107 = vsyncadd [#allocation15], %s106
      %s108 = sshll.u32 [#allocation14], 4
      %s109 = int_to_ptr.vmem [resolvable:$true] %s108
      %114 = dma.hbm_to_vmem [thread:$0]  %s7, 4096, %s109, [#allocation15], 1024, 1024, 64
    $region33: #{tpu_custom_call.1} parent=1 // pred_fallthru
      _
    // Predicated region
    $region34: #{tpu_custom_call.1} parent=1 // pred_check
      _
    $region35: #{tpu_custom_call.1} parent=1 // pred_check_branch
      %116 = sbr.rel (0) target = $region37
    $region36: #{tpu_custom_call.1} parent=1 // pred_region
      %117 = dma.done [#allocation3], 256
    $region37: #{tpu_custom_call.1} parent=1 // pred_fallthru
      _
    // Predicated region
    $region38: #{tpu_custom_call.1} parent=1 // pred_check
      _
    $region39: #{tpu_custom_call.1} parent=1 // pred_check_branch
      %119 = sbr.rel (0) target = $region41
    $region40: #{tpu_custom_call.1} parent=1 // pred_region
      %120 = dma.done [#allocation6], 256
    $region41: #{tpu_custom_call.1} parent=1 // pred_fallthru
      _
    // Predicated region
    $region42: #{tpu_custom_call.1} parent=1 // pred_check
      _
    $region43: #{tpu_custom_call.1} parent=1 // pred_check_branch
      %122 = sbr.rel (0) target = $region45
    $region44: #{tpu_custom_call.1} parent=1 // pred_region
      %123 = dma.done [#allocation6], 256
    $region45: #{tpu_custom_call.1} parent=1 // pred_fallthru
      _
    // Predicated region
    $region46: #{tpu_custom_call.1} parent=1 // pred_check
      _
    $region47: #{tpu_custom_call.1} parent=1 // pred_check_branch
      %125 = sbr.rel (0) target = $region49
    $region48: #{tpu_custom_call.1} parent=1 // pred_region
      %126 = dma.done [#allocation9], 1024
    $region49: #{tpu_custom_call.1} parent=1 // pred_fallthru
      _
    // Predicated region
    $region50: #{tpu_custom_call.1} parent=1 // pred_check
      _
    $region51: #{tpu_custom_call.1} parent=1 // pred_check_branch
      %128 = sbr.rel (0) target = $region53
    $region52: #{tpu_custom_call.1} parent=1 // pred_region
      %129 = dma.done [#allocation9], 384
    $region53: #{tpu_custom_call.1} parent=1 // pred_fallthru
      _
    // Predicated region
    $region54: #{tpu_custom_call.1} parent=1 // pred_check
      _
    $region55: #{tpu_custom_call.1} parent=1 // pred_check_branch
      %131 = sbr.rel (0) target = $region57
    $region56: #{tpu_custom_call.1} parent=1 // pred_region
      %132 = dma.done [#allocation12], 1536
    $region57: #{tpu_custom_call.1} parent=1 // pred_fallthru
      _
    // Predicated region
    $region58: #{tpu_custom_call.1} parent=1 // pred_check
      _
    $region59: #{tpu_custom_call.1} parent=1 // pred_check_branch
      %134 = sbr.rel (0) target = $region61
    $region60: #{tpu_custom_call.1} parent=1 // pred_region
      %135 = dma.done [#allocation12], 5120
    $region61: #{tpu_custom_call.1} parent=1 // pred_fallthru
      _
    // Predicated region
    $region62: #{tpu_custom_call.1} parent=1 // pred_check
      _
    $region63: #{tpu_custom_call.1} parent=1 // pred_check_branch
      %137 = sbr.rel (0) target = $region65
    $region64: #{tpu_custom_call.1} parent=1 // pred_region
      %138 = dma.done [#allocation15], 4096
    $region65: #{tpu_custom_call.1} parent=1 // pred_fallthru
      _
    %v140 = vld [vmem:[#allocation10] sm:$0xff]
    %v141 = vld [vmem:[#allocation10 + $0x8] sm:$0xff]
    %v142 = vld [vmem:[#allocation10 + $0x10] sm:$0x1f]
    %v143 = vld [vmem:[#allocation2] sm:$0xff]
    %v144 = vld [vmem:[#allocation2 + $0x8] sm:$0xff]
    %v145 = vld [vmem:[#allocation5] sm:$0xff]
    %v146 = vld [vmem:[#allocation5 + $0x8] sm:$0xff]
    %v147 = vld [vmem:[#allocation7] sm:$0xff]
    %v148 = vld [vmem:[#allocation7 + $0x8] sm:$0xff]
    %v149 = vld [vmem:[#allocation8] sm:$0xff]
    %v150 = vld [vmem:[#allocation8 + $0x8] sm:$0xff]
    %v151 = vld [vmem:[#allocation8 + $0x10] sm:$0xff]
    %v152 = vld [vmem:[#allocation8 + $0x18] sm:$0xff]
    %v153 = vld [vmem:[#allocation8 + $0x20] sm:$0xff]
    %v154 = vld [vmem:[#allocation8 + $0x28] sm:$0xff]
    %v155 = vld [vmem:[#allocation8 + $0x30] sm:$0xff]
    %v156 = vld [vmem:[#allocation8 + $0x38] sm:$0xff]
    %vm157 = vcmask 261120
    %v158 = vsel %vm157, %v143, 0.0
    %159 = vadd.xlane.f32.xlu0 %v158
    %v160 = vpop.xlane.xlu0 %159
    %v161 = vsel %vm157, %v144, 0.0
    %162 = vadd.xlane.f32.xlu0 %v161
    %v163 = vpop.xlane.xlu0 %162
    %v164 = vrcp.pop 32.0
    %v165 = vmul.f32 %v160, %v164
    %v166 = vmul.f32 %v163, %v164
    %v167 = vsub.f32 %v143, %v165
    %v168 = vsub.f32 %v144, %v166
    %v169 = vmul.f32 %v167, %v167
    %v170 = vmul.f32 %v168, %v168
    %v171 = vsel %vm157, %v169, 0.0
    %172 = vadd.xlane.f32.xlu0 %v171
    %v173 = vpop.xlane.xlu0 %172
    %v174 = vsel %vm157, %v170, 0.0
    %175 = vadd.xlane.f32.xlu0 %v174
    %v176 = vpop.xlane.xlu0 %175
    %v177 = vmul.f32 %v173, 0.032258064
    %v178 = vmul.f32 %v176, 0.032258064
    %v179 = vrsqrt.pop %v177
    %v180 = vmul.f32 %v177, %v179
    %vm181 = vcmp.eq.f32.partialorder %v177, inf
    %v182 = vsel %vm181, %v177, %v180
    %vm183 = vcmp.eq.f32.partialorder %v177, 0.0
    %v184 = vand.u32 %v177, 2147483648
    %v185 = vsel %vm183, %v184, %v182
    %v186 = vrsqrt.pop %v178
    %v187 = vmul.f32 %v178, %v186
    %vm188 = vcmp.eq.f32.partialorder %v178, inf
    %v189 = vsel %vm188, %v178, %v187
    %vm190 = vcmp.eq.f32.partialorder %v178, 0.0
    %v191 = vand.u32 %v178, 2147483648
    %v192 = vsel %vm190, %v191, %v189
    %v193 = vadd.f32 %v185, 1e-06
    %v194 = vadd.f32 %v192, 1e-06
    %v195 = vrcp.pop %v193
    %v196 = vmul.f32 %v167, %v195
    %v197 = vrcp.pop %v194
    %v198 = vmul.f32 %v168, %v197
    %v199 = vlaneseq
    %v200 = vshrl.u32 %v199, 7
    %v201 = vsub.s32 0, %v200
    %v202 = vrot.slane %v140, %v201
    %v203 = vmul.f32 %v202, %v196
    %v204 = vmul.f32 %v202, %v198
    %v205 = vlaneseq
    %v206 = vshrl.u32 %v205, 7
    %v207 = vsub.s32 1, %v206
    %v208 = vrot.slane %v140, %v207
    %v209 = vadd.f32 %v203, %v208
    %v210 = vadd.f32 %v204, %v208
    %v211 = vld [vmem:[#allocation11] sm:$0xff]
    %v212 = vld [vmem:[#allocation11 + $0x8] sm:$0xff]
    %v213 = vld [vmem:[#allocation11 + $0x10] sm:$0xff]
    %v214 = vld [vmem:[#allocation11 + $0x18] sm:$0xff]
    %v216 = vsel %vm157, %v209, 0
    %v219 = vsel %vm157, %v210, 0
    %221 = vmatprep.subr.mxu0 0.0
    %222 = vmatpush1.msra.mxu0 0.0
    %223 = vmatprep.subr.mxu0 0.0
    %224 = vmatpush1.msra.mxu0 0.0
    %225 = vmatprep.subr.mxu0 0.0
    %226 = vmatpush1.msra.mxu0 0.0
    %227 = vmatprep.subr.mxu0 0.0
    %228 = vmatpush1.msra.mxu0 0.0
    %229 = vmatprep.subr.mxu0 0.0
    %230 = vmatpush1.msra.mxu0 0.0
    %231 = vmatprep.subr.mxu0 0.0
    %232 = vmatpush1.msra.mxu0 0.0
    %233 = vmatprep.subr.mxu0 0.0
    %234 = vmatpush1.msra.mxu0 0.0
    %235 = vmatprep.subr.mxu0 0.0
    %236 = vmatpush1.msra.mxu0 0.0
    %237 = vmatprep.subr.mxu0 0.0
    %238 = vmatpush1.msra.mxu0 0.0
    %239 = vmatprep.subr.mxu0 0.0
    %240 = vmatpush1.msra.mxu0 0.0
    %241 = vmatprep.subr.mxu0 0.0
    %242 = vmatpush1.msra.mxu0 0.0
    %243 = vmatprep.subr.mxu0 0.0
    %244 = vmatpush1.msra.mxu0 0.0
    %245 = vmatprep.subr.mxu0 0.0
    %246 = vmatpush1.msra.mxu0 %v214
    %247 = vmatprep.subr.mxu0 0.0
    %248 = vmatpush1.msra.mxu0 %v213
    %249 = vmatprep.subr.mxu0 0.0
    %250 = vmatpush1.msra.mxu0 %v212
    %251 = vmatprep.subr.mxu0 0.0
    %252 = vmatpush1.msra.mxu0 %v211
    %253 = vmatprep.subr.mxu0 0.0
    %254 = vmatpush2.msra.mxu0 0.0
    %255 = vmatprep.subr.mxu0 0.0
    %256 = vmatpush2.msra.mxu0 0.0
    %257 = vmatprep.subr.mxu0 0.0
    %258 = vmatpush2.msra.mxu0 0.0
    %259 = vmatprep.subr.mxu0 0.0
    %260 = vmatpush2.msra.mxu0 0.0
    %261 = vmatprep.subr.mxu0 0.0
    %262 = vmatpush2.msra.mxu0 0.0
    %263 = vmatprep.subr.mxu0 0.0
    %264 = vmatpush2.msra.mxu0 0.0
    %265 = vmatprep.subr.mxu0 0.0
    %266 = vmatpush2.msra.mxu0 0.0
    %267 = vmatprep.subr.mxu0 0.0
    %268 = vmatpush2.msra.mxu0 0.0
    %269 = vmatprep.subr.mxu0 0.0
    %270 = vmatpush2.msra.mxu0 0.0
    %271 = vmatprep.subr.mxu0 0.0
    %272 = vmatpush2.msra.mxu0 0.0
    %273 = vmatprep.subr.mxu0 0.0
    %274 = vmatpush2.msra.mxu0 0.0
    %275 = vmatprep.subr.mxu0 0.0
    %276 = vmatpush2.msra.mxu0 0.0
    %277 = vmatprep.subr.mxu0 0.0
    %278 = vmatpush2.msra.mxu0 0.0
    %279 = vmatprep.subr.mxu0 0.0
    %280 = vmatpush2.msra.mxu0 0.0
    %281 = vmatprep.subr.mxu0 0.0
    %282 = vmatpush2.msra.mxu0 0.0
    %283 = vmatprep.subr.mxu0 0.0
    %284 = vmatpush2.msra.mxu0 0.0
    %285 = vmatprep.mubr.f32.mxu0 0.0
    %286 = vmatmul.mubr.f32.gmra.mxu0 %v216
    %v287 = vpop.f32.mrf.mxu0
    %v288 = vadd.f32 0.0, %v287
    %v289 = vpop.f32.mrf.mxu0
    %290 = vmatprep.mubr.f32.mxu0 0.0
    %291 = vmatmul.mubr.f32.gmra.mxu0 %v219
    %v292 = vpop.f32.mrf.mxu0
    %v293 = vadd.f32 0.0, %v292
    %v294 = vpop.f32.mrf.mxu0
    %295 = vdwg.mxu0
    %v296 = vlaneseq
    %v297 = vshrl.u32 %v296, 7
    %v298 = vsub.s32 0, %v297
    %v299 = vrot.slane %v141, %v298
    %v300 = vadd.f32 %v288, %v299
    %v301 = vadd.f32 %v293, %v299
    %v302 = vlaneseq
    %v303 = vshrl.u32 %v302, 7
    %v304 = vsub.s32 1, %v303
    %v305 = vrot.slane %v141, %v304
    %307 = vrot.lane.b32.xlu0 %v305, 32
    %v308 = vpop.permute.xlu0 %307
    %v310 = vadd.f32 %v288, %v308
    %v311 = vadd.f32 %v293, %v308
    %v312 = vlaneseq
    %v313 = vshrl.u32 %v312, 7
    %v314 = vsub.s32 2, %v313
    %v315 = vrot.slane %v141, %v314
    %317 = vrot.lane.b32.xlu0 %v315, 64
    %v318 = vpop.permute.xlu0 %317
    %v320 = vadd.f32 %v288, %v318
    %v321 = vadd.f32 %v293, %v318
    %323 = vrot.lane.b32.xlu0 %v300, 120
    %v324 = vpop.permute.xlu0 %323
    %325 = vrot.lane.b32.xlu0 %v300, 112
    %v326 = vpop.permute.xlu0 %325
    %327 = vrot.lane.b32.xlu0 %v300, 104
    %v328 = vpop.permute.xlu0 %327
    %330 = vrot.lane.b32.xlu0 %v301, 120
    %v331 = vpop.permute.xlu0 %330
    %332 = vrot.lane.b32.xlu0 %v301, 112
    %v333 = vpop.permute.xlu0 %332
    %334 = vrot.lane.b32.xlu0 %v301, 104
    %v335 = vpop.permute.xlu0 %334
    %337 = vrot.lane.b32.xlu0 %v310, 120
    %v338 = vpop.permute.xlu0 %337
    %339 = vrot.lane.b32.xlu0 %v310, 112
    %v340 = vpop.permute.xlu0 %339
    %341 = vrot.lane.b32.xlu0 %v310, 104
    %v342 = vpop.permute.xlu0 %341
    %344 = vrot.lane.b32.xlu0 %v311, 120
    %v345 = vpop.permute.xlu0 %344
    %346 = vrot.lane.b32.xlu0 %v311, 112
    %v347 = vpop.permute.xlu0 %346
    %348 = vrot.lane.b32.xlu0 %v311, 104
    %v349 = vpop.permute.xlu0 %348
    %351 = vrot.lane.b32.xlu0 %v320, 120
    %v352 = vpop.permute.xlu0 %351
    %353 = vrot.lane.b32.xlu0 %v320, 112
    %v354 = vpop.permute.xlu0 %353
    %355 = vrot.lane.b32.xlu0 %v320, 104
    %v356 = vpop.permute.xlu0 %355
    %358 = vrot.lane.b32.xlu0 %v321, 120
    %v359 = vpop.permute.xlu0 %358
    %360 = vrot.lane.b32.xlu0 %v321, 112
    %v361 = vpop.permute.xlu0 %360
    %362 = vrot.lane.b32.xlu0 %v321, 104
    %v363 = vpop.permute.xlu0 %362
    %364 = vrot.lane.b32.xlu0 %v310, 96
    %v365 = vpop.permute.xlu0 %364
    %vm366 = vcmask 64512
    %v367 = vsel %vm366, %v300, 0
    %v369 = vsel %vm366, %v365, 0
    %371 = vmatprep.subr.mxu0 0.0
    %372 = vmatpush1.xpose.msra.mxu0 0.0
    %373 = vmatprep.subr.mxu0 0.0
    %374 = vmatpush1.xpose.msra.mxu0 0.0
    %375 = vmatprep.subr.mxu0 0.0
    %376 = vmatpush1.xpose.msra.mxu0 0.0
    %377 = vmatprep.subr.mxu0 0.0
    %378 = vmatpush1.xpose.msra.mxu0 0.0
    %379 = vmatprep.subr.mxu0 0.0
    %380 = vmatpush1.xpose.msra.mxu0 0.0
    %381 = vmatprep.subr.mxu0 0.0
    %382 = vmatpush1.xpose.msra.mxu0 0.0
    %383 = vmatprep.subr.mxu0 0.0
    %384 = vmatpush1.xpose.msra.mxu0 0.0
    %385 = vmatprep.subr.mxu0 0.0
    %386 = vmatpush1.xpose.msra.mxu0 0.0
    %387 = vmatprep.subr.mxu0 0.0
    %388 = vmatpush1.xpose.msra.mxu0 0.0
    %389 = vmatprep.subr.mxu0 0.0
    %390 = vmatpush1.xpose.msra.mxu0 0.0
    %391 = vmatprep.subr.mxu0 0.0
    %392 = vmatpush1.xpose.msra.mxu0 0.0
    %393 = vmatprep.subr.mxu0 0.0
    %394 = vmatpush1.xpose.msra.mxu0 0.0
    %395 = vmatprep.subr.mxu0 0.0
    %396 = vmatpush1.xpose.msra.mxu0 0.0
    %397 = vmatprep.subr.mxu0 0.0
    %398 = vmatpush1.xpose.msra.mxu0 0.0
    %399 = vmatprep.subr.mxu0 0.0
    %400 = vmatpush1.xpose.msra.mxu0 0.0
    %401 = vmatprep.subr.mxu0 0.0
    %402 = vmatpush1.xpose.msra.mxu0 %v369
    %403 = vmatprep.subr.mxu0 0.0
    %404 = vmatpush2.xpose.msra.mxu0 0.0
    %405 = vmatprep.subr.mxu0 0.0
    %406 = vmatpush2.xpose.msra.mxu0 0.0
    %407 = vmatprep.subr.mxu0 0.0
    %408 = vmatpush2.xpose.msra.mxu0 0.0
    %409 = vmatprep.subr.mxu0 0.0
    %410 = vmatpush2.xpose.msra.mxu0 0.0
    %411 = vmatprep.subr.mxu0 0.0
    %412 = vmatpush2.xpose.msra.mxu0 0.0
    %413 = vmatprep.subr.mxu0 0.0
    %414 = vmatpush2.xpose.msra.mxu0 0.0
    %415 = vmatprep.subr.mxu0 0.0
    %416 = vmatpush2.xpose.msra.mxu0 0.0
    %417 = vmatprep.subr.mxu0 0.0
    %418 = vmatpush2.xpose.msra.mxu0 0.0
    %419 = vmatprep.subr.mxu0 0.0
    %420 = vmatpush2.xpose.msra.mxu0 0.0
    %421 = vmatprep.subr.mxu0 0.0
    %422 = vmatpush2.xpose.msra.mxu0 0.0
    %423 = vmatprep.subr.mxu0 0.0
    %424 = vmatpush2.xpose.msra.mxu0 0.0
    %425 = vmatprep.subr.mxu0 0.0
    %426 = vmatpush2.xpose.msra.mxu0 0.0
    %427 = vmatprep.subr.mxu0 0.0
    %428 = vmatpush2.xpose.msra.mxu0 0.0
    %429 = vmatprep.subr.mxu0 0.0
    %430 = vmatpush2.xpose.msra.mxu0 0.0
    %431 = vmatprep.subr.mxu0 0.0
    %432 = vmatpush2.xpose.msra.mxu0 0.0
    %433 = vmatprep.subr.mxu0 0.0
    %434 = vmatpush2.xpose.msra.mxu0 0.0
    %435 = vmatprep.mubr.f32.mxu0 0.0
    %436 = vmatmul.mubr.f32.gmra.mxu0 %v367
    %v437 = vpop.f32.mrf.mxu0
    %v438 = vadd.f32 0.0, %v437
    %v439 = vpop.f32.mrf.mxu0
    %440 = vdwg.mxu0
    %441 = vrot.lane.b32.xlu0 %v338, 96
    %v442 = vpop.permute.xlu0 %441
    %v443 = vsel %vm366, %v324, 0
    %v445 = vsel %vm366, %v442, 0
    %447 = vmatprep.subr.mxu0 0.0
    %448 = vmatpush1.xpose.msra.mxu0 0.0
    %449 = vmatprep.subr.mxu0 0.0
    %450 = vmatpush1.xpose.msra.mxu0 0.0
    %451 = vmatprep.subr.mxu0 0.0
    %452 = vmatpush1.xpose.msra.mxu0 0.0
    %453 = vmatprep.subr.mxu0 0.0
    %454 = vmatpush1.xpose.msra.mxu0 0.0
    %455 = vmatprep.subr.mxu0 0.0
    %456 = vmatpush1.xpose.msra.mxu0 0.0
    %457 = vmatprep.subr.mxu0 0.0
    %458 = vmatpush1.xpose.msra.mxu0 0.0
    %459 = vmatprep.subr.mxu0 0.0
    %460 = vmatpush1.xpose.msra.mxu0 0.0
    %461 = vmatprep.subr.mxu0 0.0
    %462 = vmatpush1.xpose.msra.mxu0 0.0
    %463 = vmatprep.subr.mxu0 0.0
    %464 = vmatpush1.xpose.msra.mxu0 0.0
    %465 = vmatprep.subr.mxu0 0.0
    %466 = vmatpush1.xpose.msra.mxu0 0.0
    %467 = vmatprep.subr.mxu0 0.0
    %468 = vmatpush1.xpose.msra.mxu0 0.0
    %469 = vmatprep.subr.mxu0 0.0
    %470 = vmatpush1.xpose.msra.mxu0 0.0
    %471 = vmatprep.subr.mxu0 0.0
    %472 = vmatpush1.xpose.msra.mxu0 0.0
    %473 = vmatprep.subr.mxu0 0.0
    %474 = vmatpush1.xpose.msra.mxu0 0.0
    %475 = vmatprep.subr.mxu0 0.0
    %476 = vmatpush1.xpose.msra.mxu0 0.0
    %477 = vmatprep.subr.mxu0 0.0
    %478 = vmatpush1.xpose.msra.mxu0 %v445
    %479 = vmatprep.subr.mxu0 0.0
    %480 = vmatpush2.xpose.msra.mxu0 0.0
    %481 = vmatprep.subr.mxu0 0.0
    %482 = vmatpush2.xpose.msra.mxu0 0.0
    %483 = vmatprep.subr.mxu0 0.0
    %484 = vmatpush2.xpose.msra.mxu0 0.0
    %485 = vmatprep.subr.mxu0 0.0
    %486 = vmatpush2.xpose.msra.mxu0 0.0
    %487 = vmatprep.subr.mxu0 0.0
    %488 = vmatpush2.xpose.msra.mxu0 0.0
    %489 = vmatprep.subr.mxu0 0.0
    %490 = vmatpush2.xpose.msra.mxu0 0.0
    %491 = vmatprep.subr.mxu0 0.0
    %492 = vmatpush2.xpose.msra.mxu0 0.0
    %493 = vmatprep.subr.mxu0 0.0
    %494 = vmatpush2.xpose.msra.mxu0 0.0
    %495 = vmatprep.subr.mxu0 0.0
    %496 = vmatpush2.xpose.msra.mxu0 0.0
    %497 = vmatprep.subr.mxu0 0.0
    %498 = vmatpush2.xpose.msra.mxu0 0.0
    %499 = vmatprep.subr.mxu0 0.0
    %500 = vmatpush2.xpose.msra.mxu0 0.0
    %501 = vmatprep.subr.mxu0 0.0
    %502 = vmatpush2.xpose.msra.mxu0 0.0
    %503 = vmatprep.subr.mxu0 0.0
    %504 = vmatpush2.xpose.msra.mxu0 0.0
    %505 = vmatprep.subr.mxu0 0.0
    %506 = vmatpush2.xpose.msra.mxu0 0.0
    %507 = vmatprep.subr.mxu0 0.0
    %508 = vmatpush2.xpose.msra.mxu0 0.0
    %509 = vmatprep.subr.mxu0 0.0
    %510 = vmatpush2.xpose.msra.mxu0 0.0
    %511 = vmatprep.mubr.f32.mxu0 0.0
    %512 = vmatmul.mubr.f32.gmra.mxu0 %v443
    %v513 = vpop.f32.mrf.mxu0
    %v514 = vadd.f32 0.0, %v513
    %v515 = vpop.f32.mrf.mxu0
    %516 = vdwg.mxu0
    %517 = vrot.lane.b32.xlu0 %v340, 96
    %v518 = vpop.permute.xlu0 %517
    %v519 = vsel %vm366, %v326, 0
    %v521 = vsel %vm366, %v518, 0
    %523 = vmatprep.subr.mxu0 0.0
    %524 = vmatpush1.xpose.msra.mxu0 0.0
    %525 = vmatprep.subr.mxu0 0.0
    %526 = vmatpush1.xpose.msra.mxu0 0.0
    %527 = vmatprep.subr.mxu0 0.0
    %528 = vmatpush1.xpose.msra.mxu0 0.0
    %529 = vmatprep.subr.mxu0 0.0
    %530 = vmatpush1.xpose.msra.mxu0 0.0
    %531 = vmatprep.subr.mxu0 0.0
    %532 = vmatpush1.xpose.msra.mxu0 0.0
    %533 = vmatprep.subr.mxu0 0.0
    %534 = vmatpush1.xpose.msra.mxu0 0.0
    %535 = vmatprep.subr.mxu0 0.0
    %536 = vmatpush1.xpose.msra.mxu0 0.0
    %537 = vmatprep.subr.mxu0 0.0
    %538 = vmatpush1.xpose.msra.mxu0 0.0
    %539 = vmatprep.subr.mxu0 0.0
    %540 = vmatpush1.xpose.msra.mxu0 0.0
    %541 = vmatprep.subr.mxu0 0.0
    %542 = vmatpush1.xpose.msra.mxu0 0.0
    %543 = vmatprep.subr.mxu0 0.0
    %544 = vmatpush1.xpose.msra.mxu0 0.0
    %545 = vmatprep.subr.mxu0 0.0
    %546 = vmatpush1.xpose.msra.mxu0 0.0
    %547 = vmatprep.subr.mxu0 0.0
    %548 = vmatpush1.xpose.msra.mxu0 0.0
    %549 = vmatprep.subr.mxu0 0.0
    %550 = vmatpush1.xpose.msra.mxu0 0.0
    %551 = vmatprep.subr.mxu0 0.0
    %552 = vmatpush1.xpose.msra.mxu0 0.0
    %553 = vmatprep.subr.mxu0 0.0
    %554 = vmatpush1.xpose.msra.mxu0 %v521
    %555 = vmatprep.subr.mxu0 0.0
    %556 = vmatpush2.xpose.msra.mxu0 0.0
    %557 = vmatprep.subr.mxu0 0.0
    %558 = vmatpush2.xpose.msra.mxu0 0.0
    %559 = vmatprep.subr.mxu0 0.0
    %560 = vmatpush2.xpose.msra.mxu0 0.0
    %561 = vmatprep.subr.mxu0 0.0
    %562 = vmatpush2.xpose.msra.mxu0 0.0
    %563 = vmatprep.subr.mxu0 0.0
    %564 = vmatpush2.xpose.msra.mxu0 0.0
    %565 = vmatprep.subr.mxu0 0.0
    %566 = vmatpush2.xpose.msra.mxu0 0.0
    %567 = vmatprep.subr.mxu0 0.0
    %568 = vmatpush2.xpose.msra.mxu0 0.0
    %569 = vmatprep.subr.mxu0 0.0
    %570 = vmatpush2.xpose.msra.mxu0 0.0
    %571 = vmatprep.subr.mxu0 0.0
    %572 = vmatpush2.xpose.msra.mxu0 0.0
    %573 = vmatprep.subr.mxu0 0.0
    %574 = vmatpush2.xpose.msra.mxu0 0.0
    %575 = vmatprep.subr.mxu0 0.0
    %576 = vmatpush2.xpose.msra.mxu0 0.0
    %577 = vmatprep.subr.mxu0 0.0
    %578 = vmatpush2.xpose.msra.mxu0 0.0
    %579 = vmatprep.subr.mxu0 0.0
    %580 = vmatpush2.xpose.msra.mxu0 0.0
    %581 = vmatprep.subr.mxu0 0.0
    %582 = vmatpush2.xpose.msra.mxu0 0.0
    %583 = vmatprep.subr.mxu0 0.0
    %584 = vmatpush2.xpose.msra.mxu0 0.0
    %585 = vmatprep.subr.mxu0 0.0
    %586 = vmatpush2.xpose.msra.mxu0 0.0
    %587 = vmatprep.mubr.f32.mxu0 0.0
    %588 = vmatmul.mubr.f32.gmra.mxu0 %v519
    %v589 = vpop.f32.mrf.mxu0
    %v590 = vadd.f32 0.0, %v589
    %v591 = vpop.f32.mrf.mxu0
    %592 = vdwg.mxu0
    %593 = vrot.lane.b32.xlu0 %v342, 96
    %v594 = vpop.permute.xlu0 %593
    %v595 = vsel %vm366, %v328, 0
    %v597 = vsel %vm366, %v594, 0
    %599 = vmatprep.subr.mxu0 0.0
    %600 = vmatpush1.xpose.msra.mxu0 0.0
    %601 = vmatprep.subr.mxu0 0.0
    %602 = vmatpush1.xpose.msra.mxu0 0.0
    %603 = vmatprep.subr.mxu0 0.0
    %604 = vmatpush1.xpose.msra.mxu0 0.0
    %605 = vmatprep.subr.mxu0 0.0
    %606 = vmatpush1.xpose.msra.mxu0 0.0
    %607 = vmatprep.subr.mxu0 0.0
    %608 = vmatpush1.xpose.msra.mxu0 0.0
    %609 = vmatprep.subr.mxu0 0.0
    %610 = vmatpush1.xpose.msra.mxu0 0.0
    %611 = vmatprep.subr.mxu0 0.0
    %612 = vmatpush1.xpose.msra.mxu0 0.0
    %613 = vmatprep.subr.mxu0 0.0
    %614 = vmatpush1.xpose.msra.mxu0 0.0
    %615 = vmatprep.subr.mxu0 0.0
    %616 = vmatpush1.xpose.msra.mxu0 0.0
    %617 = vmatprep.subr.mxu0 0.0
    %618 = vmatpush1.xpose.msra.mxu0 0.0
    %619 = vmatprep.subr.mxu0 0.0
    %620 = vmatpush1.xpose.msra.mxu0 0.0
    %621 = vmatprep.subr.mxu0 0.0
    %622 = vmatpush1.xpose.msra.mxu0 0.0
    %623 = vmatprep.subr.mxu0 0.0
    %624 = vmatpush1.xpose.msra.mxu0 0.0
    %625 = vmatprep.subr.mxu0 0.0
    %626 = vmatpush1.xpose.msra.mxu0 0.0
    %627 = vmatprep.subr.mxu0 0.0
    %628 = vmatpush1.xpose.msra.mxu0 0.0
    %629 = vmatprep.subr.mxu0 0.0
    %630 = vmatpush1.xpose.msra.mxu0 %v597
    %631 = vmatprep.subr.mxu0 0.0
    %632 = vmatpush2.xpose.msra.mxu0 0.0
    %633 = vmatprep.subr.mxu0 0.0
    %634 = vmatpush2.xpose.msra.mxu0 0.0
    %635 = vmatprep.subr.mxu0 0.0
    %636 = vmatpush2.xpose.msra.mxu0 0.0
    %637 = vmatprep.subr.mxu0 0.0
    %638 = vmatpush2.xpose.msra.mxu0 0.0
    %639 = vmatprep.subr.mxu0 0.0
    %640 = vmatpush2.xpose.msra.mxu0 0.0
    %641 = vmatprep.subr.mxu0 0.0
    %642 = vmatpush2.xpose.msra.mxu0 0.0
    %643 = vmatprep.subr.mxu0 0.0
    %644 = vmatpush2.xpose.msra.mxu0 0.0
    %645 = vmatprep.subr.mxu0 0.0
    %646 = vmatpush2.xpose.msra.mxu0 0.0
    %647 = vmatprep.subr.mxu0 0.0
    %648 = vmatpush2.xpose.msra.mxu0 0.0
    %649 = vmatprep.subr.mxu0 0.0
    %650 = vmatpush2.xpose.msra.mxu0 0.0
    %651 = vmatprep.subr.mxu0 0.0
    %652 = vmatpush2.xpose.msra.mxu0 0.0
    %653 = vmatprep.subr.mxu0 0.0
    %654 = vmatpush2.xpose.msra.mxu0 0.0
    %655 = vmatprep.subr.mxu0 0.0
    %656 = vmatpush2.xpose.msra.mxu0 0.0
    %657 = vmatprep.subr.mxu0 0.0
    %658 = vmatpush2.xpose.msra.mxu0 0.0
    %659 = vmatprep.subr.mxu0 0.0
    %660 = vmatpush2.xpose.msra.mxu0 0.0
    %661 = vmatprep.subr.mxu0 0.0
    %662 = vmatpush2.xpose.msra.mxu0 0.0
    %663 = vmatprep.mubr.f32.mxu0 0.0
    %664 = vmatmul.mubr.f32.gmra.mxu0 %v595
    %v665 = vpop.f32.mrf.mxu0
    %v666 = vadd.f32 0.0, %v665
    %v667 = vpop.f32.mrf.mxu0
    %668 = vdwg.mxu0
    %669 = vrot.lane.b32.xlu0 %v311, 96
    %v670 = vpop.permute.xlu0 %669
    %v671 = vsel %vm366, %v301, 0
    %v673 = vsel %vm366, %v670, 0
    %675 = vmatprep.subr.mxu0 0.0
    %676 = vmatpush1.xpose.msra.mxu0 0.0
    %677 = vmatprep.subr.mxu0 0.0
    %678 = vmatpush1.xpose.msra.mxu0 0.0
    %679 = vmatprep.subr.mxu0 0.0
    %680 = vmatpush1.xpose.msra.mxu0 0.0
    %681 = vmatprep.subr.mxu0 0.0
    %682 = vmatpush1.xpose.msra.mxu0 0.0
    %683 = vmatprep.subr.mxu0 0.0
    %684 = vmatpush1.xpose.msra.mxu0 0.0
    %685 = vmatprep.subr.mxu0 0.0
    %686 = vmatpush1.xpose.msra.mxu0 0.0
    %687 = vmatprep.subr.mxu0 0.0
    %688 = vmatpush1.xpose.msra.mxu0 0.0
    %689 = vmatprep.subr.mxu0 0.0
    %690 = vmatpush1.xpose.msra.mxu0 0.0
    %691 = vmatprep.subr.mxu0 0.0
    %692 = vmatpush1.xpose.msra.mxu0 0.0
    %693 = vmatprep.subr.mxu0 0.0
    %694 = vmatpush1.xpose.msra.mxu0 0.0
    %695 = vmatprep.subr.mxu0 0.0
    %696 = vmatpush1.xpose.msra.mxu0 0.0
    %697 = vmatprep.subr.mxu0 0.0
    %698 = vmatpush1.xpose.msra.mxu0 0.0
    %699 = vmatprep.subr.mxu0 0.0
    %700 = vmatpush1.xpose.msra.mxu0 0.0
    %701 = vmatprep.subr.mxu0 0.0
    %702 = vmatpush1.xpose.msra.mxu0 0.0
    %703 = vmatprep.subr.mxu0 0.0
    %704 = vmatpush1.xpose.msra.mxu0 0.0
    %705 = vmatprep.subr.mxu0 0.0
    %706 = vmatpush1.xpose.msra.mxu0 %v673
    %707 = vmatprep.subr.mxu0 0.0
    %708 = vmatpush2.xpose.msra.mxu0 0.0
    %709 = vmatprep.subr.mxu0 0.0
    %710 = vmatpush2.xpose.msra.mxu0 0.0
    %711 = vmatprep.subr.mxu0 0.0
    %712 = vmatpush2.xpose.msra.mxu0 0.0
    %713 = vmatprep.subr.mxu0 0.0
    %714 = vmatpush2.xpose.msra.mxu0 0.0
    %715 = vmatprep.subr.mxu0 0.0
    %716 = vmatpush2.xpose.msra.mxu0 0.0
    %717 = vmatprep.subr.mxu0 0.0
    %718 = vmatpush2.xpose.msra.mxu0 0.0
    %719 = vmatprep.subr.mxu0 0.0
    %720 = vmatpush2.xpose.msra.mxu0 0.0
    %721 = vmatprep.subr.mxu0 0.0
    %722 = vmatpush2.xpose.msra.mxu0 0.0
    %723 = vmatprep.subr.mxu0 0.0
    %724 = vmatpush2.xpose.msra.mxu0 0.0
    %725 = vmatprep.subr.mxu0 0.0
    %726 = vmatpush2.xpose.msra.mxu0 0.0
    %727 = vmatprep.subr.mxu0 0.0
    %728 = vmatpush2.xpose.msra.mxu0 0.0
    %729 = vmatprep.subr.mxu0 0.0
    %730 = vmatpush2.xpose.msra.mxu0 0.0
    %731 = vmatprep.subr.mxu0 0.0
    %732 = vmatpush2.xpose.msra.mxu0 0.0
    %733 = vmatprep.subr.mxu0 0.0
    %734 = vmatpush2.xpose.msra.mxu0 0.0
    %735 = vmatprep.subr.mxu0 0.0
    %736 = vmatpush2.xpose.msra.mxu0 0.0
    %737 = vmatprep.subr.mxu0 0.0
    %738 = vmatpush2.xpose.msra.mxu0 0.0
    %739 = vmatprep.mubr.f32.mxu0 0.0
    %740 = vmatmul.mubr.f32.gmra.mxu0 %v671
    %v741 = vpop.f32.mrf.mxu0
    %v742 = vadd.f32 0.0, %v741
    %v743 = vpop.f32.mrf.mxu0
    %744 = vdwg.mxu0
    %745 = vrot.lane.b32.xlu0 %v345, 96
    %v746 = vpop.permute.xlu0 %745
    %v747 = vsel %vm366, %v331, 0
    %v749 = vsel %vm366, %v746, 0
    %751 = vmatprep.subr.mxu0 0.0
    %752 = vmatpush1.xpose.msra.mxu0 0.0
    %753 = vmatprep.subr.mxu0 0.0
    %754 = vmatpush1.xpose.msra.mxu0 0.0
    %755 = vmatprep.subr.mxu0 0.0
    %756 = vmatpush1.xpose.msra.mxu0 0.0
    %757 = vmatprep.subr.mxu0 0.0
    %758 = vmatpush1.xpose.msra.mxu0 0.0
    %759 = vmatprep.subr.mxu0 0.0
    %760 = vmatpush1.xpose.msra.mxu0 0.0
    %761 = vmatprep.subr.mxu0 0.0
    %762 = vmatpush1.xpose.msra.mxu0 0.0
    %763 = vmatprep.subr.mxu0 0.0
    %764 = vmatpush1.xpose.msra.mxu0 0.0
    %765 = vmatprep.subr.mxu0 0.0
    %766 = vmatpush1.xpose.msra.mxu0 0.0
    %767 = vmatprep.subr.mxu0 0.0
    %768 = vmatpush1.xpose.msra.mxu0 0.0
    %769 = vmatprep.subr.mxu0 0.0
    %770 = vmatpush1.xpose.msra.mxu0 0.0
    %771 = vmatprep.subr.mxu0 0.0
    %772 = vmatpush1.xpose.msra.mxu0 0.0
    %773 = vmatprep.subr.mxu0 0.0
    %774 = vmatpush1.xpose.msra.mxu0 0.0
    %775 = vmatprep.subr.mxu0 0.0
    %776 = vmatpush1.xpose.msra.mxu0 0.0
    %777 = vmatprep.subr.mxu0 0.0
    %778 = vmatpush1.xpose.msra.mxu0 0.0
    %779 = vmatprep.subr.mxu0 0.0
    %780 = vmatpush1.xpose.msra.mxu0 0.0
    %781 = vmatprep.subr.mxu0 0.0
    %782 = vmatpush1.xpose.msra.mxu0 %v749
    %783 = vmatprep.subr.mxu0 0.0
    %784 = vmatpush2.xpose.msra.mxu0 0.0
    %785 = vmatprep.subr.mxu0 0.0
    %786 = vmatpush2.xpose.msra.mxu0 0.0
    %787 = vmatprep.subr.mxu0 0.0
    %788 = vmatpush2.xpose.msra.mxu0 0.0
    %789 = vmatprep.subr.mxu0 0.0
    %790 = vmatpush2.xpose.msra.mxu0 0.0
    %791 = vmatprep.subr.mxu0 0.0
    %792 = vmatpush2.xpose.msra.mxu0 0.0
    %793 = vmatprep.subr.mxu0 0.0
    %794 = vmatpush2.xpose.msra.mxu0 0.0
    %795 = vmatprep.subr.mxu0 0.0
    %796 = vmatpush2.xpose.msra.mxu0 0.0
    %797 = vmatprep.subr.mxu0 0.0
    %798 = vmatpush2.xpose.msra.mxu0 0.0
    %799 = vmatprep.subr.mxu0 0.0
    %800 = vmatpush2.xpose.msra.mxu0 0.0
    %801 = vmatprep.subr.mxu0 0.0
    %802 = vmatpush2.xpose.msra.mxu0 0.0
    %803 = vmatprep.subr.mxu0 0.0
    %804 = vmatpush2.xpose.msra.mxu0 0.0
    %805 = vmatprep.subr.mxu0 0.0
    %806 = vmatpush2.xpose.msra.mxu0 0.0
    %807 = vmatprep.subr.mxu0 0.0
    %808 = vmatpush2.xpose.msra.mxu0 0.0
    %809 = vmatprep.subr.mxu0 0.0
    %810 = vmatpush2.xpose.msra.mxu0 0.0
    %811 = vmatprep.subr.mxu0 0.0
    %812 = vmatpush2.xpose.msra.mxu0 0.0
    %813 = vmatprep.subr.mxu0 0.0
    %814 = vmatpush2.xpose.msra.mxu0 0.0
    %815 = vmatprep.mubr.f32.mxu0 0.0
    %816 = vmatmul.mubr.f32.gmra.mxu0 %v747
    %v817 = vpop.f32.mrf.mxu0
    %v818 = vadd.f32 0.0, %v817
    %v819 = vpop.f32.mrf.mxu0
    %820 = vdwg.mxu0
    %821 = vrot.lane.b32.xlu0 %v347, 96
    %v822 = vpop.permute.xlu0 %821
    %v823 = vsel %vm366, %v333, 0
    %v825 = vsel %vm366, %v822, 0
    %827 = vmatprep.subr.mxu0 0.0
    %828 = vmatpush1.xpose.msra.mxu0 0.0
    %829 = vmatprep.subr.mxu0 0.0
    %830 = vmatpush1.xpose.msra.mxu0 0.0
    %831 = vmatprep.subr.mxu0 0.0
    %832 = vmatpush1.xpose.msra.mxu0 0.0
    %833 = vmatprep.subr.mxu0 0.0
    %834 = vmatpush1.xpose.msra.mxu0 0.0
    %835 = vmatprep.subr.mxu0 0.0
    %836 = vmatpush1.xpose.msra.mxu0 0.0
    %837 = vmatprep.subr.mxu0 0.0
    %838 = vmatpush1.xpose.msra.mxu0 0.0
    %839 = vmatprep.subr.mxu0 0.0
    %840 = vmatpush1.xpose.msra.mxu0 0.0
    %841 = vmatprep.subr.mxu0 0.0
    %842 = vmatpush1.xpose.msra.mxu0 0.0
    %843 = vmatprep.subr.mxu0 0.0
    %844 = vmatpush1.xpose.msra.mxu0 0.0
    %845 = vmatprep.subr.mxu0 0.0
    %846 = vmatpush1.xpose.msra.mxu0 0.0
    %847 = vmatprep.subr.mxu0 0.0
    %848 = vmatpush1.xpose.msra.mxu0 0.0
    %849 = vmatprep.subr.mxu0 0.0
    %850 = vmatpush1.xpose.msra.mxu0 0.0
    %851 = vmatprep.subr.mxu0 0.0
    %852 = vmatpush1.xpose.msra.mxu0 0.0
    %853 = vmatprep.subr.mxu0 0.0
    %854 = vmatpush1.xpose.msra.mxu0 0.0
    %855 = vmatprep.subr.mxu0 0.0
    %856 = vmatpush1.xpose.msra.mxu0 0.0
    %857 = vmatprep.subr.mxu0 0.0
    %858 = vmatpush1.xpose.msra.mxu0 %v825
    %859 = vmatprep.subr.mxu0 0.0
    %860 = vmatpush2.xpose.msra.mxu0 0.0
    %861 = vmatprep.subr.mxu0 0.0
    %862 = vmatpush2.xpose.msra.mxu0 0.0
    %863 = vmatprep.subr.mxu0 0.0
    %864 = vmatpush2.xpose.msra.mxu0 0.0
    %865 = vmatprep.subr.mxu0 0.0
    %866 = vmatpush2.xpose.msra.mxu0 0.0
    %867 = vmatprep.subr.mxu0 0.0
    %868 = vmatpush2.xpose.msra.mxu0 0.0
    %869 = vmatprep.subr.mxu0 0.0
    %870 = vmatpush2.xpose.msra.mxu0 0.0
    %871 = vmatprep.subr.mxu0 0.0
    %872 = vmatpush2.xpose.msra.mxu0 0.0
    %873 = vmatprep.subr.mxu0 0.0
    %874 = vmatpush2.xpose.msra.mxu0 0.0
    %875 = vmatprep.subr.mxu0 0.0
    %876 = vmatpush2.xpose.msra.mxu0 0.0
    %877 = vmatprep.subr.mxu0 0.0
    %878 = vmatpush2.xpose.msra.mxu0 0.0
    %879 = vmatprep.subr.mxu0 0.0
    %880 = vmatpush2.xpose.msra.mxu0 0.0
    %881 = vmatprep.subr.mxu0 0.0
    %882 = vmatpush2.xpose.msra.mxu0 0.0
    %883 = vmatprep.subr.mxu0 0.0
    %884 = vmatpush2.xpose.msra.mxu0 0.0
    %885 = vmatprep.subr.mxu0 0.0
    %886 = vmatpush2.xpose.msra.mxu0 0.0
    %887 = vmatprep.subr.mxu0 0.0
    %888 = vmatpush2.xpose.msra.mxu0 0.0
    %889 = vmatprep.subr.mxu0 0.0
    %890 = vmatpush2.xpose.msra.mxu0 0.0
    %891 = vmatprep.mubr.f32.mxu0 0.0
    %892 = vmatmul.mubr.f32.gmra.mxu0 %v823
    %v893 = vpop.f32.mrf.mxu0
    %v894 = vadd.f32 0.0, %v893
    %v895 = vpop.f32.mrf.mxu0
    %896 = vdwg.mxu0
    %897 = vrot.lane.b32.xlu0 %v349, 96
    %v898 = vpop.permute.xlu0 %897
    %v899 = vsel %vm366, %v335, 0
    %v901 = vsel %vm366, %v898, 0
    %903 = vmatprep.subr.mxu0 0.0
    %904 = vmatpush1.xpose.msra.mxu0 0.0
    %905 = vmatprep.subr.mxu0 0.0
    %906 = vmatpush1.xpose.msra.mxu0 0.0
    %907 = vmatprep.subr.mxu0 0.0
    %908 = vmatpush1.xpose.msra.mxu0 0.0
    %909 = vmatprep.subr.mxu0 0.0
    %910 = vmatpush1.xpose.msra.mxu0 0.0
    %911 = vmatprep.subr.mxu0 0.0
    %912 = vmatpush1.xpose.msra.mxu0 0.0
    %913 = vmatprep.subr.mxu0 0.0
    %914 = vmatpush1.xpose.msra.mxu0 0.0
    %915 = vmatprep.subr.mxu0 0.0
    %916 = vmatpush1.xpose.msra.mxu0 0.0
    %917 = vmatprep.subr.mxu0 0.0
    %918 = vmatpush1.xpose.msra.mxu0 0.0
    %919 = vmatprep.subr.mxu0 0.0
    %920 = vmatpush1.xpose.msra.mxu0 0.0
    %921 = vmatprep.subr.mxu0 0.0
    %922 = vmatpush1.xpose.msra.mxu0 0.0
    %923 = vmatprep.subr.mxu0 0.0
    %924 = vmatpush1.xpose.msra.mxu0 0.0
    %925 = vmatprep.subr.mxu0 0.0
    %926 = vmatpush1.xpose.msra.mxu0 0.0
    %927 = vmatprep.subr.mxu0 0.0
    %928 = vmatpush1.xpose.msra.mxu0 0.0
    %929 = vmatprep.subr.mxu0 0.0
    %930 = vmatpush1.xpose.msra.mxu0 0.0
    %931 = vmatprep.subr.mxu0 0.0
    %932 = vmatpush1.xpose.msra.mxu0 0.0
    %933 = vmatprep.subr.mxu0 0.0
    %934 = vmatpush1.xpose.msra.mxu0 %v901
    %935 = vmatprep.subr.mxu0 0.0
    %936 = vmatpush2.xpose.msra.mxu0 0.0
    %937 = vmatprep.subr.mxu0 0.0
    %938 = vmatpush2.xpose.msra.mxu0 0.0
    %939 = vmatprep.subr.mxu0 0.0
    %940 = vmatpush2.xpose.msra.mxu0 0.0
    %941 = vmatprep.subr.mxu0 0.0
    %942 = vmatpush2.xpose.msra.mxu0 0.0
    %943 = vmatprep.subr.mxu0 0.0
    %944 = vmatpush2.xpose.msra.mxu0 0.0
    %945 = vmatprep.subr.mxu0 0.0
    %946 = vmatpush2.xpose.msra.mxu0 0.0
    %947 = vmatprep.subr.mxu0 0.0
    %948 = vmatpush2.xpose.msra.mxu0 0.0
    %949 = vmatprep.subr.mxu0 0.0
    %950 = vmatpush2.xpose.msra.mxu0 0.0
    %951 = vmatprep.subr.mxu0 0.0
    %952 = vmatpush2.xpose.msra.mxu0 0.0
    %953 = vmatprep.subr.mxu0 0.0
    %954 = vmatpush2.xpose.msra.mxu0 0.0
    %955 = vmatprep.subr.mxu0 0.0
    %956 = vmatpush2.xpose.msra.mxu0 0.0
    %957 = vmatprep.subr.mxu0 0.0
    %958 = vmatpush2.xpose.msra.mxu0 0.0
    %959 = vmatprep.subr.mxu0 0.0
    %960 = vmatpush2.xpose.msra.mxu0 0.0
    %961 = vmatprep.subr.mxu0 0.0
    %962 = vmatpush2.xpose.msra.mxu0 0.0
    %963 = vmatprep.subr.mxu0 0.0
    %964 = vmatpush2.xpose.msra.mxu0 0.0
    %965 = vmatprep.subr.mxu0 0.0
    %966 = vmatpush2.xpose.msra.mxu0 0.0
    %967 = vmatprep.mubr.f32.mxu0 0.0
    %968 = vmatmul.mubr.f32.gmra.mxu0 %v899
    %v969 = vpop.f32.mrf.mxu0
    %v970 = vadd.f32 0.0, %v969
    %v971 = vpop.f32.mrf.mxu0
    %972 = vdwg.mxu0
    %v973 = vmul.f32 %v438, 0.35355338
    %v974 = vmul.f32 %v514, 0.35355338
    %v975 = vmul.f32 %v590, 0.35355338
    %v976 = vmul.f32 %v666, 0.35355338
    %v977 = vmul.f32 %v742, 0.35355338
    %v978 = vmul.f32 %v818, 0.35355338
    %v979 = vmul.f32 %v894, 0.35355338
    %v980 = vmul.f32 %v970, 0.35355338
    %v981 = vadd.f32 %v973, %v149
    %v982 = vadd.f32 %v974, %v150
    %v983 = vadd.f32 %v975, %v151
    %v984 = vadd.f32 %v976, %v152
    %v985 = vadd.f32 %v977, %v153
    %v986 = vadd.f32 %v978, %v154
    %v987 = vadd.f32 %v979, %v155
    %v988 = vadd.f32 %v980, %v156
    %v989 = vsel %vm366, %v981, -inf
    %990 = vmax.xlane.f32.xlu0 %v989
    %v991 = vpop.xlane.xlu0 %990
    %v992 = vsel %vm366, %v982, -inf
    %993 = vmax.xlane.f32.xlu0 %v992
    %v994 = vpop.xlane.xlu0 %993
    %v995 = vsel %vm366, %v983, -inf
    %996 = vmax.xlane.f32.xlu0 %v995
    %v997 = vpop.xlane.xlu0 %996
    %v998 = vsel %vm366, %v984, -inf
    %999 = vmax.xlane.f32.xlu0 %v998
    %v1000 = vpop.xlane.xlu0 %999
    %v1001 = vsel %vm366, %v985, -inf
    %1002 = vmax.xlane.f32.xlu0 %v1001
    %v1003 = vpop.xlane.xlu0 %1002
    %v1004 = vsel %vm366, %v986, -inf
    %1005 = vmax.xlane.f32.xlu0 %v1004
    %v1006 = vpop.xlane.xlu0 %1005
    %v1007 = vsel %vm366, %v987, -inf
    %1008 = vmax.xlane.f32.xlu0 %v1007
    %v1009 = vpop.xlane.xlu0 %1008
    %v1010 = vsel %vm366, %v988, -inf
    %1011 = vmax.xlane.f32.xlu0 %v1010
    %v1012 = vpop.xlane.xlu0 %1011
    %v1013 = vsub.f32 %v981, %v991
    %v1014 = vsub.f32 %v982, %v994
    %v1015 = vsub.f32 %v983, %v997
    %v1016 = vsub.f32 %v984, %v1000
    %v1017 = vsub.f32 %v985, %v1003
    %v1018 = vsub.f32 %v986, %v1006
    %v1019 = vsub.f32 %v987, %v1009
    %v1020 = vsub.f32 %v988, %v1012
    %v1021 = vmul.f32 %v1013, 1.442695
    %v1022 = vpow.pop %v1021
    %v1023 = vmul.f32 %v1014, 1.442695
    %v1024 = vpow.pop %v1023
    %v1025 = vmul.f32 %v1015, 1.442695
    %v1026 = vpow.pop %v1025
    %v1027 = vmul.f32 %v1016, 1.442695
    %v1028 = vpow.pop %v1027
    %v1029 = vmul.f32 %v1017, 1.442695
    %v1030 = vpow.pop %v1029
    %v1031 = vmul.f32 %v1018, 1.442695
    %v1032 = vpow.pop %v1031
    %v1033 = vmul.f32 %v1019, 1.442695
    %v1034 = vpow.pop %v1033
    %v1035 = vmul.f32 %v1020, 1.442695
    %v1036 = vpow.pop %v1035
    %v1037 = vsel %vm366, %v1022, 0.0
    %1038 = vadd.xlane.f32.xlu0 %v1037
    %v1039 = vpop.xlane.xlu0 %1038
    %v1040 = vsel %vm366, %v1024, 0.0
    %1041 = vadd.xlane.f32.xlu0 %v1040
    %v1042 = vpop.xlane.xlu0 %1041
    %v1043 = vsel %vm366, %v1026, 0.0
    %1044 = vadd.xlane.f32.xlu0 %v1043
    %v1045 = vpop.xlane.xlu0 %1044
    %v1046 = vsel %vm366, %v1028, 0.0
    %1047 = vadd.xlane.f32.xlu0 %v1046
    %v1048 = vpop.xlane.xlu0 %1047
    %v1049 = vsel %vm366, %v1030, 0.0
    %1050 = vadd.xlane.f32.xlu0 %v1049
    %v1051 = vpop.xlane.xlu0 %1050
    %v1052 = vsel %vm366, %v1032, 0.0
    %1053 = vadd.xlane.f32.xlu0 %v1052
    %v1054 = vpop.xlane.xlu0 %1053
    %v1055 = vsel %vm366, %v1034, 0.0
    %1056 = vadd.xlane.f32.xlu0 %v1055
    %v1057 = vpop.xlane.xlu0 %1056
    %v1058 = vsel %vm366, %v1036, 0.0
    %1059 = vadd.xlane.f32.xlu0 %v1058
    %v1060 = vpop.xlane.xlu0 %1059
    %v1061 = vrcp.pop %v1039
    %v1062 = vrcp.pop %v1042
    %v1063 = vrcp.pop %v1045
    %v1064 = vrcp.pop %v1048
    %v1065 = vrcp.pop %v1051
    %v1066 = vrcp.pop %v1054
    %v1067 = vrcp.pop %v1057
    %v1068 = vrcp.pop %v1060
    %v1069 = vmul.f32 %v1022, %v1061
    %v1070 = vmul.f32 %v1024, %v1062
    %v1071 = vmul.f32 %v1026, %v1063
    %v1072 = vmul.f32 %v1028, %v1064
    %v1073 = vmul.f32 %v1030, %v1065
    %v1074 = vmul.f32 %v1032, %v1066
    %v1075 = vmul.f32 %v1034, %v1067
    %v1076 = vmul.f32 %v1036, %v1068
    %1077 = vrot.lane.b32.xlu0 %v320, 64
    %v1078 = vpop.permute.xlu0 %1077
    %v1081 = vsel %vm366, %v1069, 0
    %1083 = vmatprep.subr.mxu0 0.0
    %1084 = vmatpush1.msra.mxu0 0.0
    %1085 = vmatprep.subr.mxu0 0.0
    %1086 = vmatpush1.msra.mxu0 0.0
    %1087 = vmatprep.subr.mxu0 0.0
    %1088 = vmatpush1.msra.mxu0 0.0
    %1089 = vmatprep.subr.mxu0 0.0
    %1090 = vmatpush1.msra.mxu0 0.0
    %1091 = vmatprep.subr.mxu0 0.0
    %1092 = vmatpush1.msra.mxu0 0.0
    %1093 = vmatprep.subr.mxu0 0.0
    %1094 = vmatpush1.msra.mxu0 0.0
    %1095 = vmatprep.subr.mxu0 0.0
    %1096 = vmatpush1.msra.mxu0 0.0
    %1097 = vmatprep.subr.mxu0 0.0
    %1098 = vmatpush1.msra.mxu0 0.0
    %1099 = vmatprep.subr.mxu0 0.0
    %1100 = vmatpush1.msra.mxu0 0.0
    %1101 = vmatprep.subr.mxu0 0.0
    %1102 = vmatpush1.msra.mxu0 0.0
    %1103 = vmatprep.subr.mxu0 0.0
    %1104 = vmatpush1.msra.mxu0 0.0
    %1105 = vmatprep.subr.mxu0 0.0
    %1106 = vmatpush1.msra.mxu0 0.0
    %1107 = vmatprep.subr.mxu0 0.0
    %1108 = vmatpush1.msra.mxu0 0.0
    %1109 = vmatprep.subr.mxu0 0.0
    %1110 = vmatpush1.msra.mxu0 0.0
    %1111 = vmatprep.subr.mxu0 0.0
    %1112 = vmatpush1.msra.mxu0 0.0
    %1113 = vmatprep.subr.mxu0 0.0
    %1114 = vmatpush1.msra.mxu0 %v1078
    %1115 = vmatprep.subr.mxu0 0.0
    %1116 = vmatpush2.msra.mxu0 0.0
    %1117 = vmatprep.subr.mxu0 0.0
    %1118 = vmatpush2.msra.mxu0 0.0
    %1119 = vmatprep.subr.mxu0 0.0
    %1120 = vmatpush2.msra.mxu0 0.0
    %1121 = vmatprep.subr.mxu0 0.0
    %1122 = vmatpush2.msra.mxu0 0.0
    %1123 = vmatprep.subr.mxu0 0.0
    %1124 = vmatpush2.msra.mxu0 0.0
    %1125 = vmatprep.subr.mxu0 0.0
    %1126 = vmatpush2.msra.mxu0 0.0
    %1127 = vmatprep.subr.mxu0 0.0
    %1128 = vmatpush2.msra.mxu0 0.0
    %1129 = vmatprep.subr.mxu0 0.0
    %1130 = vmatpush2.msra.mxu0 0.0
    %1131 = vmatprep.subr.mxu0 0.0
    %1132 = vmatpush2.msra.mxu0 0.0
    %1133 = vmatprep.subr.mxu0 0.0
    %1134 = vmatpush2.msra.mxu0 0.0
    %1135 = vmatprep.subr.mxu0 0.0
    %1136 = vmatpush2.msra.mxu0 0.0
    %1137 = vmatprep.subr.mxu0 0.0
    %1138 = vmatpush2.msra.mxu0 0.0
    %1139 = vmatprep.subr.mxu0 0.0
    %1140 = vmatpush2.msra.mxu0 0.0
    %1141 = vmatprep.subr.mxu0 0.0
    %1142 = vmatpush2.msra.mxu0 0.0
    %1143 = vmatprep.subr.mxu0 0.0
    %1144 = vmatpush2.msra.mxu0 0.0
    %1145 = vmatprep.subr.mxu0 0.0
    %1146 = vmatpush2.msra.mxu0 0.0
    %1147 = vmatprep.mubr.f32.mxu0 0.0
    %1148 = vmatmul.mubr.f32.gmra.mxu0 %v1081
    %v1149 = vpop.f32.mrf.mxu0
    %v1150 = vadd.f32 0.0, %v1149
    %v1151 = vpop.f32.mrf.mxu0
    %1152 = vdwg.mxu0
    %1153 = vrot.lane.b32.xlu0 %v352, 64
    %v1154 = vpop.permute.xlu0 %1153
    %v1157 = vsel %vm366, %v1070, 0
    %1159 = vmatprep.subr.mxu0 0.0
    %1160 = vmatpush1.msra.mxu0 0.0
    %1161 = vmatprep.subr.mxu0 0.0
    %1162 = vmatpush1.msra.mxu0 0.0
    %1163 = vmatprep.subr.mxu0 0.0
    %1164 = vmatpush1.msra.mxu0 0.0
    %1165 = vmatprep.subr.mxu0 0.0
    %1166 = vmatpush1.msra.mxu0 0.0
    %1167 = vmatprep.subr.mxu0 0.0
    %1168 = vmatpush1.msra.mxu0 0.0
    %1169 = vmatprep.subr.mxu0 0.0
    %1170 = vmatpush1.msra.mxu0 0.0
    %1171 = vmatprep.subr.mxu0 0.0
    %1172 = vmatpush1.msra.mxu0 0.0
    %1173 = vmatprep.subr.mxu0 0.0
    %1174 = vmatpush1.msra.mxu0 0.0
    %1175 = vmatprep.subr.mxu0 0.0
    %1176 = vmatpush1.msra.mxu0 0.0
    %1177 = vmatprep.subr.mxu0 0.0
    %1178 = vmatpush1.msra.mxu0 0.0
    %1179 = vmatprep.subr.mxu0 0.0
    %1180 = vmatpush1.msra.mxu0 0.0
    %1181 = vmatprep.subr.mxu0 0.0
    %1182 = vmatpush1.msra.mxu0 0.0
    %1183 = vmatprep.subr.mxu0 0.0
    %1184 = vmatpush1.msra.mxu0 0.0
    %1185 = vmatprep.subr.mxu0 0.0
    %1186 = vmatpush1.msra.mxu0 0.0
    %1187 = vmatprep.subr.mxu0 0.0
    %1188 = vmatpush1.msra.mxu0 0.0
    %1189 = vmatprep.subr.mxu0 0.0
    %1190 = vmatpush1.msra.mxu0 %v1154
    %1191 = vmatprep.subr.mxu0 0.0
    %1192 = vmatpush2.msra.mxu0 0.0
    %1193 = vmatprep.subr.mxu0 0.0
    %1194 = vmatpush2.msra.mxu0 0.0
    %1195 = vmatprep.subr.mxu0 0.0
    %1196 = vmatpush2.msra.mxu0 0.0
    %1197 = vmatprep.subr.mxu0 0.0
    %1198 = vmatpush2.msra.mxu0 0.0
    %1199 = vmatprep.subr.mxu0 0.0
    %1200 = vmatpush2.msra.mxu0 0.0
    %1201 = vmatprep.subr.mxu0 0.0
    %1202 = vmatpush2.msra.mxu0 0.0
    %1203 = vmatprep.subr.mxu0 0.0
    %1204 = vmatpush2.msra.mxu0 0.0
    %1205 = vmatprep.subr.mxu0 0.0
    %1206 = vmatpush2.msra.mxu0 0.0
    %1207 = vmatprep.subr.mxu0 0.0
    %1208 = vmatpush2.msra.mxu0 0.0
    %1209 = vmatprep.subr.mxu0 0.0
    %1210 = vmatpush2.msra.mxu0 0.0
    %1211 = vmatprep.subr.mxu0 0.0
    %1212 = vmatpush2.msra.mxu0 0.0
    %1213 = vmatprep.subr.mxu0 0.0
    %1214 = vmatpush2.msra.mxu0 0.0
    %1215 = vmatprep.subr.mxu0 0.0
    %1216 = vmatpush2.msra.mxu0 0.0
    %1217 = vmatprep.subr.mxu0 0.0
    %1218 = vmatpush2.msra.mxu0 0.0
    %1219 = vmatprep.subr.mxu0 0.0
    %1220 = vmatpush2.msra.mxu0 0.0
    %1221 = vmatprep.subr.mxu0 0.0
    %1222 = vmatpush2.msra.mxu0 0.0
    %1223 = vmatprep.mubr.f32.mxu0 0.0
    %1224 = vmatmul.mubr.f32.gmra.mxu0 %v1157
    %v1225 = vpop.f32.mrf.mxu0
    %v1226 = vadd.f32 0.0, %v1225
    %v1227 = vpop.f32.mrf.mxu0
    %1228 = vdwg.mxu0
    %1229 = vrot.lane.b32.xlu0 %v354, 64
    %v1230 = vpop.permute.xlu0 %1229
    %v1233 = vsel %vm366, %v1071, 0
    %1235 = vmatprep.subr.mxu0 0.0
    %1236 = vmatpush1.msra.mxu0 0.0
    %1237 = vmatprep.subr.mxu0 0.0
    %1238 = vmatpush1.msra.mxu0 0.0
    %1239 = vmatprep.subr.mxu0 0.0
    %1240 = vmatpush1.msra.mxu0 0.0
    %1241 = vmatprep.subr.mxu0 0.0
    %1242 = vmatpush1.msra.mxu0 0.0
    %1243 = vmatprep.subr.mxu0 0.0
    %1244 = vmatpush1.msra.mxu0 0.0
    %1245 = vmatprep.subr.mxu0 0.0
    %1246 = vmatpush1.msra.mxu0 0.0
    %1247 = vmatprep.subr.mxu0 0.0
    %1248 = vmatpush1.msra.mxu0 0.0
    %1249 = vmatprep.subr.mxu0 0.0
    %1250 = vmatpush1.msra.mxu0 0.0
    %1251 = vmatprep.subr.mxu0 0.0
    %1252 = vmatpush1.msra.mxu0 0.0
    %1253 = vmatprep.subr.mxu0 0.0
    %1254 = vmatpush1.msra.mxu0 0.0
    %1255 = vmatprep.subr.mxu0 0.0
    %1256 = vmatpush1.msra.mxu0 0.0
    %1257 = vmatprep.subr.mxu0 0.0
    %1258 = vmatpush1.msra.mxu0 0.0
    %1259 = vmatprep.subr.mxu0 0.0
    %1260 = vmatpush1.msra.mxu0 0.0
    %1261 = vmatprep.subr.mxu0 0.0
    %1262 = vmatpush1.msra.mxu0 0.0
    %1263 = vmatprep.subr.mxu0 0.0
    %1264 = vmatpush1.msra.mxu0 0.0
    %1265 = vmatprep.subr.mxu0 0.0
    %1266 = vmatpush1.msra.mxu0 %v1230
    %1267 = vmatprep.subr.mxu0 0.0
    %1268 = vmatpush2.msra.mxu0 0.0
    %1269 = vmatprep.subr.mxu0 0.0
    %1270 = vmatpush2.msra.mxu0 0.0
    %1271 = vmatprep.subr.mxu0 0.0
    %1272 = vmatpush2.msra.mxu0 0.0
    %1273 = vmatprep.subr.mxu0 0.0
    %1274 = vmatpush2.msra.mxu0 0.0
    %1275 = vmatprep.subr.mxu0 0.0
    %1276 = vmatpush2.msra.mxu0 0.0
    %1277 = vmatprep.subr.mxu0 0.0
    %1278 = vmatpush2.msra.mxu0 0.0
    %1279 = vmatprep.subr.mxu0 0.0
    %1280 = vmatpush2.msra.mxu0 0.0
    %1281 = vmatprep.subr.mxu0 0.0
    %1282 = vmatpush2.msra.mxu0 0.0
    %1283 = vmatprep.subr.mxu0 0.0
    %1284 = vmatpush2.msra.mxu0 0.0
    %1285 = vmatprep.subr.mxu0 0.0
    %1286 = vmatpush2.msra.mxu0 0.0
    %1287 = vmatprep.subr.mxu0 0.0
    %1288 = vmatpush2.msra.mxu0 0.0
    %1289 = vmatprep.subr.mxu0 0.0
    %1290 = vmatpush2.msra.mxu0 0.0
    %1291 = vmatprep.subr.mxu0 0.0
    %1292 = vmatpush2.msra.mxu0 0.0
    %1293 = vmatprep.subr.mxu0 0.0
    %1294 = vmatpush2.msra.mxu0 0.0
    %1295 = vmatprep.subr.mxu0 0.0
    %1296 = vmatpush2.msra.mxu0 0.0
    %1297 = vmatprep.subr.mxu0 0.0
    %1298 = vmatpush2.msra.mxu0 0.0
    %1299 = vmatprep.mubr.f32.mxu0 0.0
    %1300 = vmatmul.mubr.f32.gmra.mxu0 %v1233
    %v1301 = vpop.f32.mrf.mxu0
    %v1302 = vadd.f32 0.0, %v1301
    %v1303 = vpop.f32.mrf.mxu0
    %1304 = vdwg.mxu0
    %1305 = vrot.lane.b32.xlu0 %v356, 64
    %v1306 = vpop.permute.xlu0 %1305
    %v1309 = vsel %vm366, %v1072, 0
    %1311 = vmatprep.subr.mxu0 0.0
    %1312 = vmatpush1.msra.mxu0 0.0
    %1313 = vmatprep.subr.mxu0 0.0
    %1314 = vmatpush1.msra.mxu0 0.0
    %1315 = vmatprep.subr.mxu0 0.0
    %1316 = vmatpush1.msra.mxu0 0.0
    %1317 = vmatprep.subr.mxu0 0.0
    %1318 = vmatpush1.msra.mxu0 0.0
    %1319 = vmatprep.subr.mxu0 0.0
    %1320 = vmatpush1.msra.mxu0 0.0
    %1321 = vmatprep.subr.mxu0 0.0
    %1322 = vmatpush1.msra.mxu0 0.0
    %1323 = vmatprep.subr.mxu0 0.0
    %1324 = vmatpush1.msra.mxu0 0.0
    %1325 = vmatprep.subr.mxu0 0.0
    %1326 = vmatpush1.msra.mxu0 0.0
    %1327 = vmatprep.subr.mxu0 0.0
    %1328 = vmatpush1.msra.mxu0 0.0
    %1329 = vmatprep.subr.mxu0 0.0
    %1330 = vmatpush1.msra.mxu0 0.0
    %1331 = vmatprep.subr.mxu0 0.0
    %1332 = vmatpush1.msra.mxu0 0.0
    %1333 = vmatprep.subr.mxu0 0.0
    %1334 = vmatpush1.msra.mxu0 0.0
    %1335 = vmatprep.subr.mxu0 0.0
    %1336 = vmatpush1.msra.mxu0 0.0
    %1337 = vmatprep.subr.mxu0 0.0
    %1338 = vmatpush1.msra.mxu0 0.0
    %1339 = vmatprep.subr.mxu0 0.0
    %1340 = vmatpush1.msra.mxu0 0.0
    %1341 = vmatprep.subr.mxu0 0.0
    %1342 = vmatpush1.msra.mxu0 %v1306
    %1343 = vmatprep.subr.mxu0 0.0
    %1344 = vmatpush2.msra.mxu0 0.0
    %1345 = vmatprep.subr.mxu0 0.0
    %1346 = vmatpush2.msra.mxu0 0.0
    %1347 = vmatprep.subr.mxu0 0.0
    %1348 = vmatpush2.msra.mxu0 0.0
    %1349 = vmatprep.subr.mxu0 0.0
    %1350 = vmatpush2.msra.mxu0 0.0
    %1351 = vmatprep.subr.mxu0 0.0
    %1352 = vmatpush2.msra.mxu0 0.0
    %1353 = vmatprep.subr.mxu0 0.0
    %1354 = vmatpush2.msra.mxu0 0.0
    %1355 = vmatprep.subr.mxu0 0.0
    %1356 = vmatpush2.msra.mxu0 0.0
    %1357 = vmatprep.subr.mxu0 0.0
    %1358 = vmatpush2.msra.mxu0 0.0
    %1359 = vmatprep.subr.mxu0 0.0
    %1360 = vmatpush2.msra.mxu0 0.0
    %1361 = vmatprep.subr.mxu0 0.0
    %1362 = vmatpush2.msra.mxu0 0.0
    %1363 = vmatprep.subr.mxu0 0.0
    %1364 = vmatpush2.msra.mxu0 0.0
    %1365 = vmatprep.subr.mxu0 0.0
    %1366 = vmatpush2.msra.mxu0 0.0
    %1367 = vmatprep.subr.mxu0 0.0
    %1368 = vmatpush2.msra.mxu0 0.0
    %1369 = vmatprep.subr.mxu0 0.0
    %1370 = vmatpush2.msra.mxu0 0.0
    %1371 = vmatprep.subr.mxu0 0.0
    %1372 = vmatpush2.msra.mxu0 0.0
    %1373 = vmatprep.subr.mxu0 0.0
    %1374 = vmatpush2.msra.mxu0 0.0
    %1375 = vmatprep.mubr.f32.mxu0 0.0
    %1376 = vmatmul.mubr.f32.gmra.mxu0 %v1309
    %v1377 = vpop.f32.mrf.mxu0
    %v1378 = vadd.f32 0.0, %v1377
    %v1379 = vpop.f32.mrf.mxu0
    %1380 = vdwg.mxu0
    %1381 = vrot.lane.b32.xlu0 %v321, 64
    %v1382 = vpop.permute.xlu0 %1381
    %v1385 = vsel %vm366, %v1073, 0
    %1387 = vmatprep.subr.mxu0 0.0
    %1388 = vmatpush1.msra.mxu0 0.0
    %1389 = vmatprep.subr.mxu0 0.0
    %1390 = vmatpush1.msra.mxu0 0.0
    %1391 = vmatprep.subr.mxu0 0.0
    %1392 = vmatpush1.msra.mxu0 0.0
    %1393 = vmatprep.subr.mxu0 0.0
    %1394 = vmatpush1.msra.mxu0 0.0
    %1395 = vmatprep.subr.mxu0 0.0
    %1396 = vmatpush1.msra.mxu0 0.0
    %1397 = vmatprep.subr.mxu0 0.0
    %1398 = vmatpush1.msra.mxu0 0.0
    %1399 = vmatprep.subr.mxu0 0.0
    %1400 = vmatpush1.msra.mxu0 0.0
    %1401 = vmatprep.subr.mxu0 0.0
    %1402 = vmatpush1.msra.mxu0 0.0
    %1403 = vmatprep.subr.mxu0 0.0
    %1404 = vmatpush1.msra.mxu0 0.0
    %1405 = vmatprep.subr.mxu0 0.0
    %1406 = vmatpush1.msra.mxu0 0.0
    %1407 = vmatprep.subr.mxu0 0.0
    %1408 = vmatpush1.msra.mxu0 0.0
    %1409 = vmatprep.subr.mxu0 0.0
    %1410 = vmatpush1.msra.mxu0 0.0
    %1411 = vmatprep.subr.mxu0 0.0
    %1412 = vmatpush1.msra.mxu0 0.0
    %1413 = vmatprep.subr.mxu0 0.0
    %1414 = vmatpush1.msra.mxu0 0.0
    %1415 = vmatprep.subr.mxu0 0.0
    %1416 = vmatpush1.msra.mxu0 0.0
    %1417 = vmatprep.subr.mxu0 0.0
    %1418 = vmatpush1.msra.mxu0 %v1382
    %1419 = vmatprep.subr.mxu0 0.0
    %1420 = vmatpush2.msra.mxu0 0.0
    %1421 = vmatprep.subr.mxu0 0.0
    %1422 = vmatpush2.msra.mxu0 0.0
    %1423 = vmatprep.subr.mxu0 0.0
    %1424 = vmatpush2.msra.mxu0 0.0
    %1425 = vmatprep.subr.mxu0 0.0
    %1426 = vmatpush2.msra.mxu0 0.0
    %1427 = vmatprep.subr.mxu0 0.0
    %1428 = vmatpush2.msra.mxu0 0.0
    %1429 = vmatprep.subr.mxu0 0.0
    %1430 = vmatpush2.msra.mxu0 0.0
    %1431 = vmatprep.subr.mxu0 0.0
    %1432 = vmatpush2.msra.mxu0 0.0
    %1433 = vmatprep.subr.mxu0 0.0
    %1434 = vmatpush2.msra.mxu0 0.0
    %1435 = vmatprep.subr.mxu0 0.0
    %1436 = vmatpush2.msra.mxu0 0.0
    %1437 = vmatprep.subr.mxu0 0.0
    %1438 = vmatpush2.msra.mxu0 0.0
    %1439 = vmatprep.subr.mxu0 0.0
    %1440 = vmatpush2.msra.mxu0 0.0
    %1441 = vmatprep.subr.mxu0 0.0
    %1442 = vmatpush2.msra.mxu0 0.0
    %1443 = vmatprep.subr.mxu0 0.0
    %1444 = vmatpush2.msra.mxu0 0.0
    %1445 = vmatprep.subr.mxu0 0.0
    %1446 = vmatpush2.msra.mxu0 0.0
    %1447 = vmatprep.subr.mxu0 0.0
    %1448 = vmatpush2.msra.mxu0 0.0
    %1449 = vmatprep.subr.mxu0 0.0
    %1450 = vmatpush2.msra.mxu0 0.0
    %1451 = vmatprep.mubr.f32.mxu0 0.0
    %1452 = vmatmul.mubr.f32.gmra.mxu0 %v1385
    %v1453 = vpop.f32.mrf.mxu0
    %v1454 = vadd.f32 0.0, %v1453
    %v1455 = vpop.f32.mrf.mxu0
    %1456 = vdwg.mxu0
    %1457 = vrot.lane.b32.xlu0 %v359, 64
    %v1458 = vpop.permute.xlu0 %1457
    %v1461 = vsel %vm366, %v1074, 0
    %1463 = vmatprep.subr.mxu0 0.0
    %1464 = vmatpush1.msra.mxu0 0.0
    %1465 = vmatprep.subr.mxu0 0.0
    %1466 = vmatpush1.msra.mxu0 0.0
    %1467 = vmatprep.subr.mxu0 0.0
    %1468 = vmatpush1.msra.mxu0 0.0
    %1469 = vmatprep.subr.mxu0 0.0
    %1470 = vmatpush1.msra.mxu0 0.0
    %1471 = vmatprep.subr.mxu0 0.0
    %1472 = vmatpush1.msra.mxu0 0.0
    %1473 = vmatprep.subr.mxu0 0.0
    %1474 = vmatpush1.msra.mxu0 0.0
    %1475 = vmatprep.subr.mxu0 0.0
    %1476 = vmatpush1.msra.mxu0 0.0
    %1477 = vmatprep.subr.mxu0 0.0
    %1478 = vmatpush1.msra.mxu0 0.0
    %1479 = vmatprep.subr.mxu0 0.0
    %1480 = vmatpush1.msra.mxu0 0.0
    %1481 = vmatprep.subr.mxu0 0.0
    %1482 = vmatpush1.msra.mxu0 0.0
    %1483 = vmatprep.subr.mxu0 0.0
    %1484 = vmatpush1.msra.mxu0 0.0
    %1485 = vmatprep.subr.mxu0 0.0
    %1486 = vmatpush1.msra.mxu0 0.0
    %1487 = vmatprep.subr.mxu0 0.0
    %1488 = vmatpush1.msra.mxu0 0.0
    %1489 = vmatprep.subr.mxu0 0.0
    %1490 = vmatpush1.msra.mxu0 0.0
    %1491 = vmatprep.subr.mxu0 0.0
    %1492 = vmatpush1.msra.mxu0 0.0
    %1493 = vmatprep.subr.mxu0 0.0
    %1494 = vmatpush1.msra.mxu0 %v1458
    %1495 = vmatprep.subr.mxu0 0.0
    %1496 = vmatpush2.msra.mxu0 0.0
    %1497 = vmatprep.subr.mxu0 0.0
    %1498 = vmatpush2.msra.mxu0 0.0
    %1499 = vmatprep.subr.mxu0 0.0
    %1500 = vmatpush2.msra.mxu0 0.0
    %1501 = vmatprep.subr.mxu0 0.0
    %1502 = vmatpush2.msra.mxu0 0.0
    %1503 = vmatprep.subr.mxu0 0.0
    %1504 = vmatpush2.msra.mxu0 0.0
    %1505 = vmatprep.subr.mxu0 0.0
    %1506 = vmatpush2.msra.mxu0 0.0
    %1507 = vmatprep.subr.mxu0 0.0
    %1508 = vmatpush2.msra.mxu0 0.0
    %1509 = vmatprep.subr.mxu0 0.0
    %1510 = vmatpush2.msra.mxu0 0.0
    %1511 = vmatprep.subr.mxu0 0.0
    %1512 = vmatpush2.msra.mxu0 0.0
    %1513 = vmatprep.subr.mxu0 0.0
    %1514 = vmatpush2.msra.mxu0 0.0
    %1515 = vmatprep.subr.mxu0 0.0
    %1516 = vmatpush2.msra.mxu0 0.0
    %1517 = vmatprep.subr.mxu0 0.0
    %1518 = vmatpush2.msra.mxu0 0.0
    %1519 = vmatprep.subr.mxu0 0.0
    %1520 = vmatpush2.msra.mxu0 0.0
    %1521 = vmatprep.subr.mxu0 0.0
    %1522 = vmatpush2.msra.mxu0 0.0
    %1523 = vmatprep.subr.mxu0 0.0
    %1524 = vmatpush2.msra.mxu0 0.0
    %1525 = vmatprep.subr.mxu0 0.0
    %1526 = vmatpush2.msra.mxu0 0.0
    %1527 = vmatprep.mubr.f32.mxu0 0.0
    %1528 = vmatmul.mubr.f32.gmra.mxu0 %v1461
    %v1529 = vpop.f32.mrf.mxu0
    %v1530 = vadd.f32 0.0, %v1529
    %v1531 = vpop.f32.mrf.mxu0
    %1532 = vdwg.mxu0
    %1533 = vrot.lane.b32.xlu0 %v361, 64
    %v1534 = vpop.permute.xlu0 %1533
    %v1537 = vsel %vm366, %v1075, 0
    %1539 = vmatprep.subr.mxu0 0.0
    %1540 = vmatpush1.msra.mxu0 0.0
    %1541 = vmatprep.subr.mxu0 0.0
    %1542 = vmatpush1.msra.mxu0 0.0
    %1543 = vmatprep.subr.mxu0 0.0
    %1544 = vmatpush1.msra.mxu0 0.0
    %1545 = vmatprep.subr.mxu0 0.0
    %1546 = vmatpush1.msra.mxu0 0.0
    %1547 = vmatprep.subr.mxu0 0.0
    %1548 = vmatpush1.msra.mxu0 0.0
    %1549 = vmatprep.subr.mxu0 0.0
    %1550 = vmatpush1.msra.mxu0 0.0
    %1551 = vmatprep.subr.mxu0 0.0
    %1552 = vmatpush1.msra.mxu0 0.0
    %1553 = vmatprep.subr.mxu0 0.0
    %1554 = vmatpush1.msra.mxu0 0.0
    %1555 = vmatprep.subr.mxu0 0.0
    %1556 = vmatpush1.msra.mxu0 0.0
    %1557 = vmatprep.subr.mxu0 0.0
    %1558 = vmatpush1.msra.mxu0 0.0
    %1559 = vmatprep.subr.mxu0 0.0
    %1560 = vmatpush1.msra.mxu0 0.0
    %1561 = vmatprep.subr.mxu0 0.0
    %1562 = vmatpush1.msra.mxu0 0.0
    %1563 = vmatprep.subr.mxu0 0.0
    %1564 = vmatpush1.msra.mxu0 0.0
    %1565 = vmatprep.subr.mxu0 0.0
    %1566 = vmatpush1.msra.mxu0 0.0
    %1567 = vmatprep.subr.mxu0 0.0
    %1568 = vmatpush1.msra.mxu0 0.0
    %1569 = vmatprep.subr.mxu0 0.0
    %1570 = vmatpush1.msra.mxu0 %v1534
    %1571 = vmatprep.subr.mxu0 0.0
    %1572 = vmatpush2.msra.mxu0 0.0
    %1573 = vmatprep.subr.mxu0 0.0
    %1574 = vmatpush2.msra.mxu0 0.0
    %1575 = vmatprep.subr.mxu0 0.0
    %1576 = vmatpush2.msra.mxu0 0.0
    %1577 = vmatprep.subr.mxu0 0.0
    %1578 = vmatpush2.msra.mxu0 0.0
    %1579 = vmatprep.subr.mxu0 0.0
    %1580 = vmatpush2.msra.mxu0 0.0
    %1581 = vmatprep.subr.mxu0 0.0
    %1582 = vmatpush2.msra.mxu0 0.0
    %1583 = vmatprep.subr.mxu0 0.0
    %1584 = vmatpush2.msra.mxu0 0.0
    %1585 = vmatprep.subr.mxu0 0.0
    %1586 = vmatpush2.msra.mxu0 0.0
    %1587 = vmatprep.subr.mxu0 0.0
    %1588 = vmatpush2.msra.mxu0 0.0
    %1589 = vmatprep.subr.mxu0 0.0
    %1590 = vmatpush2.msra.mxu0 0.0
    %1591 = vmatprep.subr.mxu0 0.0
    %1592 = vmatpush2.msra.mxu0 0.0
    %1593 = vmatprep.subr.mxu0 0.0
    %1594 = vmatpush2.msra.mxu0 0.0
    %1595 = vmatprep.subr.mxu0 0.0
    %1596 = vmatpush2.msra.mxu0 0.0
    %1597 = vmatprep.subr.mxu0 0.0
    %1598 = vmatpush2.msra.mxu0 0.0
    %1599 = vmatprep.subr.mxu0 0.0
    %1600 = vmatpush2.msra.mxu0 0.0
    %1601 = vmatprep.subr.mxu0 0.0
    %1602 = vmatpush2.msra.mxu0 0.0
    %1603 = vmatprep.mubr.f32.mxu0 0.0
    %1604 = vmatmul.mubr.f32.gmra.mxu0 %v1537
    %v1605 = vpop.f32.mrf.mxu0
    %v1606 = vadd.f32 0.0, %v1605
    %v1607 = vpop.f32.mrf.mxu0
    %1608 = vdwg.mxu0
    %1609 = vrot.lane.b32.xlu0 %v363, 64
    %v1610 = vpop.permute.xlu0 %1609
    %v1613 = vsel %vm366, %v1076, 0
    %1615 = vmatprep.subr.mxu0 0.0
    %1616 = vmatpush1.msra.mxu0 0.0
    %1617 = vmatprep.subr.mxu0 0.0
    %1618 = vmatpush1.msra.mxu0 0.0
    %1619 = vmatprep.subr.mxu0 0.0
    %1620 = vmatpush1.msra.mxu0 0.0
    %1621 = vmatprep.subr.mxu0 0.0
    %1622 = vmatpush1.msra.mxu0 0.0
    %1623 = vmatprep.subr.mxu0 0.0
    %1624 = vmatpush1.msra.mxu0 0.0
    %1625 = vmatprep.subr.mxu0 0.0
    %1626 = vmatpush1.msra.mxu0 0.0
    %1627 = vmatprep.subr.mxu0 0.0
    %1628 = vmatpush1.msra.mxu0 0.0
    %1629 = vmatprep.subr.mxu0 0.0
    %1630 = vmatpush1.msra.mxu0 0.0
    %1631 = vmatprep.subr.mxu0 0.0
    %1632 = vmatpush1.msra.mxu0 0.0
    %1633 = vmatprep.subr.mxu0 0.0
    %1634 = vmatpush1.msra.mxu0 0.0
    %1635 = vmatprep.subr.mxu0 0.0
    %1636 = vmatpush1.msra.mxu0 0.0
    %1637 = vmatprep.subr.mxu0 0.0
    %1638 = vmatpush1.msra.mxu0 0.0
    %1639 = vmatprep.subr.mxu0 0.0
    %1640 = vmatpush1.msra.mxu0 0.0
    %1641 = vmatprep.subr.mxu0 0.0
    %1642 = vmatpush1.msra.mxu0 0.0
    %1643 = vmatprep.subr.mxu0 0.0
    %1644 = vmatpush1.msra.mxu0 0.0
    %1645 = vmatprep.subr.mxu0 0.0
    %1646 = vmatpush1.msra.mxu0 %v1610
    %1647 = vmatprep.subr.mxu0 0.0
    %1648 = vmatpush2.msra.mxu0 0.0
    %1649 = vmatprep.subr.mxu0 0.0
    %1650 = vmatpush2.msra.mxu0 0.0
    %1651 = vmatprep.subr.mxu0 0.0
    %1652 = vmatpush2.msra.mxu0 0.0
    %1653 = vmatprep.subr.mxu0 0.0
    %1654 = vmatpush2.msra.mxu0 0.0
    %1655 = vmatprep.subr.mxu0 0.0
    %1656 = vmatpush2.msra.mxu0 0.0
    %1657 = vmatprep.subr.mxu0 0.0
    %1658 = vmatpush2.msra.mxu0 0.0
    %1659 = vmatprep.subr.mxu0 0.0
    %1660 = vmatpush2.msra.mxu0 0.0
    %1661 = vmatprep.subr.mxu0 0.0
    %1662 = vmatpush2.msra.mxu0 0.0
    %1663 = vmatprep.subr.mxu0 0.0
    %1664 = vmatpush2.msra.mxu0 0.0
    %1665 = vmatprep.subr.mxu0 0.0
    %1666 = vmatpush2.msra.mxu0 0.0
    %1667 = vmatprep.subr.mxu0 0.0
    %1668 = vmatpush2.msra.mxu0 0.0
    %1669 = vmatprep.subr.mxu0 0.0
    %1670 = vmatpush2.msra.mxu0 0.0
    %1671 = vmatprep.subr.mxu0 0.0
    %1672 = vmatpush2.msra.mxu0 0.0
    %1673 = vmatprep.subr.mxu0 0.0
    %1674 = vmatpush2.msra.mxu0 0.0
    %1675 = vmatprep.subr.mxu0 0.0
    %1676 = vmatpush2.msra.mxu0 0.0
    %1677 = vmatprep.subr.mxu0 0.0
    %1678 = vmatpush2.msra.mxu0 0.0
    %1679 = vmatprep.mubr.f32.mxu0 0.0
    %1680 = vmatmul.mubr.f32.gmra.mxu0 %v1613
    %v1681 = vpop.f32.mrf.mxu0
    %v1682 = vadd.f32 0.0, %v1681
    %v1683 = vpop.f32.mrf.mxu0
    %1684 = vdwg.mxu0
    %1686 = vrot.lane.b32.xlu0 %v1226, 8
    %v1687 = vpop.permute.xlu0 %1686
    %1690 = vrot.lane.b32.xlu0 %v1302, 16
    %v1691 = vpop.permute.xlu0 %1690
    %1694 = vrot.lane.b32.xlu0 %v1378, 24
    %v1695 = vpop.permute.xlu0 %1694
    %v1697 = vsel %vm366, %v1150, %v1687
    %vm1698 = vcmask 130048
    %v1699 = vsel %vm1698, %v1697, %v1691
    %vm1700 = vcmask 195584
    %v1701 = vsel %vm1700, %v1699, %v1695
    %1703 = vrot.lane.b32.xlu0 %v1530, 8
    %v1704 = vpop.permute.xlu0 %1703
    %1707 = vrot.lane.b32.xlu0 %v1606, 16
    %v1708 = vpop.permute.xlu0 %1707
    %1711 = vrot.lane.b32.xlu0 %v1682, 24
    %v1712 = vpop.permute.xlu0 %1711
    %v1714 = vsel %vm366, %v1454, %v1704
    %v1715 = vsel %vm1698, %v1714, %v1708
    %v1716 = vsel %vm1700, %v1715, %v1712
    %v1717 = vlaneseq
    %v1718 = vshrl.u32 %v1717, 7
    %v1719 = vsub.s32 3, %v1718
    %v1720 = vrot.slane %v141, %v1719
    %1725 = vrot.lane.b32.xlu0 %v211, 32
    %v1726 = vpop.permute.xlu0 %1725
    %1727 = vrot.lane.b32.xlu0 %v212, 32
    %v1728 = vpop.permute.xlu0 %1727
    %1729 = vrot.lane.b32.xlu0 %v213, 32
    %v1730 = vpop.permute.xlu0 %1729
    %1731 = vrot.lane.b32.xlu0 %v214, 32
    %v1732 = vpop.permute.xlu0 %1731
    %v1738 = vsel %vm157, %v1701, 0
    %v1741 = vsel %vm157, %v1716, 0
    %1743 = vmatprep.subr.mxu0 0.0
    %1744 = vmatpush1.msra.mxu0 0.0
    %1745 = vmatprep.subr.mxu0 0.0
    %1746 = vmatpush1.msra.mxu0 0.0
    %1747 = vmatprep.subr.mxu0 0.0
    %1748 = vmatpush1.msra.mxu0 0.0
    %1749 = vmatprep.subr.mxu0 0.0
    %1750 = vmatpush1.msra.mxu0 0.0
    %1751 = vmatprep.subr.mxu0 0.0
    %1752 = vmatpush1.msra.mxu0 0.0
    %1753 = vmatprep.subr.mxu0 0.0
    %1754 = vmatpush1.msra.mxu0 0.0
    %1755 = vmatprep.subr.mxu0 0.0
    %1756 = vmatpush1.msra.mxu0 0.0
    %1757 = vmatprep.subr.mxu0 0.0
    %1758 = vmatpush1.msra.mxu0 0.0
    %1759 = vmatprep.subr.mxu0 0.0
    %1760 = vmatpush1.msra.mxu0 0.0
    %1761 = vmatprep.subr.mxu0 0.0
    %1762 = vmatpush1.msra.mxu0 0.0
    %1763 = vmatprep.subr.mxu0 0.0
    %1764 = vmatpush1.msra.mxu0 0.0
    %1765 = vmatprep.subr.mxu0 0.0
    %1766 = vmatpush1.msra.mxu0 0.0
    %1767 = vmatprep.subr.mxu0 0.0
    %1768 = vmatpush1.msra.mxu0 %v1732
    %1769 = vmatprep.subr.mxu0 0.0
    %1770 = vmatpush1.msra.mxu0 %v1730
    %1771 = vmatprep.subr.mxu0 0.0
    %1772 = vmatpush1.msra.mxu0 %v1728
    %1773 = vmatprep.subr.mxu0 0.0
    %1774 = vmatpush1.msra.mxu0 %v1726
    %1775 = vmatprep.subr.mxu0 0.0
    %1776 = vmatpush2.msra.mxu0 0.0
    %1777 = vmatprep.subr.mxu0 0.0
    %1778 = vmatpush2.msra.mxu0 0.0
    %1779 = vmatprep.subr.mxu0 0.0
    %1780 = vmatpush2.msra.mxu0 0.0
    %1781 = vmatprep.subr.mxu0 0.0
    %1782 = vmatpush2.msra.mxu0 0.0
    %1783 = vmatprep.subr.mxu0 0.0
    %1784 = vmatpush2.msra.mxu0 0.0
    %1785 = vmatprep.subr.mxu0 0.0
    %1786 = vmatpush2.msra.mxu0 0.0
    %1787 = vmatprep.subr.mxu0 0.0
    %1788 = vmatpush2.msra.mxu0 0.0
    %1789 = vmatprep.subr.mxu0 0.0
    %1790 = vmatpush2.msra.mxu0 0.0
    %1791 = vmatprep.subr.mxu0 0.0
    %1792 = vmatpush2.msra.mxu0 0.0
    %1793 = vmatprep.subr.mxu0 0.0
    %1794 = vmatpush2.msra.mxu0 0.0
    %1795 = vmatprep.subr.mxu0 0.0
    %1796 = vmatpush2.msra.mxu0 0.0
    %1797 = vmatprep.subr.mxu0 0.0
    %1798 = vmatpush2.msra.mxu0 0.0
    %1799 = vmatprep.subr.mxu0 0.0
    %1800 = vmatpush2.msra.mxu0 0.0
    %1801 = vmatprep.subr.mxu0 0.0
    %1802 = vmatpush2.msra.mxu0 0.0
    %1803 = vmatprep.subr.mxu0 0.0
    %1804 = vmatpush2.msra.mxu0 0.0
    %1805 = vmatprep.subr.mxu0 0.0
    %1806 = vmatpush2.msra.mxu0 0.0
    %1807 = vmatprep.mubr.f32.mxu0 0.0
    %1808 = vmatmul.mubr.f32.gmra.mxu0 %v1738
    %v1809 = vpop.f32.mrf.mxu0
    %v1810 = vadd.f32 %v1720, %v1809
    %v1811 = vpop.f32.mrf.mxu0
    %1812 = vmatprep.mubr.f32.mxu0 0.0
    %1813 = vmatmul.mubr.f32.gmra.mxu0 %v1741
    %v1814 = vpop.f32.mrf.mxu0
    %v1815 = vadd.f32 %v1720, %v1814
    %v1816 = vpop.f32.mrf.mxu0
    %1817 = vdwg.mxu0
    %v1818 = vadd.f32 %v143, %v1810
    %v1819 = vadd.f32 %v144, %v1815
    %v1820 = vsel %vm157, %v1818, 0.0
    %1821 = vadd.xlane.f32.xlu0 %v1820
    %v1822 = vpop.xlane.xlu0 %1821
    %v1823 = vsel %vm157, %v1819, 0.0
    %1824 = vadd.xlane.f32.xlu0 %v1823
    %v1825 = vpop.xlane.xlu0 %1824
    %v1826 = vmul.f32 %v1822, %v164
    %v1827 = vmul.f32 %v1825, %v164
    %v1828 = vsub.f32 %v1818, %v1826
    %v1829 = vsub.f32 %v1819, %v1827
    %v1830 = vmul.f32 %v1828, %v1828
    %v1831 = vmul.f32 %v1829, %v1829
    %v1832 = vsel %vm157, %v1830, 0.0
    %1833 = vadd.xlane.f32.xlu0 %v1832
    %v1834 = vpop.xlane.xlu0 %1833
    %v1835 = vsel %vm157, %v1831, 0.0
    %1836 = vadd.xlane.f32.xlu0 %v1835
    %v1837 = vpop.xlane.xlu0 %1836
    %v1838 = vmul.f32 %v1834, 0.032258064
    %v1839 = vmul.f32 %v1837, 0.032258064
    %v1840 = vrsqrt.pop %v1838
    %v1841 = vmul.f32 %v1838, %v1840
    %vm1842 = vcmp.eq.f32.partialorder %v1838, inf
    %v1843 = vsel %vm1842, %v1838, %v1841
    %vm1844 = vcmp.eq.f32.partialorder %v1838, 0.0
    %v1845 = vand.u32 %v1838, 2147483648
    %v1846 = vsel %vm1844, %v1845, %v1843
    %v1847 = vrsqrt.pop %v1839
    %v1848 = vmul.f32 %v1839, %v1847
    %vm1849 = vcmp.eq.f32.partialorder %v1839, inf
    %v1850 = vsel %vm1849, %v1839, %v1848
    %vm1851 = vcmp.eq.f32.partialorder %v1839, 0.0
    %v1852 = vand.u32 %v1839, 2147483648
    %v1853 = vsel %vm1851, %v1852, %v1850
    %v1854 = vadd.f32 %v1846, 1e-06
    %v1855 = vadd.f32 %v1853, 1e-06
    %v1856 = vrcp.pop %v1854
    %v1857 = vmul.f32 %v1828, %v1856
    %v1858 = vrcp.pop %v1855
    %v1859 = vmul.f32 %v1829, %v1858
    %v1860 = vlaneseq
    %v1861 = vshrl.u32 %v1860, 7
    %v1862 = vsub.s32 2, %v1861
    %v1863 = vrot.slane %v140, %v1862
    %v1864 = vmul.f32 %v1863, %v1857
    %v1865 = vmul.f32 %v1863, %v1859
    %v1866 = vlaneseq
    %v1867 = vshrl.u32 %v1866, 7
    %v1868 = vsub.s32 3, %v1867
    %v1869 = vrot.slane %v140, %v1868
    %v1870 = vadd.f32 %v1864, %v1869
    %v1871 = vadd.f32 %v1865, %v1869
    %s1872 = scalar_lea.vmem [#allocation11], 32
    %v1873 = vld [vmem:[%s1872] sm:$0xff]
    %v1874 = vld [vmem:[%s1872 + $0x8] sm:$0xff]
    %v1875 = vld [vmem:[%s1872 + $0x10] sm:$0xff]
    %v1876 = vld [vmem:[%s1872 + $0x18] sm:$0xff]
    %v1877 = vlaneseq
    %v1878 = vshrl.u32 %v1877, 7
    %v1879 = vsub.s32 4, %v1878
    %v1880 = vrot.slane %v141, %v1879
    %v1882 = vsel %vm157, %v1870, 0
    %v1885 = vsel %vm157, %v1871, 0
    %1887 = vmatprep.subr.mxu0 0.0
    %1888 = vmatpush1.msra.mxu0 0.0
    %1889 = vmatprep.subr.mxu0 0.0
    %1890 = vmatpush1.msra.mxu0 0.0
    %1891 = vmatprep.subr.mxu0 0.0
    %1892 = vmatpush1.msra.mxu0 0.0
    %1893 = vmatprep.subr.mxu0 0.0
    %1894 = vmatpush1.msra.mxu0 0.0
    %1895 = vmatprep.subr.mxu0 0.0
    %1896 = vmatpush1.msra.mxu0 0.0
    %1897 = vmatprep.subr.mxu0 0.0
    %1898 = vmatpush1.msra.mxu0 0.0
    %1899 = vmatprep.subr.mxu0 0.0
    %1900 = vmatpush1.msra.mxu0 0.0
    %1901 = vmatprep.subr.mxu0 0.0
    %1902 = vmatpush1.msra.mxu0 0.0
    %1903 = vmatprep.subr.mxu0 0.0
    %1904 = vmatpush1.msra.mxu0 0.0
    %1905 = vmatprep.subr.mxu0 0.0
    %1906 = vmatpush1.msra.mxu0 0.0
    %1907 = vmatprep.subr.mxu0 0.0
    %1908 = vmatpush1.msra.mxu0 0.0
    %1909 = vmatprep.subr.mxu0 0.0
    %1910 = vmatpush1.msra.mxu0 0.0
    %1911 = vmatprep.subr.mxu0 0.0
    %1912 = vmatpush1.msra.mxu0 %v1876
    %1913 = vmatprep.subr.mxu0 0.0
    %1914 = vmatpush1.msra.mxu0 %v1875
    %1915 = vmatprep.subr.mxu0 0.0
    %1916 = vmatpush1.msra.mxu0 %v1874
    %1917 = vmatprep.subr.mxu0 0.0
    %1918 = vmatpush1.msra.mxu0 %v1873
    %1919 = vmatprep.subr.mxu0 0.0
    %1920 = vmatpush2.msra.mxu0 0.0
    %1921 = vmatprep.subr.mxu0 0.0
    %1922 = vmatpush2.msra.mxu0 0.0
    %1923 = vmatprep.subr.mxu0 0.0
    %1924 = vmatpush2.msra.mxu0 0.0
    %1925 = vmatprep.subr.mxu0 0.0
    %1926 = vmatpush2.msra.mxu0 0.0
    %1927 = vmatprep.subr.mxu0 0.0
    %1928 = vmatpush2.msra.mxu0 0.0
    %1929 = vmatprep.subr.mxu0 0.0
    %1930 = vmatpush2.msra.mxu0 0.0
    %1931 = vmatprep.subr.mxu0 0.0
    %1932 = vmatpush2.msra.mxu0 0.0
    %1933 = vmatprep.subr.mxu0 0.0
    %1934 = vmatpush2.msra.mxu0 0.0
    %1935 = vmatprep.subr.mxu0 0.0
    %1936 = vmatpush2.msra.mxu0 0.0
    %1937 = vmatprep.subr.mxu0 0.0
    %1938 = vmatpush2.msra.mxu0 0.0
    %1939 = vmatprep.subr.mxu0 0.0
    %1940 = vmatpush2.msra.mxu0 0.0
    %1941 = vmatprep.subr.mxu0 0.0
    %1942 = vmatpush2.msra.mxu0 0.0
    %1943 = vmatprep.subr.mxu0 0.0
    %1944 = vmatpush2.msra.mxu0 0.0
    %1945 = vmatprep.subr.mxu0 0.0
    %1946 = vmatpush2.msra.mxu0 0.0
    %1947 = vmatprep.subr.mxu0 0.0
    %1948 = vmatpush2.msra.mxu0 0.0
    %1949 = vmatprep.subr.mxu0 0.0
    %1950 = vmatpush2.msra.mxu0 0.0
    %1951 = vmatprep.mubr.f32.mxu0 0.0
    %1952 = vmatmul.mubr.f32.gmra.mxu0 %v1882
    %v1953 = vpop.f32.mrf.mxu0
    %v1954 = vadd.f32 %v1880, %v1953
    %v1955 = vpop.f32.mrf.mxu0
    %1956 = vmatprep.mubr.f32.mxu0 0.0
    %1957 = vmatmul.mubr.f32.gmra.mxu0 %v1885
    %v1958 = vpop.f32.mrf.mxu0
    %v1959 = vadd.f32 %v1880, %v1958
    %v1960 = vpop.f32.mrf.mxu0
    %1961 = vdwg.mxu0
    %1966 = vrot.lane.b32.xlu0 %v1873, 96
    %v1967 = vpop.permute.xlu0 %1966
    %1968 = vrot.lane.b32.xlu0 %v1874, 96
    %v1969 = vpop.permute.xlu0 %1968
    %1970 = vrot.lane.b32.xlu0 %v1875, 96
    %v1971 = vpop.permute.xlu0 %1970
    %1972 = vrot.lane.b32.xlu0 %v1876, 96
    %v1973 = vpop.permute.xlu0 %1972
    %v1979 = vsel %vm157, %v145, 0
    %v1982 = vsel %vm157, %v146, 0
    %1984 = vmatprep.subr.mxu0 0.0
    %1985 = vmatpush1.msra.mxu0 0.0
    %1986 = vmatprep.subr.mxu0 0.0
    %1987 = vmatpush1.msra.mxu0 0.0
    %1988 = vmatprep.subr.mxu0 0.0
    %1989 = vmatpush1.msra.mxu0 0.0
    %1990 = vmatprep.subr.mxu0 0.0
    %1991 = vmatpush1.msra.mxu0 0.0
    %1992 = vmatprep.subr.mxu0 0.0
    %1993 = vmatpush1.msra.mxu0 0.0
    %1994 = vmatprep.subr.mxu0 0.0
    %1995 = vmatpush1.msra.mxu0 0.0
    %1996 = vmatprep.subr.mxu0 0.0
    %1997 = vmatpush1.msra.mxu0 0.0
    %1998 = vmatprep.subr.mxu0 0.0
    %1999 = vmatpush1.msra.mxu0 0.0
    %2000 = vmatprep.subr.mxu0 0.0
    %2001 = vmatpush1.msra.mxu0 0.0
    %2002 = vmatprep.subr.mxu0 0.0
    %2003 = vmatpush1.msra.mxu0 0.0
    %2004 = vmatprep.subr.mxu0 0.0
    %2005 = vmatpush1.msra.mxu0 0.0
    %2006 = vmatprep.subr.mxu0 0.0
    %2007 = vmatpush1.msra.mxu0 0.0
    %2008 = vmatprep.subr.mxu0 0.0
    %2009 = vmatpush1.msra.mxu0 %v1973
    %2010 = vmatprep.subr.mxu0 0.0
    %2011 = vmatpush1.msra.mxu0 %v1971
    %2012 = vmatprep.subr.mxu0 0.0
    %2013 = vmatpush1.msra.mxu0 %v1969
    %2014 = vmatprep.subr.mxu0 0.0
    %2015 = vmatpush1.msra.mxu0 %v1967
    %2016 = vmatprep.subr.mxu0 0.0
    %2017 = vmatpush2.msra.mxu0 0.0
    %2018 = vmatprep.subr.mxu0 0.0
    %2019 = vmatpush2.msra.mxu0 0.0
    %2020 = vmatprep.subr.mxu0 0.0
    %2021 = vmatpush2.msra.mxu0 0.0
    %2022 = vmatprep.subr.mxu0 0.0
    %2023 = vmatpush2.msra.mxu0 0.0
    %2024 = vmatprep.subr.mxu0 0.0
    %2025 = vmatpush2.msra.mxu0 0.0
    %2026 = vmatprep.subr.mxu0 0.0
    %2027 = vmatpush2.msra.mxu0 0.0
    %2028 = vmatprep.subr.mxu0 0.0
    %2029 = vmatpush2.msra.mxu0 0.0
    %2030 = vmatprep.subr.mxu0 0.0
    %2031 = vmatpush2.msra.mxu0 0.0
    %2032 = vmatprep.subr.mxu0 0.0
    %2033 = vmatpush2.msra.mxu0 0.0
    %2034 = vmatprep.subr.mxu0 0.0
    %2035 = vmatpush2.msra.mxu0 0.0
    %2036 = vmatprep.subr.mxu0 0.0
    %2037 = vmatpush2.msra.mxu0 0.0
    %2038 = vmatprep.subr.mxu0 0.0
    %2039 = vmatpush2.msra.mxu0 0.0
    %2040 = vmatprep.subr.mxu0 0.0
    %2041 = vmatpush2.msra.mxu0 0.0
    %2042 = vmatprep.subr.mxu0 0.0
    %2043 = vmatpush2.msra.mxu0 0.0
    %2044 = vmatprep.subr.mxu0 0.0
    %2045 = vmatpush2.msra.mxu0 0.0
    %2046 = vmatprep.subr.mxu0 0.0
    %2047 = vmatpush2.msra.mxu0 0.0
    %2048 = vmatprep.mubr.f32.mxu0 0.0
    %2049 = vmatmul.mubr.f32.gmra.mxu0 %v1979
    %v2050 = vpop.f32.mrf.mxu0
    %v2051 = vadd.f32 0.0, %v2050
    %v2052 = vpop.f32.mrf.mxu0
    %2053 = vmatprep.mubr.f32.mxu0 0.0
    %2054 = vmatmul.mubr.f32.gmra.mxu0 %v1982
    %v2055 = vpop.f32.mrf.mxu0
    %v2056 = vadd.f32 0.0, %v2055
    %v2057 = vpop.f32.mrf.mxu0
    %2058 = vdwg.mxu0
    %v2059 = vlaneseq
    %v2060 = vshrl.u32 %v2059, 7
    %v2061 = vsub.s32 5, %v2060
    %v2062 = vrot.slane %v141, %v2061
    %v2063 = vadd.f32 %v2051, %v2062
    %v2064 = vadd.f32 %v2056, %v2062
    %v2065 = vlaneseq
    %v2066 = vshrl.u32 %v2065, 7
    %v2067 = vsub.s32 6, %v2066
    %v2068 = vrot.slane %v141, %v2067
    %2070 = vrot.lane.b32.xlu0 %v2068, 32
    %v2071 = vpop.permute.xlu0 %2070
    %v2073 = vadd.f32 %v2051, %v2071
    %v2074 = vadd.f32 %v2056, %v2071
    %2076 = vrot.lane.b32.xlu0 %v1954, 120
    %v2077 = vpop.permute.xlu0 %2076
    %2078 = vrot.lane.b32.xlu0 %v1954, 112
    %v2079 = vpop.permute.xlu0 %2078
    %2080 = vrot.lane.b32.xlu0 %v1954, 104
    %v2081 = vpop.permute.xlu0 %2080
    %2083 = vrot.lane.b32.xlu0 %v1959, 120
    %v2084 = vpop.permute.xlu0 %2083
    %2085 = vrot.lane.b32.xlu0 %v1959, 112
    %v2086 = vpop.permute.xlu0 %2085
    %2087 = vrot.lane.b32.xlu0 %v1959, 104
    %v2088 = vpop.permute.xlu0 %2087
    %2090 = vrot.lane.b32.xlu0 %v2063, 120
    %v2091 = vpop.permute.xlu0 %2090
    %2092 = vrot.lane.b32.xlu0 %v2063, 112
    %v2093 = vpop.permute.xlu0 %2092
    %2094 = vrot.lane.b32.xlu0 %v2063, 104
    %v2095 = vpop.permute.xlu0 %2094
    %2097 = vrot.lane.b32.xlu0 %v2064, 120
    %v2098 = vpop.permute.xlu0 %2097
    %2099 = vrot.lane.b32.xlu0 %v2064, 112
    %v2100 = vpop.permute.xlu0 %2099
    %2101 = vrot.lane.b32.xlu0 %v2064, 104
    %v2102 = vpop.permute.xlu0 %2101
    %2104 = vrot.lane.b32.xlu0 %v2073, 120
    %v2105 = vpop.permute.xlu0 %2104
    %2106 = vrot.lane.b32.xlu0 %v2073, 112
    %v2107 = vpop.permute.xlu0 %2106
    %2108 = vrot.lane.b32.xlu0 %v2073, 104
    %v2109 = vpop.permute.xlu0 %2108
    %2111 = vrot.lane.b32.xlu0 %v2074, 120
    %v2112 = vpop.permute.xlu0 %2111
    %2113 = vrot.lane.b32.xlu0 %v2074, 112
    %v2114 = vpop.permute.xlu0 %2113
    %2115 = vrot.lane.b32.xlu0 %v2074, 104
    %v2116 = vpop.permute.xlu0 %2115
    %v2117 = vsel %vm366, %v1954, 0
    %v2119 = vsel %vm366, %v2063, 0
    %2121 = vmatprep.subr.mxu0 0.0
    %2122 = vmatpush1.xpose.msra.mxu0 0.0
    %2123 = vmatprep.subr.mxu0 0.0
    %2124 = vmatpush1.xpose.msra.mxu0 0.0
    %2125 = vmatprep.subr.mxu0 0.0
    %2126 = vmatpush1.xpose.msra.mxu0 0.0
    %2127 = vmatprep.subr.mxu0 0.0
    %2128 = vmatpush1.xpose.msra.mxu0 0.0
    %2129 = vmatprep.subr.mxu0 0.0
    %2130 = vmatpush1.xpose.msra.mxu0 0.0
    %2131 = vmatprep.subr.mxu0 0.0
    %2132 = vmatpush1.xpose.msra.mxu0 0.0
    %2133 = vmatprep.subr.mxu0 0.0
    %2134 = vmatpush1.xpose.msra.mxu0 0.0
    %2135 = vmatprep.subr.mxu0 0.0
    %2136 = vmatpush1.xpose.msra.mxu0 0.0
    %2137 = vmatprep.subr.mxu0 0.0
    %2138 = vmatpush1.xpose.msra.mxu0 0.0
    %2139 = vmatprep.subr.mxu0 0.0
    %2140 = vmatpush1.xpose.msra.mxu0 0.0
    %2141 = vmatprep.subr.mxu0 0.0
    %2142 = vmatpush1.xpose.msra.mxu0 0.0
    %2143 = vmatprep.subr.mxu0 0.0
    %2144 = vmatpush1.xpose.msra.mxu0 0.0
    %2145 = vmatprep.subr.mxu0 0.0
    %2146 = vmatpush1.xpose.msra.mxu0 0.0
    %2147 = vmatprep.subr.mxu0 0.0
    %2148 = vmatpush1.xpose.msra.mxu0 0.0
    %2149 = vmatprep.subr.mxu0 0.0
    %2150 = vmatpush1.xpose.msra.mxu0 0.0
    %2151 = vmatprep.subr.mxu0 0.0
    %2152 = vmatpush1.xpose.msra.mxu0 %v2119
    %2153 = vmatprep.subr.mxu0 0.0
    %2154 = vmatpush2.xpose.msra.mxu0 0.0
    %2155 = vmatprep.subr.mxu0 0.0
    %2156 = vmatpush2.xpose.msra.mxu0 0.0
    %2157 = vmatprep.subr.mxu0 0.0
    %2158 = vmatpush2.xpose.msra.mxu0 0.0
    %2159 = vmatprep.subr.mxu0 0.0
    %2160 = vmatpush2.xpose.msra.mxu0 0.0
    %2161 = vmatprep.subr.mxu0 0.0
    %2162 = vmatpush2.xpose.msra.mxu0 0.0
    %2163 = vmatprep.subr.mxu0 0.0
    %2164 = vmatpush2.xpose.msra.mxu0 0.0
    %2165 = vmatprep.subr.mxu0 0.0
    %2166 = vmatpush2.xpose.msra.mxu0 0.0
    %2167 = vmatprep.subr.mxu0 0.0
    %2168 = vmatpush2.xpose.msra.mxu0 0.0
    %2169 = vmatprep.subr.mxu0 0.0
    %2170 = vmatpush2.xpose.msra.mxu0 0.0
    %2171 = vmatprep.subr.mxu0 0.0
    %2172 = vmatpush2.xpose.msra.mxu0 0.0
    %2173 = vmatprep.subr.mxu0 0.0
    %2174 = vmatpush2.xpose.msra.mxu0 0.0
    %2175 = vmatprep.subr.mxu0 0.0
    %2176 = vmatpush2.xpose.msra.mxu0 0.0
    %2177 = vmatprep.subr.mxu0 0.0
    %2178 = vmatpush2.xpose.msra.mxu0 0.0
    %2179 = vmatprep.subr.mxu0 0.0
    %2180 = vmatpush2.xpose.msra.mxu0 0.0
    %2181 = vmatprep.subr.mxu0 0.0
    %2182 = vmatpush2.xpose.msra.mxu0 0.0
    %2183 = vmatprep.subr.mxu0 0.0
    %2184 = vmatpush2.xpose.msra.mxu0 0.0
    %2185 = vmatprep.mubr.f32.mxu0 0.0
    %2186 = vmatmul.mubr.f32.gmra.mxu0 %v2117
    %v2187 = vpop.f32.mrf.mxu0
    %v2188 = vadd.f32 0.0, %v2187
    %v2189 = vpop.f32.mrf.mxu0
    %2190 = vdwg.mxu0
    %v2191 = vsel %vm366, %v2077, 0
    %v2193 = vsel %vm366, %v2091, 0
    %2195 = vmatprep.subr.mxu0 0.0
    %2196 = vmatpush1.xpose.msra.mxu0 0.0
    %2197 = vmatprep.subr.mxu0 0.0
    %2198 = vmatpush1.xpose.msra.mxu0 0.0
    %2199 = vmatprep.subr.mxu0 0.0
    %2200 = vmatpush1.xpose.msra.mxu0 0.0
    %2201 = vmatprep.subr.mxu0 0.0
    %2202 = vmatpush1.xpose.msra.mxu0 0.0
    %2203 = vmatprep.subr.mxu0 0.0
    %2204 = vmatpush1.xpose.msra.mxu0 0.0
    %2205 = vmatprep.subr.mxu0 0.0
    %2206 = vmatpush1.xpose.msra.mxu0 0.0
    %2207 = vmatprep.subr.mxu0 0.0
    %2208 = vmatpush1.xpose.msra.mxu0 0.0
    %2209 = vmatprep.subr.mxu0 0.0
    %2210 = vmatpush1.xpose.msra.mxu0 0.0
    %2211 = vmatprep.subr.mxu0 0.0
    %2212 = vmatpush1.xpose.msra.mxu0 0.0
    %2213 = vmatprep.subr.mxu0 0.0
    %2214 = vmatpush1.xpose.msra.mxu0 0.0
    %2215 = vmatprep.subr.mxu0 0.0
    %2216 = vmatpush1.xpose.msra.mxu0 0.0
    %2217 = vmatprep.subr.mxu0 0.0
    %2218 = vmatpush1.xpose.msra.mxu0 0.0
    %2219 = vmatprep.subr.mxu0 0.0
    %2220 = vmatpush1.xpose.msra.mxu0 0.0
    %2221 = vmatprep.subr.mxu0 0.0
    %2222 = vmatpush1.xpose.msra.mxu0 0.0
    %2223 = vmatprep.subr.mxu0 0.0
    %2224 = vmatpush1.xpose.msra.mxu0 0.0
    %2225 = vmatprep.subr.mxu0 0.0
    %2226 = vmatpush1.xpose.msra.mxu0 %v2193
    %2227 = vmatprep.subr.mxu0 0.0
    %2228 = vmatpush2.xpose.msra.mxu0 0.0
    %2229 = vmatprep.subr.mxu0 0.0
    %2230 = vmatpush2.xpose.msra.mxu0 0.0
    %2231 = vmatprep.subr.mxu0 0.0
    %2232 = vmatpush2.xpose.msra.mxu0 0.0
    %2233 = vmatprep.subr.mxu0 0.0
    %2234 = vmatpush2.xpose.msra.mxu0 0.0
    %2235 = vmatprep.subr.mxu0 0.0
    %2236 = vmatpush2.xpose.msra.mxu0 0.0
    %2237 = vmatprep.subr.mxu0 0.0
    %2238 = vmatpush2.xpose.msra.mxu0 0.0
    %2239 = vmatprep.subr.mxu0 0.0
    %2240 = vmatpush2.xpose.msra.mxu0 0.0
    %2241 = vmatprep.subr.mxu0 0.0
    %2242 = vmatpush2.xpose.msra.mxu0 0.0
    %2243 = vmatprep.subr.mxu0 0.0
    %2244 = vmatpush2.xpose.msra.mxu0 0.0
    %2245 = vmatprep.subr.mxu0 0.0
    %2246 = vmatpush2.xpose.msra.mxu0 0.0
    %2247 = vmatprep.subr.mxu0 0.0
    %2248 = vmatpush2.xpose.msra.mxu0 0.0
    %2249 = vmatprep.subr.mxu0 0.0
    %2250 = vmatpush2.xpose.msra.mxu0 0.0
    %2251 = vmatprep.subr.mxu0 0.0
    %2252 = vmatpush2.xpose.msra.mxu0 0.0
    %2253 = vmatprep.subr.mxu0 0.0
    %2254 = vmatpush2.xpose.msra.mxu0 0.0
    %2255 = vmatprep.subr.mxu0 0.0
    %2256 = vmatpush2.xpose.msra.mxu0 0.0
    %2257 = vmatprep.subr.mxu0 0.0
    %2258 = vmatpush2.xpose.msra.mxu0 0.0
    %2259 = vmatprep.mubr.f32.mxu0 0.0
    %2260 = vmatmul.mubr.f32.gmra.mxu0 %v2191
    %v2261 = vpop.f32.mrf.mxu0
    %v2262 = vadd.f32 0.0, %v2261
    %v2263 = vpop.f32.mrf.mxu0
    %2264 = vdwg.mxu0
    %v2265 = vsel %vm366, %v2079, 0
    %v2267 = vsel %vm366, %v2093, 0
    %2269 = vmatprep.subr.mxu0 0.0
    %2270 = vmatpush1.xpose.msra.mxu0 0.0
    %2271 = vmatprep.subr.mxu0 0.0
    %2272 = vmatpush1.xpose.msra.mxu0 0.0
    %2273 = vmatprep.subr.mxu0 0.0
    %2274 = vmatpush1.xpose.msra.mxu0 0.0
    %2275 = vmatprep.subr.mxu0 0.0
    %2276 = vmatpush1.xpose.msra.mxu0 0.0
    %2277 = vmatprep.subr.mxu0 0.0
    %2278 = vmatpush1.xpose.msra.mxu0 0.0
    %2279 = vmatprep.subr.mxu0 0.0
    %2280 = vmatpush1.xpose.msra.mxu0 0.0
    %2281 = vmatprep.subr.mxu0 0.0
    %2282 = vmatpush1.xpose.msra.mxu0 0.0
    %2283 = vmatprep.subr.mxu0 0.0
    %2284 = vmatpush1.xpose.msra.mxu0 0.0
    %2285 = vmatprep.subr.mxu0 0.0
    %2286 = vmatpush1.xpose.msra.mxu0 0.0
    %2287 = vmatprep.subr.mxu0 0.0
    %2288 = vmatpush1.xpose.msra.mxu0 0.0
    %2289 = vmatprep.subr.mxu0 0.0
    %2290 = vmatpush1.xpose.msra.mxu0 0.0
    %2291 = vmatprep.subr.mxu0 0.0
    %2292 = vmatpush1.xpose.msra.mxu0 0.0
    %2293 = vmatprep.subr.mxu0 0.0
    %2294 = vmatpush1.xpose.msra.mxu0 0.0
    %2295 = vmatprep.subr.mxu0 0.0
    %2296 = vmatpush1.xpose.msra.mxu0 0.0
    %2297 = vmatprep.subr.mxu0 0.0
    %2298 = vmatpush1.xpose.msra.mxu0 0.0
    %2299 = vmatprep.subr.mxu0 0.0
    %2300 = vmatpush1.xpose.msra.mxu0 %v2267
    %2301 = vmatprep.subr.mxu0 0.0
    %2302 = vmatpush2.xpose.msra.mxu0 0.0
    %2303 = vmatprep.subr.mxu0 0.0
    %2304 = vmatpush2.xpose.msra.mxu0 0.0
    %2305 = vmatprep.subr.mxu0 0.0
    %2306 = vmatpush2.xpose.msra.mxu0 0.0
    %2307 = vmatprep.subr.mxu0 0.0
    %2308 = vmatpush2.xpose.msra.mxu0 0.0
    %2309 = vmatprep.subr.mxu0 0.0
    %2310 = vmatpush2.xpose.msra.mxu0 0.0
    %2311 = vmatprep.subr.mxu0 0.0
    %2312 = vmatpush2.xpose.msra.mxu0 0.0
    %2313 = vmatprep.subr.mxu0 0.0
    %2314 = vmatpush2.xpose.msra.mxu0 0.0
    %2315 = vmatprep.subr.mxu0 0.0
    %2316 = vmatpush2.xpose.msra.mxu0 0.0
    %2317 = vmatprep.subr.mxu0 0.0
    %2318 = vmatpush2.xpose.msra.mxu0 0.0
    %2319 = vmatprep.subr.mxu0 0.0
    %2320 = vmatpush2.xpose.msra.mxu0 0.0
    %2321 = vmatprep.subr.mxu0 0.0
    %2322 = vmatpush2.xpose.msra.mxu0 0.0
    %2323 = vmatprep.subr.mxu0 0.0
    %2324 = vmatpush2.xpose.msra.mxu0 0.0
    %2325 = vmatprep.subr.mxu0 0.0
    %2326 = vmatpush2.xpose.msra.mxu0 0.0
    %2327 = vmatprep.subr.mxu0 0.0
    %2328 = vmatpush2.xpose.msra.mxu0 0.0
    %2329 = vmatprep.subr.mxu0 0.0
    %2330 = vmatpush2.xpose.msra.mxu0 0.0
    %2331 = vmatprep.subr.mxu0 0.0
    %2332 = vmatpush2.xpose.msra.mxu0 0.0
    %2333 = vmatprep.mubr.f32.mxu0 0.0
    %2334 = vmatmul.mubr.f32.gmra.mxu0 %v2265
    %v2335 = vpop.f32.mrf.mxu0
    %v2336 = vadd.f32 0.0, %v2335
    %v2337 = vpop.f32.mrf.mxu0
    %2338 = vdwg.mxu0
    %v2339 = vsel %vm366, %v2081, 0
    %v2341 = vsel %vm366, %v2095, 0
    %2343 = vmatprep.subr.mxu0 0.0
    %2344 = vmatpush1.xpose.msra.mxu0 0.0
    %2345 = vmatprep.subr.mxu0 0.0
    %2346 = vmatpush1.xpose.msra.mxu0 0.0
    %2347 = vmatprep.subr.mxu0 0.0
    %2348 = vmatpush1.xpose.msra.mxu0 0.0
    %2349 = vmatprep.subr.mxu0 0.0
    %2350 = vmatpush1.xpose.msra.mxu0 0.0
    %2351 = vmatprep.subr.mxu0 0.0
    %2352 = vmatpush1.xpose.msra.mxu0 0.0
    %2353 = vmatprep.subr.mxu0 0.0
    %2354 = vmatpush1.xpose.msra.mxu0 0.0
    %2355 = vmatprep.subr.mxu0 0.0
    %2356 = vmatpush1.xpose.msra.mxu0 0.0
    %2357 = vmatprep.subr.mxu0 0.0
    %2358 = vmatpush1.xpose.msra.mxu0 0.0
    %2359 = vmatprep.subr.mxu0 0.0
    %2360 = vmatpush1.xpose.msra.mxu0 0.0
    %2361 = vmatprep.subr.mxu0 0.0
    %2362 = vmatpush1.xpose.msra.mxu0 0.0
    %2363 = vmatprep.subr.mxu0 0.0
    %2364 = vmatpush1.xpose.msra.mxu0 0.0
    %2365 = vmatprep.subr.mxu0 0.0
    %2366 = vmatpush1.xpose.msra.mxu0 0.0
    %2367 = vmatprep.subr.mxu0 0.0
    %2368 = vmatpush1.xpose.msra.mxu0 0.0
    %2369 = vmatprep.subr.mxu0 0.0
    %2370 = vmatpush1.xpose.msra.mxu0 0.0
    %2371 = vmatprep.subr.mxu0 0.0
    %2372 = vmatpush1.xpose.msra.mxu0 0.0
    %2373 = vmatprep.subr.mxu0 0.0
    %2374 = vmatpush1.xpose.msra.mxu0 %v2341
    %2375 = vmatprep.subr.mxu0 0.0
    %2376 = vmatpush2.xpose.msra.mxu0 0.0
    %2377 = vmatprep.subr.mxu0 0.0
    %2378 = vmatpush2.xpose.msra.mxu0 0.0
    %2379 = vmatprep.subr.mxu0 0.0
    %2380 = vmatpush2.xpose.msra.mxu0 0.0
    %2381 = vmatprep.subr.mxu0 0.0
    %2382 = vmatpush2.xpose.msra.mxu0 0.0
    %2383 = vmatprep.subr.mxu0 0.0
    %2384 = vmatpush2.xpose.msra.mxu0 0.0
    %2385 = vmatprep.subr.mxu0 0.0
    %2386 = vmatpush2.xpose.msra.mxu0 0.0
    %2387 = vmatprep.subr.mxu0 0.0
    %2388 = vmatpush2.xpose.msra.mxu0 0.0
    %2389 = vmatprep.subr.mxu0 0.0
    %2390 = vmatpush2.xpose.msra.mxu0 0.0
    %2391 = vmatprep.subr.mxu0 0.0
    %2392 = vmatpush2.xpose.msra.mxu0 0.0
    %2393 = vmatprep.subr.mxu0 0.0
    %2394 = vmatpush2.xpose.msra.mxu0 0.0
    %2395 = vmatprep.subr.mxu0 0.0
    %2396 = vmatpush2.xpose.msra.mxu0 0.0
    %2397 = vmatprep.subr.mxu0 0.0
    %2398 = vmatpush2.xpose.msra.mxu0 0.0
    %2399 = vmatprep.subr.mxu0 0.0
    %2400 = vmatpush2.xpose.msra.mxu0 0.0
    %2401 = vmatprep.subr.mxu0 0.0
    %2402 = vmatpush2.xpose.msra.mxu0 0.0
    %2403 = vmatprep.subr.mxu0 0.0
    %2404 = vmatpush2.xpose.msra.mxu0 0.0
    %2405 = vmatprep.subr.mxu0 0.0
    %2406 = vmatpush2.xpose.msra.mxu0 0.0
    %2407 = vmatprep.mubr.f32.mxu0 0.0
    %2408 = vmatmul.mubr.f32.gmra.mxu0 %v2339
    %v2409 = vpop.f32.mrf.mxu0
    %v2410 = vadd.f32 0.0, %v2409
    %v2411 = vpop.f32.mrf.mxu0
    %2412 = vdwg.mxu0
    %v2413 = vsel %vm366, %v1959, 0
    %v2415 = vsel %vm366, %v2064, 0
    %2417 = vmatprep.subr.mxu0 0.0
    %2418 = vmatpush1.xpose.msra.mxu0 0.0
    %2419 = vmatprep.subr.mxu0 0.0
    %2420 = vmatpush1.xpose.msra.mxu0 0.0
    %2421 = vmatprep.subr.mxu0 0.0
    %2422 = vmatpush1.xpose.msra.mxu0 0.0
    %2423 = vmatprep.subr.mxu0 0.0
    %2424 = vmatpush1.xpose.msra.mxu0 0.0
    %2425 = vmatprep.subr.mxu0 0.0
    %2426 = vmatpush1.xpose.msra.mxu0 0.0
    %2427 = vmatprep.subr.mxu0 0.0
    %2428 = vmatpush1.xpose.msra.mxu0 0.0
    %2429 = vmatprep.subr.mxu0 0.0
    %2430 = vmatpush1.xpose.msra.mxu0 0.0
    %2431 = vmatprep.subr.mxu0 0.0
    %2432 = vmatpush1.xpose.msra.mxu0 0.0
    %2433 = vmatprep.subr.mxu0 0.0
    %2434 = vmatpush1.xpose.msra.mxu0 0.0
    %2435 = vmatprep.subr.mxu0 0.0
    %2436 = vmatpush1.xpose.msra.mxu0 0.0
    %2437 = vmatprep.subr.mxu0 0.0
    %2438 = vmatpush1.xpose.msra.mxu0 0.0
    %2439 = vmatprep.subr.mxu0 0.0
    %2440 = vmatpush1.xpose.msra.mxu0 0.0
    %2441 = vmatprep.subr.mxu0 0.0
    %2442 = vmatpush1.xpose.msra.mxu0 0.0
    %2443 = vmatprep.subr.mxu0 0.0
    %2444 = vmatpush1.xpose.msra.mxu0 0.0
    %2445 = vmatprep.subr.mxu0 0.0
    %2446 = vmatpush1.xpose.msra.mxu0 0.0
    %2447 = vmatprep.subr.mxu0 0.0
    %2448 = vmatpush1.xpose.msra.mxu0 %v2415
    %2449 = vmatprep.subr.mxu0 0.0
    %2450 = vmatpush2.xpose.msra.mxu0 0.0
    %2451 = vmatprep.subr.mxu0 0.0
    %2452 = vmatpush2.xpose.msra.mxu0 0.0
    %2453 = vmatprep.subr.mxu0 0.0
    %2454 = vmatpush2.xpose.msra.mxu0 0.0
    %2455 = vmatprep.subr.mxu0 0.0
    %2456 = vmatpush2.xpose.msra.mxu0 0.0
    %2457 = vmatprep.subr.mxu0 0.0
    %2458 = vmatpush2.xpose.msra.mxu0 0.0
    %2459 = vmatprep.subr.mxu0 0.0
    %2460 = vmatpush2.xpose.msra.mxu0 0.0
    %2461 = vmatprep.subr.mxu0 0.0
    %2462 = vmatpush2.xpose.msra.mxu0 0.0
    %2463 = vmatprep.subr.mxu0 0.0
    %2464 = vmatpush2.xpose.msra.mxu0 0.0
    %2465 = vmatprep.subr.mxu0 0.0
    %2466 = vmatpush2.xpose.msra.mxu0 0.0
    %2467 = vmatprep.subr.mxu0 0.0
    %2468 = vmatpush2.xpose.msra.mxu0 0.0
    %2469 = vmatprep.subr.mxu0 0.0
    %2470 = vmatpush2.xpose.msra.mxu0 0.0
    %2471 = vmatprep.subr.mxu0 0.0
    %2472 = vmatpush2.xpose.msra.mxu0 0.0
    %2473 = vmatprep.subr.mxu0 0.0
    %2474 = vmatpush2.xpose.msra.mxu0 0.0
    %2475 = vmatprep.subr.mxu0 0.0
    %2476 = vmatpush2.xpose.msra.mxu0 0.0
    %2477 = vmatprep.subr.mxu0 0.0
    %2478 = vmatpush2.xpose.msra.mxu0 0.0
    %2479 = vmatprep.subr.mxu0 0.0
    %2480 = vmatpush2.xpose.msra.mxu0 0.0
    %2481 = vmatprep.mubr.f32.mxu0 0.0
    %2482 = vmatmul.mubr.f32.gmra.mxu0 %v2413
    %v2483 = vpop.f32.mrf.mxu0
    %v2484 = vadd.f32 0.0, %v2483
    %v2485 = vpop.f32.mrf.mxu0
    %2486 = vdwg.mxu0
    %v2487 = vsel %vm366, %v2084, 0
    %v2489 = vsel %vm366, %v2098, 0
    %2491 = vmatprep.subr.mxu0 0.0
    %2492 = vmatpush1.xpose.msra.mxu0 0.0
    %2493 = vmatprep.subr.mxu0 0.0
    %2494 = vmatpush1.xpose.msra.mxu0 0.0
    %2495 = vmatprep.subr.mxu0 0.0
    %2496 = vmatpush1.xpose.msra.mxu0 0.0
    %2497 = vmatprep.subr.mxu0 0.0
    %2498 = vmatpush1.xpose.msra.mxu0 0.0
    %2499 = vmatprep.subr.mxu0 0.0
    %2500 = vmatpush1.xpose.msra.mxu0 0.0
    %2501 = vmatprep.subr.mxu0 0.0
    %2502 = vmatpush1.xpose.msra.mxu0 0.0
    %2503 = vmatprep.subr.mxu0 0.0
    %2504 = vmatpush1.xpose.msra.mxu0 0.0
    %2505 = vmatprep.subr.mxu0 0.0
    %2506 = vmatpush1.xpose.msra.mxu0 0.0
    %2507 = vmatprep.subr.mxu0 0.0
    %2508 = vmatpush1.xpose.msra.mxu0 0.0
    %2509 = vmatprep.subr.mxu0 0.0
    %2510 = vmatpush1.xpose.msra.mxu0 0.0
    %2511 = vmatprep.subr.mxu0 0.0
    %2512 = vmatpush1.xpose.msra.mxu0 0.0
    %2513 = vmatprep.subr.mxu0 0.0
    %2514 = vmatpush1.xpose.msra.mxu0 0.0
    %2515 = vmatprep.subr.mxu0 0.0
    %2516 = vmatpush1.xpose.msra.mxu0 0.0
    %2517 = vmatprep.subr.mxu0 0.0
    %2518 = vmatpush1.xpose.msra.mxu0 0.0
    %2519 = vmatprep.subr.mxu0 0.0
    %2520 = vmatpush1.xpose.msra.mxu0 0.0
    %2521 = vmatprep.subr.mxu0 0.0
    %2522 = vmatpush1.xpose.msra.mxu0 %v2489
    %2523 = vmatprep.subr.mxu0 0.0
    %2524 = vmatpush2.xpose.msra.mxu0 0.0
    %2525 = vmatprep.subr.mxu0 0.0
    %2526 = vmatpush2.xpose.msra.mxu0 0.0
    %2527 = vmatprep.subr.mxu0 0.0
    %2528 = vmatpush2.xpose.msra.mxu0 0.0
    %2529 = vmatprep.subr.mxu0 0.0
    %2530 = vmatpush2.xpose.msra.mxu0 0.0
    %2531 = vmatprep.subr.mxu0 0.0
    %2532 = vmatpush2.xpose.msra.mxu0 0.0
    %2533 = vmatprep.subr.mxu0 0.0
    %2534 = vmatpush2.xpose.msra.mxu0 0.0
    %2535 = vmatprep.subr.mxu0 0.0
    %2536 = vmatpush2.xpose.msra.mxu0 0.0
    %2537 = vmatprep.subr.mxu0 0.0
    %2538 = vmatpush2.xpose.msra.mxu0 0.0
    %2539 = vmatprep.subr.mxu0 0.0
    %2540 = vmatpush2.xpose.msra.mxu0 0.0
    %2541 = vmatprep.subr.mxu0 0.0
    %2542 = vmatpush2.xpose.msra.mxu0 0.0
    %2543 = vmatprep.subr.mxu0 0.0
    %2544 = vmatpush2.xpose.msra.mxu0 0.0
    %2545 = vmatprep.subr.mxu0 0.0
    %2546 = vmatpush2.xpose.msra.mxu0 0.0
    %2547 = vmatprep.subr.mxu0 0.0
    %2548 = vmatpush2.xpose.msra.mxu0 0.0
    %2549 = vmatprep.subr.mxu0 0.0
    %2550 = vmatpush2.xpose.msra.mxu0 0.0
    %2551 = vmatprep.subr.mxu0 0.0
    %2552 = vmatpush2.xpose.msra.mxu0 0.0
    %2553 = vmatprep.subr.mxu0 0.0
    %2554 = vmatpush2.xpose.msra.mxu0 0.0
    %2555 = vmatprep.mubr.f32.mxu0 0.0
    %2556 = vmatmul.mubr.f32.gmra.mxu0 %v2487
    %v2557 = vpop.f32.mrf.mxu0
    %v2558 = vadd.f32 0.0, %v2557
    %v2559 = vpop.f32.mrf.mxu0
    %2560 = vdwg.mxu0
    %v2561 = vsel %vm366, %v2086, 0
    %v2563 = vsel %vm366, %v2100, 0
    %2565 = vmatprep.subr.mxu0 0.0
    %2566 = vmatpush1.xpose.msra.mxu0 0.0
    %2567 = vmatprep.subr.mxu0 0.0
    %2568 = vmatpush1.xpose.msra.mxu0 0.0
    %2569 = vmatprep.subr.mxu0 0.0
    %2570 = vmatpush1.xpose.msra.mxu0 0.0
    %2571 = vmatprep.subr.mxu0 0.0
    %2572 = vmatpush1.xpose.msra.mxu0 0.0
    %2573 = vmatprep.subr.mxu0 0.0
    %2574 = vmatpush1.xpose.msra.mxu0 0.0
    %2575 = vmatprep.subr.mxu0 0.0
    %2576 = vmatpush1.xpose.msra.mxu0 0.0
    %2577 = vmatprep.subr.mxu0 0.0
    %2578 = vmatpush1.xpose.msra.mxu0 0.0
    %2579 = vmatprep.subr.mxu0 0.0
    %2580 = vmatpush1.xpose.msra.mxu0 0.0
    %2581 = vmatprep.subr.mxu0 0.0
    %2582 = vmatpush1.xpose.msra.mxu0 0.0
    %2583 = vmatprep.subr.mxu0 0.0
    %2584 = vmatpush1.xpose.msra.mxu0 0.0
    %2585 = vmatprep.subr.mxu0 0.0
    %2586 = vmatpush1.xpose.msra.mxu0 0.0
    %2587 = vmatprep.subr.mxu0 0.0
    %2588 = vmatpush1.xpose.msra.mxu0 0.0
    %2589 = vmatprep.subr.mxu0 0.0
    %2590 = vmatpush1.xpose.msra.mxu0 0.0
    %2591 = vmatprep.subr.mxu0 0.0
    %2592 = vmatpush1.xpose.msra.mxu0 0.0
    %2593 = vmatprep.subr.mxu0 0.0
    %2594 = vmatpush1.xpose.msra.mxu0 0.0
    %2595 = vmatprep.subr.mxu0 0.0
    %2596 = vmatpush1.xpose.msra.mxu0 %v2563
    %2597 = vmatprep.subr.mxu0 0.0
    %2598 = vmatpush2.xpose.msra.mxu0 0.0
    %2599 = vmatprep.subr.mxu0 0.0
    %2600 = vmatpush2.xpose.msra.mxu0 0.0
    %2601 = vmatprep.subr.mxu0 0.0
    %2602 = vmatpush2.xpose.msra.mxu0 0.0
    %2603 = vmatprep.subr.mxu0 0.0
    %2604 = vmatpush2.xpose.msra.mxu0 0.0
    %2605 = vmatprep.subr.mxu0 0.0
    %2606 = vmatpush2.xpose.msra.mxu0 0.0
    %2607 = vmatprep.subr.mxu0 0.0
    %2608 = vmatpush2.xpose.msra.mxu0 0.0
    %2609 = vmatprep.subr.mxu0 0.0
    %2610 = vmatpush2.xpose.msra.mxu0 0.0
    %2611 = vmatprep.subr.mxu0 0.0
    %2612 = vmatpush2.xpose.msra.mxu0 0.0
    %2613 = vmatprep.subr.mxu0 0.0
    %2614 = vmatpush2.xpose.msra.mxu0 0.0
    %2615 = vmatprep.subr.mxu0 0.0
    %2616 = vmatpush2.xpose.msra.mxu0 0.0
    %2617 = vmatprep.subr.mxu0 0.0
    %2618 = vmatpush2.xpose.msra.mxu0 0.0
    %2619 = vmatprep.subr.mxu0 0.0
    %2620 = vmatpush2.xpose.msra.mxu0 0.0
    %2621 = vmatprep.subr.mxu0 0.0
    %2622 = vmatpush2.xpose.msra.mxu0 0.0
    %2623 = vmatprep.subr.mxu0 0.0
    %2624 = vmatpush2.xpose.msra.mxu0 0.0
    %2625 = vmatprep.subr.mxu0 0.0
    %2626 = vmatpush2.xpose.msra.mxu0 0.0
    %2627 = vmatprep.subr.mxu0 0.0
    %2628 = vmatpush2.xpose.msra.mxu0 0.0
    %2629 = vmatprep.mubr.f32.mxu0 0.0
    %2630 = vmatmul.mubr.f32.gmra.mxu0 %v2561
    %v2631 = vpop.f32.mrf.mxu0
    %v2632 = vadd.f32 0.0, %v2631
    %v2633 = vpop.f32.mrf.mxu0
    %2634 = vdwg.mxu0
    %v2635 = vsel %vm366, %v2088, 0
    %v2637 = vsel %vm366, %v2102, 0
    %2639 = vmatprep.subr.mxu0 0.0
    %2640 = vmatpush1.xpose.msra.mxu0 0.0
    %2641 = vmatprep.subr.mxu0 0.0
    %2642 = vmatpush1.xpose.msra.mxu0 0.0
    %2643 = vmatprep.subr.mxu0 0.0
    %2644 = vmatpush1.xpose.msra.mxu0 0.0
    %2645 = vmatprep.subr.mxu0 0.0
    %2646 = vmatpush1.xpose.msra.mxu0 0.0
    %2647 = vmatprep.subr.mxu0 0.0
    %2648 = vmatpush1.xpose.msra.mxu0 0.0
    %2649 = vmatprep.subr.mxu0 0.0
    %2650 = vmatpush1.xpose.msra.mxu0 0.0
    %2651 = vmatprep.subr.mxu0 0.0
    %2652 = vmatpush1.xpose.msra.mxu0 0.0
    %2653 = vmatprep.subr.mxu0 0.0
    %2654 = vmatpush1.xpose.msra.mxu0 0.0
    %2655 = vmatprep.subr.mxu0 0.0
    %2656 = vmatpush1.xpose.msra.mxu0 0.0
    %2657 = vmatprep.subr.mxu0 0.0
    %2658 = vmatpush1.xpose.msra.mxu0 0.0
    %2659 = vmatprep.subr.mxu0 0.0
    %2660 = vmatpush1.xpose.msra.mxu0 0.0
    %2661 = vmatprep.subr.mxu0 0.0
    %2662 = vmatpush1.xpose.msra.mxu0 0.0
    %2663 = vmatprep.subr.mxu0 0.0
    %2664 = vmatpush1.xpose.msra.mxu0 0.0
    %2665 = vmatprep.subr.mxu0 0.0
    %2666 = vmatpush1.xpose.msra.mxu0 0.0
    %2667 = vmatprep.subr.mxu0 0.0
    %2668 = vmatpush1.xpose.msra.mxu0 0.0
    %2669 = vmatprep.subr.mxu0 0.0
    %2670 = vmatpush1.xpose.msra.mxu0 %v2637
    %2671 = vmatprep.subr.mxu0 0.0
    %2672 = vmatpush2.xpose.msra.mxu0 0.0
    %2673 = vmatprep.subr.mxu0 0.0
    %2674 = vmatpush2.xpose.msra.mxu0 0.0
    %2675 = vmatprep.subr.mxu0 0.0
    %2676 = vmatpush2.xpose.msra.mxu0 0.0
    %2677 = vmatprep.subr.mxu0 0.0
    %2678 = vmatpush2.xpose.msra.mxu0 0.0
    %2679 = vmatprep.subr.mxu0 0.0
    %2680 = vmatpush2.xpose.msra.mxu0 0.0
    %2681 = vmatprep.subr.mxu0 0.0
    %2682 = vmatpush2.xpose.msra.mxu0 0.0
    %2683 = vmatprep.subr.mxu0 0.0
    %2684 = vmatpush2.xpose.msra.mxu0 0.0
    %2685 = vmatprep.subr.mxu0 0.0
    %2686 = vmatpush2.xpose.msra.mxu0 0.0
    %2687 = vmatprep.subr.mxu0 0.0
    %2688 = vmatpush2.xpose.msra.mxu0 0.0
    %2689 = vmatprep.subr.mxu0 0.0
    %2690 = vmatpush2.xpose.msra.mxu0 0.0
    %2691 = vmatprep.subr.mxu0 0.0
    %2692 = vmatpush2.xpose.msra.mxu0 0.0
    %2693 = vmatprep.subr.mxu0 0.0
    %2694 = vmatpush2.xpose.msra.mxu0 0.0
    %2695 = vmatprep.subr.mxu0 0.0
    %2696 = vmatpush2.xpose.msra.mxu0 0.0
    %2697 = vmatprep.subr.mxu0 0.0
    %2698 = vmatpush2.xpose.msra.mxu0 0.0
    %2699 = vmatprep.subr.mxu0 0.0
    %2700 = vmatpush2.xpose.msra.mxu0 0.0
    %2701 = vmatprep.subr.mxu0 0.0
    %2702 = vmatpush2.xpose.msra.mxu0 0.0
    %2703 = vmatprep.mubr.f32.mxu0 0.0
    %2704 = vmatmul.mubr.f32.gmra.mxu0 %v2635
    %v2705 = vpop.f32.mrf.mxu0
    %v2706 = vadd.f32 0.0, %v2705
    %v2707 = vpop.f32.mrf.mxu0
    %2708 = vdwg.mxu0
    %v2709 = vmul.f32 %v2188, 0.35355338
    %v2710 = vmul.f32 %v2262, 0.35355338
    %v2711 = vmul.f32 %v2336, 0.35355338
    %v2712 = vmul.f32 %v2410, 0.35355338
    %v2713 = vmul.f32 %v2484, 0.35355338
    %v2714 = vmul.f32 %v2558, 0.35355338
    %v2715 = vmul.f32 %v2632, 0.35355338
    %v2716 = vmul.f32 %v2706, 0.35355338
    %v2717 = vsel %vm366, %v2709, -inf
    %2718 = vmax.xlane.f32.xlu0 %v2717
    %v2719 = vpop.xlane.xlu0 %2718
    %v2720 = vsel %vm366, %v2710, -inf
    %2721 = vmax.xlane.f32.xlu0 %v2720
    %v2722 = vpop.xlane.xlu0 %2721
    %v2723 = vsel %vm366, %v2711, -inf
    %2724 = vmax.xlane.f32.xlu0 %v2723
    %v2725 = vpop.xlane.xlu0 %2724
    %v2726 = vsel %vm366, %v2712, -inf
    %2727 = vmax.xlane.f32.xlu0 %v2726
    %v2728 = vpop.xlane.xlu0 %2727
    %v2729 = vsel %vm366, %v2713, -inf
    %2730 = vmax.xlane.f32.xlu0 %v2729
    %v2731 = vpop.xlane.xlu0 %2730
    %v2732 = vsel %vm366, %v2714, -inf
    %2733 = vmax.xlane.f32.xlu0 %v2732
    %v2734 = vpop.xlane.xlu0 %2733
    %v2735 = vsel %vm366, %v2715, -inf
    %2736 = vmax.xlane.f32.xlu0 %v2735
    %v2737 = vpop.xlane.xlu0 %2736
    %v2738 = vsel %vm366, %v2716, -inf
    %2739 = vmax.xlane.f32.xlu0 %v2738
    %v2740 = vpop.xlane.xlu0 %2739
    %v2741 = vsub.f32 %v2709, %v2719
    %v2742 = vsub.f32 %v2710, %v2722
    %v2743 = vsub.f32 %v2711, %v2725
    %v2744 = vsub.f32 %v2712, %v2728
    %v2745 = vsub.f32 %v2713, %v2731
    %v2746 = vsub.f32 %v2714, %v2734
    %v2747 = vsub.f32 %v2715, %v2737
    %v2748 = vsub.f32 %v2716, %v2740
    %v2749 = vmul.f32 %v2741, 1.442695
    %v2750 = vpow.pop %v2749
    %v2751 = vmul.f32 %v2742, 1.442695
    %v2752 = vpow.pop %v2751
    %v2753 = vmul.f32 %v2743, 1.442695
    %v2754 = vpow.pop %v2753
    %v2755 = vmul.f32 %v2744, 1.442695
    %v2756 = vpow.pop %v2755
    %v2757 = vmul.f32 %v2745, 1.442695
    %v2758 = vpow.pop %v2757
    %v2759 = vmul.f32 %v2746, 1.442695
    %v2760 = vpow.pop %v2759
    %v2761 = vmul.f32 %v2747, 1.442695
    %v2762 = vpow.pop %v2761
    %v2763 = vmul.f32 %v2748, 1.442695
    %v2764 = vpow.pop %v2763
    %v2765 = vsel %vm366, %v2750, 0.0
    %2766 = vadd.xlane.f32.xlu0 %v2765
    %v2767 = vpop.xlane.xlu0 %2766
    %v2768 = vsel %vm366, %v2752, 0.0
    %2769 = vadd.xlane.f32.xlu0 %v2768
    %v2770 = vpop.xlane.xlu0 %2769
    %v2771 = vsel %vm366, %v2754, 0.0
    %2772 = vadd.xlane.f32.xlu0 %v2771
    %v2773 = vpop.xlane.xlu0 %2772
    %v2774 = vsel %vm366, %v2756, 0.0
    %2775 = vadd.xlane.f32.xlu0 %v2774
    %v2776 = vpop.xlane.xlu0 %2775
    %v2777 = vsel %vm366, %v2758, 0.0
    %2778 = vadd.xlane.f32.xlu0 %v2777
    %v2779 = vpop.xlane.xlu0 %2778
    %v2780 = vsel %vm366, %v2760, 0.0
    %2781 = vadd.xlane.f32.xlu0 %v2780
    %v2782 = vpop.xlane.xlu0 %2781
    %v2783 = vsel %vm366, %v2762, 0.0
    %2784 = vadd.xlane.f32.xlu0 %v2783
    %v2785 = vpop.xlane.xlu0 %2784
    %v2786 = vsel %vm366, %v2764, 0.0
    %2787 = vadd.xlane.f32.xlu0 %v2786
    %v2788 = vpop.xlane.xlu0 %2787
    %v2789 = vrcp.pop %v2767
    %v2790 = vrcp.pop %v2770
    %v2791 = vrcp.pop %v2773
    %v2792 = vrcp.pop %v2776
    %v2793 = vrcp.pop %v2779
    %v2794 = vrcp.pop %v2782
    %v2795 = vrcp.pop %v2785
    %v2796 = vrcp.pop %v2788
    %v2797 = vmul.f32 %v2750, %v2789
    %v2798 = vmul.f32 %v2752, %v2790
    %v2799 = vmul.f32 %v2754, %v2791
    %v2800 = vmul.f32 %v2756, %v2792
    %v2801 = vmul.f32 %v2758, %v2793
    %v2802 = vmul.f32 %v2760, %v2794
    %v2803 = vmul.f32 %v2762, %v2795
    %v2804 = vmul.f32 %v2764, %v2796
    %2805 = vrot.lane.b32.xlu0 %v2073, 96
    %v2806 = vpop.permute.xlu0 %2805
    %v2809 = vsel %vm366, %v2797, 0
    %2811 = vmatprep.subr.mxu0 0.0
    %2812 = vmatpush1.msra.mxu0 0.0
    %2813 = vmatprep.subr.mxu0 0.0
    %2814 = vmatpush1.msra.mxu0 0.0
    %2815 = vmatprep.subr.mxu0 0.0
    %2816 = vmatpush1.msra.mxu0 0.0
    %2817 = vmatprep.subr.mxu0 0.0
    %2818 = vmatpush1.msra.mxu0 0.0
    %2819 = vmatprep.subr.mxu0 0.0
    %2820 = vmatpush1.msra.mxu0 0.0
    %2821 = vmatprep.subr.mxu0 0.0
    %2822 = vmatpush1.msra.mxu0 0.0
    %2823 = vmatprep.subr.mxu0 0.0
    %2824 = vmatpush1.msra.mxu0 0.0
    %2825 = vmatprep.subr.mxu0 0.0
    %2826 = vmatpush1.msra.mxu0 0.0
    %2827 = vmatprep.subr.mxu0 0.0
    %2828 = vmatpush1.msra.mxu0 0.0
    %2829 = vmatprep.subr.mxu0 0.0
    %2830 = vmatpush1.msra.mxu0 0.0
    %2831 = vmatprep.subr.mxu0 0.0
    %2832 = vmatpush1.msra.mxu0 0.0
    %2833 = vmatprep.subr.mxu0 0.0
    %2834 = vmatpush1.msra.mxu0 0.0
    %2835 = vmatprep.subr.mxu0 0.0
    %2836 = vmatpush1.msra.mxu0 0.0
    %2837 = vmatprep.subr.mxu0 0.0
    %2838 = vmatpush1.msra.mxu0 0.0
    %2839 = vmatprep.subr.mxu0 0.0
    %2840 = vmatpush1.msra.mxu0 0.0
    %2841 = vmatprep.subr.mxu0 0.0
    %2842 = vmatpush1.msra.mxu0 %v2806
    %2843 = vmatprep.subr.mxu0 0.0
    %2844 = vmatpush2.msra.mxu0 0.0
    %2845 = vmatprep.subr.mxu0 0.0
    %2846 = vmatpush2.msra.mxu0 0.0
    %2847 = vmatprep.subr.mxu0 0.0
    %2848 = vmatpush2.msra.mxu0 0.0
    %2849 = vmatprep.subr.mxu0 0.0
    %2850 = vmatpush2.msra.mxu0 0.0
    %2851 = vmatprep.subr.mxu0 0.0
    %2852 = vmatpush2.msra.mxu0 0.0
    %2853 = vmatprep.subr.mxu0 0.0
    %2854 = vmatpush2.msra.mxu0 0.0
    %2855 = vmatprep.subr.mxu0 0.0
    %2856 = vmatpush2.msra.mxu0 0.0
    %2857 = vmatprep.subr.mxu0 0.0
    %2858 = vmatpush2.msra.mxu0 0.0
    %2859 = vmatprep.subr.mxu0 0.0
    %2860 = vmatpush2.msra.mxu0 0.0
    %2861 = vmatprep.subr.mxu0 0.0
    %2862 = vmatpush2.msra.mxu0 0.0
    %2863 = vmatprep.subr.mxu0 0.0
    %2864 = vmatpush2.msra.mxu0 0.0
    %2865 = vmatprep.subr.mxu0 0.0
    %2866 = vmatpush2.msra.mxu0 0.0
    %2867 = vmatprep.subr.mxu0 0.0
    %2868 = vmatpush2.msra.mxu0 0.0
    %2869 = vmatprep.subr.mxu0 0.0
    %2870 = vmatpush2.msra.mxu0 0.0
    %2871 = vmatprep.subr.mxu0 0.0
    %2872 = vmatpush2.msra.mxu0 0.0
    %2873 = vmatprep.subr.mxu0 0.0
    %2874 = vmatpush2.msra.mxu0 0.0
    %2875 = vmatprep.mubr.f32.mxu0 0.0
    %2876 = vmatmul.mubr.f32.gmra.mxu0 %v2809
    %v2877 = vpop.f32.mrf.mxu0
    %v2878 = vadd.f32 0.0, %v2877
    %v2879 = vpop.f32.mrf.mxu0
    %2880 = vdwg.mxu0
    %2881 = vrot.lane.b32.xlu0 %v2105, 96
    %v2882 = vpop.permute.xlu0 %2881
    %v2885 = vsel %vm366, %v2798, 0
    %2887 = vmatprep.subr.mxu0 0.0
    %2888 = vmatpush1.msra.mxu0 0.0
    %2889 = vmatprep.subr.mxu0 0.0
    %2890 = vmatpush1.msra.mxu0 0.0
    %2891 = vmatprep.subr.mxu0 0.0
    %2892 = vmatpush1.msra.mxu0 0.0
    %2893 = vmatprep.subr.mxu0 0.0
    %2894 = vmatpush1.msra.mxu0 0.0
    %2895 = vmatprep.subr.mxu0 0.0
    %2896 = vmatpush1.msra.mxu0 0.0
    %2897 = vmatprep.subr.mxu0 0.0
    %2898 = vmatpush1.msra.mxu0 0.0
    %2899 = vmatprep.subr.mxu0 0.0
    %2900 = vmatpush1.msra.mxu0 0.0
    %2901 = vmatprep.subr.mxu0 0.0
    %2902 = vmatpush1.msra.mxu0 0.0
    %2903 = vmatprep.subr.mxu0 0.0
    %2904 = vmatpush1.msra.mxu0 0.0
    %2905 = vmatprep.subr.mxu0 0.0
    %2906 = vmatpush1.msra.mxu0 0.0
    %2907 = vmatprep.subr.mxu0 0.0
    %2908 = vmatpush1.msra.mxu0 0.0
    %2909 = vmatprep.subr.mxu0 0.0
    %2910 = vmatpush1.msra.mxu0 0.0
    %2911 = vmatprep.subr.mxu0 0.0
    %2912 = vmatpush1.msra.mxu0 0.0
    %2913 = vmatprep.subr.mxu0 0.0
    %2914 = vmatpush1.msra.mxu0 0.0
    %2915 = vmatprep.subr.mxu0 0.0
    %2916 = vmatpush1.msra.mxu0 0.0
    %2917 = vmatprep.subr.mxu0 0.0
    %2918 = vmatpush1.msra.mxu0 %v2882
    %2919 = vmatprep.subr.mxu0 0.0
    %2920 = vmatpush2.msra.mxu0 0.0
    %2921 = vmatprep.subr.mxu0 0.0
    %2922 = vmatpush2.msra.mxu0 0.0
    %2923 = vmatprep.subr.mxu0 0.0
    %2924 = vmatpush2.msra.mxu0 0.0
    %2925 = vmatprep.subr.mxu0 0.0
    %2926 = vmatpush2.msra.mxu0 0.0
    %2927 = vmatprep.subr.mxu0 0.0
    %2928 = vmatpush2.msra.mxu0 0.0
    %2929 = vmatprep.subr.mxu0 0.0
    %2930 = vmatpush2.msra.mxu0 0.0
    %2931 = vmatprep.subr.mxu0 0.0
    %2932 = vmatpush2.msra.mxu0 0.0
    %2933 = vmatprep.subr.mxu0 0.0
    %2934 = vmatpush2.msra.mxu0 0.0
    %2935 = vmatprep.subr.mxu0 0.0
    %2936 = vmatpush2.msra.mxu0 0.0
    %2937 = vmatprep.subr.mxu0 0.0
    %2938 = vmatpush2.msra.mxu0 0.0
    %2939 = vmatprep.subr.mxu0 0.0
    %2940 = vmatpush2.msra.mxu0 0.0
    %2941 = vmatprep.subr.mxu0 0.0
    %2942 = vmatpush2.msra.mxu0 0.0
    %2943 = vmatprep.subr.mxu0 0.0
    %2944 = vmatpush2.msra.mxu0 0.0
    %2945 = vmatprep.subr.mxu0 0.0
    %2946 = vmatpush2.msra.mxu0 0.0
    %2947 = vmatprep.subr.mxu0 0.0
    %2948 = vmatpush2.msra.mxu0 0.0
    %2949 = vmatprep.subr.mxu0 0.0
    %2950 = vmatpush2.msra.mxu0 0.0
    %2951 = vmatprep.mubr.f32.mxu0 0.0
    %2952 = vmatmul.mubr.f32.gmra.mxu0 %v2885
    %v2953 = vpop.f32.mrf.mxu0
    %v2954 = vadd.f32 0.0, %v2953
    %v2955 = vpop.f32.mrf.mxu0
    %2956 = vdwg.mxu0
    %2957 = vrot.lane.b32.xlu0 %v2107, 96
    %v2958 = vpop.permute.xlu0 %2957
    %v2961 = vsel %vm366, %v2799, 0
    %2963 = vmatprep.subr.mxu0 0.0
    %2964 = vmatpush1.msra.mxu0 0.0
    %2965 = vmatprep.subr.mxu0 0.0
    %2966 = vmatpush1.msra.mxu0 0.0
    %2967 = vmatprep.subr.mxu0 0.0
    %2968 = vmatpush1.msra.mxu0 0.0
    %2969 = vmatprep.subr.mxu0 0.0
    %2970 = vmatpush1.msra.mxu0 0.0
    %2971 = vmatprep.subr.mxu0 0.0
    %2972 = vmatpush1.msra.mxu0 0.0
    %2973 = vmatprep.subr.mxu0 0.0
    %2974 = vmatpush1.msra.mxu0 0.0
    %2975 = vmatprep.subr.mxu0 0.0
    %2976 = vmatpush1.msra.mxu0 0.0
    %2977 = vmatprep.subr.mxu0 0.0
    %2978 = vmatpush1.msra.mxu0 0.0
    %2979 = vmatprep.subr.mxu0 0.0
    %2980 = vmatpush1.msra.mxu0 0.0
    %2981 = vmatprep.subr.mxu0 0.0
    %2982 = vmatpush1.msra.mxu0 0.0
    %2983 = vmatprep.subr.mxu0 0.0
    %2984 = vmatpush1.msra.mxu0 0.0
    %2985 = vmatprep.subr.mxu0 0.0
    %2986 = vmatpush1.msra.mxu0 0.0
    %2987 = vmatprep.subr.mxu0 0.0
    %2988 = vmatpush1.msra.mxu0 0.0
    %2989 = vmatprep.subr.mxu0 0.0
    %2990 = vmatpush1.msra.mxu0 0.0
    %2991 = vmatprep.subr.mxu0 0.0
    %2992 = vmatpush1.msra.mxu0 0.0
    %2993 = vmatprep.subr.mxu0 0.0
    %2994 = vmatpush1.msra.mxu0 %v2958
    %2995 = vmatprep.subr.mxu0 0.0
    %2996 = vmatpush2.msra.mxu0 0.0
    %2997 = vmatprep.subr.mxu0 0.0
    %2998 = vmatpush2.msra.mxu0 0.0
    %2999 = vmatprep.subr.mxu0 0.0
    %3000 = vmatpush2.msra.mxu0 0.0
    %3001 = vmatprep.subr.mxu0 0.0
    %3002 = vmatpush2.msra.mxu0 0.0
    %3003 = vmatprep.subr.mxu0 0.0
    %3004 = vmatpush2.msra.mxu0 0.0
    %3005 = vmatprep.subr.mxu0 0.0
    %3006 = vmatpush2.msra.mxu0 0.0
    %3007 = vmatprep.subr.mxu0 0.0
    %3008 = vmatpush2.msra.mxu0 0.0
    %3009 = vmatprep.subr.mxu0 0.0
    %3010 = vmatpush2.msra.mxu0 0.0
    %3011 = vmatprep.subr.mxu0 0.0
    %3012 = vmatpush2.msra.mxu0 0.0
    %3013 = vmatprep.subr.mxu0 0.0
    %3014 = vmatpush2.msra.mxu0 0.0
    %3015 = vmatprep.subr.mxu0 0.0
    %3016 = vmatpush2.msra.mxu0 0.0
    %3017 = vmatprep.subr.mxu0 0.0
    %3018 = vmatpush2.msra.mxu0 0.0
    %3019 = vmatprep.subr.mxu0 0.0
    %3020 = vmatpush2.msra.mxu0 0.0
    %3021 = vmatprep.subr.mxu0 0.0
    %3022 = vmatpush2.msra.mxu0 0.0
    %3023 = vmatprep.subr.mxu0 0.0
    %3024 = vmatpush2.msra.mxu0 0.0
    %3025 = vmatprep.subr.mxu0 0.0
    %3026 = vmatpush2.msra.mxu0 0.0
    %3027 = vmatprep.mubr.f32.mxu0 0.0
    %3028 = vmatmul.mubr.f32.gmra.mxu0 %v2961
    %v3029 = vpop.f32.mrf.mxu0
    %v3030 = vadd.f32 0.0, %v3029
    %v3031 = vpop.f32.mrf.mxu0
    %3032 = vdwg.mxu0
    %3033 = vrot.lane.b32.xlu0 %v2109, 96
    %v3034 = vpop.permute.xlu0 %3033
    %v3037 = vsel %vm366, %v2800, 0
    %3039 = vmatprep.subr.mxu0 0.0
    %3040 = vmatpush1.msra.mxu0 0.0
    %3041 = vmatprep.subr.mxu0 0.0
    %3042 = vmatpush1.msra.mxu0 0.0
    %3043 = vmatprep.subr.mxu0 0.0
    %3044 = vmatpush1.msra.mxu0 0.0
    %3045 = vmatprep.subr.mxu0 0.0
    %3046 = vmatpush1.msra.mxu0 0.0
    %3047 = vmatprep.subr.mxu0 0.0
    %3048 = vmatpush1.msra.mxu0 0.0
    %3049 = vmatprep.subr.mxu0 0.0
    %3050 = vmatpush1.msra.mxu0 0.0
    %3051 = vmatprep.subr.mxu0 0.0
    %3052 = vmatpush1.msra.mxu0 0.0
    %3053 = vmatprep.subr.mxu0 0.0
    %3054 = vmatpush1.msra.mxu0 0.0
    %3055 = vmatprep.subr.mxu0 0.0
    %3056 = vmatpush1.msra.mxu0 0.0
    %3057 = vmatprep.subr.mxu0 0.0
    %3058 = vmatpush1.msra.mxu0 0.0
    %3059 = vmatprep.subr.mxu0 0.0
    %3060 = vmatpush1.msra.mxu0 0.0
    %3061 = vmatprep.subr.mxu0 0.0
    %3062 = vmatpush1.msra.mxu0 0.0
    %3063 = vmatprep.subr.mxu0 0.0
    %3064 = vmatpush1.msra.mxu0 0.0
    %3065 = vmatprep.subr.mxu0 0.0
    %3066 = vmatpush1.msra.mxu0 0.0
    %3067 = vmatprep.subr.mxu0 0.0
    %3068 = vmatpush1.msra.mxu0 0.0
    %3069 = vmatprep.subr.mxu0 0.0
    %3070 = vmatpush1.msra.mxu0 %v3034
    %3071 = vmatprep.subr.mxu0 0.0
    %3072 = vmatpush2.msra.mxu0 0.0
    %3073 = vmatprep.subr.mxu0 0.0
    %3074 = vmatpush2.msra.mxu0 0.0
    %3075 = vmatprep.subr.mxu0 0.0
    %3076 = vmatpush2.msra.mxu0 0.0
    %3077 = vmatprep.subr.mxu0 0.0
    %3078 = vmatpush2.msra.mxu0 0.0
    %3079 = vmatprep.subr.mxu0 0.0
    %3080 = vmatpush2.msra.mxu0 0.0
    %3081 = vmatprep.subr.mxu0 0.0
    %3082 = vmatpush2.msra.mxu0 0.0
    %3083 = vmatprep.subr.mxu0 0.0
    %3084 = vmatpush2.msra.mxu0 0.0
    %3085 = vmatprep.subr.mxu0 0.0
    %3086 = vmatpush2.msra.mxu0 0.0
    %3087 = vmatprep.subr.mxu0 0.0
    %3088 = vmatpush2.msra.mxu0 0.0
    %3089 = vmatprep.subr.mxu0 0.0
    %3090 = vmatpush2.msra.mxu0 0.0
    %3091 = vmatprep.subr.mxu0 0.0
    %3092 = vmatpush2.msra.mxu0 0.0
    %3093 = vmatprep.subr.mxu0 0.0
    %3094 = vmatpush2.msra.mxu0 0.0
    %3095 = vmatprep.subr.mxu0 0.0
    %3096 = vmatpush2.msra.mxu0 0.0
    %3097 = vmatprep.subr.mxu0 0.0
    %3098 = vmatpush2.msra.mxu0 0.0
    %3099 = vmatprep.subr.mxu0 0.0
    %3100 = vmatpush2.msra.mxu0 0.0
    %3101 = vmatprep.subr.mxu0 0.0
    %3102 = vmatpush2.msra.mxu0 0.0
    %3103 = vmatprep.mubr.f32.mxu0 0.0
    %3104 = vmatmul.mubr.f32.gmra.mxu0 %v3037
    %v3105 = vpop.f32.mrf.mxu0
    %v3106 = vadd.f32 0.0, %v3105
    %v3107 = vpop.f32.mrf.mxu0
    %3108 = vdwg.mxu0
    %3109 = vrot.lane.b32.xlu0 %v2074, 96
    %v3110 = vpop.permute.xlu0 %3109
    %v3113 = vsel %vm366, %v2801, 0
    %3115 = vmatprep.subr.mxu0 0.0
    %3116 = vmatpush1.msra.mxu0 0.0
    %3117 = vmatprep.subr.mxu0 0.0
    %3118 = vmatpush1.msra.mxu0 0.0
    %3119 = vmatprep.subr.mxu0 0.0
    %3120 = vmatpush1.msra.mxu0 0.0
    %3121 = vmatprep.subr.mxu0 0.0
    %3122 = vmatpush1.msra.mxu0 0.0
    %3123 = vmatprep.subr.mxu0 0.0
    %3124 = vmatpush1.msra.mxu0 0.0
    %3125 = vmatprep.subr.mxu0 0.0
    %3126 = vmatpush1.msra.mxu0 0.0
    %3127 = vmatprep.subr.mxu0 0.0
    %3128 = vmatpush1.msra.mxu0 0.0
    %3129 = vmatprep.subr.mxu0 0.0
    %3130 = vmatpush1.msra.mxu0 0.0
    %3131 = vmatprep.subr.mxu0 0.0
    %3132 = vmatpush1.msra.mxu0 0.0
    %3133 = vmatprep.subr.mxu0 0.0
    %3134 = vmatpush1.msra.mxu0 0.0
    %3135 = vmatprep.subr.mxu0 0.0
    %3136 = vmatpush1.msra.mxu0 0.0
    %3137 = vmatprep.subr.mxu0 0.0
    %3138 = vmatpush1.msra.mxu0 0.0
    %3139 = vmatprep.subr.mxu0 0.0
    %3140 = vmatpush1.msra.mxu0 0.0
    %3141 = vmatprep.subr.mxu0 0.0
    %3142 = vmatpush1.msra.mxu0 0.0
    %3143 = vmatprep.subr.mxu0 0.0
    %3144 = vmatpush1.msra.mxu0 0.0
    %3145 = vmatprep.subr.mxu0 0.0
    %3146 = vmatpush1.msra.mxu0 %v3110
    %3147 = vmatprep.subr.mxu0 0.0
    %3148 = vmatpush2.msra.mxu0 0.0
    %3149 = vmatprep.subr.mxu0 0.0
    %3150 = vmatpush2.msra.mxu0 0.0
    %3151 = vmatprep.subr.mxu0 0.0
    %3152 = vmatpush2.msra.mxu0 0.0
    %3153 = vmatprep.subr.mxu0 0.0
    %3154 = vmatpush2.msra.mxu0 0.0
    %3155 = vmatprep.subr.mxu0 0.0
    %3156 = vmatpush2.msra.mxu0 0.0
    %3157 = vmatprep.subr.mxu0 0.0
    %3158 = vmatpush2.msra.mxu0 0.0
    %3159 = vmatprep.subr.mxu0 0.0
    %3160 = vmatpush2.msra.mxu0 0.0
    %3161 = vmatprep.subr.mxu0 0.0
    %3162 = vmatpush2.msra.mxu0 0.0
    %3163 = vmatprep.subr.mxu0 0.0
    %3164 = vmatpush2.msra.mxu0 0.0
    %3165 = vmatprep.subr.mxu0 0.0
    %3166 = vmatpush2.msra.mxu0 0.0
    %3167 = vmatprep.subr.mxu0 0.0
    %3168 = vmatpush2.msra.mxu0 0.0
    %3169 = vmatprep.subr.mxu0 0.0
    %3170 = vmatpush2.msra.mxu0 0.0
    %3171 = vmatprep.subr.mxu0 0.0
    %3172 = vmatpush2.msra.mxu0 0.0
    %3173 = vmatprep.subr.mxu0 0.0
    %3174 = vmatpush2.msra.mxu0 0.0
    %3175 = vmatprep.subr.mxu0 0.0
    %3176 = vmatpush2.msra.mxu0 0.0
    %3177 = vmatprep.subr.mxu0 0.0
    %3178 = vmatpush2.msra.mxu0 0.0
    %3179 = vmatprep.mubr.f32.mxu0 0.0
    %3180 = vmatmul.mubr.f32.gmra.mxu0 %v3113
    %v3181 = vpop.f32.mrf.mxu0
    %v3182 = vadd.f32 0.0, %v3181
    %v3183 = vpop.f32.mrf.mxu0
    %3184 = vdwg.mxu0
    %3185 = vrot.lane.b32.xlu0 %v2112, 96
    %v3186 = vpop.permute.xlu0 %3185
    %v3189 = vsel %vm366, %v2802, 0
    %3191 = vmatprep.subr.mxu0 0.0
    %3192 = vmatpush1.msra.mxu0 0.0
    %3193 = vmatprep.subr.mxu0 0.0
    %3194 = vmatpush1.msra.mxu0 0.0
    %3195 = vmatprep.subr.mxu0 0.0
    %3196 = vmatpush1.msra.mxu0 0.0
    %3197 = vmatprep.subr.mxu0 0.0
    %3198 = vmatpush1.msra.mxu0 0.0
    %3199 = vmatprep.subr.mxu0 0.0
    %3200 = vmatpush1.msra.mxu0 0.0
    %3201 = vmatprep.subr.mxu0 0.0
    %3202 = vmatpush1.msra.mxu0 0.0
    %3203 = vmatprep.subr.mxu0 0.0
    %3204 = vmatpush1.msra.mxu0 0.0
    %3205 = vmatprep.subr.mxu0 0.0
    %3206 = vmatpush1.msra.mxu0 0.0
    %3207 = vmatprep.subr.mxu0 0.0
    %3208 = vmatpush1.msra.mxu0 0.0
    %3209 = vmatprep.subr.mxu0 0.0
    %3210 = vmatpush1.msra.mxu0 0.0
    %3211 = vmatprep.subr.mxu0 0.0
    %3212 = vmatpush1.msra.mxu0 0.0
    %3213 = vmatprep.subr.mxu0 0.0
    %3214 = vmatpush1.msra.mxu0 0.0
    %3215 = vmatprep.subr.mxu0 0.0
    %3216 = vmatpush1.msra.mxu0 0.0
    %3217 = vmatprep.subr.mxu0 0.0
    %3218 = vmatpush1.msra.mxu0 0.0
    %3219 = vmatprep.subr.mxu0 0.0
    %3220 = vmatpush1.msra.mxu0 0.0
    %3221 = vmatprep.subr.mxu0 0.0
    %3222 = vmatpush1.msra.mxu0 %v3186
    %3223 = vmatprep.subr.mxu0 0.0
    %3224 = vmatpush2.msra.mxu0 0.0
    %3225 = vmatprep.subr.mxu0 0.0
    %3226 = vmatpush2.msra.mxu0 0.0
    %3227 = vmatprep.subr.mxu0 0.0
    %3228 = vmatpush2.msra.mxu0 0.0
    %3229 = vmatprep.subr.mxu0 0.0
    %3230 = vmatpush2.msra.mxu0 0.0
    %3231 = vmatprep.subr.mxu0 0.0
    %3232 = vmatpush2.msra.mxu0 0.0
    %3233 = vmatprep.subr.mxu0 0.0
    %3234 = vmatpush2.msra.mxu0 0.0
    %3235 = vmatprep.subr.mxu0 0.0
    %3236 = vmatpush2.msra.mxu0 0.0
    %3237 = vmatprep.subr.mxu0 0.0
    %3238 = vmatpush2.msra.mxu0 0.0
    %3239 = vmatprep.subr.mxu0 0.0
    %3240 = vmatpush2.msra.mxu0 0.0
    %3241 = vmatprep.subr.mxu0 0.0
    %3242 = vmatpush2.msra.mxu0 0.0
    %3243 = vmatprep.subr.mxu0 0.0
    %3244 = vmatpush2.msra.mxu0 0.0
    %3245 = vmatprep.subr.mxu0 0.0
    %3246 = vmatpush2.msra.mxu0 0.0
    %3247 = vmatprep.subr.mxu0 0.0
    %3248 = vmatpush2.msra.mxu0 0.0
    %3249 = vmatprep.subr.mxu0 0.0
    %3250 = vmatpush2.msra.mxu0 0.0
    %3251 = vmatprep.subr.mxu0 0.0
    %3252 = vmatpush2.msra.mxu0 0.0
    %3253 = vmatprep.subr.mxu0 0.0
    %3254 = vmatpush2.msra.mxu0 0.0
    %3255 = vmatprep.mubr.f32.mxu0 0.0
    %3256 = vmatmul.mubr.f32.gmra.mxu0 %v3189
    %v3257 = vpop.f32.mrf.mxu0
    %v3258 = vadd.f32 0.0, %v3257
    %v3259 = vpop.f32.mrf.mxu0
    %3260 = vdwg.mxu0
    %3261 = vrot.lane.b32.xlu0 %v2114, 96
    %v3262 = vpop.permute.xlu0 %3261
    %v3265 = vsel %vm366, %v2803, 0
    %3267 = vmatprep.subr.mxu0 0.0
    %3268 = vmatpush1.msra.mxu0 0.0
    %3269 = vmatprep.subr.mxu0 0.0
    %3270 = vmatpush1.msra.mxu0 0.0
    %3271 = vmatprep.subr.mxu0 0.0
    %3272 = vmatpush1.msra.mxu0 0.0
    %3273 = vmatprep.subr.mxu0 0.0
    %3274 = vmatpush1.msra.mxu0 0.0
    %3275 = vmatprep.subr.mxu0 0.0
    %3276 = vmatpush1.msra.mxu0 0.0
    %3277 = vmatprep.subr.mxu0 0.0
    %3278 = vmatpush1.msra.mxu0 0.0
    %3279 = vmatprep.subr.mxu0 0.0
    %3280 = vmatpush1.msra.mxu0 0.0
    %3281 = vmatprep.subr.mxu0 0.0
    %3282 = vmatpush1.msra.mxu0 0.0
    %3283 = vmatprep.subr.mxu0 0.0
    %3284 = vmatpush1.msra.mxu0 0.0
    %3285 = vmatprep.subr.mxu0 0.0
    %3286 = vmatpush1.msra.mxu0 0.0
    %3287 = vmatprep.subr.mxu0 0.0
    %3288 = vmatpush1.msra.mxu0 0.0
    %3289 = vmatprep.subr.mxu0 0.0
    %3290 = vmatpush1.msra.mxu0 0.0
    %3291 = vmatprep.subr.mxu0 0.0
    %3292 = vmatpush1.msra.mxu0 0.0
    %3293 = vmatprep.subr.mxu0 0.0
    %3294 = vmatpush1.msra.mxu0 0.0
    %3295 = vmatprep.subr.mxu0 0.0
    %3296 = vmatpush1.msra.mxu0 0.0
    %3297 = vmatprep.subr.mxu0 0.0
    %3298 = vmatpush1.msra.mxu0 %v3262
    %3299 = vmatprep.subr.mxu0 0.0
    %3300 = vmatpush2.msra.mxu0 0.0
    %3301 = vmatprep.subr.mxu0 0.0
    %3302 = vmatpush2.msra.mxu0 0.0
    %3303 = vmatprep.subr.mxu0 0.0
    %3304 = vmatpush2.msra.mxu0 0.0
    %3305 = vmatprep.subr.mxu0 0.0
    %3306 = vmatpush2.msra.mxu0 0.0
    %3307 = vmatprep.subr.mxu0 0.0
    %3308 = vmatpush2.msra.mxu0 0.0
    %3309 = vmatprep.subr.mxu0 0.0
    %3310 = vmatpush2.msra.mxu0 0.0
    %3311 = vmatprep.subr.mxu0 0.0
    %3312 = vmatpush2.msra.mxu0 0.0
    %3313 = vmatprep.subr.mxu0 0.0
    %3314 = vmatpush2.msra.mxu0 0.0
    %3315 = vmatprep.subr.mxu0 0.0
    %3316 = vmatpush2.msra.mxu0 0.0
    %3317 = vmatprep.subr.mxu0 0.0
    %3318 = vmatpush2.msra.mxu0 0.0
    %3319 = vmatprep.subr.mxu0 0.0
    %3320 = vmatpush2.msra.mxu0 0.0
    %3321 = vmatprep.subr.mxu0 0.0
    %3322 = vmatpush2.msra.mxu0 0.0
    %3323 = vmatprep.subr.mxu0 0.0
    %3324 = vmatpush2.msra.mxu0 0.0
    %3325 = vmatprep.subr.mxu0 0.0
    %3326 = vmatpush2.msra.mxu0 0.0
    %3327 = vmatprep.subr.mxu0 0.0
    %3328 = vmatpush2.msra.mxu0 0.0
    %3329 = vmatprep.subr.mxu0 0.0
    %3330 = vmatpush2.msra.mxu0 0.0
    %3331 = vmatprep.mubr.f32.mxu0 0.0
    %3332 = vmatmul.mubr.f32.gmra.mxu0 %v3265
    %v3333 = vpop.f32.mrf.mxu0
    %v3334 = vadd.f32 0.0, %v3333
    %v3335 = vpop.f32.mrf.mxu0
    %3336 = vdwg.mxu0
    %3337 = vrot.lane.b32.xlu0 %v2116, 96
    %v3338 = vpop.permute.xlu0 %3337
    %v3341 = vsel %vm366, %v2804, 0
    %3343 = vmatprep.subr.mxu0 0.0
    %3344 = vmatpush1.msra.mxu0 0.0
    %3345 = vmatprep.subr.mxu0 0.0
    %3346 = vmatpush1.msra.mxu0 0.0
    %3347 = vmatprep.subr.mxu0 0.0
    %3348 = vmatpush1.msra.mxu0 0.0
    %3349 = vmatprep.subr.mxu0 0.0
    %3350 = vmatpush1.msra.mxu0 0.0
    %3351 = vmatprep.subr.mxu0 0.0
    %3352 = vmatpush1.msra.mxu0 0.0
    %3353 = vmatprep.subr.mxu0 0.0
    %3354 = vmatpush1.msra.mxu0 0.0
    %3355 = vmatprep.subr.mxu0 0.0
    %3356 = vmatpush1.msra.mxu0 0.0
    %3357 = vmatprep.subr.mxu0 0.0
    %3358 = vmatpush1.msra.mxu0 0.0
    %3359 = vmatprep.subr.mxu0 0.0
    %3360 = vmatpush1.msra.mxu0 0.0
    %3361 = vmatprep.subr.mxu0 0.0
    %3362 = vmatpush1.msra.mxu0 0.0
    %3363 = vmatprep.subr.mxu0 0.0
    %3364 = vmatpush1.msra.mxu0 0.0
    %3365 = vmatprep.subr.mxu0 0.0
    %3366 = vmatpush1.msra.mxu0 0.0
    %3367 = vmatprep.subr.mxu0 0.0
    %3368 = vmatpush1.msra.mxu0 0.0
    %3369 = vmatprep.subr.mxu0 0.0
    %3370 = vmatpush1.msra.mxu0 0.0
    %3371 = vmatprep.subr.mxu0 0.0
    %3372 = vmatpush1.msra.mxu0 0.0
    %3373 = vmatprep.subr.mxu0 0.0
    %3374 = vmatpush1.msra.mxu0 %v3338
    %3375 = vmatprep.subr.mxu0 0.0
    %3376 = vmatpush2.msra.mxu0 0.0
    %3377 = vmatprep.subr.mxu0 0.0
    %3378 = vmatpush2.msra.mxu0 0.0
    %3379 = vmatprep.subr.mxu0 0.0
    %3380 = vmatpush2.msra.mxu0 0.0
    %3381 = vmatprep.subr.mxu0 0.0
    %3382 = vmatpush2.msra.mxu0 0.0
    %3383 = vmatprep.subr.mxu0 0.0
    %3384 = vmatpush2.msra.mxu0 0.0
    %3385 = vmatprep.subr.mxu0 0.0
    %3386 = vmatpush2.msra.mxu0 0.0
    %3387 = vmatprep.subr.mxu0 0.0
    %3388 = vmatpush2.msra.mxu0 0.0
    %3389 = vmatprep.subr.mxu0 0.0
    %3390 = vmatpush2.msra.mxu0 0.0
    %3391 = vmatprep.subr.mxu0 0.0
    %3392 = vmatpush2.msra.mxu0 0.0
    %3393 = vmatprep.subr.mxu0 0.0
    %3394 = vmatpush2.msra.mxu0 0.0
    %3395 = vmatprep.subr.mxu0 0.0
    %3396 = vmatpush2.msra.mxu0 0.0
    %3397 = vmatprep.subr.mxu0 0.0
    %3398 = vmatpush2.msra.mxu0 0.0
    %3399 = vmatprep.subr.mxu0 0.0
    %3400 = vmatpush2.msra.mxu0 0.0
    %3401 = vmatprep.subr.mxu0 0.0
    %3402 = vmatpush2.msra.mxu0 0.0
    %3403 = vmatprep.subr.mxu0 0.0
    %3404 = vmatpush2.msra.mxu0 0.0
    %3405 = vmatprep.subr.mxu0 0.0
    %3406 = vmatpush2.msra.mxu0 0.0
    %3407 = vmatprep.mubr.f32.mxu0 0.0
    %3408 = vmatmul.mubr.f32.gmra.mxu0 %v3341
    %v3409 = vpop.f32.mrf.mxu0
    %v3410 = vadd.f32 0.0, %v3409
    %v3411 = vpop.f32.mrf.mxu0
    %3412 = vdwg.mxu0
    %3414 = vrot.lane.b32.xlu0 %v2954, 8
    %v3415 = vpop.permute.xlu0 %3414
    %3418 = vrot.lane.b32.xlu0 %v3030, 16
    %v3419 = vpop.permute.xlu0 %3418
    %3422 = vrot.lane.b32.xlu0 %v3106, 24
    %v3423 = vpop.permute.xlu0 %3422
    %v3425 = vsel %vm366, %v2878, %v3415
    %v3426 = vsel %vm1698, %v3425, %v3419
    %v3427 = vsel %vm1700, %v3426, %v3423
    %3429 = vrot.lane.b32.xlu0 %v3258, 8
    %v3430 = vpop.permute.xlu0 %3429
    %3433 = vrot.lane.b32.xlu0 %v3334, 16
    %v3434 = vpop.permute.xlu0 %3433
    %3437 = vrot.lane.b32.xlu0 %v3410, 24
    %v3438 = vpop.permute.xlu0 %3437
    %v3440 = vsel %vm366, %v3182, %v3430
    %v3441 = vsel %vm1698, %v3440, %v3434
    %v3442 = vsel %vm1700, %v3441, %v3438
    %v3443 = vlaneseq
    %v3444 = vshrl.u32 %v3443, 7
    %v3445 = vsub.s32 7, %v3444
    %v3446 = vrot.slane %v141, %v3445
    %3447 = vrot.lane.b32.xlu0 %v1873, 32
    %v3448 = vpop.permute.xlu0 %3447
    %3449 = vrot.lane.b32.xlu0 %v1874, 32
    %v3450 = vpop.permute.xlu0 %3449
    %3451 = vrot.lane.b32.xlu0 %v1875, 32
    %v3452 = vpop.permute.xlu0 %3451
    %3453 = vrot.lane.b32.xlu0 %v1876, 32
    %v3454 = vpop.permute.xlu0 %3453
    %v3460 = vsel %vm157, %v3427, 0
    %v3463 = vsel %vm157, %v3442, 0
    %3465 = vmatprep.subr.mxu0 0.0
    %3466 = vmatpush1.msra.mxu0 0.0
    %3467 = vmatprep.subr.mxu0 0.0
    %3468 = vmatpush1.msra.mxu0 0.0
    %3469 = vmatprep.subr.mxu0 0.0
    %3470 = vmatpush1.msra.mxu0 0.0
    %3471 = vmatprep.subr.mxu0 0.0
    %3472 = vmatpush1.msra.mxu0 0.0
    %3473 = vmatprep.subr.mxu0 0.0
    %3474 = vmatpush1.msra.mxu0 0.0
    %3475 = vmatprep.subr.mxu0 0.0
    %3476 = vmatpush1.msra.mxu0 0.0
    %3477 = vmatprep.subr.mxu0 0.0
    %3478 = vmatpush1.msra.mxu0 0.0
    %3479 = vmatprep.subr.mxu0 0.0
    %3480 = vmatpush1.msra.mxu0 0.0
    %3481 = vmatprep.subr.mxu0 0.0
    %3482 = vmatpush1.msra.mxu0 0.0
    %3483 = vmatprep.subr.mxu0 0.0
    %3484 = vmatpush1.msra.mxu0 0.0
    %3485 = vmatprep.subr.mxu0 0.0
    %3486 = vmatpush1.msra.mxu0 0.0
    %3487 = vmatprep.subr.mxu0 0.0
    %3488 = vmatpush1.msra.mxu0 0.0
    %3489 = vmatprep.subr.mxu0 0.0
    %3490 = vmatpush1.msra.mxu0 %v3454
    %3491 = vmatprep.subr.mxu0 0.0
    %3492 = vmatpush1.msra.mxu0 %v3452
    %3493 = vmatprep.subr.mxu0 0.0
    %3494 = vmatpush1.msra.mxu0 %v3450
    %3495 = vmatprep.subr.mxu0 0.0
    %3496 = vmatpush1.msra.mxu0 %v3448
    %3497 = vmatprep.subr.mxu0 0.0
    %3498 = vmatpush2.msra.mxu0 0.0
    %3499 = vmatprep.subr.mxu0 0.0
    %3500 = vmatpush2.msra.mxu0 0.0
    %3501 = vmatprep.subr.mxu0 0.0
    %3502 = vmatpush2.msra.mxu0 0.0
    %3503 = vmatprep.subr.mxu0 0.0
    %3504 = vmatpush2.msra.mxu0 0.0
    %3505 = vmatprep.subr.mxu0 0.0
    %3506 = vmatpush2.msra.mxu0 0.0
    %3507 = vmatprep.subr.mxu0 0.0
    %3508 = vmatpush2.msra.mxu0 0.0
    %3509 = vmatprep.subr.mxu0 0.0
    %3510 = vmatpush2.msra.mxu0 0.0
    %3511 = vmatprep.subr.mxu0 0.0
    %3512 = vmatpush2.msra.mxu0 0.0
    %3513 = vmatprep.subr.mxu0 0.0
    %3514 = vmatpush2.msra.mxu0 0.0
    %3515 = vmatprep.subr.mxu0 0.0
    %3516 = vmatpush2.msra.mxu0 0.0
    %3517 = vmatprep.subr.mxu0 0.0
    %3518 = vmatpush2.msra.mxu0 0.0
    %3519 = vmatprep.subr.mxu0 0.0
    %3520 = vmatpush2.msra.mxu0 0.0
    %3521 = vmatprep.subr.mxu0 0.0
    %3522 = vmatpush2.msra.mxu0 0.0
    %3523 = vmatprep.subr.mxu0 0.0
    %3524 = vmatpush2.msra.mxu0 0.0
    %3525 = vmatprep.subr.mxu0 0.0
    %3526 = vmatpush2.msra.mxu0 0.0
    %3527 = vmatprep.subr.mxu0 0.0
    %3528 = vmatpush2.msra.mxu0 0.0
    %3529 = vmatprep.mubr.f32.mxu0 0.0
    %3530 = vmatmul.mubr.f32.gmra.mxu0 %v3460
    %v3531 = vpop.f32.mrf.mxu0
    %v3532 = vadd.f32 %v3446, %v3531
    %v3533 = vpop.f32.mrf.mxu0
    %3534 = vmatprep.mubr.f32.mxu0 0.0
    %3535 = vmatmul.mubr.f32.gmra.mxu0 %v3463
    %v3536 = vpop.f32.mrf.mxu0
    %v3537 = vadd.f32 %v3446, %v3536
    %v3538 = vpop.f32.mrf.mxu0
    %3539 = vdwg.mxu0
    %v3540 = vadd.f32 %v1818, %v3532
    %v3541 = vadd.f32 %v1819, %v3537
    %v3542 = vsel %vm157, %v3540, 0.0
    %3543 = vadd.xlane.f32.xlu0 %v3542
    %v3544 = vpop.xlane.xlu0 %3543
    %v3545 = vsel %vm157, %v3541, 0.0
    %3546 = vadd.xlane.f32.xlu0 %v3545
    %v3547 = vpop.xlane.xlu0 %3546
    %v3548 = vmul.f32 %v3544, %v164
    %v3549 = vmul.f32 %v3547, %v164
    %v3550 = vsub.f32 %v3540, %v3548
    %v3551 = vsub.f32 %v3541, %v3549
    %v3552 = vmul.f32 %v3550, %v3550
    %v3553 = vmul.f32 %v3551, %v3551
    %v3554 = vsel %vm157, %v3552, 0.0
    %3555 = vadd.xlane.f32.xlu0 %v3554
    %v3556 = vpop.xlane.xlu0 %3555
    %v3557 = vsel %vm157, %v3553, 0.0
    %3558 = vadd.xlane.f32.xlu0 %v3557
    %v3559 = vpop.xlane.xlu0 %3558
    %v3560 = vmul.f32 %v3556, 0.032258064
    %v3561 = vmul.f32 %v3559, 0.032258064
    %v3562 = vrsqrt.pop %v3560
    %v3563 = vmul.f32 %v3560, %v3562
    %vm3564 = vcmp.eq.f32.partialorder %v3560, inf
    %v3565 = vsel %vm3564, %v3560, %v3563
    %vm3566 = vcmp.eq.f32.partialorder %v3560, 0.0
    %v3567 = vand.u32 %v3560, 2147483648
    %v3568 = vsel %vm3566, %v3567, %v3565
    %v3569 = vrsqrt.pop %v3561
    %v3570 = vmul.f32 %v3561, %v3569
    %vm3571 = vcmp.eq.f32.partialorder %v3561, inf
    %v3572 = vsel %vm3571, %v3561, %v3570
    %vm3573 = vcmp.eq.f32.partialorder %v3561, 0.0
    %v3574 = vand.u32 %v3561, 2147483648
    %v3575 = vsel %vm3573, %v3574, %v3572
    %v3576 = vadd.f32 %v3568, 1e-06
    %v3577 = vadd.f32 %v3575, 1e-06
    %v3578 = vrcp.pop %v3576
    %v3579 = vmul.f32 %v3550, %v3578
    %v3580 = vrcp.pop %v3577
    %v3581 = vmul.f32 %v3551, %v3580
    %v3582 = vlaneseq
    %v3583 = vshrl.u32 %v3582, 7
    %v3584 = vsub.s32 4, %v3583
    %v3585 = vrot.slane %v140, %v3584
    %v3586 = vmul.f32 %v3585, %v3579
    %v3587 = vmul.f32 %v3585, %v3581
    %v3588 = vlaneseq
    %v3589 = vshrl.u32 %v3588, 7
    %v3590 = vsub.s32 5, %v3589
    %v3591 = vrot.slane %v140, %v3590
    %v3592 = vadd.f32 %v3586, %v3591
    %v3593 = vadd.f32 %v3587, %v3591
    %s3594 = scalar_lea.vmem [#allocation11], 64
    %v3595 = vld [vmem:[%s3594] sm:$0xff]
    %v3596 = vld [vmem:[%s3594 + $0x8] sm:$0xff]
    %v3597 = vld [vmem:[%s3594 + $0x10] sm:$0xff]
    %v3598 = vld [vmem:[%s3594 + $0x18] sm:$0xff]
    %v3599 = vlaneseq
    %v3600 = vshrl.u32 %v3599, 7
    %v3601 = vsub.s32 0, %v3600
    %v3602 = vrot.slane %v142, %v3601
    %v3604 = vsel %vm157, %v3592, 0
    %v3607 = vsel %vm157, %v3593, 0
    %3609 = vmatprep.subr.mxu0 0.0
    %3610 = vmatpush1.msra.mxu0 0.0
    %3611 = vmatprep.subr.mxu0 0.0
    %3612 = vmatpush1.msra.mxu0 0.0
    %3613 = vmatprep.subr.mxu0 0.0
    %3614 = vmatpush1.msra.mxu0 0.0
    %3615 = vmatprep.subr.mxu0 0.0
    %3616 = vmatpush1.msra.mxu0 0.0
    %3617 = vmatprep.subr.mxu0 0.0
    %3618 = vmatpush1.msra.mxu0 0.0
    %3619 = vmatprep.subr.mxu0 0.0
    %3620 = vmatpush1.msra.mxu0 0.0
    %3621 = vmatprep.subr.mxu0 0.0
    %3622 = vmatpush1.msra.mxu0 0.0
    %3623 = vmatprep.subr.mxu0 0.0
    %3624 = vmatpush1.msra.mxu0 0.0
    %3625 = vmatprep.subr.mxu0 0.0
    %3626 = vmatpush1.msra.mxu0 0.0
    %3627 = vmatprep.subr.mxu0 0.0
    %3628 = vmatpush1.msra.mxu0 0.0
    %3629 = vmatprep.subr.mxu0 0.0
    %3630 = vmatpush1.msra.mxu0 0.0
    %3631 = vmatprep.subr.mxu0 0.0
    %3632 = vmatpush1.msra.mxu0 0.0
    %3633 = vmatprep.subr.mxu0 0.0
    %3634 = vmatpush1.msra.mxu0 %v3598
    %3635 = vmatprep.subr.mxu0 0.0
    %3636 = vmatpush1.msra.mxu0 %v3597
    %3637 = vmatprep.subr.mxu0 0.0
    %3638 = vmatpush1.msra.mxu0 %v3596
    %3639 = vmatprep.subr.mxu0 0.0
    %3640 = vmatpush1.msra.mxu0 %v3595
    %3641 = vmatprep.subr.mxu0 0.0
    %3642 = vmatpush2.msra.mxu0 0.0
    %3643 = vmatprep.subr.mxu0 0.0
    %3644 = vmatpush2.msra.mxu0 0.0
    %3645 = vmatprep.subr.mxu0 0.0
    %3646 = vmatpush2.msra.mxu0 0.0
    %3647 = vmatprep.subr.mxu0 0.0
    %3648 = vmatpush2.msra.mxu0 0.0
    %3649 = vmatprep.subr.mxu0 0.0
    %3650 = vmatpush2.msra.mxu0 0.0
    %3651 = vmatprep.subr.mxu0 0.0
    %3652 = vmatpush2.msra.mxu0 0.0
    %3653 = vmatprep.subr.mxu0 0.0
    %3654 = vmatpush2.msra.mxu0 0.0
    %3655 = vmatprep.subr.mxu0 0.0
    %3656 = vmatpush2.msra.mxu0 0.0
    %3657 = vmatprep.subr.mxu0 0.0
    %3658 = vmatpush2.msra.mxu0 0.0
    %3659 = vmatprep.subr.mxu0 0.0
    %3660 = vmatpush2.msra.mxu0 0.0
    %3661 = vmatprep.subr.mxu0 0.0
    %3662 = vmatpush2.msra.mxu0 0.0
    %3663 = vmatprep.subr.mxu0 0.0
    %3664 = vmatpush2.msra.mxu0 0.0
    %3665 = vmatprep.subr.mxu0 0.0
    %3666 = vmatpush2.msra.mxu0 0.0
    %3667 = vmatprep.subr.mxu0 0.0
    %3668 = vmatpush2.msra.mxu0 0.0
    %3669 = vmatprep.subr.mxu0 0.0
    %3670 = vmatpush2.msra.mxu0 0.0
    %3671 = vmatprep.subr.mxu0 0.0
    %3672 = vmatpush2.msra.mxu0 0.0
    %3673 = vmatprep.mubr.f32.mxu0 0.0
    %3674 = vmatmul.mubr.f32.gmra.mxu0 %v3604
    %v3675 = vpop.f32.mrf.mxu0
    %v3676 = vadd.f32 %v3602, %v3675
    %v3677 = vpop.f32.mrf.mxu0
    %3678 = vmatprep.mubr.f32.mxu0 0.0
    %3679 = vmatmul.mubr.f32.gmra.mxu0 %v3607
    %v3680 = vpop.f32.mrf.mxu0
    %v3681 = vadd.f32 %v3602, %v3680
    %v3682 = vpop.f32.mrf.mxu0
    %3683 = vdwg.mxu0
    %3688 = vrot.lane.b32.xlu0 %v3595, 96
    %v3689 = vpop.permute.xlu0 %3688
    %3690 = vrot.lane.b32.xlu0 %v3596, 96
    %v3691 = vpop.permute.xlu0 %3690
    %3692 = vrot.lane.b32.xlu0 %v3597, 96
    %v3693 = vpop.permute.xlu0 %3692
    %3694 = vrot.lane.b32.xlu0 %v3598, 96
    %v3695 = vpop.permute.xlu0 %3694
    %v3701 = vsel %vm157, %v147, 0
    %v3704 = vsel %vm157, %v148, 0
    %3706 = vmatprep.subr.mxu0 0.0
    %3707 = vmatpush1.msra.mxu0 0.0
    %3708 = vmatprep.subr.mxu0 0.0
    %3709 = vmatpush1.msra.mxu0 0.0
    %3710 = vmatprep.subr.mxu0 0.0
    %3711 = vmatpush1.msra.mxu0 0.0
    %3712 = vmatprep.subr.mxu0 0.0
    %3713 = vmatpush1.msra.mxu0 0.0
    %3714 = vmatprep.subr.mxu0 0.0
    %3715 = vmatpush1.msra.mxu0 0.0
    %3716 = vmatprep.subr.mxu0 0.0
    %3717 = vmatpush1.msra.mxu0 0.0
    %3718 = vmatprep.subr.mxu0 0.0
    %3719 = vmatpush1.msra.mxu0 0.0
    %3720 = vmatprep.subr.mxu0 0.0
    %3721 = vmatpush1.msra.mxu0 0.0
    %3722 = vmatprep.subr.mxu0 0.0
    %3723 = vmatpush1.msra.mxu0 0.0
    %3724 = vmatprep.subr.mxu0 0.0
    %3725 = vmatpush1.msra.mxu0 0.0
    %3726 = vmatprep.subr.mxu0 0.0
    %3727 = vmatpush1.msra.mxu0 0.0
    %3728 = vmatprep.subr.mxu0 0.0
    %3729 = vmatpush1.msra.mxu0 0.0
    %3730 = vmatprep.subr.mxu0 0.0
    %3731 = vmatpush1.msra.mxu0 %v3695
    %3732 = vmatprep.subr.mxu0 0.0
    %3733 = vmatpush1.msra.mxu0 %v3693
    %3734 = vmatprep.subr.mxu0 0.0
    %3735 = vmatpush1.msra.mxu0 %v3691
    %3736 = vmatprep.subr.mxu0 0.0
    %3737 = vmatpush1.msra.mxu0 %v3689
    %3738 = vmatprep.subr.mxu0 0.0
    %3739 = vmatpush2.msra.mxu0 0.0
    %3740 = vmatprep.subr.mxu0 0.0
    %3741 = vmatpush2.msra.mxu0 0.0
    %3742 = vmatprep.subr.mxu0 0.0
    %3743 = vmatpush2.msra.mxu0 0.0
    %3744 = vmatprep.subr.mxu0 0.0
    %3745 = vmatpush2.msra.mxu0 0.0
    %3746 = vmatprep.subr.mxu0 0.0
    %3747 = vmatpush2.msra.mxu0 0.0
    %3748 = vmatprep.subr.mxu0 0.0
    %3749 = vmatpush2.msra.mxu0 0.0
    %3750 = vmatprep.subr.mxu0 0.0
    %3751 = vmatpush2.msra.mxu0 0.0
    %3752 = vmatprep.subr.mxu0 0.0
    %3753 = vmatpush2.msra.mxu0 0.0
    %3754 = vmatprep.subr.mxu0 0.0
    %3755 = vmatpush2.msra.mxu0 0.0
    %3756 = vmatprep.subr.mxu0 0.0
    %3757 = vmatpush2.msra.mxu0 0.0
    %3758 = vmatprep.subr.mxu0 0.0
    %3759 = vmatpush2.msra.mxu0 0.0
    %3760 = vmatprep.subr.mxu0 0.0
    %3761 = vmatpush2.msra.mxu0 0.0
    %3762 = vmatprep.subr.mxu0 0.0
    %3763 = vmatpush2.msra.mxu0 0.0
    %3764 = vmatprep.subr.mxu0 0.0
    %3765 = vmatpush2.msra.mxu0 0.0
    %3766 = vmatprep.subr.mxu0 0.0
    %3767 = vmatpush2.msra.mxu0 0.0
    %3768 = vmatprep.subr.mxu0 0.0
    %3769 = vmatpush2.msra.mxu0 0.0
    %3770 = vmatprep.mubr.f32.mxu0 0.0
    %3771 = vmatmul.mubr.f32.gmra.mxu0 %v3701
    %v3772 = vpop.f32.mrf.mxu0
    %v3773 = vadd.f32 0.0, %v3772
    %v3774 = vpop.f32.mrf.mxu0
    %3775 = vmatprep.mubr.f32.mxu0 0.0
    %3776 = vmatmul.mubr.f32.gmra.mxu0 %v3704
    %v3777 = vpop.f32.mrf.mxu0
    %v3778 = vadd.f32 0.0, %v3777
    %v3779 = vpop.f32.mrf.mxu0
    %3780 = vdwg.mxu0
    %v3781 = vlaneseq
    %v3782 = vshrl.u32 %v3781, 7
    %v3783 = vsub.s32 1, %v3782
    %v3784 = vrot.slane %v142, %v3783
    %v3785 = vadd.f32 %v3773, %v3784
    %v3786 = vadd.f32 %v3778, %v3784
    %v3787 = vlaneseq
    %v3788 = vshrl.u32 %v3787, 7
    %v3789 = vsub.s32 2, %v3788
    %v3790 = vrot.slane %v142, %v3789
    %3792 = vrot.lane.b32.xlu0 %v3790, 32
    %v3793 = vpop.permute.xlu0 %3792
    %v3795 = vadd.f32 %v3773, %v3793
    %v3796 = vadd.f32 %v3778, %v3793
    %3798 = vrot.lane.b32.xlu0 %v3676, 120
    %v3799 = vpop.permute.xlu0 %3798
    %3800 = vrot.lane.b32.xlu0 %v3676, 112
    %v3801 = vpop.permute.xlu0 %3800
    %3802 = vrot.lane.b32.xlu0 %v3676, 104
    %v3803 = vpop.permute.xlu0 %3802
    %3805 = vrot.lane.b32.xlu0 %v3681, 120
    %v3806 = vpop.permute.xlu0 %3805
    %3807 = vrot.lane.b32.xlu0 %v3681, 112
    %v3808 = vpop.permute.xlu0 %3807
    %3809 = vrot.lane.b32.xlu0 %v3681, 104
    %v3810 = vpop.permute.xlu0 %3809
    %3812 = vrot.lane.b32.xlu0 %v3785, 120
    %v3813 = vpop.permute.xlu0 %3812
    %3814 = vrot.lane.b32.xlu0 %v3785, 112
    %v3815 = vpop.permute.xlu0 %3814
    %3816 = vrot.lane.b32.xlu0 %v3785, 104
    %v3817 = vpop.permute.xlu0 %3816
    %3819 = vrot.lane.b32.xlu0 %v3786, 120
    %v3820 = vpop.permute.xlu0 %3819
    %3821 = vrot.lane.b32.xlu0 %v3786, 112
    %v3822 = vpop.permute.xlu0 %3821
    %3823 = vrot.lane.b32.xlu0 %v3786, 104
    %v3824 = vpop.permute.xlu0 %3823
    %3826 = vrot.lane.b32.xlu0 %v3795, 120
    %v3827 = vpop.permute.xlu0 %3826
    %3828 = vrot.lane.b32.xlu0 %v3795, 112
    %v3829 = vpop.permute.xlu0 %3828
    %3830 = vrot.lane.b32.xlu0 %v3795, 104
    %v3831 = vpop.permute.xlu0 %3830
    %3833 = vrot.lane.b32.xlu0 %v3796, 120
    %v3834 = vpop.permute.xlu0 %3833
    %3835 = vrot.lane.b32.xlu0 %v3796, 112
    %v3836 = vpop.permute.xlu0 %3835
    %3837 = vrot.lane.b32.xlu0 %v3796, 104
    %v3838 = vpop.permute.xlu0 %3837
    %v3839 = vsel %vm366, %v3676, 0
    %v3841 = vsel %vm366, %v3785, 0
    %3843 = vmatprep.subr.mxu0 0.0
    %3844 = vmatpush1.xpose.msra.mxu0 0.0
    %3845 = vmatprep.subr.mxu0 0.0
    %3846 = vmatpush1.xpose.msra.mxu0 0.0
    %3847 = vmatprep.subr.mxu0 0.0
    %3848 = vmatpush1.xpose.msra.mxu0 0.0
    %3849 = vmatprep.subr.mxu0 0.0
    %3850 = vmatpush1.xpose.msra.mxu0 0.0
    %3851 = vmatprep.subr.mxu0 0.0
    %3852 = vmatpush1.xpose.msra.mxu0 0.0
    %3853 = vmatprep.subr.mxu0 0.0
    %3854 = vmatpush1.xpose.msra.mxu0 0.0
    %3855 = vmatprep.subr.mxu0 0.0
    %3856 = vmatpush1.xpose.msra.mxu0 0.0
    %3857 = vmatprep.subr.mxu0 0.0
    %3858 = vmatpush1.xpose.msra.mxu0 0.0
    %3859 = vmatprep.subr.mxu0 0.0
    %3860 = vmatpush1.xpose.msra.mxu0 0.0
    %3861 = vmatprep.subr.mxu0 0.0
    %3862 = vmatpush1.xpose.msra.mxu0 0.0
    %3863 = vmatprep.subr.mxu0 0.0
    %3864 = vmatpush1.xpose.msra.mxu0 0.0
    %3865 = vmatprep.subr.mxu0 0.0
    %3866 = vmatpush1.xpose.msra.mxu0 0.0
    %3867 = vmatprep.subr.mxu0 0.0
    %3868 = vmatpush1.xpose.msra.mxu0 0.0
    %3869 = vmatprep.subr.mxu0 0.0
    %3870 = vmatpush1.xpose.msra.mxu0 0.0
    %3871 = vmatprep.subr.mxu0 0.0
    %3872 = vmatpush1.xpose.msra.mxu0 0.0
    %3873 = vmatprep.subr.mxu0 0.0
    %3874 = vmatpush1.xpose.msra.mxu0 %v3841
    %3875 = vmatprep.subr.mxu0 0.0
    %3876 = vmatpush2.xpose.msra.mxu0 0.0
    %3877 = vmatprep.subr.mxu0 0.0
    %3878 = vmatpush2.xpose.msra.mxu0 0.0
    %3879 = vmatprep.subr.mxu0 0.0
    %3880 = vmatpush2.xpose.msra.mxu0 0.0
    %3881 = vmatprep.subr.mxu0 0.0
    %3882 = vmatpush2.xpose.msra.mxu0 0.0
    %3883 = vmatprep.subr.mxu0 0.0
    %3884 = vmatpush2.xpose.msra.mxu0 0.0
    %3885 = vmatprep.subr.mxu0 0.0
    %3886 = vmatpush2.xpose.msra.mxu0 0.0
    %3887 = vmatprep.subr.mxu0 0.0
    %3888 = vmatpush2.xpose.msra.mxu0 0.0
    %3889 = vmatprep.subr.mxu0 0.0
    %3890 = vmatpush2.xpose.msra.mxu0 0.0
    %3891 = vmatprep.subr.mxu0 0.0
    %3892 = vmatpush2.xpose.msra.mxu0 0.0
    %3893 = vmatprep.subr.mxu0 0.0
    %3894 = vmatpush2.xpose.msra.mxu0 0.0
    %3895 = vmatprep.subr.mxu0 0.0
    %3896 = vmatpush2.xpose.msra.mxu0 0.0
    %3897 = vmatprep.subr.mxu0 0.0
    %3898 = vmatpush2.xpose.msra.mxu0 0.0
    %3899 = vmatprep.subr.mxu0 0.0
    %3900 = vmatpush2.xpose.msra.mxu0 0.0
    %3901 = vmatprep.subr.mxu0 0.0
    %3902 = vmatpush2.xpose.msra.mxu0 0.0
    %3903 = vmatprep.subr.mxu0 0.0
    %3904 = vmatpush2.xpose.msra.mxu0 0.0
    %3905 = vmatprep.subr.mxu0 0.0
    %3906 = vmatpush2.xpose.msra.mxu0 0.0
    %3907 = vmatprep.mubr.f32.mxu0 0.0
    %3908 = vmatmul.mubr.f32.gmra.mxu0 %v3839
    %v3909 = vpop.f32.mrf.mxu0
    %v3910 = vadd.f32 0.0, %v3909
    %v3911 = vpop.f32.mrf.mxu0
    %3912 = vdwg.mxu0
    %v3913 = vsel %vm366, %v3799, 0
    %v3915 = vsel %vm366, %v3813, 0
    %3917 = vmatprep.subr.mxu0 0.0
    %3918 = vmatpush1.xpose.msra.mxu0 0.0
    %3919 = vmatprep.subr.mxu0 0.0
    %3920 = vmatpush1.xpose.msra.mxu0 0.0
    %3921 = vmatprep.subr.mxu0 0.0
    %3922 = vmatpush1.xpose.msra.mxu0 0.0
    %3923 = vmatprep.subr.mxu0 0.0
    %3924 = vmatpush1.xpose.msra.mxu0 0.0
    %3925 = vmatprep.subr.mxu0 0.0
    %3926 = vmatpush1.xpose.msra.mxu0 0.0
    %3927 = vmatprep.subr.mxu0 0.0
    %3928 = vmatpush1.xpose.msra.mxu0 0.0
    %3929 = vmatprep.subr.mxu0 0.0
    %3930 = vmatpush1.xpose.msra.mxu0 0.0
    %3931 = vmatprep.subr.mxu0 0.0
    %3932 = vmatpush1.xpose.msra.mxu0 0.0
    %3933 = vmatprep.subr.mxu0 0.0
    %3934 = vmatpush1.xpose.msra.mxu0 0.0
    %3935 = vmatprep.subr.mxu0 0.0
    %3936 = vmatpush1.xpose.msra.mxu0 0.0
    %3937 = vmatprep.subr.mxu0 0.0
    %3938 = vmatpush1.xpose.msra.mxu0 0.0
    %3939 = vmatprep.subr.mxu0 0.0
    %3940 = vmatpush1.xpose.msra.mxu0 0.0
    %3941 = vmatprep.subr.mxu0 0.0
    %3942 = vmatpush1.xpose.msra.mxu0 0.0
    %3943 = vmatprep.subr.mxu0 0.0
    %3944 = vmatpush1.xpose.msra.mxu0 0.0
    %3945 = vmatprep.subr.mxu0 0.0
    %3946 = vmatpush1.xpose.msra.mxu0 0.0
    %3947 = vmatprep.subr.mxu0 0.0
    %3948 = vmatpush1.xpose.msra.mxu0 %v3915
    %3949 = vmatprep.subr.mxu0 0.0
    %3950 = vmatpush2.xpose.msra.mxu0 0.0
    %3951 = vmatprep.subr.mxu0 0.0
    %3952 = vmatpush2.xpose.msra.mxu0 0.0
    %3953 = vmatprep.subr.mxu0 0.0
    %3954 = vmatpush2.xpose.msra.mxu0 0.0
    %3955 = vmatprep.subr.mxu0 0.0
    %3956 = vmatpush2.xpose.msra.mxu0 0.0
    %3957 = vmatprep.subr.mxu0 0.0
    %3958 = vmatpush2.xpose.msra.mxu0 0.0
    %3959 = vmatprep.subr.mxu0 0.0
    %3960 = vmatpush2.xpose.msra.mxu0 0.0
    %3961 = vmatprep.subr.mxu0 0.0
    %3962 = vmatpush2.xpose.msra.mxu0 0.0
    %3963 = vmatprep.subr.mxu0 0.0
    %3964 = vmatpush2.xpose.msra.mxu0 0.0
    %3965 = vmatprep.subr.mxu0 0.0
    %3966 = vmatpush2.xpose.msra.mxu0 0.0
    %3967 = vmatprep.subr.mxu0 0.0
    %3968 = vmatpush2.xpose.msra.mxu0 0.0
    %3969 = vmatprep.subr.mxu0 0.0
    %3970 = vmatpush2.xpose.msra.mxu0 0.0
    %3971 = vmatprep.subr.mxu0 0.0
    %3972 = vmatpush2.xpose.msra.mxu0 0.0
    %3973 = vmatprep.subr.mxu0 0.0
    %3974 = vmatpush2.xpose.msra.mxu0 0.0
    %3975 = vmatprep.subr.mxu0 0.0
    %3976 = vmatpush2.xpose.msra.mxu0 0.0
    %3977 = vmatprep.subr.mxu0 0.0
    %3978 = vmatpush2.xpose.msra.mxu0 0.0
    %3979 = vmatprep.subr.mxu0 0.0
    %3980 = vmatpush2.xpose.msra.mxu0 0.0
    %3981 = vmatprep.mubr.f32.mxu0 0.0
    %3982 = vmatmul.mubr.f32.gmra.mxu0 %v3913
    %v3983 = vpop.f32.mrf.mxu0
    %v3984 = vadd.f32 0.0, %v3983
    %v3985 = vpop.f32.mrf.mxu0
    %3986 = vdwg.mxu0
    %v3987 = vsel %vm366, %v3801, 0
    %v3989 = vsel %vm366, %v3815, 0
    %3991 = vmatprep.subr.mxu0 0.0
    %3992 = vmatpush1.xpose.msra.mxu0 0.0
    %3993 = vmatprep.subr.mxu0 0.0
    %3994 = vmatpush1.xpose.msra.mxu0 0.0
    %3995 = vmatprep.subr.mxu0 0.0
    %3996 = vmatpush1.xpose.msra.mxu0 0.0
    %3997 = vmatprep.subr.mxu0 0.0
    %3998 = vmatpush1.xpose.msra.mxu0 0.0
    %3999 = vmatprep.subr.mxu0 0.0
    %4000 = vmatpush1.xpose.msra.mxu0 0.0
    %4001 = vmatprep.subr.mxu0 0.0
    %4002 = vmatpush1.xpose.msra.mxu0 0.0
    %4003 = vmatprep.subr.mxu0 0.0
    %4004 = vmatpush1.xpose.msra.mxu0 0.0
    %4005 = vmatprep.subr.mxu0 0.0
    %4006 = vmatpush1.xpose.msra.mxu0 0.0
    %4007 = vmatprep.subr.mxu0 0.0
    %4008 = vmatpush1.xpose.msra.mxu0 0.0
    %4009 = vmatprep.subr.mxu0 0.0
    %4010 = vmatpush1.xpose.msra.mxu0 0.0
    %4011 = vmatprep.subr.mxu0 0.0
    %4012 = vmatpush1.xpose.msra.mxu0 0.0
    %4013 = vmatprep.subr.mxu0 0.0
    %4014 = vmatpush1.xpose.msra.mxu0 0.0
    %4015 = vmatprep.subr.mxu0 0.0
    %4016 = vmatpush1.xpose.msra.mxu0 0.0
    %4017 = vmatprep.subr.mxu0 0.0
    %4018 = vmatpush1.xpose.msra.mxu0 0.0
    %4019 = vmatprep.subr.mxu0 0.0
    %4020 = vmatpush1.xpose.msra.mxu0 0.0
    %4021 = vmatprep.subr.mxu0 0.0
    %4022 = vmatpush1.xpose.msra.mxu0 %v3989
    %4023 = vmatprep.subr.mxu0 0.0
    %4024 = vmatpush2.xpose.msra.mxu0 0.0
    %4025 = vmatprep.subr.mxu0 0.0
    %4026 = vmatpush2.xpose.msra.mxu0 0.0
    %4027 = vmatprep.subr.mxu0 0.0
    %4028 = vmatpush2.xpose.msra.mxu0 0.0
    %4029 = vmatprep.subr.mxu0 0.0
    %4030 = vmatpush2.xpose.msra.mxu0 0.0
    %4031 = vmatprep.subr.mxu0 0.0
    %4032 = vmatpush2.xpose.msra.mxu0 0.0
    %4033 = vmatprep.subr.mxu0 0.0
    %4034 = vmatpush2.xpose.msra.mxu0 0.0
    %4035 = vmatprep.subr.mxu0 0.0
    %4036 = vmatpush2.xpose.msra.mxu0 0.0
    %4037 = vmatprep.subr.mxu0 0.0
    %4038 = vmatpush2.xpose.msra.mxu0 0.0
    %4039 = vmatprep.subr.mxu0 0.0
    %4040 = vmatpush2.xpose.msra.mxu0 0.0
    %4041 = vmatprep.subr.mxu0 0.0
    %4042 = vmatpush2.xpose.msra.mxu0 0.0
    %4043 = vmatprep.subr.mxu0 0.0
    %4044 = vmatpush2.xpose.msra.mxu0 0.0
    %4045 = vmatprep.subr.mxu0 0.0
    %4046 = vmatpush2.xpose.msra.mxu0 0.0
    %4047 = vmatprep.subr.mxu0 0.0
    %4048 = vmatpush2.xpose.msra.mxu0 0.0
    %4049 = vmatprep.subr.mxu0 0.0
    %4050 = vmatpush2.xpose.msra.mxu0 0.0
    %4051 = vmatprep.subr.mxu0 0.0
    %4052 = vmatpush2.xpose.msra.mxu0 0.0
    %4053 = vmatprep.subr.mxu0 0.0
    %4054 = vmatpush2.xpose.msra.mxu0 0.0
    %4055 = vmatprep.mubr.f32.mxu0 0.0
    %4056 = vmatmul.mubr.f32.gmra.mxu0 %v3987
    %v4057 = vpop.f32.mrf.mxu0
    %v4058 = vadd.f32 0.0, %v4057
    %v4059 = vpop.f32.mrf.mxu0
    %4060 = vdwg.mxu0
    %v4061 = vsel %vm366, %v3803, 0
    %v4063 = vsel %vm366, %v3817, 0
    %4065 = vmatprep.subr.mxu0 0.0
    %4066 = vmatpush1.xpose.msra.mxu0 0.0
    %4067 = vmatprep.subr.mxu0 0.0
    %4068 = vmatpush1.xpose.msra.mxu0 0.0
    %4069 = vmatprep.subr.mxu0 0.0
    %4070 = vmatpush1.xpose.msra.mxu0 0.0
    %4071 = vmatprep.subr.mxu0 0.0
    %4072 = vmatpush1.xpose.msra.mxu0 0.0
    %4073 = vmatprep.subr.mxu0 0.0
    %4074 = vmatpush1.xpose.msra.mxu0 0.0
    %4075 = vmatprep.subr.mxu0 0.0
    %4076 = vmatpush1.xpose.msra.mxu0 0.0
    %4077 = vmatprep.subr.mxu0 0.0
    %4078 = vmatpush1.xpose.msra.mxu0 0.0
    %4079 = vmatprep.subr.mxu0 0.0
    %4080 = vmatpush1.xpose.msra.mxu0 0.0
    %4081 = vmatprep.subr.mxu0 0.0
    %4082 = vmatpush1.xpose.msra.mxu0 0.0
    %4083 = vmatprep.subr.mxu0 0.0
    %4084 = vmatpush1.xpose.msra.mxu0 0.0
    %4085 = vmatprep.subr.mxu0 0.0
    %4086 = vmatpush1.xpose.msra.mxu0 0.0
    %4087 = vmatprep.subr.mxu0 0.0
    %4088 = vmatpush1.xpose.msra.mxu0 0.0
    %4089 = vmatprep.subr.mxu0 0.0
    %4090 = vmatpush1.xpose.msra.mxu0 0.0
    %4091 = vmatprep.subr.mxu0 0.0
    %4092 = vmatpush1.xpose.msra.mxu0 0.0
    %4093 = vmatprep.subr.mxu0 0.0
    %4094 = vmatpush1.xpose.msra.mxu0 0.0
    %4095 = vmatprep.subr.mxu0 0.0
    %4096 = vmatpush1.xpose.msra.mxu0 %v4063
    %4097 = vmatprep.subr.mxu0 0.0
    %4098 = vmatpush2.xpose.msra.mxu0 0.0
    %4099 = vmatprep.subr.mxu0 0.0
    %4100 = vmatpush2.xpose.msra.mxu0 0.0
    %4101 = vmatprep.subr.mxu0 0.0
    %4102 = vmatpush2.xpose.msra.mxu0 0.0
    %4103 = vmatprep.subr.mxu0 0.0
    %4104 = vmatpush2.xpose.msra.mxu0 0.0
    %4105 = vmatprep.subr.mxu0 0.0
    %4106 = vmatpush2.xpose.msra.mxu0 0.0
    %4107 = vmatprep.subr.mxu0 0.0
    %4108 = vmatpush2.xpose.msra.mxu0 0.0
    %4109 = vmatprep.subr.mxu0 0.0
    %4110 = vmatpush2.xpose.msra.mxu0 0.0
    %4111 = vmatprep.subr.mxu0 0.0
    %4112 = vmatpush2.xpose.msra.mxu0 0.0
    %4113 = vmatprep.subr.mxu0 0.0
    %4114 = vmatpush2.xpose.msra.mxu0 0.0
    %4115 = vmatprep.subr.mxu0 0.0
    %4116 = vmatpush2.xpose.msra.mxu0 0.0
    %4117 = vmatprep.subr.mxu0 0.0
    %4118 = vmatpush2.xpose.msra.mxu0 0.0
    %4119 = vmatprep.subr.mxu0 0.0
    %4120 = vmatpush2.xpose.msra.mxu0 0.0
    %4121 = vmatprep.subr.mxu0 0.0
    %4122 = vmatpush2.xpose.msra.mxu0 0.0
    %4123 = vmatprep.subr.mxu0 0.0
    %4124 = vmatpush2.xpose.msra.mxu0 0.0
    %4125 = vmatprep.subr.mxu0 0.0
    %4126 = vmatpush2.xpose.msra.mxu0 0.0
    %4127 = vmatprep.subr.mxu0 0.0
    %4128 = vmatpush2.xpose.msra.mxu0 0.0
    %4129 = vmatprep.mubr.f32.mxu0 0.0
    %4130 = vmatmul.mubr.f32.gmra.mxu0 %v4061
    %v4131 = vpop.f32.mrf.mxu0
    %v4132 = vadd.f32 0.0, %v4131
    %v4133 = vpop.f32.mrf.mxu0
    %4134 = vdwg.mxu0
    %v4135 = vsel %vm366, %v3681, 0
    %v4137 = vsel %vm366, %v3786, 0
    %4139 = vmatprep.subr.mxu0 0.0
    %4140 = vmatpush1.xpose.msra.mxu0 0.0
    %4141 = vmatprep.subr.mxu0 0.0
    %4142 = vmatpush1.xpose.msra.mxu0 0.0
    %4143 = vmatprep.subr.mxu0 0.0
    %4144 = vmatpush1.xpose.msra.mxu0 0.0
    %4145 = vmatprep.subr.mxu0 0.0
    %4146 = vmatpush1.xpose.msra.mxu0 0.0
    %4147 = vmatprep.subr.mxu0 0.0
    %4148 = vmatpush1.xpose.msra.mxu0 0.0
    %4149 = vmatprep.subr.mxu0 0.0
    %4150 = vmatpush1.xpose.msra.mxu0 0.0
    %4151 = vmatprep.subr.mxu0 0.0
    %4152 = vmatpush1.xpose.msra.mxu0 0.0
    %4153 = vmatprep.subr.mxu0 0.0
    %4154 = vmatpush1.xpose.msra.mxu0 0.0
    %4155 = vmatprep.subr.mxu0 0.0
    %4156 = vmatpush1.xpose.msra.mxu0 0.0
    %4157 = vmatprep.subr.mxu0 0.0
    %4158 = vmatpush1.xpose.msra.mxu0 0.0
    %4159 = vmatprep.subr.mxu0 0.0
    %4160 = vmatpush1.xpose.msra.mxu0 0.0
    %4161 = vmatprep.subr.mxu0 0.0
    %4162 = vmatpush1.xpose.msra.mxu0 0.0
    %4163 = vmatprep.subr.mxu0 0.0
    %4164 = vmatpush1.xpose.msra.mxu0 0.0
    %4165 = vmatprep.subr.mxu0 0.0
    %4166 = vmatpush1.xpose.msra.mxu0 0.0
    %4167 = vmatprep.subr.mxu0 0.0
    %4168 = vmatpush1.xpose.msra.mxu0 0.0
    %4169 = vmatprep.subr.mxu0 0.0
    %4170 = vmatpush1.xpose.msra.mxu0 %v4137
    %4171 = vmatprep.subr.mxu0 0.0
    %4172 = vmatpush2.xpose.msra.mxu0 0.0
    %4173 = vmatprep.subr.mxu0 0.0
    %4174 = vmatpush2.xpose.msra.mxu0 0.0
    %4175 = vmatprep.subr.mxu0 0.0
    %4176 = vmatpush2.xpose.msra.mxu0 0.0
    %4177 = vmatprep.subr.mxu0 0.0
    %4178 = vmatpush2.xpose.msra.mxu0 0.0
    %4179 = vmatprep.subr.mxu0 0.0
    %4180 = vmatpush2.xpose.msra.mxu0 0.0
    %4181 = vmatprep.subr.mxu0 0.0
    %4182 = vmatpush2.xpose.msra.mxu0 0.0
    %4183 = vmatprep.subr.mxu0 0.0
    %4184 = vmatpush2.xpose.msra.mxu0 0.0
    %4185 = vmatprep.subr.mxu0 0.0
    %4186 = vmatpush2.xpose.msra.mxu0 0.0
    %4187 = vmatprep.subr.mxu0 0.0
    %4188 = vmatpush2.xpose.msra.mxu0 0.0
    %4189 = vmatprep.subr.mxu0 0.0
    %4190 = vmatpush2.xpose.msra.mxu0 0.0
    %4191 = vmatprep.subr.mxu0 0.0
    %4192 = vmatpush2.xpose.msra.mxu0 0.0
    %4193 = vmatprep.subr.mxu0 0.0
    %4194 = vmatpush2.xpose.msra.mxu0 0.0
    %4195 = vmatprep.subr.mxu0 0.0
    %4196 = vmatpush2.xpose.msra.mxu0 0.0
    %4197 = vmatprep.subr.mxu0 0.0
    %4198 = vmatpush2.xpose.msra.mxu0 0.0
    %4199 = vmatprep.subr.mxu0 0.0
    %4200 = vmatpush2.xpose.msra.mxu0 0.0
    %4201 = vmatprep.subr.mxu0 0.0
    %4202 = vmatpush2.xpose.msra.mxu0 0.0
    %4203 = vmatprep.mubr.f32.mxu0 0.0
    %4204 = vmatmul.mubr.f32.gmra.mxu0 %v4135
    %v4205 = vpop.f32.mrf.mxu0
    %v4206 = vadd.f32 0.0, %v4205
    %v4207 = vpop.f32.mrf.mxu0
    %4208 = vdwg.mxu0
    %v4209 = vsel %vm366, %v3806, 0
    %v4211 = vsel %vm366, %v3820, 0
    %4213 = vmatprep.subr.mxu0 0.0
    %4214 = vmatpush1.xpose.msra.mxu0 0.0
    %4215 = vmatprep.subr.mxu0 0.0
    %4216 = vmatpush1.xpose.msra.mxu0 0.0
    %4217 = vmatprep.subr.mxu0 0.0
    %4218 = vmatpush1.xpose.msra.mxu0 0.0
    %4219 = vmatprep.subr.mxu0 0.0
    %4220 = vmatpush1.xpose.msra.mxu0 0.0
    %4221 = vmatprep.subr.mxu0 0.0
    %4222 = vmatpush1.xpose.msra.mxu0 0.0
    %4223 = vmatprep.subr.mxu0 0.0
    %4224 = vmatpush1.xpose.msra.mxu0 0.0
    %4225 = vmatprep.subr.mxu0 0.0
    %4226 = vmatpush1.xpose.msra.mxu0 0.0
    %4227 = vmatprep.subr.mxu0 0.0
    %4228 = vmatpush1.xpose.msra.mxu0 0.0
    %4229 = vmatprep.subr.mxu0 0.0
    %4230 = vmatpush1.xpose.msra.mxu0 0.0
    %4231 = vmatprep.subr.mxu0 0.0
    %4232 = vmatpush1.xpose.msra.mxu0 0.0
    %4233 = vmatprep.subr.mxu0 0.0
    %4234 = vmatpush1.xpose.msra.mxu0 0.0
    %4235 = vmatprep.subr.mxu0 0.0
    %4236 = vmatpush1.xpose.msra.mxu0 0.0
    %4237 = vmatprep.subr.mxu0 0.0
    %4238 = vmatpush1.xpose.msra.mxu0 0.0
    %4239 = vmatprep.subr.mxu0 0.0
    %4240 = vmatpush1.xpose.msra.mxu0 0.0
    %4241 = vmatprep.subr.mxu0 0.0
    %4242 = vmatpush1.xpose.msra.mxu0 0.0
    %4243 = vmatprep.subr.mxu0 0.0
    %4244 = vmatpush1.xpose.msra.mxu0 %v4211
    %4245 = vmatprep.subr.mxu0 0.0
    %4246 = vmatpush2.xpose.msra.mxu0 0.0
    %4247 = vmatprep.subr.mxu0 0.0
    %4248 = vmatpush2.xpose.msra.mxu0 0.0
    %4249 = vmatprep.subr.mxu0 0.0
    %4250 = vmatpush2.xpose.msra.mxu0 0.0
    %4251 = vmatprep.subr.mxu0 0.0
    %4252 = vmatpush2.xpose.msra.mxu0 0.0
    %4253 = vmatprep.subr.mxu0 0.0
    %4254 = vmatpush2.xpose.msra.mxu0 0.0
    %4255 = vmatprep.subr.mxu0 0.0
    %4256 = vmatpush2.xpose.msra.mxu0 0.0
    %4257 = vmatprep.subr.mxu0 0.0
    %4258 = vmatpush2.xpose.msra.mxu0 0.0
    %4259 = vmatprep.subr.mxu0 0.0
    %4260 = vmatpush2.xpose.msra.mxu0 0.0
    %4261 = vmatprep.subr.mxu0 0.0
    %4262 = vmatpush2.xpose.msra.mxu0 0.0
    %4263 = vmatprep.subr.mxu0 0.0
    %4264 = vmatpush2.xpose.msra.mxu0 0.0
    %4265 = vmatprep.subr.mxu0 0.0
    %4266 = vmatpush2.xpose.msra.mxu0 0.0
    %4267 = vmatprep.subr.mxu0 0.0
    %4268 = vmatpush2.xpose.msra.mxu0 0.0
    %4269 = vmatprep.subr.mxu0 0.0
    %4270 = vmatpush2.xpose.msra.mxu0 0.0
    %4271 = vmatprep.subr.mxu0 0.0
    %4272 = vmatpush2.xpose.msra.mxu0 0.0
    %4273 = vmatprep.subr.mxu0 0.0
    %4274 = vmatpush2.xpose.msra.mxu0 0.0
    %4275 = vmatprep.subr.mxu0 0.0
    %4276 = vmatpush2.xpose.msra.mxu0 0.0
    %4277 = vmatprep.mubr.f32.mxu0 0.0
    %4278 = vmatmul.mubr.f32.gmra.mxu0 %v4209
    %v4279 = vpop.f32.mrf.mxu0
    %v4280 = vadd.f32 0.0, %v4279
    %v4281 = vpop.f32.mrf.mxu0
    %4282 = vdwg.mxu0
    %v4283 = vsel %vm366, %v3808, 0
    %v4285 = vsel %vm366, %v3822, 0
    %4287 = vmatprep.subr.mxu0 0.0
    %4288 = vmatpush1.xpose.msra.mxu0 0.0
    %4289 = vmatprep.subr.mxu0 0.0
    %4290 = vmatpush1.xpose.msra.mxu0 0.0
    %4291 = vmatprep.subr.mxu0 0.0
    %4292 = vmatpush1.xpose.msra.mxu0 0.0
    %4293 = vmatprep.subr.mxu0 0.0
    %4294 = vmatpush1.xpose.msra.mxu0 0.0
    %4295 = vmatprep.subr.mxu0 0.0
    %4296 = vmatpush1.xpose.msra.mxu0 0.0
    %4297 = vmatprep.subr.mxu0 0.0
    %4298 = vmatpush1.xpose.msra.mxu0 0.0
    %4299 = vmatprep.subr.mxu0 0.0
    %4300 = vmatpush1.xpose.msra.mxu0 0.0
    %4301 = vmatprep.subr.mxu0 0.0
    %4302 = vmatpush1.xpose.msra.mxu0 0.0
    %4303 = vmatprep.subr.mxu0 0.0
    %4304 = vmatpush1.xpose.msra.mxu0 0.0
    %4305 = vmatprep.subr.mxu0 0.0
    %4306 = vmatpush1.xpose.msra.mxu0 0.0
    %4307 = vmatprep.subr.mxu0 0.0
    %4308 = vmatpush1.xpose.msra.mxu0 0.0
    %4309 = vmatprep.subr.mxu0 0.0
    %4310 = vmatpush1.xpose.msra.mxu0 0.0
    %4311 = vmatprep.subr.mxu0 0.0
    %4312 = vmatpush1.xpose.msra.mxu0 0.0
    %4313 = vmatprep.subr.mxu0 0.0
    %4314 = vmatpush1.xpose.msra.mxu0 0.0
    %4315 = vmatprep.subr.mxu0 0.0
    %4316 = vmatpush1.xpose.msra.mxu0 0.0
    %4317 = vmatprep.subr.mxu0 0.0
    %4318 = vmatpush1.xpose.msra.mxu0 %v4285
    %4319 = vmatprep.subr.mxu0 0.0
    %4320 = vmatpush2.xpose.msra.mxu0 0.0
    %4321 = vmatprep.subr.mxu0 0.0
    %4322 = vmatpush2.xpose.msra.mxu0 0.0
    %4323 = vmatprep.subr.mxu0 0.0
    %4324 = vmatpush2.xpose.msra.mxu0 0.0
    %4325 = vmatprep.subr.mxu0 0.0
    %4326 = vmatpush2.xpose.msra.mxu0 0.0
    %4327 = vmatprep.subr.mxu0 0.0
    %4328 = vmatpush2.xpose.msra.mxu0 0.0
    %4329 = vmatprep.subr.mxu0 0.0
    %4330 = vmatpush2.xpose.msra.mxu0 0.0
    %4331 = vmatprep.subr.mxu0 0.0
    %4332 = vmatpush2.xpose.msra.mxu0 0.0
    %4333 = vmatprep.subr.mxu0 0.0
    %4334 = vmatpush2.xpose.msra.mxu0 0.0
    %4335 = vmatprep.subr.mxu0 0.0
    %4336 = vmatpush2.xpose.msra.mxu0 0.0
    %4337 = vmatprep.subr.mxu0 0.0
    %4338 = vmatpush2.xpose.msra.mxu0 0.0
    %4339 = vmatprep.subr.mxu0 0.0
    %4340 = vmatpush2.xpose.msra.mxu0 0.0
    %4341 = vmatprep.subr.mxu0 0.0
    %4342 = vmatpush2.xpose.msra.mxu0 0.0
    %4343 = vmatprep.subr.mxu0 0.0
    %4344 = vmatpush2.xpose.msra.mxu0 0.0
    %4345 = vmatprep.subr.mxu0 0.0
    %4346 = vmatpush2.xpose.msra.mxu0 0.0
    %4347 = vmatprep.subr.mxu0 0.0
    %4348 = vmatpush2.xpose.msra.mxu0 0.0
    %4349 = vmatprep.subr.mxu0 0.0
    %4350 = vmatpush2.xpose.msra.mxu0 0.0
    %4351 = vmatprep.mubr.f32.mxu0 0.0
    %4352 = vmatmul.mubr.f32.gmra.mxu0 %v4283
    %v4353 = vpop.f32.mrf.mxu0
    %v4354 = vadd.f32 0.0, %v4353
    %v4355 = vpop.f32.mrf.mxu0
    %4356 = vdwg.mxu0
    %v4357 = vsel %vm366, %v3810, 0
    %v4359 = vsel %vm366, %v3824, 0
    %4361 = vmatprep.subr.mxu0 0.0
    %4362 = vmatpush1.xpose.msra.mxu0 0.0
    %4363 = vmatprep.subr.mxu0 0.0
    %4364 = vmatpush1.xpose.msra.mxu0 0.0
    %4365 = vmatprep.subr.mxu0 0.0
    %4366 = vmatpush1.xpose.msra.mxu0 0.0
    %4367 = vmatprep.subr.mxu0 0.0
    %4368 = vmatpush1.xpose.msra.mxu0 0.0
    %4369 = vmatprep.subr.mxu0 0.0
    %4370 = vmatpush1.xpose.msra.mxu0 0.0
    %4371 = vmatprep.subr.mxu0 0.0
    %4372 = vmatpush1.xpose.msra.mxu0 0.0
    %4373 = vmatprep.subr.mxu0 0.0
    %4374 = vmatpush1.xpose.msra.mxu0 0.0
    %4375 = vmatprep.subr.mxu0 0.0
    %4376 = vmatpush1.xpose.msra.mxu0 0.0
    %4377 = vmatprep.subr.mxu0 0.0
    %4378 = vmatpush1.xpose.msra.mxu0 0.0
    %4379 = vmatprep.subr.mxu0 0.0
    %4380 = vmatpush1.xpose.msra.mxu0 0.0
    %4381 = vmatprep.subr.mxu0 0.0
    %4382 = vmatpush1.xpose.msra.mxu0 0.0
    %4383 = vmatprep.subr.mxu0 0.0
    %4384 = vmatpush1.xpose.msra.mxu0 0.0
    %4385 = vmatprep.subr.mxu0 0.0
    %4386 = vmatpush1.xpose.msra.mxu0 0.0
    %4387 = vmatprep.subr.mxu0 0.0
    %4388 = vmatpush1.xpose.msra.mxu0 0.0
    %4389 = vmatprep.subr.mxu0 0.0
    %4390 = vmatpush1.xpose.msra.mxu0 0.0
    %4391 = vmatprep.subr.mxu0 0.0
    %4392 = vmatpush1.xpose.msra.mxu0 %v4359
    %4393 = vmatprep.subr.mxu0 0.0
    %4394 = vmatpush2.xpose.msra.mxu0 0.0
    %4395 = vmatprep.subr.mxu0 0.0
    %4396 = vmatpush2.xpose.msra.mxu0 0.0
    %4397 = vmatprep.subr.mxu0 0.0
    %4398 = vmatpush2.xpose.msra.mxu0 0.0
    %4399 = vmatprep.subr.mxu0 0.0
    %4400 = vmatpush2.xpose.msra.mxu0 0.0
    %4401 = vmatprep.subr.mxu0 0.0
    %4402 = vmatpush2.xpose.msra.mxu0 0.0
    %4403 = vmatprep.subr.mxu0 0.0
    %4404 = vmatpush2.xpose.msra.mxu0 0.0
    %4405 = vmatprep.subr.mxu0 0.0
    %4406 = vmatpush2.xpose.msra.mxu0 0.0
    %4407 = vmatprep.subr.mxu0 0.0
    %4408 = vmatpush2.xpose.msra.mxu0 0.0
    %4409 = vmatprep.subr.mxu0 0.0
    %4410 = vmatpush2.xpose.msra.mxu0 0.0
    %4411 = vmatprep.subr.mxu0 0.0
    %4412 = vmatpush2.xpose.msra.mxu0 0.0
    %4413 = vmatprep.subr.mxu0 0.0
    %4414 = vmatpush2.xpose.msra.mxu0 0.0
    %4415 = vmatprep.subr.mxu0 0.0
    %4416 = vmatpush2.xpose.msra.mxu0 0.0
    %4417 = vmatprep.subr.mxu0 0.0
    %4418 = vmatpush2.xpose.msra.mxu0 0.0
    %4419 = vmatprep.subr.mxu0 0.0
    %4420 = vmatpush2.xpose.msra.mxu0 0.0
    %4421 = vmatprep.subr.mxu0 0.0
    %4422 = vmatpush2.xpose.msra.mxu0 0.0
    %4423 = vmatprep.subr.mxu0 0.0
    %4424 = vmatpush2.xpose.msra.mxu0 0.0
    %4425 = vmatprep.mubr.f32.mxu0 0.0
    %4426 = vmatmul.mubr.f32.gmra.mxu0 %v4357
    %v4427 = vpop.f32.mrf.mxu0
    %v4428 = vadd.f32 0.0, %v4427
    %v4429 = vpop.f32.mrf.mxu0
    %4430 = vdwg.mxu0
    %v4431 = vmul.f32 %v3910, 0.35355338
    %v4432 = vmul.f32 %v3984, 0.35355338
    %v4433 = vmul.f32 %v4058, 0.35355338
    %v4434 = vmul.f32 %v4132, 0.35355338
    %v4435 = vmul.f32 %v4206, 0.35355338
    %v4436 = vmul.f32 %v4280, 0.35355338
    %v4437 = vmul.f32 %v4354, 0.35355338
    %v4438 = vmul.f32 %v4428, 0.35355338
    %v4439 = vsel %vm366, %v4431, -inf
    %4440 = vmax.xlane.f32.xlu0 %v4439
    %v4441 = vpop.xlane.xlu0 %4440
    %v4442 = vsel %vm366, %v4432, -inf
    %4443 = vmax.xlane.f32.xlu0 %v4442
    %v4444 = vpop.xlane.xlu0 %4443
    %v4445 = vsel %vm366, %v4433, -inf
    %4446 = vmax.xlane.f32.xlu0 %v4445
    %v4447 = vpop.xlane.xlu0 %4446
    %v4448 = vsel %vm366, %v4434, -inf
    %4449 = vmax.xlane.f32.xlu0 %v4448
    %v4450 = vpop.xlane.xlu0 %4449
    %v4451 = vsel %vm366, %v4435, -inf
    %4452 = vmax.xlane.f32.xlu0 %v4451
    %v4453 = vpop.xlane.xlu0 %4452
    %v4454 = vsel %vm366, %v4436, -inf
    %4455 = vmax.xlane.f32.xlu0 %v4454
    %v4456 = vpop.xlane.xlu0 %4455
    %v4457 = vsel %vm366, %v4437, -inf
    %4458 = vmax.xlane.f32.xlu0 %v4457
    %v4459 = vpop.xlane.xlu0 %4458
    %v4460 = vsel %vm366, %v4438, -inf
    %4461 = vmax.xlane.f32.xlu0 %v4460
    %v4462 = vpop.xlane.xlu0 %4461
    %v4463 = vsub.f32 %v4431, %v4441
    %v4464 = vsub.f32 %v4432, %v4444
    %v4465 = vsub.f32 %v4433, %v4447
    %v4466 = vsub.f32 %v4434, %v4450
    %v4467 = vsub.f32 %v4435, %v4453
    %v4468 = vsub.f32 %v4436, %v4456
    %v4469 = vsub.f32 %v4437, %v4459
    %v4470 = vsub.f32 %v4438, %v4462
    %v4471 = vmul.f32 %v4463, 1.442695
    %v4472 = vpow.pop %v4471
    %v4473 = vmul.f32 %v4464, 1.442695
    %v4474 = vpow.pop %v4473
    %v4475 = vmul.f32 %v4465, 1.442695
    %v4476 = vpow.pop %v4475
    %v4477 = vmul.f32 %v4466, 1.442695
    %v4478 = vpow.pop %v4477
    %v4479 = vmul.f32 %v4467, 1.442695
    %v4480 = vpow.pop %v4479
    %v4481 = vmul.f32 %v4468, 1.442695
    %v4482 = vpow.pop %v4481
    %v4483 = vmul.f32 %v4469, 1.442695
    %v4484 = vpow.pop %v4483
    %v4485 = vmul.f32 %v4470, 1.442695
    %v4486 = vpow.pop %v4485
    %v4487 = vsel %vm366, %v4472, 0.0
    %4488 = vadd.xlane.f32.xlu0 %v4487
    %v4489 = vpop.xlane.xlu0 %4488
    %v4490 = vsel %vm366, %v4474, 0.0
    %4491 = vadd.xlane.f32.xlu0 %v4490
    %v4492 = vpop.xlane.xlu0 %4491
    %v4493 = vsel %vm366, %v4476, 0.0
    %4494 = vadd.xlane.f32.xlu0 %v4493
    %v4495 = vpop.xlane.xlu0 %4494
    %v4496 = vsel %vm366, %v4478, 0.0
    %4497 = vadd.xlane.f32.xlu0 %v4496
    %v4498 = vpop.xlane.xlu0 %4497
    %v4499 = vsel %vm366, %v4480, 0.0
    %4500 = vadd.xlane.f32.xlu0 %v4499
    %v4501 = vpop.xlane.xlu0 %4500
    %v4502 = vsel %vm366, %v4482, 0.0
    %4503 = vadd.xlane.f32.xlu0 %v4502
    %v4504 = vpop.xlane.xlu0 %4503
    %v4505 = vsel %vm366, %v4484, 0.0
    %4506 = vadd.xlane.f32.xlu0 %v4505
    %v4507 = vpop.xlane.xlu0 %4506
    %v4508 = vsel %vm366, %v4486, 0.0
    %4509 = vadd.xlane.f32.xlu0 %v4508
    %v4510 = vpop.xlane.xlu0 %4509
    %v4511 = vrcp.pop %v4489
    %v4512 = vrcp.pop %v4492
    %v4513 = vrcp.pop %v4495
    %v4514 = vrcp.pop %v4498
    %v4515 = vrcp.pop %v4501
    %v4516 = vrcp.pop %v4504
    %v4517 = vrcp.pop %v4507
    %v4518 = vrcp.pop %v4510
    %v4519 = vmul.f32 %v4472, %v4511
    %v4520 = vmul.f32 %v4474, %v4512
    %v4521 = vmul.f32 %v4476, %v4513
    %v4522 = vmul.f32 %v4478, %v4514
    %v4523 = vmul.f32 %v4480, %v4515
    %v4524 = vmul.f32 %v4482, %v4516
    %v4525 = vmul.f32 %v4484, %v4517
    %v4526 = vmul.f32 %v4486, %v4518
    %4527 = vrot.lane.b32.xlu0 %v3795, 96
    %v4528 = vpop.permute.xlu0 %4527
    %v4531 = vsel %vm366, %v4519, 0
    %4533 = vmatprep.subr.mxu0 0.0
    %4534 = vmatpush1.msra.mxu0 0.0
    %4535 = vmatprep.subr.mxu0 0.0
    %4536 = vmatpush1.msra.mxu0 0.0
    %4537 = vmatprep.subr.mxu0 0.0
    %4538 = vmatpush1.msra.mxu0 0.0
    %4539 = vmatprep.subr.mxu0 0.0
    %4540 = vmatpush1.msra.mxu0 0.0
    %4541 = vmatprep.subr.mxu0 0.0
    %4542 = vmatpush1.msra.mxu0 0.0
    %4543 = vmatprep.subr.mxu0 0.0
    %4544 = vmatpush1.msra.mxu0 0.0
    %4545 = vmatprep.subr.mxu0 0.0
    %4546 = vmatpush1.msra.mxu0 0.0
    %4547 = vmatprep.subr.mxu0 0.0
    %4548 = vmatpush1.msra.mxu0 0.0
    %4549 = vmatprep.subr.mxu0 0.0
    %4550 = vmatpush1.msra.mxu0 0.0
    %4551 = vmatprep.subr.mxu0 0.0
    %4552 = vmatpush1.msra.mxu0 0.0
    %4553 = vmatprep.subr.mxu0 0.0
    %4554 = vmatpush1.msra.mxu0 0.0
    %4555 = vmatprep.subr.mxu0 0.0
    %4556 = vmatpush1.msra.mxu0 0.0
    %4557 = vmatprep.subr.mxu0 0.0
    %4558 = vmatpush1.msra.mxu0 0.0
    %4559 = vmatprep.subr.mxu0 0.0
    %4560 = vmatpush1.msra.mxu0 0.0
    %4561 = vmatprep.subr.mxu0 0.0
    %4562 = vmatpush1.msra.mxu0 0.0
    %4563 = vmatprep.subr.mxu0 0.0
    %4564 = vmatpush1.msra.mxu0 %v4528
    %4565 = vmatprep.subr.mxu0 0.0
    %4566 = vmatpush2.msra.mxu0 0.0
    %4567 = vmatprep.subr.mxu0 0.0
    %4568 = vmatpush2.msra.mxu0 0.0
    %4569 = vmatprep.subr.mxu0 0.0
    %4570 = vmatpush2.msra.mxu0 0.0
    %4571 = vmatprep.subr.mxu0 0.0
    %4572 = vmatpush2.msra.mxu0 0.0
    %4573 = vmatprep.subr.mxu0 0.0
    %4574 = vmatpush2.msra.mxu0 0.0
    %4575 = vmatprep.subr.mxu0 0.0
    %4576 = vmatpush2.msra.mxu0 0.0
    %4577 = vmatprep.subr.mxu0 0.0
    %4578 = vmatpush2.msra.mxu0 0.0
    %4579 = vmatprep.subr.mxu0 0.0
    %4580 = vmatpush2.msra.mxu0 0.0
    %4581 = vmatprep.subr.mxu0 0.0
    %4582 = vmatpush2.msra.mxu0 0.0
    %4583 = vmatprep.subr.mxu0 0.0
    %4584 = vmatpush2.msra.mxu0 0.0
    %4585 = vmatprep.subr.mxu0 0.0
    %4586 = vmatpush2.msra.mxu0 0.0
    %4587 = vmatprep.subr.mxu0 0.0
    %4588 = vmatpush2.msra.mxu0 0.0
    %4589 = vmatprep.subr.mxu0 0.0
    %4590 = vmatpush2.msra.mxu0 0.0
    %4591 = vmatprep.subr.mxu0 0.0
    %4592 = vmatpush2.msra.mxu0 0.0
    %4593 = vmatprep.subr.mxu0 0.0
    %4594 = vmatpush2.msra.mxu0 0.0
    %4595 = vmatprep.subr.mxu0 0.0
    %4596 = vmatpush2.msra.mxu0 0.0
    %4597 = vmatprep.mubr.f32.mxu0 0.0
    %4598 = vmatmul.mubr.f32.gmra.mxu0 %v4531
    %v4599 = vpop.f32.mrf.mxu0
    %v4600 = vadd.f32 0.0, %v4599
    %v4601 = vpop.f32.mrf.mxu0
    %4602 = vdwg.mxu0
    %4603 = vrot.lane.b32.xlu0 %v3827, 96
    %v4604 = vpop.permute.xlu0 %4603
    %v4607 = vsel %vm366, %v4520, 0
    %4609 = vmatprep.subr.mxu0 0.0
    %4610 = vmatpush1.msra.mxu0 0.0
    %4611 = vmatprep.subr.mxu0 0.0
    %4612 = vmatpush1.msra.mxu0 0.0
    %4613 = vmatprep.subr.mxu0 0.0
    %4614 = vmatpush1.msra.mxu0 0.0
    %4615 = vmatprep.subr.mxu0 0.0
    %4616 = vmatpush1.msra.mxu0 0.0
    %4617 = vmatprep.subr.mxu0 0.0
    %4618 = vmatpush1.msra.mxu0 0.0
    %4619 = vmatprep.subr.mxu0 0.0
    %4620 = vmatpush1.msra.mxu0 0.0
    %4621 = vmatprep.subr.mxu0 0.0
    %4622 = vmatpush1.msra.mxu0 0.0
    %4623 = vmatprep.subr.mxu0 0.0
    %4624 = vmatpush1.msra.mxu0 0.0
    %4625 = vmatprep.subr.mxu0 0.0
    %4626 = vmatpush1.msra.mxu0 0.0
    %4627 = vmatprep.subr.mxu0 0.0
    %4628 = vmatpush1.msra.mxu0 0.0
    %4629 = vmatprep.subr.mxu0 0.0
    %4630 = vmatpush1.msra.mxu0 0.0
    %4631 = vmatprep.subr.mxu0 0.0
    %4632 = vmatpush1.msra.mxu0 0.0
    %4633 = vmatprep.subr.mxu0 0.0
    %4634 = vmatpush1.msra.mxu0 0.0
    %4635 = vmatprep.subr.mxu0 0.0
    %4636 = vmatpush1.msra.mxu0 0.0
    %4637 = vmatprep.subr.mxu0 0.0
    %4638 = vmatpush1.msra.mxu0 0.0
    %4639 = vmatprep.subr.mxu0 0.0
    %4640 = vmatpush1.msra.mxu0 %v4604
    %4641 = vmatprep.subr.mxu0 0.0
    %4642 = vmatpush2.msra.mxu0 0.0
    %4643 = vmatprep.subr.mxu0 0.0
    %4644 = vmatpush2.msra.mxu0 0.0
    %4645 = vmatprep.subr.mxu0 0.0
    %4646 = vmatpush2.msra.mxu0 0.0
    %4647 = vmatprep.subr.mxu0 0.0
    %4648 = vmatpush2.msra.mxu0 0.0
    %4649 = vmatprep.subr.mxu0 0.0
    %4650 = vmatpush2.msra.mxu0 0.0
    %4651 = vmatprep.subr.mxu0 0.0
    %4652 = vmatpush2.msra.mxu0 0.0
    %4653 = vmatprep.subr.mxu0 0.0
    %4654 = vmatpush2.msra.mxu0 0.0
    %4655 = vmatprep.subr.mxu0 0.0
    %4656 = vmatpush2.msra.mxu0 0.0
    %4657 = vmatprep.subr.mxu0 0.0
    %4658 = vmatpush2.msra.mxu0 0.0
    %4659 = vmatprep.subr.mxu0 0.0
    %4660 = vmatpush2.msra.mxu0 0.0
    %4661 = vmatprep.subr.mxu0 0.0
    %4662 = vmatpush2.msra.mxu0 0.0
    %4663 = vmatprep.subr.mxu0 0.0
    %4664 = vmatpush2.msra.mxu0 0.0
    %4665 = vmatprep.subr.mxu0 0.0
    %4666 = vmatpush2.msra.mxu0 0.0
    %4667 = vmatprep.subr.mxu0 0.0
    %4668 = vmatpush2.msra.mxu0 0.0
    %4669 = vmatprep.subr.mxu0 0.0
    %4670 = vmatpush2.msra.mxu0 0.0
    %4671 = vmatprep.subr.mxu0 0.0
    %4672 = vmatpush2.msra.mxu0 0.0
    %4673 = vmatprep.mubr.f32.mxu0 0.0
    %4674 = vmatmul.mubr.f32.gmra.mxu0 %v4607
    %v4675 = vpop.f32.mrf.mxu0
    %v4676 = vadd.f32 0.0, %v4675
    %v4677 = vpop.f32.mrf.mxu0
    %4678 = vdwg.mxu0
    %4679 = vrot.lane.b32.xlu0 %v3829, 96
    %v4680 = vpop.permute.xlu0 %4679
    %v4683 = vsel %vm366, %v4521, 0
    %4685 = vmatprep.subr.mxu0 0.0
    %4686 = vmatpush1.msra.mxu0 0.0
    %4687 = vmatprep.subr.mxu0 0.0
    %4688 = vmatpush1.msra.mxu0 0.0
    %4689 = vmatprep.subr.mxu0 0.0
    %4690 = vmatpush1.msra.mxu0 0.0
    %4691 = vmatprep.subr.mxu0 0.0
    %4692 = vmatpush1.msra.mxu0 0.0
    %4693 = vmatprep.subr.mxu0 0.0
    %4694 = vmatpush1.msra.mxu0 0.0
    %4695 = vmatprep.subr.mxu0 0.0
    %4696 = vmatpush1.msra.mxu0 0.0
    %4697 = vmatprep.subr.mxu0 0.0
    %4698 = vmatpush1.msra.mxu0 0.0
    %4699 = vmatprep.subr.mxu0 0.0
    %4700 = vmatpush1.msra.mxu0 0.0
    %4701 = vmatprep.subr.mxu0 0.0
    %4702 = vmatpush1.msra.mxu0 0.0
    %4703 = vmatprep.subr.mxu0 0.0
    %4704 = vmatpush1.msra.mxu0 0.0
    %4705 = vmatprep.subr.mxu0 0.0
    %4706 = vmatpush1.msra.mxu0 0.0
    %4707 = vmatprep.subr.mxu0 0.0
    %4708 = vmatpush1.msra.mxu0 0.0
    %4709 = vmatprep.subr.mxu0 0.0
    %4710 = vmatpush1.msra.mxu0 0.0
    %4711 = vmatprep.subr.mxu0 0.0
    %4712 = vmatpush1.msra.mxu0 0.0
    %4713 = vmatprep.subr.mxu0 0.0
    %4714 = vmatpush1.msra.mxu0 0.0
    %4715 = vmatprep.subr.mxu0 0.0
    %4716 = vmatpush1.msra.mxu0 %v4680
    %4717 = vmatprep.subr.mxu0 0.0
    %4718 = vmatpush2.msra.mxu0 0.0
    %4719 = vmatprep.subr.mxu0 0.0
    %4720 = vmatpush2.msra.mxu0 0.0
    %4721 = vmatprep.subr.mxu0 0.0
    %4722 = vmatpush2.msra.mxu0 0.0
    %4723 = vmatprep.subr.mxu0 0.0
    %4724 = vmatpush2.msra.mxu0 0.0
    %4725 = vmatprep.subr.mxu0 0.0
    %4726 = vmatpush2.msra.mxu0 0.0
    %4727 = vmatprep.subr.mxu0 0.0
    %4728 = vmatpush2.msra.mxu0 0.0
    %4729 = vmatprep.subr.mxu0 0.0
    %4730 = vmatpush2.msra.mxu0 0.0
    %4731 = vmatprep.subr.mxu0 0.0
    %4732 = vmatpush2.msra.mxu0 0.0
    %4733 = vmatprep.subr.mxu0 0.0
    %4734 = vmatpush2.msra.mxu0 0.0
    %4735 = vmatprep.subr.mxu0 0.0
    %4736 = vmatpush2.msra.mxu0 0.0
    %4737 = vmatprep.subr.mxu0 0.0
    %4738 = vmatpush2.msra.mxu0 0.0
    %4739 = vmatprep.subr.mxu0 0.0
    %4740 = vmatpush2.msra.mxu0 0.0
    %4741 = vmatprep.subr.mxu0 0.0
    %4742 = vmatpush2.msra.mxu0 0.0
    %4743 = vmatprep.subr.mxu0 0.0
    %4744 = vmatpush2.msra.mxu0 0.0
    %4745 = vmatprep.subr.mxu0 0.0
    %4746 = vmatpush2.msra.mxu0 0.0
    %4747 = vmatprep.subr.mxu0 0.0
    %4748 = vmatpush2.msra.mxu0 0.0
    %4749 = vmatprep.mubr.f32.mxu0 0.0
    %4750 = vmatmul.mubr.f32.gmra.mxu0 %v4683
    %v4751 = vpop.f32.mrf.mxu0
    %v4752 = vadd.f32 0.0, %v4751
    %v4753 = vpop.f32.mrf.mxu0
    %4754 = vdwg.mxu0
    %4755 = vrot.lane.b32.xlu0 %v3831, 96
    %v4756 = vpop.permute.xlu0 %4755
    %v4759 = vsel %vm366, %v4522, 0
    %4761 = vmatprep.subr.mxu0 0.0
    %4762 = vmatpush1.msra.mxu0 0.0
    %4763 = vmatprep.subr.mxu0 0.0
    %4764 = vmatpush1.msra.mxu0 0.0
    %4765 = vmatprep.subr.mxu0 0.0
    %4766 = vmatpush1.msra.mxu0 0.0
    %4767 = vmatprep.subr.mxu0 0.0
    %4768 = vmatpush1.msra.mxu0 0.0
    %4769 = vmatprep.subr.mxu0 0.0
    %4770 = vmatpush1.msra.mxu0 0.0
    %4771 = vmatprep.subr.mxu0 0.0
    %4772 = vmatpush1.msra.mxu0 0.0
    %4773 = vmatprep.subr.mxu0 0.0
    %4774 = vmatpush1.msra.mxu0 0.0
    %4775 = vmatprep.subr.mxu0 0.0
    %4776 = vmatpush1.msra.mxu0 0.0
    %4777 = vmatprep.subr.mxu0 0.0
    %4778 = vmatpush1.msra.mxu0 0.0
    %4779 = vmatprep.subr.mxu0 0.0
    %4780 = vmatpush1.msra.mxu0 0.0
    %4781 = vmatprep.subr.mxu0 0.0
    %4782 = vmatpush1.msra.mxu0 0.0
    %4783 = vmatprep.subr.mxu0 0.0
    %4784 = vmatpush1.msra.mxu0 0.0
    %4785 = vmatprep.subr.mxu0 0.0
    %4786 = vmatpush1.msra.mxu0 0.0
    %4787 = vmatprep.subr.mxu0 0.0
    %4788 = vmatpush1.msra.mxu0 0.0
    %4789 = vmatprep.subr.mxu0 0.0
    %4790 = vmatpush1.msra.mxu0 0.0
    %4791 = vmatprep.subr.mxu0 0.0
    %4792 = vmatpush1.msra.mxu0 %v4756
    %4793 = vmatprep.subr.mxu0 0.0
    %4794 = vmatpush2.msra.mxu0 0.0
    %4795 = vmatprep.subr.mxu0 0.0
    %4796 = vmatpush2.msra.mxu0 0.0
    %4797 = vmatprep.subr.mxu0 0.0
    %4798 = vmatpush2.msra.mxu0 0.0
    %4799 = vmatprep.subr.mxu0 0.0
    %4800 = vmatpush2.msra.mxu0 0.0
    %4801 = vmatprep.subr.mxu0 0.0
    %4802 = vmatpush2.msra.mxu0 0.0
    %4803 = vmatprep.subr.mxu0 0.0
    %4804 = vmatpush2.msra.mxu0 0.0
    %4805 = vmatprep.subr.mxu0 0.0
    %4806 = vmatpush2.msra.mxu0 0.0
    %4807 = vmatprep.subr.mxu0 0.0
    %4808 = vmatpush2.msra.mxu0 0.0
    %4809 = vmatprep.subr.mxu0 0.0
    %4810 = vmatpush2.msra.mxu0 0.0
    %4811 = vmatprep.subr.mxu0 0.0
    %4812 = vmatpush2.msra.mxu0 0.0
    %4813 = vmatprep.subr.mxu0 0.0
    %4814 = vmatpush2.msra.mxu0 0.0
    %4815 = vmatprep.subr.mxu0 0.0
    %4816 = vmatpush2.msra.mxu0 0.0
    %4817 = vmatprep.subr.mxu0 0.0
    %4818 = vmatpush2.msra.mxu0 0.0
    %4819 = vmatprep.subr.mxu0 0.0
    %4820 = vmatpush2.msra.mxu0 0.0
    %4821 = vmatprep.subr.mxu0 0.0
    %4822 = vmatpush2.msra.mxu0 0.0
    %4823 = vmatprep.subr.mxu0 0.0
    %4824 = vmatpush2.msra.mxu0 0.0
    %4825 = vmatprep.mubr.f32.mxu0 0.0
    %4826 = vmatmul.mubr.f32.gmra.mxu0 %v4759
    %v4827 = vpop.f32.mrf.mxu0
    %v4828 = vadd.f32 0.0, %v4827
    %v4829 = vpop.f32.mrf.mxu0
    %4830 = vdwg.mxu0
    %4831 = vrot.lane.b32.xlu0 %v3796, 96
    %v4832 = vpop.permute.xlu0 %4831
    %v4835 = vsel %vm366, %v4523, 0
    %4837 = vmatprep.subr.mxu0 0.0
    %4838 = vmatpush1.msra.mxu0 0.0
    %4839 = vmatprep.subr.mxu0 0.0
    %4840 = vmatpush1.msra.mxu0 0.0
    %4841 = vmatprep.subr.mxu0 0.0
    %4842 = vmatpush1.msra.mxu0 0.0
    %4843 = vmatprep.subr.mxu0 0.0
    %4844 = vmatpush1.msra.mxu0 0.0
    %4845 = vmatprep.subr.mxu0 0.0
    %4846 = vmatpush1.msra.mxu0 0.0
    %4847 = vmatprep.subr.mxu0 0.0
    %4848 = vmatpush1.msra.mxu0 0.0
    %4849 = vmatprep.subr.mxu0 0.0
    %4850 = vmatpush1.msra.mxu0 0.0
    %4851 = vmatprep.subr.mxu0 0.0
    %4852 = vmatpush1.msra.mxu0 0.0
    %4853 = vmatprep.subr.mxu0 0.0
    %4854 = vmatpush1.msra.mxu0 0.0
    %4855 = vmatprep.subr.mxu0 0.0
    %4856 = vmatpush1.msra.mxu0 0.0
    %4857 = vmatprep.subr.mxu0 0.0
    %4858 = vmatpush1.msra.mxu0 0.0
    %4859 = vmatprep.subr.mxu0 0.0
    %4860 = vmatpush1.msra.mxu0 0.0
    %4861 = vmatprep.subr.mxu0 0.0
    %4862 = vmatpush1.msra.mxu0 0.0
    %4863 = vmatprep.subr.mxu0 0.0
    %4864 = vmatpush1.msra.mxu0 0.0
    %4865 = vmatprep.subr.mxu0 0.0
    %4866 = vmatpush1.msra.mxu0 0.0
    %4867 = vmatprep.subr.mxu0 0.0
    %4868 = vmatpush1.msra.mxu0 %v4832
    %4869 = vmatprep.subr.mxu0 0.0
    %4870 = vmatpush2.msra.mxu0 0.0
    %4871 = vmatprep.subr.mxu0 0.0
    %4872 = vmatpush2.msra.mxu0 0.0
    %4873 = vmatprep.subr.mxu0 0.0
    %4874 = vmatpush2.msra.mxu0 0.0
    %4875 = vmatprep.subr.mxu0 0.0
    %4876 = vmatpush2.msra.mxu0 0.0
    %4877 = vmatprep.subr.mxu0 0.0
    %4878 = vmatpush2.msra.mxu0 0.0
    %4879 = vmatprep.subr.mxu0 0.0
    %4880 = vmatpush2.msra.mxu0 0.0
    %4881 = vmatprep.subr.mxu0 0.0
    %4882 = vmatpush2.msra.mxu0 0.0
    %4883 = vmatprep.subr.mxu0 0.0
    %4884 = vmatpush2.msra.mxu0 0.0
    %4885 = vmatprep.subr.mxu0 0.0
    %4886 = vmatpush2.msra.mxu0 0.0
    %4887 = vmatprep.subr.mxu0 0.0
    %4888 = vmatpush2.msra.mxu0 0.0
    %4889 = vmatprep.subr.mxu0 0.0
    %4890 = vmatpush2.msra.mxu0 0.0
    %4891 = vmatprep.subr.mxu0 0.0
    %4892 = vmatpush2.msra.mxu0 0.0
    %4893 = vmatprep.subr.mxu0 0.0
    %4894 = vmatpush2.msra.mxu0 0.0
    %4895 = vmatprep.subr.mxu0 0.0
    %4896 = vmatpush2.msra.mxu0 0.0
    %4897 = vmatprep.subr.mxu0 0.0
    %4898 = vmatpush2.msra.mxu0 0.0
    %4899 = vmatprep.subr.mxu0 0.0
    %4900 = vmatpush2.msra.mxu0 0.0
    %4901 = vmatprep.mubr.f32.mxu0 0.0
    %4902 = vmatmul.mubr.f32.gmra.mxu0 %v4835
    %v4903 = vpop.f32.mrf.mxu0
    %v4904 = vadd.f32 0.0, %v4903
    %v4905 = vpop.f32.mrf.mxu0
    %4906 = vdwg.mxu0
    %4907 = vrot.lane.b32.xlu0 %v3834, 96
    %v4908 = vpop.permute.xlu0 %4907
    %v4911 = vsel %vm366, %v4524, 0
    %4913 = vmatprep.subr.mxu0 0.0
    %4914 = vmatpush1.msra.mxu0 0.0
    %4915 = vmatprep.subr.mxu0 0.0
    %4916 = vmatpush1.msra.mxu0 0.0
    %4917 = vmatprep.subr.mxu0 0.0
    %4918 = vmatpush1.msra.mxu0 0.0
    %4919 = vmatprep.subr.mxu0 0.0
    %4920 = vmatpush1.msra.mxu0 0.0
    %4921 = vmatprep.subr.mxu0 0.0
    %4922 = vmatpush1.msra.mxu0 0.0
    %4923 = vmatprep.subr.mxu0 0.0
    %4924 = vmatpush1.msra.mxu0 0.0
    %4925 = vmatprep.subr.mxu0 0.0
    %4926 = vmatpush1.msra.mxu0 0.0
    %4927 = vmatprep.subr.mxu0 0.0
    %4928 = vmatpush1.msra.mxu0 0.0
    %4929 = vmatprep.subr.mxu0 0.0
    %4930 = vmatpush1.msra.mxu0 0.0
    %4931 = vmatprep.subr.mxu0 0.0
    %4932 = vmatpush1.msra.mxu0 0.0
    %4933 = vmatprep.subr.mxu0 0.0
    %4934 = vmatpush1.msra.mxu0 0.0
    %4935 = vmatprep.subr.mxu0 0.0
    %4936 = vmatpush1.msra.mxu0 0.0
    %4937 = vmatprep.subr.mxu0 0.0
    %4938 = vmatpush1.msra.mxu0 0.0
    %4939 = vmatprep.subr.mxu0 0.0
    %4940 = vmatpush1.msra.mxu0 0.0
    %4941 = vmatprep.subr.mxu0 0.0
    %4942 = vmatpush1.msra.mxu0 0.0
    %4943 = vmatprep.subr.mxu0 0.0
    %4944 = vmatpush1.msra.mxu0 %v4908
    %4945 = vmatprep.subr.mxu0 0.0
    %4946 = vmatpush2.msra.mxu0 0.0
    %4947 = vmatprep.subr.mxu0 0.0
    %4948 = vmatpush2.msra.mxu0 0.0
    %4949 = vmatprep.subr.mxu0 0.0
    %4950 = vmatpush2.msra.mxu0 0.0
    %4951 = vmatprep.subr.mxu0 0.0
    %4952 = vmatpush2.msra.mxu0 0.0
    %4953 = vmatprep.subr.mxu0 0.0
    %4954 = vmatpush2.msra.mxu0 0.0
    %4955 = vmatprep.subr.mxu0 0.0
    %4956 = vmatpush2.msra.mxu0 0.0
    %4957 = vmatprep.subr.mxu0 0.0
    %4958 = vmatpush2.msra.mxu0 0.0
    %4959 = vmatprep.subr.mxu0 0.0
    %4960 = vmatpush2.msra.mxu0 0.0
    %4961 = vmatprep.subr.mxu0 0.0
    %4962 = vmatpush2.msra.mxu0 0.0
    %4963 = vmatprep.subr.mxu0 0.0
    %4964 = vmatpush2.msra.mxu0 0.0
    %4965 = vmatprep.subr.mxu0 0.0
    %4966 = vmatpush2.msra.mxu0 0.0
    %4967 = vmatprep.subr.mxu0 0.0
    %4968 = vmatpush2.msra.mxu0 0.0
    %4969 = vmatprep.subr.mxu0 0.0
    %4970 = vmatpush2.msra.mxu0 0.0
    %4971 = vmatprep.subr.mxu0 0.0
    %4972 = vmatpush2.msra.mxu0 0.0
    %4973 = vmatprep.subr.mxu0 0.0
    %4974 = vmatpush2.msra.mxu0 0.0
    %4975 = vmatprep.subr.mxu0 0.0
    %4976 = vmatpush2.msra.mxu0 0.0
    %4977 = vmatprep.mubr.f32.mxu0 0.0
    %4978 = vmatmul.mubr.f32.gmra.mxu0 %v4911
    %v4979 = vpop.f32.mrf.mxu0
    %v4980 = vadd.f32 0.0, %v4979
    %v4981 = vpop.f32.mrf.mxu0
    %4982 = vdwg.mxu0
    %4983 = vrot.lane.b32.xlu0 %v3836, 96
    %v4984 = vpop.permute.xlu0 %4983
    %v4987 = vsel %vm366, %v4525, 0
    %4989 = vmatprep.subr.mxu0 0.0
    %4990 = vmatpush1.msra.mxu0 0.0
    %4991 = vmatprep.subr.mxu0 0.0
    %4992 = vmatpush1.msra.mxu0 0.0
    %4993 = vmatprep.subr.mxu0 0.0
    %4994 = vmatpush1.msra.mxu0 0.0
    %4995 = vmatprep.subr.mxu0 0.0
    %4996 = vmatpush1.msra.mxu0 0.0
    %4997 = vmatprep.subr.mxu0 0.0
    %4998 = vmatpush1.msra.mxu0 0.0
    %4999 = vmatprep.subr.mxu0 0.0
    %5000 = vmatpush1.msra.mxu0 0.0
    %5001 = vmatprep.subr.mxu0 0.0
    %5002 = vmatpush1.msra.mxu0 0.0
    %5003 = vmatprep.subr.mxu0 0.0
    %5004 = vmatpush1.msra.mxu0 0.0
    %5005 = vmatprep.subr.mxu0 0.0
    %5006 = vmatpush1.msra.mxu0 0.0
    %5007 = vmatprep.subr.mxu0 0.0
    %5008 = vmatpush1.msra.mxu0 0.0
    %5009 = vmatprep.subr.mxu0 0.0
    %5010 = vmatpush1.msra.mxu0 0.0
    %5011 = vmatprep.subr.mxu0 0.0
    %5012 = vmatpush1.msra.mxu0 0.0
    %5013 = vmatprep.subr.mxu0 0.0
    %5014 = vmatpush1.msra.mxu0 0.0
    %5015 = vmatprep.subr.mxu0 0.0
    %5016 = vmatpush1.msra.mxu0 0.0
    %5017 = vmatprep.subr.mxu0 0.0
    %5018 = vmatpush1.msra.mxu0 0.0
    %5019 = vmatprep.subr.mxu0 0.0
    %5020 = vmatpush1.msra.mxu0 %v4984
    %5021 = vmatprep.subr.mxu0 0.0
    %5022 = vmatpush2.msra.mxu0 0.0
    %5023 = vmatprep.subr.mxu0 0.0
    %5024 = vmatpush2.msra.mxu0 0.0
    %5025 = vmatprep.subr.mxu0 0.0
    %5026 = vmatpush2.msra.mxu0 0.0
    %5027 = vmatprep.subr.mxu0 0.0
    %5028 = vmatpush2.msra.mxu0 0.0
    %5029 = vmatprep.subr.mxu0 0.0
    %5030 = vmatpush2.msra.mxu0 0.0
    %5031 = vmatprep.subr.mxu0 0.0
    %5032 = vmatpush2.msra.mxu0 0.0
    %5033 = vmatprep.subr.mxu0 0.0
    %5034 = vmatpush2.msra.mxu0 0.0
    %5035 = vmatprep.subr.mxu0 0.0
    %5036 = vmatpush2.msra.mxu0 0.0
    %5037 = vmatprep.subr.mxu0 0.0
    %5038 = vmatpush2.msra.mxu0 0.0
    %5039 = vmatprep.subr.mxu0 0.0
    %5040 = vmatpush2.msra.mxu0 0.0
    %5041 = vmatprep.subr.mxu0 0.0
    %5042 = vmatpush2.msra.mxu0 0.0
    %5043 = vmatprep.subr.mxu0 0.0
    %5044 = vmatpush2.msra.mxu0 0.0
    %5045 = vmatprep.subr.mxu0 0.0
    %5046 = vmatpush2.msra.mxu0 0.0
    %5047 = vmatprep.subr.mxu0 0.0
    %5048 = vmatpush2.msra.mxu0 0.0
    %5049 = vmatprep.subr.mxu0 0.0
    %5050 = vmatpush2.msra.mxu0 0.0
    %5051 = vmatprep.subr.mxu0 0.0
    %5052 = vmatpush2.msra.mxu0 0.0
    %5053 = vmatprep.mubr.f32.mxu0 0.0
    %5054 = vmatmul.mubr.f32.gmra.mxu0 %v4987
    %v5055 = vpop.f32.mrf.mxu0
    %v5056 = vadd.f32 0.0, %v5055
    %v5057 = vpop.f32.mrf.mxu0
    %5058 = vdwg.mxu0
    %5059 = vrot.lane.b32.xlu0 %v3838, 96
    %v5060 = vpop.permute.xlu0 %5059
    %v5063 = vsel %vm366, %v4526, 0
    %5065 = vmatprep.subr.mxu0 0.0
    %5066 = vmatpush1.msra.mxu0 0.0
    %5067 = vmatprep.subr.mxu0 0.0
    %5068 = vmatpush1.msra.mxu0 0.0
    %5069 = vmatprep.subr.mxu0 0.0
    %5070 = vmatpush1.msra.mxu0 0.0
    %5071 = vmatprep.subr.mxu0 0.0
    %5072 = vmatpush1.msra.mxu0 0.0
    %5073 = vmatprep.subr.mxu0 0.0
    %5074 = vmatpush1.msra.mxu0 0.0
    %5075 = vmatprep.subr.mxu0 0.0
    %5076 = vmatpush1.msra.mxu0 0.0
    %5077 = vmatprep.subr.mxu0 0.0
    %5078 = vmatpush1.msra.mxu0 0.0
    %5079 = vmatprep.subr.mxu0 0.0
    %5080 = vmatpush1.msra.mxu0 0.0
    %5081 = vmatprep.subr.mxu0 0.0
    %5082 = vmatpush1.msra.mxu0 0.0
    %5083 = vmatprep.subr.mxu0 0.0
    %5084 = vmatpush1.msra.mxu0 0.0
    %5085 = vmatprep.subr.mxu0 0.0
    %5086 = vmatpush1.msra.mxu0 0.0
    %5087 = vmatprep.subr.mxu0 0.0
    %5088 = vmatpush1.msra.mxu0 0.0
    %5089 = vmatprep.subr.mxu0 0.0
    %5090 = vmatpush1.msra.mxu0 0.0
    %5091 = vmatprep.subr.mxu0 0.0
    %5092 = vmatpush1.msra.mxu0 0.0
    %5093 = vmatprep.subr.mxu0 0.0
    %5094 = vmatpush1.msra.mxu0 0.0
    %5095 = vmatprep.subr.mxu0 0.0
    %5096 = vmatpush1.msra.mxu0 %v5060
    %5097 = vmatprep.subr.mxu0 0.0
    %5098 = vmatpush2.msra.mxu0 0.0
    %5099 = vmatprep.subr.mxu0 0.0
    %5100 = vmatpush2.msra.mxu0 0.0
    %5101 = vmatprep.subr.mxu0 0.0
    %5102 = vmatpush2.msra.mxu0 0.0
    %5103 = vmatprep.subr.mxu0 0.0
    %5104 = vmatpush2.msra.mxu0 0.0
    %5105 = vmatprep.subr.mxu0 0.0
    %5106 = vmatpush2.msra.mxu0 0.0
    %5107 = vmatprep.subr.mxu0 0.0
    %5108 = vmatpush2.msra.mxu0 0.0
    %5109 = vmatprep.subr.mxu0 0.0
    %5110 = vmatpush2.msra.mxu0 0.0
    %5111 = vmatprep.subr.mxu0 0.0
    %5112 = vmatpush2.msra.mxu0 0.0
    %5113 = vmatprep.subr.mxu0 0.0
    %5114 = vmatpush2.msra.mxu0 0.0
    %5115 = vmatprep.subr.mxu0 0.0
    %5116 = vmatpush2.msra.mxu0 0.0
    %5117 = vmatprep.subr.mxu0 0.0
    %5118 = vmatpush2.msra.mxu0 0.0
    %5119 = vmatprep.subr.mxu0 0.0
    %5120 = vmatpush2.msra.mxu0 0.0
    %5121 = vmatprep.subr.mxu0 0.0
    %5122 = vmatpush2.msra.mxu0 0.0
    %5123 = vmatprep.subr.mxu0 0.0
    %5124 = vmatpush2.msra.mxu0 0.0
    %5125 = vmatprep.subr.mxu0 0.0
    %5126 = vmatpush2.msra.mxu0 0.0
    %5127 = vmatprep.subr.mxu0 0.0
    %5128 = vmatpush2.msra.mxu0 0.0
    %5129 = vmatprep.mubr.f32.mxu0 0.0
    %5130 = vmatmul.mubr.f32.gmra.mxu0 %v5063
    %v5131 = vpop.f32.mrf.mxu0
    %v5132 = vadd.f32 0.0, %v5131
    %v5133 = vpop.f32.mrf.mxu0
    %5134 = vdwg.mxu0
    %5136 = vrot.lane.b32.xlu0 %v4676, 8
    %v5137 = vpop.permute.xlu0 %5136
    %5140 = vrot.lane.b32.xlu0 %v4752, 16
    %v5141 = vpop.permute.xlu0 %5140
    %5144 = vrot.lane.b32.xlu0 %v4828, 24
    %v5145 = vpop.permute.xlu0 %5144
    %v5147 = vsel %vm366, %v4600, %v5137
    %v5148 = vsel %vm1698, %v5147, %v5141
    %v5149 = vsel %vm1700, %v5148, %v5145
    %5151 = vrot.lane.b32.xlu0 %v4980, 8
    %v5152 = vpop.permute.xlu0 %5151
    %5155 = vrot.lane.b32.xlu0 %v5056, 16
    %v5156 = vpop.permute.xlu0 %5155
    %5159 = vrot.lane.b32.xlu0 %v5132, 24
    %v5160 = vpop.permute.xlu0 %5159
    %v5162 = vsel %vm366, %v4904, %v5152
    %v5163 = vsel %vm1698, %v5162, %v5156
    %v5164 = vsel %vm1700, %v5163, %v5160
    %v5165 = vlaneseq
    %v5166 = vshrl.u32 %v5165, 7
    %v5167 = vsub.s32 3, %v5166
    %v5168 = vrot.slane %v142, %v5167
    %5169 = vrot.lane.b32.xlu0 %v3595, 32
    %v5170 = vpop.permute.xlu0 %5169
    %5171 = vrot.lane.b32.xlu0 %v3596, 32
    %v5172 = vpop.permute.xlu0 %5171
    %5173 = vrot.lane.b32.xlu0 %v3597, 32
    %v5174 = vpop.permute.xlu0 %5173
    %5175 = vrot.lane.b32.xlu0 %v3598, 32
    %v5176 = vpop.permute.xlu0 %5175
    %v5182 = vsel %vm157, %v5149, 0
    %v5185 = vsel %vm157, %v5164, 0
    %5187 = vmatprep.subr.mxu0 0.0
    %5188 = vmatpush1.msra.mxu0 0.0
    %5189 = vmatprep.subr.mxu0 0.0
    %5190 = vmatpush1.msra.mxu0 0.0
    %5191 = vmatprep.subr.mxu0 0.0
    %5192 = vmatpush1.msra.mxu0 0.0
    %5193 = vmatprep.subr.mxu0 0.0
    %5194 = vmatpush1.msra.mxu0 0.0
    %5195 = vmatprep.subr.mxu0 0.0
    %5196 = vmatpush1.msra.mxu0 0.0
    %5197 = vmatprep.subr.mxu0 0.0
    %5198 = vmatpush1.msra.mxu0 0.0
    %5199 = vmatprep.subr.mxu0 0.0
    %5200 = vmatpush1.msra.mxu0 0.0
    %5201 = vmatprep.subr.mxu0 0.0
    %5202 = vmatpush1.msra.mxu0 0.0
    %5203 = vmatprep.subr.mxu0 0.0
    %5204 = vmatpush1.msra.mxu0 0.0
    %5205 = vmatprep.subr.mxu0 0.0
    %5206 = vmatpush1.msra.mxu0 0.0
    %5207 = vmatprep.subr.mxu0 0.0
    %5208 = vmatpush1.msra.mxu0 0.0
    %5209 = vmatprep.subr.mxu0 0.0
    %5210 = vmatpush1.msra.mxu0 0.0
    %5211 = vmatprep.subr.mxu0 0.0
    %5212 = vmatpush1.msra.mxu0 %v5176
    %5213 = vmatprep.subr.mxu0 0.0
    %5214 = vmatpush1.msra.mxu0 %v5174
    %5215 = vmatprep.subr.mxu0 0.0
    %5216 = vmatpush1.msra.mxu0 %v5172
    %5217 = vmatprep.subr.mxu0 0.0
    %5218 = vmatpush1.msra.mxu0 %v5170
    %5219 = vmatprep.subr.mxu0 0.0
    %5220 = vmatpush2.msra.mxu0 0.0
    %5221 = vmatprep.subr.mxu0 0.0
    %5222 = vmatpush2.msra.mxu0 0.0
    %5223 = vmatprep.subr.mxu0 0.0
    %5224 = vmatpush2.msra.mxu0 0.0
    %5225 = vmatprep.subr.mxu0 0.0
    %5226 = vmatpush2.msra.mxu0 0.0
    %5227 = vmatprep.subr.mxu0 0.0
    %5228 = vmatpush2.msra.mxu0 0.0
    %5229 = vmatprep.subr.mxu0 0.0
    %5230 = vmatpush2.msra.mxu0 0.0
    %5231 = vmatprep.subr.mxu0 0.0
    %5232 = vmatpush2.msra.mxu0 0.0
    %5233 = vmatprep.subr.mxu0 0.0
    %5234 = vmatpush2.msra.mxu0 0.0
    %5235 = vmatprep.subr.mxu0 0.0
    %5236 = vmatpush2.msra.mxu0 0.0
    %5237 = vmatprep.subr.mxu0 0.0
    %5238 = vmatpush2.msra.mxu0 0.0
    %5239 = vmatprep.subr.mxu0 0.0
    %5240 = vmatpush2.msra.mxu0 0.0
    %5241 = vmatprep.subr.mxu0 0.0
    %5242 = vmatpush2.msra.mxu0 0.0
    %5243 = vmatprep.subr.mxu0 0.0
    %5244 = vmatpush2.msra.mxu0 0.0
    %5245 = vmatprep.subr.mxu0 0.0
    %5246 = vmatpush2.msra.mxu0 0.0
    %5247 = vmatprep.subr.mxu0 0.0
    %5248 = vmatpush2.msra.mxu0 0.0
    %5249 = vmatprep.subr.mxu0 0.0
    %5250 = vmatpush2.msra.mxu0 0.0
    %5251 = vmatprep.mubr.f32.mxu0 0.0
    %5252 = vmatmul.mubr.f32.gmra.mxu0 %v5182
    %v5253 = vpop.f32.mrf.mxu0
    %v5254 = vadd.f32 %v5168, %v5253
    %v5255 = vpop.f32.mrf.mxu0
    %5256 = vmatprep.mubr.f32.mxu0 0.0
    %5257 = vmatmul.mubr.f32.gmra.mxu0 %v5185
    %v5258 = vpop.f32.mrf.mxu0
    %v5259 = vadd.f32 %v5168, %v5258
    %v5260 = vpop.f32.mrf.mxu0
    %5261 = vdwg.mxu0
    %v5262 = vadd.f32 %v3540, %v5254
    %v5263 = vadd.f32 %v3541, %v5259
    %v5264 = vsel %vm157, %v5262, 0.0
    %5265 = vadd.xlane.f32.xlu0 %v5264
    %v5266 = vpop.xlane.xlu0 %5265
    %v5267 = vsel %vm157, %v5263, 0.0
    %5268 = vadd.xlane.f32.xlu0 %v5267
    %v5269 = vpop.xlane.xlu0 %5268
    %v5270 = vmul.f32 %v5266, %v164
    %v5271 = vmul.f32 %v5269, %v164
    %v5272 = vsub.f32 %v5262, %v5270
    %v5273 = vsub.f32 %v5263, %v5271
    %v5274 = vmul.f32 %v5272, %v5272
    %v5275 = vmul.f32 %v5273, %v5273
    %v5276 = vsel %vm157, %v5274, 0.0
    %5277 = vadd.xlane.f32.xlu0 %v5276
    %v5278 = vpop.xlane.xlu0 %5277
    %v5279 = vsel %vm157, %v5275, 0.0
    %5280 = vadd.xlane.f32.xlu0 %v5279
    %v5281 = vpop.xlane.xlu0 %5280
    %v5282 = vmul.f32 %v5278, 0.032258064
    %v5283 = vmul.f32 %v5281, 0.032258064
    %v5284 = vrsqrt.pop %v5282
    %v5285 = vmul.f32 %v5282, %v5284
    %vm5286 = vcmp.eq.f32.partialorder %v5282, inf
    %v5287 = vsel %vm5286, %v5282, %v5285
    %vm5288 = vcmp.eq.f32.partialorder %v5282, 0.0
    %v5289 = vand.u32 %v5282, 2147483648
    %v5290 = vsel %vm5288, %v5289, %v5287
    %v5291 = vrsqrt.pop %v5283
    %v5292 = vmul.f32 %v5283, %v5291
    %vm5293 = vcmp.eq.f32.partialorder %v5283, inf
    %v5294 = vsel %vm5293, %v5283, %v5292
    %vm5295 = vcmp.eq.f32.partialorder %v5283, 0.0
    %v5296 = vand.u32 %v5283, 2147483648
    %v5297 = vsel %vm5295, %v5296, %v5294
    %v5298 = vadd.f32 %v5290, 1e-06
    %v5299 = vadd.f32 %v5297, 1e-06
    %v5300 = vrcp.pop %v5298
    %v5301 = vmul.f32 %v5272, %v5300
    %v5302 = vrcp.pop %v5299
    %v5303 = vmul.f32 %v5273, %v5302
    %v5304 = vlaneseq
    %v5305 = vshrl.u32 %v5304, 7
    %v5306 = vsub.s32 6, %v5305
    %v5307 = vrot.slane %v140, %v5306
    %v5308 = vmul.f32 %v5307, %v5301
    %v5309 = vmul.f32 %v5307, %v5303
    %v5310 = vlaneseq
    %v5311 = vshrl.u32 %v5310, 7
    %v5312 = vsub.s32 7, %v5311
    %v5313 = vrot.slane %v140, %v5312
    %v5314 = vadd.f32 %v5308, %v5313
    %v5315 = vadd.f32 %v5309, %v5313
    %v5316 = vpack.c.bf16 %v5315, %v5314
    %v5317 = vld [vmem:[#allocation13] sm:$0xff]
    %v5318 = vld [vmem:[#allocation13 + $0x8] sm:$0xff]
    %v5319 = vld [vmem:[#allocation13 + $0x10] sm:$0xff]
    %v5320 = vld [vmem:[#allocation13 + $0x18] sm:$0xff]
    %v5321 = vld [vmem:[#allocation13 + $0x20] sm:$0xff]
    %v5322 = vld [vmem:[#allocation13 + $0x28] sm:$0xff]
    %v5323 = vld [vmem:[#allocation13 + $0x30] sm:$0xff]
    %v5324 = vld [vmem:[#allocation13 + $0x38] sm:$0xff]
    %v5325 = vld [vmem:[#allocation13 + $0x40] sm:$0xff]
    %v5326 = vld [vmem:[#allocation13 + $0x48] sm:$0xff]
    %v5327 = vld [vmem:[#allocation13 + $0x50] sm:$0xff]
    %v5328 = vld [vmem:[#allocation13 + $0x58] sm:$0xff]
    %v5329 = vld [vmem:[#allocation13 + $0x60] sm:$0xff]
    %v5330 = vld [vmem:[#allocation13 + $0x68] sm:$0xff]
    %v5331 = vld [vmem:[#allocation13 + $0x70] sm:$0xff]
    %v5332 = vld [vmem:[#allocation13 + $0x78] sm:$0xff]
    %v5333 = vld [vmem:[#allocation13 + $0x80] sm:$0xff]
    %v5334 = vld [vmem:[#allocation13 + $0x88] sm:$0xff]
    %v5335 = vld [vmem:[#allocation13 + $0x90] sm:$0xff]
    %v5336 = vld [vmem:[#allocation13 + $0x98] sm:$0xff]
    %v5337 = vld [vmem:[#allocation13 + $0xa0] sm:$0xff]
    %v5338 = vld [vmem:[#allocation13 + $0xa8] sm:$0xff]
    %v5339 = vld [vmem:[#allocation13 + $0xb0] sm:$0xff]
    %v5340 = vld [vmem:[#allocation13 + $0xb8] sm:$0xff]
    %v5341 = vld [vmem:[#allocation13 + $0xc0] sm:$0xff]
    %v5342 = vld [vmem:[#allocation13 + $0xc8] sm:$0xff]
    %v5343 = vld [vmem:[#allocation13 + $0xd0] sm:$0xff]
    %v5344 = vld [vmem:[#allocation13 + $0xd8] sm:$0xff]
    %v5345 = vld [vmem:[#allocation13 + $0xe0] sm:$0xff]
    %v5346 = vld [vmem:[#allocation13 + $0xe8] sm:$0xff]
    %v5347 = vld [vmem:[#allocation13 + $0xf0] sm:$0xff]
    %v5348 = vld [vmem:[#allocation13 + $0xf8] sm:$0xff]
    %v5349 = vld [vmem:[#allocation13 + $0x100] sm:$0x11]
    %v5350 = vld [vmem:[#allocation13 + $0x108] sm:$0x11]
    %v5351 = vld [vmem:[#allocation13 + $0x110] sm:$0x11]
    %v5352 = vld [vmem:[#allocation13 + $0x118] sm:$0x11]
    %v5353 = vld [vmem:[#allocation13 + $0x120] sm:$0x11]
    %v5354 = vld [vmem:[#allocation13 + $0x128] sm:$0x11]
    %v5355 = vld [vmem:[#allocation13 + $0x130] sm:$0x11]
    %v5356 = vld [vmem:[#allocation13 + $0x138] sm:$0x11]
    %v5357 = vunpack.c.l.bf16 %v5349
    %v5358 = vunpack.c.h.bf16 %v5349
    %v5359 = vunpack.c.l.bf16 %v5350
    %v5360 = vunpack.c.h.bf16 %v5350
    %v5361 = vunpack.c.l.bf16 %v5351
    %v5362 = vunpack.c.h.bf16 %v5351
    %v5363 = vunpack.c.l.bf16 %v5352
    %v5364 = vunpack.c.h.bf16 %v5352
    %v5365 = vunpack.c.l.bf16 %v5353
    %v5366 = vunpack.c.h.bf16 %v5353
    %v5367 = vunpack.c.l.bf16 %v5354
    %v5368 = vunpack.c.h.bf16 %v5354
    %v5369 = vunpack.c.l.bf16 %v5355
    %v5370 = vunpack.c.h.bf16 %v5355
    %v5371 = vunpack.c.l.bf16 %v5356
    %v5372 = vunpack.c.h.bf16 %v5356
    %v5373 = vlaneseq
    %v5374 = vshrl.u32 %v5373, 7
    %v5375 = vsub.s32 0, %v5374
    %v5376 = vrot.slane %v5357, %v5375
    %v5377 = vlaneseq
    %v5378 = vshrl.u32 %v5377, 7
    %v5379 = vsub.s32 0, %v5378
    %v5380 = vrot.slane %v5358, %v5379
    %v5381 = vlaneseq
    %v5382 = vshrl.u32 %v5381, 7
    %v5383 = vsub.s32 0, %v5382
    %v5384 = vrot.slane %v5359, %v5383
    %v5385 = vlaneseq
    %v5386 = vshrl.u32 %v5385, 7
    %v5387 = vsub.s32 0, %v5386
    %v5388 = vrot.slane %v5360, %v5387
    %v5389 = vlaneseq
    %v5390 = vshrl.u32 %v5389, 7
    %v5391 = vsub.s32 0, %v5390
    %v5392 = vrot.slane %v5361, %v5391
    %v5393 = vlaneseq
    %v5394 = vshrl.u32 %v5393, 7
    %v5395 = vsub.s32 0, %v5394
    %v5396 = vrot.slane %v5362, %v5395
    %v5397 = vlaneseq
    %v5398 = vshrl.u32 %v5397, 7
    %v5399 = vsub.s32 0, %v5398
    %v5400 = vrot.slane %v5363, %v5399
    %v5401 = vlaneseq
    %v5402 = vshrl.u32 %v5401, 7
    %v5403 = vsub.s32 0, %v5402
    %v5404 = vrot.slane %v5364, %v5403
    %v5405 = vlaneseq
    %v5406 = vshrl.u32 %v5405, 7
    %v5407 = vsub.s32 0, %v5406
    %v5408 = vrot.slane %v5365, %v5407
    %v5409 = vlaneseq
    %v5410 = vshrl.u32 %v5409, 7
    %v5411 = vsub.s32 0, %v5410
    %v5412 = vrot.slane %v5366, %v5411
    %v5413 = vlaneseq
    %v5414 = vshrl.u32 %v5413, 7
    %v5415 = vsub.s32 0, %v5414
    %v5416 = vrot.slane %v5367, %v5415
    %v5417 = vlaneseq
    %v5418 = vshrl.u32 %v5417, 7
    %v5419 = vsub.s32 0, %v5418
    %v5420 = vrot.slane %v5368, %v5419
    %v5421 = vlaneseq
    %v5422 = vshrl.u32 %v5421, 7
    %v5423 = vsub.s32 0, %v5422
    %v5424 = vrot.slane %v5369, %v5423
    %v5425 = vlaneseq
    %v5426 = vshrl.u32 %v5425, 7
    %v5427 = vsub.s32 0, %v5426
    %v5428 = vrot.slane %v5370, %v5427
    %v5429 = vlaneseq
    %v5430 = vshrl.u32 %v5429, 7
    %v5431 = vsub.s32 0, %v5430
    %v5432 = vrot.slane %v5371, %v5431
    %v5433 = vlaneseq
    %v5434 = vshrl.u32 %v5433, 7
    %v5435 = vsub.s32 0, %v5434
    %v5436 = vrot.slane %v5372, %v5435
    %v5469 = vunpack.c.l.b16 %v5317
    %v5470 = vunpack.c.h.b16 %v5317
    %v5471 = vunpack.c.l.b16 %v5318
    %v5472 = vunpack.c.h.b16 %v5318
    %v5473 = vunpack.c.l.b16 %v5319
    %v5474 = vunpack.c.h.b16 %v5319
    %v5475 = vunpack.c.l.b16 %v5320
    %v5476 = vunpack.c.h.b16 %v5320
    %v5477 = vunpack.c.l.b16 %v5321
    %v5478 = vunpack.c.h.b16 %v5321
    %v5479 = vunpack.c.l.b16 %v5322
    %v5480 = vunpack.c.h.b16 %v5322
    %v5481 = vunpack.c.l.b16 %v5323
    %v5482 = vunpack.c.h.b16 %v5323
    %v5483 = vunpack.c.l.b16 %v5324
    %v5484 = vunpack.c.h.b16 %v5324
    %v5485 = vunpack.c.l.b16 %v5325
    %v5486 = vunpack.c.h.b16 %v5325
    %v5487 = vunpack.c.l.b16 %v5326
    %v5488 = vunpack.c.h.b16 %v5326
    %v5489 = vunpack.c.l.b16 %v5327
    %v5490 = vunpack.c.h.b16 %v5327
    %v5491 = vunpack.c.l.b16 %v5328
    %v5492 = vunpack.c.h.b16 %v5328
    %v5493 = vunpack.c.l.b16 %v5329
    %v5494 = vunpack.c.h.b16 %v5329
    %v5495 = vunpack.c.l.b16 %v5330
    %v5496 = vunpack.c.h.b16 %v5330
    %v5497 = vunpack.c.l.b16 %v5331
    %v5498 = vunpack.c.h.b16 %v5331
    %v5499 = vunpack.c.l.b16 %v5332
    %v5500 = vunpack.c.h.b16 %v5332
    %v5501 = vunpack.c.l.b16 %v5333
    %v5502 = vunpack.c.h.b16 %v5333
    %v5503 = vunpack.c.l.b16 %v5334
    %v5504 = vunpack.c.h.b16 %v5334
    %v5505 = vunpack.c.l.b16 %v5335
    %v5506 = vunpack.c.h.b16 %v5335
    %v5507 = vunpack.c.l.b16 %v5336
    %v5508 = vunpack.c.h.b16 %v5336
    %v5509 = vunpack.c.l.b16 %v5337
    %v5510 = vunpack.c.h.b16 %v5337
    %v5511 = vunpack.c.l.b16 %v5338
    %v5512 = vunpack.c.h.b16 %v5338
    %v5513 = vunpack.c.l.b16 %v5339
    %v5514 = vunpack.c.h.b16 %v5339
    %v5515 = vunpack.c.l.b16 %v5340
    %v5516 = vunpack.c.h.b16 %v5340
    %v5517 = vunpack.c.l.b16 %v5341
    %v5518 = vunpack.c.h.b16 %v5341
    %v5519 = vunpack.c.l.b16 %v5342
    %v5520 = vunpack.c.h.b16 %v5342
    %v5521 = vunpack.c.l.b16 %v5343
    %v5522 = vunpack.c.h.b16 %v5343
    %v5523 = vunpack.c.l.b16 %v5344
    %v5524 = vunpack.c.h.b16 %v5344
    %v5525 = vunpack.c.l.b16 %v5345
    %v5526 = vunpack.c.h.b16 %v5345
    %v5527 = vunpack.c.l.b16 %v5346
    %v5528 = vunpack.c.h.b16 %v5346
    %v5529 = vunpack.c.l.b16 %v5347
    %v5530 = vunpack.c.h.b16 %v5347
    %v5531 = vunpack.c.l.b16 %v5348
    %v5532 = vunpack.c.h.b16 %v5348
    %v5533 = vpack.c.b16 %v5485, %v5469
    %v5534 = vpack.c.b16 %v5486, %v5470
    %v5535 = vpack.c.b16 %v5487, %v5471
    %v5536 = vpack.c.b16 %v5488, %v5472
    %v5537 = vpack.c.b16 %v5489, %v5473
    %v5538 = vpack.c.b16 %v5490, %v5474
    %v5539 = vpack.c.b16 %v5491, %v5475
    %v5540 = vpack.c.b16 %v5492, %v5476
    %v5541 = vpack.c.b16 %v5493, %v5477
    %v5542 = vpack.c.b16 %v5494, %v5478
    %v5543 = vpack.c.b16 %v5495, %v5479
    %v5544 = vpack.c.b16 %v5496, %v5480
    %v5545 = vpack.c.b16 %v5497, %v5481
    %v5546 = vpack.c.b16 %v5498, %v5482
    %v5547 = vpack.c.b16 %v5499, %v5483
    %v5548 = vpack.c.b16 %v5500, %v5484
    %v5549 = vpack.c.b16 %v5517, %v5501
    %v5550 = vpack.c.b16 %v5518, %v5502
    %v5551 = vpack.c.b16 %v5519, %v5503
    %v5552 = vpack.c.b16 %v5520, %v5504
    %v5553 = vpack.c.b16 %v5521, %v5505
    %v5554 = vpack.c.b16 %v5522, %v5506
    %v5555 = vpack.c.b16 %v5523, %v5507
    %v5556 = vpack.c.b16 %v5524, %v5508
    %v5557 = vpack.c.b16 %v5525, %v5509
    %v5558 = vpack.c.b16 %v5526, %v5510
    %v5559 = vpack.c.b16 %v5527, %v5511
    %v5560 = vpack.c.b16 %v5528, %v5512
    %v5561 = vpack.c.b16 %v5529, %v5513
    %v5562 = vpack.c.b16 %v5530, %v5514
    %v5563 = vpack.c.b16 %v5531, %v5515
    %v5564 = vpack.c.b16 %v5532, %v5516
    %v5598 = vsel %vm157, %v5316, 0
    %5600 = vmatprep.subr.bf16.mxu0 0
    %5601 = vmatpush1.bf16.msra.mxu0 0
    %5602 = vmatprep.subr.bf16.mxu0 0
    %5603 = vmatpush1.bf16.msra.mxu0 0
    %5604 = vmatprep.subr.bf16.mxu0 0
    %5605 = vmatpush1.bf16.msra.mxu0 0
    %5606 = vmatprep.subr.bf16.mxu0 0
    %5607 = vmatpush1.bf16.msra.mxu0 0
    %5608 = vmatprep.subr.bf16.mxu0 0
    %5609 = vmatpush1.bf16.msra.mxu0 0
    %5610 = vmatprep.subr.bf16.mxu0 0
    %5611 = vmatpush1.bf16.msra.mxu0 0
    %5612 = vmatprep.subr.bf16.mxu0 %v5550
    %5613 = vmatpush1.bf16.msra.mxu0 %v5549
    %5614 = vmatprep.subr.bf16.mxu0 %v5534
    %5615 = vmatpush1.bf16.msra.mxu0 %v5533
    %5616 = vmatprep.subr.bf16.mxu0 0
    %5617 = vmatpush2.bf16.msra.mxu0 0
    %5618 = vmatprep.subr.bf16.mxu0 0
    %5619 = vmatpush2.bf16.msra.mxu0 0
    %5620 = vmatprep.subr.bf16.mxu0 0
    %5621 = vmatpush2.bf16.msra.mxu0 0
    %5622 = vmatprep.subr.bf16.mxu0 0
    %5623 = vmatpush2.bf16.msra.mxu0 0
    %5624 = vmatprep.subr.bf16.mxu0 0
    %5625 = vmatpush2.bf16.msra.mxu0 0
    %5626 = vmatprep.subr.bf16.mxu0 0
    %5627 = vmatpush2.bf16.msra.mxu0 0
    %5628 = vmatprep.subr.bf16.mxu0 0
    %5629 = vmatpush2.bf16.msra.mxu0 0
    %5630 = vmatprep.subr.bf16.mxu0 0
    %5631 = vmatpush2.bf16.msra.mxu0 0
    %5632 = vmatprep.mubr.bf16.mxu0 0
    %5633 = vmatmul.mubr.bf16.gmra.mxu0 %v5598
    %v5634 = vpop.f32.mrf.mxu0
    %v5635 = vadd.f32 %v5376, %v5634
    %v5636 = vpop.f32.mrf.mxu0
    %v5637 = vadd.f32 %v5380, %v5636
    %v5638 = vpop.f32.mrf.mxu0
    %v5639 = vadd.f32 %v5376, %v5638
    %v5640 = vpop.f32.mrf.mxu0
    %v5641 = vadd.f32 %v5380, %v5640
    %5642 = vdwg.mxu0
    %5643 = vmatprep.subr.bf16.mxu0 0
    %5644 = vmatpush1.bf16.msra.mxu0 0
    %5645 = vmatprep.subr.bf16.mxu0 0
    %5646 = vmatpush1.bf16.msra.mxu0 0
    %5647 = vmatprep.subr.bf16.mxu0 0
    %5648 = vmatpush1.bf16.msra.mxu0 0
    %5649 = vmatprep.subr.bf16.mxu0 0
    %5650 = vmatpush1.bf16.msra.mxu0 0
    %5651 = vmatprep.subr.bf16.mxu0 0
    %5652 = vmatpush1.bf16.msra.mxu0 0
    %5653 = vmatprep.subr.bf16.mxu0 0
    %5654 = vmatpush1.bf16.msra.mxu0 0
    %5655 = vmatprep.subr.bf16.mxu0 %v5552
    %5656 = vmatpush1.bf16.msra.mxu0 %v5551
    %5657 = vmatprep.subr.bf16.mxu0 %v5536
    %5658 = vmatpush1.bf16.msra.mxu0 %v5535
    %5659 = vmatprep.subr.bf16.mxu0 0
    %5660 = vmatpush2.bf16.msra.mxu0 0
    %5661 = vmatprep.subr.bf16.mxu0 0
    %5662 = vmatpush2.bf16.msra.mxu0 0
    %5663 = vmatprep.subr.bf16.mxu0 0
    %5664 = vmatpush2.bf16.msra.mxu0 0
    %5665 = vmatprep.subr.bf16.mxu0 0
    %5666 = vmatpush2.bf16.msra.mxu0 0
    %5667 = vmatprep.subr.bf16.mxu0 0
    %5668 = vmatpush2.bf16.msra.mxu0 0
    %5669 = vmatprep.subr.bf16.mxu0 0
    %5670 = vmatpush2.bf16.msra.mxu0 0
    %5671 = vmatprep.subr.bf16.mxu0 0
    %5672 = vmatpush2.bf16.msra.mxu0 0
    %5673 = vmatprep.subr.bf16.mxu0 0
    %5674 = vmatpush2.bf16.msra.mxu0 0
    %5675 = vmatprep.mubr.bf16.mxu0 0
    %5676 = vmatmul.mubr.bf16.gmra.mxu0 %v5598
    %v5677 = vpop.f32.mrf.mxu0
    %v5678 = vadd.f32 %v5384, %v5677
    %v5679 = vpop.f32.mrf.mxu0
    %v5680 = vadd.f32 %v5388, %v5679
    %v5681 = vpop.f32.mrf.mxu0
    %v5682 = vadd.f32 %v5384, %v5681
    %v5683 = vpop.f32.mrf.mxu0
    %v5684 = vadd.f32 %v5388, %v5683
    %5685 = vdwg.mxu0
    %5686 = vmatprep.subr.bf16.mxu0 0
    %5687 = vmatpush1.bf16.msra.mxu0 0
    %5688 = vmatprep.subr.bf16.mxu0 0
    %5689 = vmatpush1.bf16.msra.mxu0 0
    %5690 = vmatprep.subr.bf16.mxu0 0
    %5691 = vmatpush1.bf16.msra.mxu0 0
    %5692 = vmatprep.subr.bf16.mxu0 0
    %5693 = vmatpush1.bf16.msra.mxu0 0
    %5694 = vmatprep.subr.bf16.mxu0 0
    %5695 = vmatpush1.bf16.msra.mxu0 0
    %5696 = vmatprep.subr.bf16.mxu0 0
    %5697 = vmatpush1.bf16.msra.mxu0 0
    %5698 = vmatprep.subr.bf16.mxu0 %v5554
    %5699 = vmatpush1.bf16.msra.mxu0 %v5553
    %5700 = vmatprep.subr.bf16.mxu0 %v5538
    %5701 = vmatpush1.bf16.msra.mxu0 %v5537
    %5702 = vmatprep.subr.bf16.mxu0 0
    %5703 = vmatpush2.bf16.msra.mxu0 0
    %5704 = vmatprep.subr.bf16.mxu0 0
    %5705 = vmatpush2.bf16.msra.mxu0 0
    %5706 = vmatprep.subr.bf16.mxu0 0
    %5707 = vmatpush2.bf16.msra.mxu0 0
    %5708 = vmatprep.subr.bf16.mxu0 0
    %5709 = vmatpush2.bf16.msra.mxu0 0
    %5710 = vmatprep.subr.bf16.mxu0 0
    %5711 = vmatpush2.bf16.msra.mxu0 0
    %5712 = vmatprep.subr.bf16.mxu0 0
    %5713 = vmatpush2.bf16.msra.mxu0 0
    %5714 = vmatprep.subr.bf16.mxu0 0
    %5715 = vmatpush2.bf16.msra.mxu0 0
    %5716 = vmatprep.subr.bf16.mxu0 0
    %5717 = vmatpush2.bf16.msra.mxu0 0
    %5718 = vmatprep.mubr.bf16.mxu0 0
    %5719 = vmatmul.mubr.bf16.gmra.mxu0 %v5598
    %v5720 = vpop.f32.mrf.mxu0
    %v5721 = vadd.f32 %v5392, %v5720
    %v5722 = vpop.f32.mrf.mxu0
    %v5723 = vadd.f32 %v5396, %v5722
    %v5724 = vpop.f32.mrf.mxu0
    %v5725 = vadd.f32 %v5392, %v5724
    %v5726 = vpop.f32.mrf.mxu0
    %v5727 = vadd.f32 %v5396, %v5726
    %5728 = vdwg.mxu0
    %5729 = vmatprep.subr.bf16.mxu0 0
    %5730 = vmatpush1.bf16.msra.mxu0 0
    %5731 = vmatprep.subr.bf16.mxu0 0
    %5732 = vmatpush1.bf16.msra.mxu0 0
    %5733 = vmatprep.subr.bf16.mxu0 0
    %5734 = vmatpush1.bf16.msra.mxu0 0
    %5735 = vmatprep.subr.bf16.mxu0 0
    %5736 = vmatpush1.bf16.msra.mxu0 0
    %5737 = vmatprep.subr.bf16.mxu0 0
    %5738 = vmatpush1.bf16.msra.mxu0 0
    %5739 = vmatprep.subr.bf16.mxu0 0
    %5740 = vmatpush1.bf16.msra.mxu0 0
    %5741 = vmatprep.subr.bf16.mxu0 %v5556
    %5742 = vmatpush1.bf16.msra.mxu0 %v5555
    %5743 = vmatprep.subr.bf16.mxu0 %v5540
    %5744 = vmatpush1.bf16.msra.mxu0 %v5539
    %5745 = vmatprep.subr.bf16.mxu0 0
    %5746 = vmatpush2.bf16.msra.mxu0 0
    %5747 = vmatprep.subr.bf16.mxu0 0
    %5748 = vmatpush2.bf16.msra.mxu0 0
    %5749 = vmatprep.subr.bf16.mxu0 0
    %5750 = vmatpush2.bf16.msra.mxu0 0
    %5751 = vmatprep.subr.bf16.mxu0 0
    %5752 = vmatpush2.bf16.msra.mxu0 0
    %5753 = vmatprep.subr.bf16.mxu0 0
    %5754 = vmatpush2.bf16.msra.mxu0 0
    %5755 = vmatprep.subr.bf16.mxu0 0
    %5756 = vmatpush2.bf16.msra.mxu0 0
    %5757 = vmatprep.subr.bf16.mxu0 0
    %5758 = vmatpush2.bf16.msra.mxu0 0
    %5759 = vmatprep.subr.bf16.mxu0 0
    %5760 = vmatpush2.bf16.msra.mxu0 0
    %5761 = vmatprep.mubr.bf16.mxu0 0
    %5762 = vmatmul.mubr.bf16.gmra.mxu0 %v5598
    %v5763 = vpop.f32.mrf.mxu0
    %v5764 = vadd.f32 %v5400, %v5763
    %v5765 = vpop.f32.mrf.mxu0
    %v5766 = vadd.f32 %v5404, %v5765
    %v5767 = vpop.f32.mrf.mxu0
    %v5768 = vadd.f32 %v5400, %v5767
    %v5769 = vpop.f32.mrf.mxu0
    %v5770 = vadd.f32 %v5404, %v5769
    %5771 = vdwg.mxu0
    %5772 = vmatprep.subr.bf16.mxu0 0
    %5773 = vmatpush1.bf16.msra.mxu0 0
    %5774 = vmatprep.subr.bf16.mxu0 0
    %5775 = vmatpush1.bf16.msra.mxu0 0
    %5776 = vmatprep.subr.bf16.mxu0 0
    %5777 = vmatpush1.bf16.msra.mxu0 0
    %5778 = vmatprep.subr.bf16.mxu0 0
    %5779 = vmatpush1.bf16.msra.mxu0 0
    %5780 = vmatprep.subr.bf16.mxu0 0
    %5781 = vmatpush1.bf16.msra.mxu0 0
    %5782 = vmatprep.subr.bf16.mxu0 0
    %5783 = vmatpush1.bf16.msra.mxu0 0
    %5784 = vmatprep.subr.bf16.mxu0 %v5558
    %5785 = vmatpush1.bf16.msra.mxu0 %v5557
    %5786 = vmatprep.subr.bf16.mxu0 %v5542
    %5787 = vmatpush1.bf16.msra.mxu0 %v5541
    %5788 = vmatprep.subr.bf16.mxu0 0
    %5789 = vmatpush2.bf16.msra.mxu0 0
    %5790 = vmatprep.subr.bf16.mxu0 0
    %5791 = vmatpush2.bf16.msra.mxu0 0
    %5792 = vmatprep.subr.bf16.mxu0 0
    %5793 = vmatpush2.bf16.msra.mxu0 0
    %5794 = vmatprep.subr.bf16.mxu0 0
    %5795 = vmatpush2.bf16.msra.mxu0 0
    %5796 = vmatprep.subr.bf16.mxu0 0
    %5797 = vmatpush2.bf16.msra.mxu0 0
    %5798 = vmatprep.subr.bf16.mxu0 0
    %5799 = vmatpush2.bf16.msra.mxu0 0
    %5800 = vmatprep.subr.bf16.mxu0 0
    %5801 = vmatpush2.bf16.msra.mxu0 0
    %5802 = vmatprep.subr.bf16.mxu0 0
    %5803 = vmatpush2.bf16.msra.mxu0 0
    %5804 = vmatprep.mubr.bf16.mxu0 0
    %5805 = vmatmul.mubr.bf16.gmra.mxu0 %v5598
    %v5806 = vpop.f32.mrf.mxu0
    %v5807 = vadd.f32 %v5408, %v5806
    %v5808 = vpop.f32.mrf.mxu0
    %v5809 = vadd.f32 %v5412, %v5808
    %v5810 = vpop.f32.mrf.mxu0
    %v5811 = vadd.f32 %v5408, %v5810
    %v5812 = vpop.f32.mrf.mxu0
    %v5813 = vadd.f32 %v5412, %v5812
    %5814 = vdwg.mxu0
    %5815 = vmatprep.subr.bf16.mxu0 0
    %5816 = vmatpush1.bf16.msra.mxu0 0
    %5817 = vmatprep.subr.bf16.mxu0 0
    %5818 = vmatpush1.bf16.msra.mxu0 0
    %5819 = vmatprep.subr.bf16.mxu0 0
    %5820 = vmatpush1.bf16.msra.mxu0 0
    %5821 = vmatprep.subr.bf16.mxu0 0
    %5822 = vmatpush1.bf16.msra.mxu0 0
    %5823 = vmatprep.subr.bf16.mxu0 0
    %5824 = vmatpush1.bf16.msra.mxu0 0
    %5825 = vmatprep.subr.bf16.mxu0 0
    %5826 = vmatpush1.bf16.msra.mxu0 0
    %5827 = vmatprep.subr.bf16.mxu0 %v5560
    %5828 = vmatpush1.bf16.msra.mxu0 %v5559
    %5829 = vmatprep.subr.bf16.mxu0 %v5544
    %5830 = vmatpush1.bf16.msra.mxu0 %v5543
    %5831 = vmatprep.subr.bf16.mxu0 0
    %5832 = vmatpush2.bf16.msra.mxu0 0
    %5833 = vmatprep.subr.bf16.mxu0 0
    %5834 = vmatpush2.bf16.msra.mxu0 0
    %5835 = vmatprep.subr.bf16.mxu0 0
    %5836 = vmatpush2.bf16.msra.mxu0 0
    %5837 = vmatprep.subr.bf16.mxu0 0
    %5838 = vmatpush2.bf16.msra.mxu0 0
    %5839 = vmatprep.subr.bf16.mxu0 0
    %5840 = vmatpush2.bf16.msra.mxu0 0
    %5841 = vmatprep.subr.bf16.mxu0 0
    %5842 = vmatpush2.bf16.msra.mxu0 0
    %5843 = vmatprep.subr.bf16.mxu0 0
    %5844 = vmatpush2.bf16.msra.mxu0 0
    %5845 = vmatprep.subr.bf16.mxu0 0
    %5846 = vmatpush2.bf16.msra.mxu0 0
    %5847 = vmatprep.mubr.bf16.mxu0 0
    %5848 = vmatmul.mubr.bf16.gmra.mxu0 %v5598
    %v5849 = vpop.f32.mrf.mxu0
    %v5850 = vadd.f32 %v5416, %v5849
    %v5851 = vpop.f32.mrf.mxu0
    %v5852 = vadd.f32 %v5420, %v5851
    %v5853 = vpop.f32.mrf.mxu0
    %v5854 = vadd.f32 %v5416, %v5853
    %v5855 = vpop.f32.mrf.mxu0
    %v5856 = vadd.f32 %v5420, %v5855
    %5857 = vdwg.mxu0
    %5858 = vmatprep.subr.bf16.mxu0 0
    %5859 = vmatpush1.bf16.msra.mxu0 0
    %5860 = vmatprep.subr.bf16.mxu0 0
    %5861 = vmatpush1.bf16.msra.mxu0 0
    %5862 = vmatprep.subr.bf16.mxu0 0
    %5863 = vmatpush1.bf16.msra.mxu0 0
    %5864 = vmatprep.subr.bf16.mxu0 0
    %5865 = vmatpush1.bf16.msra.mxu0 0
    %5866 = vmatprep.subr.bf16.mxu0 0
    %5867 = vmatpush1.bf16.msra.mxu0 0
    %5868 = vmatprep.subr.bf16.mxu0 0
    %5869 = vmatpush1.bf16.msra.mxu0 0
    %5870 = vmatprep.subr.bf16.mxu0 %v5562
    %5871 = vmatpush1.bf16.msra.mxu0 %v5561
    %5872 = vmatprep.subr.bf16.mxu0 %v5546
    %5873 = vmatpush1.bf16.msra.mxu0 %v5545
    %5874 = vmatprep.subr.bf16.mxu0 0
    %5875 = vmatpush2.bf16.msra.mxu0 0
    %5876 = vmatprep.subr.bf16.mxu0 0
    %5877 = vmatpush2.bf16.msra.mxu0 0
    %5878 = vmatprep.subr.bf16.mxu0 0
    %5879 = vmatpush2.bf16.msra.mxu0 0
    %5880 = vmatprep.subr.bf16.mxu0 0
    %5881 = vmatpush2.bf16.msra.mxu0 0
    %5882 = vmatprep.subr.bf16.mxu0 0
    %5883 = vmatpush2.bf16.msra.mxu0 0
    %5884 = vmatprep.subr.bf16.mxu0 0
    %5885 = vmatpush2.bf16.msra.mxu0 0
    %5886 = vmatprep.subr.bf16.mxu0 0
    %5887 = vmatpush2.bf16.msra.mxu0 0
    %5888 = vmatprep.subr.bf16.mxu0 0
    %5889 = vmatpush2.bf16.msra.mxu0 0
    %5890 = vmatprep.mubr.bf16.mxu0 0
    %5891 = vmatmul.mubr.bf16.gmra.mxu0 %v5598
    %v5892 = vpop.f32.mrf.mxu0
    %v5893 = vadd.f32 %v5424, %v5892
    %v5894 = vpop.f32.mrf.mxu0
    %v5895 = vadd.f32 %v5428, %v5894
    %v5896 = vpop.f32.mrf.mxu0
    %v5897 = vadd.f32 %v5424, %v5896
    %v5898 = vpop.f32.mrf.mxu0
    %v5899 = vadd.f32 %v5428, %v5898
    %5900 = vdwg.mxu0
    %5901 = vmatprep.subr.bf16.mxu0 0
    %5902 = vmatpush1.bf16.msra.mxu0 0
    %5903 = vmatprep.subr.bf16.mxu0 0
    %5904 = vmatpush1.bf16.msra.mxu0 0
    %5905 = vmatprep.subr.bf16.mxu0 0
    %5906 = vmatpush1.bf16.msra.mxu0 0
    %5907 = vmatprep.subr.bf16.mxu0 0
    %5908 = vmatpush1.bf16.msra.mxu0 0
    %5909 = vmatprep.subr.bf16.mxu0 0
    %5910 = vmatpush1.bf16.msra.mxu0 0
    %5911 = vmatprep.subr.bf16.mxu0 0
    %5912 = vmatpush1.bf16.msra.mxu0 0
    %5913 = vmatprep.subr.bf16.mxu0 %v5564
    %5914 = vmatpush1.bf16.msra.mxu0 %v5563
    %5915 = vmatprep.subr.bf16.mxu0 %v5548
    %5916 = vmatpush1.bf16.msra.mxu0 %v5547
    %5917 = vmatprep.subr.bf16.mxu0 0
    %5918 = vmatpush2.bf16.msra.mxu0 0
    %5919 = vmatprep.subr.bf16.mxu0 0
    %5920 = vmatpush2.bf16.msra.mxu0 0
    %5921 = vmatprep.subr.bf16.mxu0 0
    %5922 = vmatpush2.bf16.msra.mxu0 0
    %5923 = vmatprep.subr.bf16.mxu0 0
    %5924 = vmatpush2.bf16.msra.mxu0 0
    %5925 = vmatprep.subr.bf16.mxu0 0
    %5926 = vmatpush2.bf16.msra.mxu0 0
    %5927 = vmatprep.subr.bf16.mxu0 0
    %5928 = vmatpush2.bf16.msra.mxu0 0
    %5929 = vmatprep.subr.bf16.mxu0 0
    %5930 = vmatpush2.bf16.msra.mxu0 0
    %5931 = vmatprep.subr.bf16.mxu0 0
    %5932 = vmatpush2.bf16.msra.mxu0 0
    %5933 = vmatprep.mubr.bf16.mxu0 0
    %5934 = vmatmul.mubr.bf16.gmra.mxu0 %v5598
    %v5935 = vpop.f32.mrf.mxu0
    %v5936 = vadd.f32 %v5432, %v5935
    %v5937 = vpop.f32.mrf.mxu0
    %v5938 = vadd.f32 %v5436, %v5937
    %v5939 = vpop.f32.mrf.mxu0
    %v5940 = vadd.f32 %v5432, %v5939
    %v5941 = vpop.f32.mrf.mxu0
    %v5942 = vadd.f32 %v5436, %v5941
    %5943 = vdwg.mxu0
    %v5944 = vmax.f32 %v5635, 0.0
    %v5945 = vmax.f32 %v5637, 0.0
    %v5946 = vmax.f32 %v5678, 0.0
    %v5947 = vmax.f32 %v5680, 0.0
    %v5948 = vmax.f32 %v5721, 0.0
    %v5949 = vmax.f32 %v5723, 0.0
    %v5950 = vmax.f32 %v5764, 0.0
    %v5951 = vmax.f32 %v5766, 0.0
    %v5952 = vmax.f32 %v5807, 0.0
    %v5953 = vmax.f32 %v5809, 0.0
    %v5954 = vmax.f32 %v5850, 0.0
    %v5955 = vmax.f32 %v5852, 0.0
    %v5956 = vmax.f32 %v5893, 0.0
    %v5957 = vmax.f32 %v5895, 0.0
    %v5958 = vmax.f32 %v5936, 0.0
    %v5959 = vmax.f32 %v5938, 0.0
    %v5960 = vmax.f32 %v5639, 0.0
    %v5961 = vmax.f32 %v5641, 0.0
    %v5962 = vmax.f32 %v5682, 0.0
    %v5963 = vmax.f32 %v5684, 0.0
    %v5964 = vmax.f32 %v5725, 0.0
    %v5965 = vmax.f32 %v5727, 0.0
    %v5966 = vmax.f32 %v5768, 0.0
    %v5967 = vmax.f32 %v5770, 0.0
    %v5968 = vmax.f32 %v5811, 0.0
    %v5969 = vmax.f32 %v5813, 0.0
    %v5970 = vmax.f32 %v5854, 0.0
    %v5971 = vmax.f32 %v5856, 0.0
    %v5972 = vmax.f32 %v5897, 0.0
    %v5973 = vmax.f32 %v5899, 0.0
    %v5974 = vmax.f32 %v5940, 0.0
    %v5975 = vmax.f32 %v5942, 0.0
    %v5976 = vpack.c.bf16 %v5960, %v5944
    %v5977 = vpack.c.bf16 %v5961, %v5945
    %v5978 = vpack.c.bf16 %v5962, %v5946
    %v5979 = vpack.c.bf16 %v5963, %v5947
    %v5980 = vpack.c.bf16 %v5964, %v5948
    %v5981 = vpack.c.bf16 %v5965, %v5949
    %v5982 = vpack.c.bf16 %v5966, %v5950
    %v5983 = vpack.c.bf16 %v5967, %v5951
    %v5984 = vpack.c.bf16 %v5968, %v5952
    %v5985 = vpack.c.bf16 %v5969, %v5953
    %v5986 = vpack.c.bf16 %v5970, %v5954
    %v5987 = vpack.c.bf16 %v5971, %v5955
    %v5988 = vpack.c.bf16 %v5972, %v5956
    %v5989 = vpack.c.bf16 %v5973, %v5957
    %v5990 = vpack.c.bf16 %v5974, %v5958
    %v5991 = vpack.c.bf16 %v5975, %v5959
    %v5992 = vld [vmem:[#allocation14] sm:$0xff]
    %v5993 = vld [vmem:[#allocation14 + $0x8] sm:$0xff]
    %v5994 = vld [vmem:[#allocation14 + $0x10] sm:$0xff]
    %v5995 = vld [vmem:[#allocation14 + $0x18] sm:$0xff]
    %v5996 = vld [vmem:[#allocation14 + $0x20] sm:$0xff]
    %v5997 = vld [vmem:[#allocation14 + $0x28] sm:$0xff]
    %v5998 = vld [vmem:[#allocation14 + $0x30] sm:$0xff]
    %v5999 = vld [vmem:[#allocation14 + $0x38] sm:$0xff]
    %v6000 = vld [vmem:[#allocation14 + $0x40] sm:$0xff]
    %v6001 = vld [vmem:[#allocation14 + $0x48] sm:$0xff]
    %v6002 = vld [vmem:[#allocation14 + $0x50] sm:$0xff]
    %v6003 = vld [vmem:[#allocation14 + $0x58] sm:$0xff]
    %v6004 = vld [vmem:[#allocation14 + $0x60] sm:$0xff]
    %v6005 = vld [vmem:[#allocation14 + $0x68] sm:$0xff]
    %v6006 = vld [vmem:[#allocation14 + $0x70] sm:$0xff]
    %v6007 = vld [vmem:[#allocation14 + $0x78] sm:$0xff]
    %v6008 = vld [vmem:[#allocation14 + $0x80] sm:$0xff]
    %v6009 = vld [vmem:[#allocation14 + $0x88] sm:$0xff]
    %v6010 = vld [vmem:[#allocation14 + $0x90] sm:$0xff]
    %v6011 = vld [vmem:[#allocation14 + $0x98] sm:$0xff]
    %v6012 = vld [vmem:[#allocation14 + $0xa0] sm:$0xff]
    %v6013 = vld [vmem:[#allocation14 + $0xa8] sm:$0xff]
    %v6014 = vld [vmem:[#allocation14 + $0xb0] sm:$0xff]
    %v6015 = vld [vmem:[#allocation14 + $0xb8] sm:$0xff]
    %v6016 = vld [vmem:[#allocation14 + $0xc0] sm:$0xff]
    %v6017 = vld [vmem:[#allocation14 + $0xc8] sm:$0xff]
    %v6018 = vld [vmem:[#allocation14 + $0xd0] sm:$0xff]
    %v6019 = vld [vmem:[#allocation14 + $0xd8] sm:$0xff]
    %v6020 = vld [vmem:[#allocation14 + $0xe0] sm:$0xff]
    %v6021 = vld [vmem:[#allocation14 + $0xe8] sm:$0xff]
    %v6022 = vld [vmem:[#allocation14 + $0xf0] sm:$0xff]
    %v6023 = vld [vmem:[#allocation14 + $0xf8] sm:$0xff]
    %v6056 = vunpack.c.l.b16 %v5992
    %v6057 = vunpack.c.h.b16 %v5992
    %v6058 = vunpack.c.l.b16 %v5993
    %v6059 = vunpack.c.h.b16 %v5993
    %v6060 = vunpack.c.l.b16 %v5994
    %v6061 = vunpack.c.h.b16 %v5994
    %v6062 = vunpack.c.l.b16 %v5995
    %v6063 = vunpack.c.h.b16 %v5995
    %v6064 = vunpack.c.l.b16 %v5996
    %v6065 = vunpack.c.h.b16 %v5996
    %v6066 = vunpack.c.l.b16 %v5997
    %v6067 = vunpack.c.h.b16 %v5997
    %v6068 = vunpack.c.l.b16 %v5998
    %v6069 = vunpack.c.h.b16 %v5998
    %v6070 = vunpack.c.l.b16 %v5999
    %v6071 = vunpack.c.h.b16 %v5999
    %v6072 = vunpack.c.l.b16 %v6000
    %v6073 = vunpack.c.h.b16 %v6000
    %v6074 = vunpack.c.l.b16 %v6001
    %v6075 = vunpack.c.h.b16 %v6001
    %v6076 = vunpack.c.l.b16 %v6002
    %v6077 = vunpack.c.h.b16 %v6002
    %v6078 = vunpack.c.l.b16 %v6003
    %v6079 = vunpack.c.h.b16 %v6003
    %v6080 = vunpack.c.l.b16 %v6004
    %v6081 = vunpack.c.h.b16 %v6004
    %v6082 = vunpack.c.l.b16 %v6005
    %v6083 = vunpack.c.h.b16 %v6005
    %v6084 = vunpack.c.l.b16 %v6006
    %v6085 = vunpack.c.h.b16 %v6006
    %v6086 = vunpack.c.l.b16 %v6007
    %v6087 = vunpack.c.h.b16 %v6007
    %v6088 = vunpack.c.l.b16 %v6008
    %v6089 = vunpack.c.h.b16 %v6008
    %v6090 = vunpack.c.l.b16 %v6009
    %v6091 = vunpack.c.h.b16 %v6009
    %v6092 = vunpack.c.l.b16 %v6010
    %v6093 = vunpack.c.h.b16 %v6010
    %v6094 = vunpack.c.l.b16 %v6011
    %v6095 = vunpack.c.h.b16 %v6011
    %v6096 = vunpack.c.l.b16 %v6012
    %v6097 = vunpack.c.h.b16 %v6012
    %v6098 = vunpack.c.l.b16 %v6013
    %v6099 = vunpack.c.h.b16 %v6013
    %v6100 = vunpack.c.l.b16 %v6014
    %v6101 = vunpack.c.h.b16 %v6014
    %v6102 = vunpack.c.l.b16 %v6015
    %v6103 = vunpack.c.h.b16 %v6015
    %v6104 = vunpack.c.l.b16 %v6016
    %v6105 = vunpack.c.h.b16 %v6016
    %v6106 = vunpack.c.l.b16 %v6017
    %v6107 = vunpack.c.h.b16 %v6017
    %v6108 = vunpack.c.l.b16 %v6018
    %v6109 = vunpack.c.h.b16 %v6018
    %v6110 = vunpack.c.l.b16 %v6019
    %v6111 = vunpack.c.h.b16 %v6019
    %v6112 = vunpack.c.l.b16 %v6020
    %v6113 = vunpack.c.h.b16 %v6020
    %v6114 = vunpack.c.l.b16 %v6021
    %v6115 = vunpack.c.h.b16 %v6021
    %v6116 = vunpack.c.l.b16 %v6022
    %v6117 = vunpack.c.h.b16 %v6022
    %v6118 = vunpack.c.l.b16 %v6023
    %v6119 = vunpack.c.h.b16 %v6023
    %v6120 = vpack.c.b16 %v6072, %v6056
    %v6121 = vpack.c.b16 %v6073, %v6057
    %v6122 = vpack.c.b16 %v6074, %v6058
    %v6123 = vpack.c.b16 %v6075, %v6059
    %v6124 = vpack.c.b16 %v6076, %v6060
    %v6125 = vpack.c.b16 %v6077, %v6061
    %v6126 = vpack.c.b16 %v6078, %v6062
    %v6127 = vpack.c.b16 %v6079, %v6063
    %v6128 = vpack.c.b16 %v6080, %v6064
    %v6129 = vpack.c.b16 %v6081, %v6065
    %v6130 = vpack.c.b16 %v6082, %v6066
    %v6131 = vpack.c.b16 %v6083, %v6067
    %v6132 = vpack.c.b16 %v6084, %v6068
    %v6133 = vpack.c.b16 %v6085, %v6069
    %v6134 = vpack.c.b16 %v6086, %v6070
    %v6135 = vpack.c.b16 %v6087, %v6071
    %v6136 = vpack.c.b16 %v6104, %v6088
    %v6137 = vpack.c.b16 %v6105, %v6089
    %v6138 = vpack.c.b16 %v6106, %v6090
    %v6139 = vpack.c.b16 %v6107, %v6091
    %v6140 = vpack.c.b16 %v6108, %v6092
    %v6141 = vpack.c.b16 %v6109, %v6093
    %v6142 = vpack.c.b16 %v6110, %v6094
    %v6143 = vpack.c.b16 %v6111, %v6095
    %v6144 = vpack.c.b16 %v6112, %v6096
    %v6145 = vpack.c.b16 %v6113, %v6097
    %v6146 = vpack.c.b16 %v6114, %v6098
    %v6147 = vpack.c.b16 %v6115, %v6099
    %v6148 = vpack.c.b16 %v6116, %v6100
    %v6149 = vpack.c.b16 %v6117, %v6101
    %v6150 = vpack.c.b16 %v6118, %v6102
    %v6151 = vpack.c.b16 %v6119, %v6103
    %6184 = vmatprep.subr.bf16.mxu0 0
    %6185 = vmatpush1.bf16.xpose.msra.mxu0 0
    %6186 = vmatprep.subr.bf16.mxu0 0
    %6187 = vmatpush1.bf16.xpose.msra.mxu0 0
    %6188 = vmatprep.subr.bf16.mxu0 0
    %6189 = vmatpush1.bf16.xpose.msra.mxu0 0
    %6190 = vmatprep.subr.bf16.mxu0 0
    %6191 = vmatpush1.bf16.xpose.msra.mxu0 0
    %6192 = vmatprep.subr.bf16.mxu0 0
    %6193 = vmatpush1.bf16.xpose.msra.mxu0 0
    %6194 = vmatprep.subr.bf16.mxu0 0
    %6195 = vmatpush1.bf16.xpose.msra.mxu0 0
    %6196 = vmatprep.subr.bf16.mxu0 %v6137
    %6197 = vmatpush1.bf16.xpose.msra.mxu0 %v6136
    %6198 = vmatprep.subr.bf16.mxu0 %v6121
    %6199 = vmatpush1.bf16.xpose.msra.mxu0 %v6120
    %6200 = vmatprep.subr.bf16.mxu0 0
    %6201 = vmatpush2.bf16.xpose.msra.mxu0 0
    %6202 = vmatprep.subr.bf16.mxu0 0
    %6203 = vmatpush2.bf16.xpose.msra.mxu0 0
    %6204 = vmatprep.subr.bf16.mxu0 0
    %6205 = vmatpush2.bf16.xpose.msra.mxu0 0
    %6206 = vmatprep.subr.bf16.mxu0 0
    %6207 = vmatpush2.bf16.xpose.msra.mxu0 0
    %6208 = vmatprep.subr.bf16.mxu0 0
    %6209 = vmatpush2.bf16.xpose.msra.mxu0 0
    %6210 = vmatprep.subr.bf16.mxu0 0
    %6211 = vmatpush2.bf16.xpose.msra.mxu0 0
    %6212 = vmatprep.subr.bf16.mxu0 0
    %6213 = vmatpush2.bf16.xpose.msra.mxu0 0
    %6214 = vmatprep.subr.bf16.mxu0 0
    %6215 = vmatpush2.bf16.xpose.msra.mxu0 0
    %6216 = vmatprep.mubr.bf16.mxu0 %v5977
    %6217 = vmatmul.mubr.bf16.gmra.mxu0 %v5976
    %v6218 = vpop.f32.mrf.mxu0
    %v6219 = vadd.f32 0.0, %v6218
    %v6220 = vpop.f32.mrf.mxu0
    %v6221 = vpop.f32.mrf.mxu0
    %v6222 = vadd.f32 0.0, %v6221
    %v6223 = vpop.f32.mrf.mxu0
    %6224 = vdwg.mxu0
    %6225 = vmatprep.subr.bf16.mxu0 0
    %6226 = vmatpush1.bf16.xpose.msra.mxu0 0
    %6227 = vmatprep.subr.bf16.mxu0 0
    %6228 = vmatpush1.bf16.xpose.msra.mxu0 0
    %6229 = vmatprep.subr.bf16.mxu0 0
    %6230 = vmatpush1.bf16.xpose.msra.mxu0 0
    %6231 = vmatprep.subr.bf16.mxu0 0
    %6232 = vmatpush1.bf16.xpose.msra.mxu0 0
    %6233 = vmatprep.subr.bf16.mxu0 0
    %6234 = vmatpush1.bf16.xpose.msra.mxu0 0
    %6235 = vmatprep.subr.bf16.mxu0 0
    %6236 = vmatpush1.bf16.xpose.msra.mxu0 0
    %6237 = vmatprep.subr.bf16.mxu0 %v6139
    %6238 = vmatpush1.bf16.xpose.msra.mxu0 %v6138
    %6239 = vmatprep.subr.bf16.mxu0 %v6123
    %6240 = vmatpush1.bf16.xpose.msra.mxu0 %v6122
    %6241 = vmatprep.subr.bf16.mxu0 0
    %6242 = vmatpush2.bf16.xpose.msra.mxu0 0
    %6243 = vmatprep.subr.bf16.mxu0 0
    %6244 = vmatpush2.bf16.xpose.msra.mxu0 0
    %6245 = vmatprep.subr.bf16.mxu0 0
    %6246 = vmatpush2.bf16.xpose.msra.mxu0 0
    %6247 = vmatprep.subr.bf16.mxu0 0
    %6248 = vmatpush2.bf16.xpose.msra.mxu0 0
    %6249 = vmatprep.subr.bf16.mxu0 0
    %6250 = vmatpush2.bf16.xpose.msra.mxu0 0
    %6251 = vmatprep.subr.bf16.mxu0 0
    %6252 = vmatpush2.bf16.xpose.msra.mxu0 0
    %6253 = vmatprep.subr.bf16.mxu0 0
    %6254 = vmatpush2.bf16.xpose.msra.mxu0 0
    %6255 = vmatprep.subr.bf16.mxu0 0
    %6256 = vmatpush2.bf16.xpose.msra.mxu0 0
    %6257 = vmatprep.mubr.bf16.mxu0 %v5979
    %6258 = vmatmul.mubr.bf16.gmra.mxu0 %v5978
    %v6259 = vpop.f32.mrf.mxu0
    %v6260 = vadd.f32 %v6219, %v6259
    %v6261 = vpop.f32.mrf.mxu0
    %v6262 = vpop.f32.mrf.mxu0
    %v6263 = vadd.f32 %v6222, %v6262
    %v6264 = vpop.f32.mrf.mxu0
    %6265 = vdwg.mxu0
    %6266 = vmatprep.subr.bf16.mxu0 0
    %6267 = vmatpush1.bf16.xpose.msra.mxu0 0
    %6268 = vmatprep.subr.bf16.mxu0 0
    %6269 = vmatpush1.bf16.xpose.msra.mxu0 0
    %6270 = vmatprep.subr.bf16.mxu0 0
    %6271 = vmatpush1.bf16.xpose.msra.mxu0 0
    %6272 = vmatprep.subr.bf16.mxu0 0
    %6273 = vmatpush1.bf16.xpose.msra.mxu0 0
    %6274 = vmatprep.subr.bf16.mxu0 0
    %6275 = vmatpush1.bf16.xpose.msra.mxu0 0
    %6276 = vmatprep.subr.bf16.mxu0 0
    %6277 = vmatpush1.bf16.xpose.msra.mxu0 0
    %6278 = vmatprep.subr.bf16.mxu0 %v6141
    %6279 = vmatpush1.bf16.xpose.msra.mxu0 %v6140
    %6280 = vmatprep.subr.bf16.mxu0 %v6125
    %6281 = vmatpush1.bf16.xpose.msra.mxu0 %v6124
    %6282 = vmatprep.subr.bf16.mxu0 0
    %6283 = vmatpush2.bf16.xpose.msra.mxu0 0
    %6284 = vmatprep.subr.bf16.mxu0 0
    %6285 = vmatpush2.bf16.xpose.msra.mxu0 0
    %6286 = vmatprep.subr.bf16.mxu0 0
    %6287 = vmatpush2.bf16.xpose.msra.mxu0 0
    %6288 = vmatprep.subr.bf16.mxu0 0
    %6289 = vmatpush2.bf16.xpose.msra.mxu0 0
    %6290 = vmatprep.subr.bf16.mxu0 0
    %6291 = vmatpush2.bf16.xpose.msra.mxu0 0
    %6292 = vmatprep.subr.bf16.mxu0 0
    %6293 = vmatpush2.bf16.xpose.msra.mxu0 0
    %6294 = vmatprep.subr.bf16.mxu0 0
    %6295 = vmatpush2.bf16.xpose.msra.mxu0 0
    %6296 = vmatprep.subr.bf16.mxu0 0
    %6297 = vmatpush2.bf16.xpose.msra.mxu0 0
    %6298 = vmatprep.mubr.bf16.mxu0 %v5981
    %6299 = vmatmul.mubr.bf16.gmra.mxu0 %v5980
    %v6300 = vpop.f32.mrf.mxu0
    %v6301 = vadd.f32 %v6260, %v6300
    %v6302 = vpop.f32.mrf.mxu0
    %v6303 = vpop.f32.mrf.mxu0
    %v6304 = vadd.f32 %v6263, %v6303
    %v6305 = vpop.f32.mrf.mxu0
    %6306 = vdwg.mxu0
    %6307 = vmatprep.subr.bf16.mxu0 0
    %6308 = vmatpush1.bf16.xpose.msra.mxu0 0
    %6309 = vmatprep.subr.bf16.mxu0 0
    %6310 = vmatpush1.bf16.xpose.msra.mxu0 0
    %6311 = vmatprep.subr.bf16.mxu0 0
    %6312 = vmatpush1.bf16.xpose.msra.mxu0 0
    %6313 = vmatprep.subr.bf16.mxu0 0
    %6314 = vmatpush1.bf16.xpose.msra.mxu0 0
    %6315 = vmatprep.subr.bf16.mxu0 0
    %6316 = vmatpush1.bf16.xpose.msra.mxu0 0
    %6317 = vmatprep.subr.bf16.mxu0 0
    %6318 = vmatpush1.bf16.xpose.msra.mxu0 0
    %6319 = vmatprep.subr.bf16.mxu0 %v6143
    %6320 = vmatpush1.bf16.xpose.msra.mxu0 %v6142
    %6321 = vmatprep.subr.bf16.mxu0 %v6127
    %6322 = vmatpush1.bf16.xpose.msra.mxu0 %v6126
    %6323 = vmatprep.subr.bf16.mxu0 0
    %6324 = vmatpush2.bf16.xpose.msra.mxu0 0
    %6325 = vmatprep.subr.bf16.mxu0 0
    %6326 = vmatpush2.bf16.xpose.msra.mxu0 0
    %6327 = vmatprep.subr.bf16.mxu0 0
    %6328 = vmatpush2.bf16.xpose.msra.mxu0 0
    %6329 = vmatprep.subr.bf16.mxu0 0
    %6330 = vmatpush2.bf16.xpose.msra.mxu0 0
    %6331 = vmatprep.subr.bf16.mxu0 0
    %6332 = vmatpush2.bf16.xpose.msra.mxu0 0
    %6333 = vmatprep.subr.bf16.mxu0 0
    %6334 = vmatpush2.bf16.xpose.msra.mxu0 0
    %6335 = vmatprep.subr.bf16.mxu0 0
    %6336 = vmatpush2.bf16.xpose.msra.mxu0 0
    %6337 = vmatprep.subr.bf16.mxu0 0
    %6338 = vmatpush2.bf16.xpose.msra.mxu0 0
    %6339 = vmatprep.mubr.bf16.mxu0 %v5983
    %6340 = vmatmul.mubr.bf16.gmra.mxu0 %v5982
    %v6341 = vpop.f32.mrf.mxu0
    %v6342 = vadd.f32 %v6301, %v6341
    %v6343 = vpop.f32.mrf.mxu0
    %v6344 = vpop.f32.mrf.mxu0
    %v6345 = vadd.f32 %v6304, %v6344
    %v6346 = vpop.f32.mrf.mxu0
    %6347 = vdwg.mxu0
    %6348 = vmatprep.subr.bf16.mxu0 0
    %6349 = vmatpush1.bf16.xpose.msra.mxu0 0
    %6350 = vmatprep.subr.bf16.mxu0 0
    %6351 = vmatpush1.bf16.xpose.msra.mxu0 0
    %6352 = vmatprep.subr.bf16.mxu0 0
    %6353 = vmatpush1.bf16.xpose.msra.mxu0 0
    %6354 = vmatprep.subr.bf16.mxu0 0
    %6355 = vmatpush1.bf16.xpose.msra.mxu0 0
    %6356 = vmatprep.subr.bf16.mxu0 0
    %6357 = vmatpush1.bf16.xpose.msra.mxu0 0
    %6358 = vmatprep.subr.bf16.mxu0 0
    %6359 = vmatpush1.bf16.xpose.msra.mxu0 0
    %6360 = vmatprep.subr.bf16.mxu0 %v6145
    %6361 = vmatpush1.bf16.xpose.msra.mxu0 %v6144
    %6362 = vmatprep.subr.bf16.mxu0 %v6129
    %6363 = vmatpush1.bf16.xpose.msra.mxu0 %v6128
    %6364 = vmatprep.subr.bf16.mxu0 0
    %6365 = vmatpush2.bf16.xpose.msra.mxu0 0
    %6366 = vmatprep.subr.bf16.mxu0 0
    %6367 = vmatpush2.bf16.xpose.msra.mxu0 0
    %6368 = vmatprep.subr.bf16.mxu0 0
    %6369 = vmatpush2.bf16.xpose.msra.mxu0 0
    %6370 = vmatprep.subr.bf16.mxu0 0
    %6371 = vmatpush2.bf16.xpose.msra.mxu0 0
    %6372 = vmatprep.subr.bf16.mxu0 0
    %6373 = vmatpush2.bf16.xpose.msra.mxu0 0
    %6374 = vmatprep.subr.bf16.mxu0 0
    %6375 = vmatpush2.bf16.xpose.msra.mxu0 0
    %6376 = vmatprep.subr.bf16.mxu0 0
    %6377 = vmatpush2.bf16.xpose.msra.mxu0 0
    %6378 = vmatprep.subr.bf16.mxu0 0
    %6379 = vmatpush2.bf16.xpose.msra.mxu0 0
    %6380 = vmatprep.mubr.bf16.mxu0 %v5985
    %6381 = vmatmul.mubr.bf16.gmra.mxu0 %v5984
    %v6382 = vpop.f32.mrf.mxu0
    %v6383 = vadd.f32 %v6342, %v6382
    %v6384 = vpop.f32.mrf.mxu0
    %v6385 = vpop.f32.mrf.mxu0
    %v6386 = vadd.f32 %v6345, %v6385
    %v6387 = vpop.f32.mrf.mxu0
    %6388 = vdwg.mxu0
    %6389 = vmatprep.subr.bf16.mxu0 0
    %6390 = vmatpush1.bf16.xpose.msra.mxu0 0
    %6391 = vmatprep.subr.bf16.mxu0 0
    %6392 = vmatpush1.bf16.xpose.msra.mxu0 0
    %6393 = vmatprep.subr.bf16.mxu0 0
    %6394 = vmatpush1.bf16.xpose.msra.mxu0 0
    %6395 = vmatprep.subr.bf16.mxu0 0
    %6396 = vmatpush1.bf16.xpose.msra.mxu0 0
    %6397 = vmatprep.subr.bf16.mxu0 0
    %6398 = vmatpush1.bf16.xpose.msra.mxu0 0
    %6399 = vmatprep.subr.bf16.mxu0 0
    %6400 = vmatpush1.bf16.xpose.msra.mxu0 0
    %6401 = vmatprep.subr.bf16.mxu0 %v6147
    %6402 = vmatpush1.bf16.xpose.msra.mxu0 %v6146
    %6403 = vmatprep.subr.bf16.mxu0 %v6131
    %6404 = vmatpush1.bf16.xpose.msra.mxu0 %v6130
    %6405 = vmatprep.subr.bf16.mxu0 0
    %6406 = vmatpush2.bf16.xpose.msra.mxu0 0
    %6407 = vmatprep.subr.bf16.mxu0 0
    %6408 = vmatpush2.bf16.xpose.msra.mxu0 0
    %6409 = vmatprep.subr.bf16.mxu0 0
    %6410 = vmatpush2.bf16.xpose.msra.mxu0 0
    %6411 = vmatprep.subr.bf16.mxu0 0
    %6412 = vmatpush2.bf16.xpose.msra.mxu0 0
    %6413 = vmatprep.subr.bf16.mxu0 0
    %6414 = vmatpush2.bf16.xpose.msra.mxu0 0
    %6415 = vmatprep.subr.bf16.mxu0 0
    %6416 = vmatpush2.bf16.xpose.msra.mxu0 0
    %6417 = vmatprep.subr.bf16.mxu0 0
    %6418 = vmatpush2.bf16.xpose.msra.mxu0 0
    %6419 = vmatprep.subr.bf16.mxu0 0
    %6420 = vmatpush2.bf16.xpose.msra.mxu0 0
    %6421 = vmatprep.mubr.bf16.mxu0 %v5987
    %6422 = vmatmul.mubr.bf16.gmra.mxu0 %v5986
    %v6423 = vpop.f32.mrf.mxu0
    %v6424 = vadd.f32 %v6383, %v6423
    %v6425 = vpop.f32.mrf.mxu0
    %v6426 = vpop.f32.mrf.mxu0
    %v6427 = vadd.f32 %v6386, %v6426
    %v6428 = vpop.f32.mrf.mxu0
    %6429 = vdwg.mxu0
    %6430 = vmatprep.subr.bf16.mxu0 0
    %6431 = vmatpush1.bf16.xpose.msra.mxu0 0
    %6432 = vmatprep.subr.bf16.mxu0 0
    %6433 = vmatpush1.bf16.xpose.msra.mxu0 0
    %6434 = vmatprep.subr.bf16.mxu0 0
    %6435 = vmatpush1.bf16.xpose.msra.mxu0 0
    %6436 = vmatprep.subr.bf16.mxu0 0
    %6437 = vmatpush1.bf16.xpose.msra.mxu0 0
    %6438 = vmatprep.subr.bf16.mxu0 0
    %6439 = vmatpush1.bf16.xpose.msra.mxu0 0
    %6440 = vmatprep.subr.bf16.mxu0 0
    %6441 = vmatpush1.bf16.xpose.msra.mxu0 0
    %6442 = vmatprep.subr.bf16.mxu0 %v6149
    %6443 = vmatpush1.bf16.xpose.msra.mxu0 %v6148
    %6444 = vmatprep.subr.bf16.mxu0 %v6133
    %6445 = vmatpush1.bf16.xpose.msra.mxu0 %v6132
    %6446 = vmatprep.subr.bf16.mxu0 0
    %6447 = vmatpush2.bf16.xpose.msra.mxu0 0
    %6448 = vmatprep.subr.bf16.mxu0 0
    %6449 = vmatpush2.bf16.xpose.msra.mxu0 0
    %6450 = vmatprep.subr.bf16.mxu0 0
    %6451 = vmatpush2.bf16.xpose.msra.mxu0 0
    %6452 = vmatprep.subr.bf16.mxu0 0
    %6453 = vmatpush2.bf16.xpose.msra.mxu0 0
    %6454 = vmatprep.subr.bf16.mxu0 0
    %6455 = vmatpush2.bf16.xpose.msra.mxu0 0
    %6456 = vmatprep.subr.bf16.mxu0 0
    %6457 = vmatpush2.bf16.xpose.msra.mxu0 0
    %6458 = vmatprep.subr.bf16.mxu0 0
    %6459 = vmatpush2.bf16.xpose.msra.mxu0 0
    %6460 = vmatprep.subr.bf16.mxu0 0
    %6461 = vmatpush2.bf16.xpose.msra.mxu0 0
    %6462 = vmatprep.mubr.bf16.mxu0 %v5989
    %6463 = vmatmul.mubr.bf16.gmra.mxu0 %v5988
    %v6464 = vpop.f32.mrf.mxu0
    %v6465 = vadd.f32 %v6424, %v6464
    %v6466 = vpop.f32.mrf.mxu0
    %v6467 = vpop.f32.mrf.mxu0
    %v6468 = vadd.f32 %v6427, %v6467
    %v6469 = vpop.f32.mrf.mxu0
    %6470 = vdwg.mxu0
    %6471 = vmatprep.subr.bf16.mxu0 0
    %6472 = vmatpush1.bf16.xpose.msra.mxu0 0
    %6473 = vmatprep.subr.bf16.mxu0 0
    %6474 = vmatpush1.bf16.xpose.msra.mxu0 0
    %6475 = vmatprep.subr.bf16.mxu0 0
    %6476 = vmatpush1.bf16.xpose.msra.mxu0 0
    %6477 = vmatprep.subr.bf16.mxu0 0
    %6478 = vmatpush1.bf16.xpose.msra.mxu0 0
    %6479 = vmatprep.subr.bf16.mxu0 0
    %6480 = vmatpush1.bf16.xpose.msra.mxu0 0
    %6481 = vmatprep.subr.bf16.mxu0 0
    %6482 = vmatpush1.bf16.xpose.msra.mxu0 0
    %6483 = vmatprep.subr.bf16.mxu0 %v6151
    %6484 = vmatpush1.bf16.xpose.msra.mxu0 %v6150
    %6485 = vmatprep.subr.bf16.mxu0 %v6135
    %6486 = vmatpush1.bf16.xpose.msra.mxu0 %v6134
    %6487 = vmatprep.subr.bf16.mxu0 0
    %6488 = vmatpush2.bf16.xpose.msra.mxu0 0
    %6489 = vmatprep.subr.bf16.mxu0 0
    %6490 = vmatpush2.bf16.xpose.msra.mxu0 0
    %6491 = vmatprep.subr.bf16.mxu0 0
    %6492 = vmatpush2.bf16.xpose.msra.mxu0 0
    %6493 = vmatprep.subr.bf16.mxu0 0
    %6494 = vmatpush2.bf16.xpose.msra.mxu0 0
    %6495 = vmatprep.subr.bf16.mxu0 0
    %6496 = vmatpush2.bf16.xpose.msra.mxu0 0
    %6497 = vmatprep.subr.bf16.mxu0 0
    %6498 = vmatpush2.bf16.xpose.msra.mxu0 0
    %6499 = vmatprep.subr.bf16.mxu0 0
    %6500 = vmatpush2.bf16.xpose.msra.mxu0 0
    %6501 = vmatprep.subr.bf16.mxu0 0
    %6502 = vmatpush2.bf16.xpose.msra.mxu0 0
    %6503 = vmatprep.mubr.bf16.mxu0 %v5991
    %6504 = vmatmul.mubr.bf16.gmra.mxu0 %v5990
    %v6505 = vpop.f32.mrf.mxu0
    %v6506 = vadd.f32 %v6465, %v6505
    %v6507 = vpop.f32.mrf.mxu0
    %v6508 = vpop.f32.mrf.mxu0
    %v6509 = vadd.f32 %v6468, %v6508
    %v6510 = vpop.f32.mrf.mxu0
    %6511 = vdwg.mxu0
    %v6512 = vadd.f32 %v5262, %v6506
    %v6513 = vadd.f32 %v5263, %v6509
    %v6514 = vlaneseq
    %v6515 = vshrl.u32 %v6514, 7
    %v6516 = vsub.s32 4, %v6515
    %v6517 = vrot.slane %v142, %v6516
    %v6518 = vadd.f32 %v6512, %v6517
    %v6519 = vadd.f32 %v6513, %v6517
    %6520 = vst.msk [vmem:[#allocation16] sm:$0xff] %vm157, %v6518
    %6521 = vst.msk [vmem:[#allocation16 + $0x8] sm:$0xff] %vm157, %v6519
    // Predicated region
    $region66: #{tpu_custom_call.1} parent=1 // pred_check
      _
    $region67: #{tpu_custom_call.1} parent=1 // pred_check_branch
      %6523 = sbr.rel (0) target = $region69
    $region68: #{tpu_custom_call.1} parent=1 // pred_region
      %s6525 = ssub.s32 256, 256
      %6526 = vsyncadd [#allocation4], %s6525
      %s6527 = sshll.u32 [#allocation16], 4
      %s6528 = int_to_ptr.vmem [resolvable:$true] %s6527
      %6533 = dma.vmem_to_hbm [thread:$0]  %s6528, 256, %s8, [#allocation4], 128, 128, 8
    $region69: #{tpu_custom_call.1} parent=1 // pred_fallthru
      _
    // Predicated region
    $region70: #{tpu_custom_call.1} parent=1 // pred_check
      _
    $region71: #{tpu_custom_call.1} parent=1 // pred_check_branch
      %6535 = sbr.rel (0) target = $region73
    $region72: #{tpu_custom_call.1} parent=1 // pred_region
      %6536 = dma.done [#allocation4], 256
    $region73: #{tpu_custom_call.1} parent=1 // pred_fallthru
      _
    %6537 = vsyncpa [#allocation3], 1
    %6538 = vsyncpa [#allocation6], 1
    %6539 = vsyncpa [#allocation9], 1
    %6540 = vsyncpa [#allocation12], 1
    %6541 = vsyncpa [#allocation15], 1
    %6542 = vsyncpa [#allocation4], 1

</llo_original>
